<compile_context>
chip_gen: v6e
topology: v6e:2x2x1
jax: 0.10.0
libtpu: 0.0.40
codegen_flags: <defaults>
</compile_context>

<pallas_src>
import functools

import jax
import jax.numpy as jnp
from jax.experimental import pallas as pl
from jax.experimental.pallas import tpu as pltpu


def _pick_tile(total: int, target: int) -> int:
    """Largest divisor of `total` that is <= target and a multiple of 8.

    Falls back to `total` (single tile) if no such divisor exists.
    """
    if total <= target:
        return total
    for t in range(target, 7, -1):
        if total % t == 0 and t % 8 == 0:
            return t
    return total


# ---------------------------------------------------------------------------
# Fused Pallas kernel (one batch element per grid step)
# ---------------------------------------------------------------------------
def _nl_block_kernel(x_ref, wv_ref, sv_ref, bv_ref, ww_ref, sw_ref, bw_ref,
                     o_ref, *, H, W, C, TQ, TKV):
    """Fused NL_Block forward for ONE batch element.

    x_ref  : (1, H, W, C)  bf16  input (conv_v input, query == key)
    w*_ref : (3, 3, C, C)  bf16  conv weights (HWIO)
    s*/b*  : (1, C)        f32   folded BN scale / bias (conv bias included)
    o_ref  : (1, H, W, C)  f32   output
    """
    HW = H * W
    f32, bf16 = jnp.float32, jnp.bfloat16

    x_img = x_ref[0]                           # (H, W, C) bf16
    xf_bf = x_img.reshape(HW, C)               # (HW, C) bf16  (query == key)
    xf_f32 = xf_bf.astype(f32)                 # f32 copy used by the conv taps

    # Pixel coordinates of every flattened-spatial row; used to mask the
    # wrap-around rows produced by the circular roll in the convs.
    y_ids = jax.lax.broadcasted_iota(jnp.int32, (H, W, C), 0).reshape(HW, C)
    x_ids = jax.lax.broadcasted_iota(jnp.int32, (H, W, C), 1).reshape(HW, C)

    def conv3x3_bn(feat_f32, w_ref, scale_ref, bias_ref, relu):
        """3x3 SAME conv + folded BN (+ optional ReLU): (HW, C) f32 -> (HW, C) f32.

        Nine shifted matmuls.  The shift is a circular roll along the flattened
        spatial axis (XLU) + a border mask (VPU) -> no halo scratch and no
        unaligned ref stores.  bf16 MXU operands, f32 accumulation.
        """
        acc = jnp.zeros((HW, C), f32)
        for dy in range(3):
            oy = dy - 1
            for dx in range(3):
                ox = dx - 1
                d = oy * W + ox                       # flattened neighbor offset
                if d == 0:
                    sh = feat_f32
                else:
                    sh = pltpu.roll(feat_f32, shift=(-d) % HW, axis=0)
                valid = ((y_ids >= -oy) & (y_ids < H - oy) &
                         (x_ids >= -ox) & (x_ids < W - ox))
                tap = jnp.where(valid, sh, 0.0).astype(bf16)
                acc = acc + jnp.dot(tap, w_ref[dy, dx],
                                    preferred_element_type=f32)
        y = acc * scale_ref[...] + bias_ref[...]
        return jnp.maximum(y, 0.0) if relu else y

    # ---- value = BN(conv_v(x)); stays in VMEM, never written to HBM --------
    value = conv3x3_bn(xf_f32, wv_ref, sv_ref, bv_ref, relu=False).astype(bf16)

    # ---- non-local attention: softmax(Q K^T / sqrt(C)) @ V ------------------
    # Flash-style online softmax over KV tiles; (HW, HW) never materialized.
    inv_sqrt_c = float(C) ** -0.5
    n_q, n_kv = HW // TQ, HW // TKV
    ctx_tiles = []
    for qi in range(n_q):
        q = xf_bf[qi * TQ:(qi + 1) * TQ, :]                  # (TQ, C) bf16
        m = jnp.full((TQ, 1), -jnp.inf, f32)
        l = jnp.zeros((TQ, 1), f32)
        acc = jnp.zeros((TQ, C), f32)
        for ki in range(n_kv):
            k = xf_bf[ki * TKV:(ki + 1) * TKV, :]            # (TKV, C) bf16
            v = value[ki * TKV:(ki + 1) * TKV, :]            # (TKV, C) bf16
            # Contract channel dims directly (no explicit transpose of K).
            s = jax.lax.dot_general(
                q, k, dimension_numbers=(((1,), (1,)), ((), ())),
                preferred_element_type=f32) * inv_sqrt_c     # (TQ, TKV) f32
            m_new = jnp.maximum(m, jnp.max(s, axis=-1, keepdims=True))
            alpha = jnp.exp(m - m_new)
            p = jnp.exp(s - m_new)
            l = alpha * l + jnp.sum(p, axis=-1, keepdims=True)
            acc = alpha * acc + jnp.dot(p.astype(bf16), v,
                                        preferred_element_type=f32)
            m = m_new
        # Softmax denominator via EUP reciprocal (free slot) instead of divide.
        ctx_tiles.append(acc * pl.reciprocal(l, approx=True))
    ctx = ctx_tiles[0] if n_q == 1 else jnp.concatenate(ctx_tiles, axis=0)

    # ---- out = ReLU(BN(conv_w(ctx))) ----------------------------------------
    out = conv3x3_bn(ctx, ww_ref, sw_ref, bw_ref, relu=True)
    o_ref[0] = out.reshape(H, W, C)


# ---------------------------------------------------------------------------
# Wrapper
# ---------------------------------------------------------------------------
def nl_block_apply(x_nchw, p):
    """Forward pass of NL_Block. Input/output: NCHW float32."""
    N, C, H, W = x_nchw.shape
    HW = H * W
    TQ = _pick_tile(HW, 512)      # query tile (flattened spatial)
    TKV = _pick_tile(HW, 512)     # key/value tile (flattened spatial)

    # NCHW -> NHWC + bf16 cast (one fused XLA pass; halves kernel DMA bytes).
    x = jnp.transpose(x_nchw, (0, 2, 3, 1)).astype(jnp.bfloat16)

    kern = functools.partial(_nl_block_kernel, H=H, W=W, C=C, TQ=TQ, TKV=TKV)
    img_spec = pl.BlockSpec((1, H, W, C), lambda n: (n, 0, 0, 0))
    w_spec = pl.BlockSpec((3, 3, C, C), lambda n: (0, 0, 0, 0))
    vec_spec = pl.BlockSpec((1, C), lambda n: (0, 0))

    out = pl.pallas_call(
        kern,
        out_shape=jax.ShapeDtypeStruct((N, H, W, C), jnp.float32),
        grid=(N,),
        in_specs=[img_spec, w_spec, vec_spec, vec_spec,
                  w_spec, vec_spec, vec_spec],
        out_specs=img_spec,
        compiler_params=pltpu.CompilerParams(
            dimension_semantics=("parallel",),
            vmem_limit_bytes=64 * 1024 * 1024,   # within v7x's 64 MiB physical VMEM
        ),
    )(x,
      p["wv"].astype(jnp.bfloat16), p["sv"].reshape(1, C), p["bv"].reshape(1, C),
      p["ww"].astype(jnp.bfloat16), p["sw"].reshape(1, C), p["bw"].reshape(1, C))

    return jnp.transpose(out, (0, 3, 1, 2))      # back to NCHW


# ---------------------------------------------------------------------------
# Deterministic parameter init (Conv2d bias + SyncBatchNorm folded to
# scale/bias; BN uses eval-style stats running_mean=0, running_var=1).
# TODO(synk): SyncBatchNorm's cross-device statistics sync (training mode) has
# no per-kernel equivalent; eval-mode folded BN is implemented instead.
# ---------------------------------------------------------------------------
def init_params(key, C):
    eps = 1e-5
    k1, k2, k3, k4 = jax.random.split(key, 4)

    def make(kw, kb, idx):
        w = 0.1 * jax.random.normal(kw, (3, 3, C, C), jnp.float32)          # HWIO
        cb = 0.05 * jax.random.normal(kb, (C,), jnp.float32)                 # conv bias
        gamma = 1.0 + 0.1 * jnp.arange(C, dtype=jnp.float32) + 0.01 * idx    # BN weight
        beta = 0.02 * jnp.arange(C, dtype=jnp.float32) - 0.01 * idx          # BN bias
        scale = gamma / jnp.sqrt(1.0 + eps)
        bias = scale * cb + beta
        return w, scale, bias

    wv, sv, bv = make(k1, k2, 0)
    ww, sw, bw = make(k3, k4, 1)
    return dict(wv=wv, sv=sv, bv=bv, ww=ww, sw=sw, bw=bw)


# ---------------------------------------------------------------------------
# Pure-JAX f32 reference (sanity check)
# ---------------------------------------------------------------------------
def nl_block_reference(x_nchw, p):
    N, C, H, W = x_nchw.shape
    x = jnp.transpose(x_nchw, (0, 2, 3, 1)).astype(jnp.float32)

    def conv(xi, w, s, b, relu):
        y = jax.lax.conv_general_dilated(
            xi, w, (1, 1), "SAME", dimension_numbers=("NHWC", "HWIO", "NHWC"))
        y = y * s + b
        return jnp.maximum(y, 0.0) if relu else y

    value = conv(x, p["wv"], p["sv"], p["bv"], False)
    q = x.reshape(N, H * W, C)
    sim = jnp.einsum("nic,njc->nij", q, q) * (C ** -0.5)
    sim = jax.nn.softmax(sim, axis=-1)
    ctx = jnp.einsum("nij,njc->nic", sim, value.reshape(N, H * W, C))
    out = conv(ctx.reshape(N, H, W, C), p["ww"], p["sw"], p["bw"], True)
    return jnp.transpose(out, (0, 3, 1, 2))


if __name__ == "__main__":
    N, C, H, W = 2, 4, 16, 16
    key = jax.random.PRNGKey(0)
    kx, kp = jax.random.split(key)
    x = jax.random.normal(kx, (N, C, H, W), jnp.float32)
    params = init_params(kp, C)

    out = jax.block_until_ready(jax.jit(nl_block_apply)(x, params))
    ref = jax.block_until_ready(nl_block_reference(x, params))

    assert out.shape == (N, C, H, W)
    max_err = float(jnp.max(jnp.abs(out - ref)))
    # Kernel uses bf16 MXU operands (f32 accumulation) + approx reciprocal,
    # so compare against the pure-f32 reference with a matching tolerance.
    assert jnp.allclose(out, ref, rtol=3e-2, atol=3e-2), f"max abs err {max_err}"
    print("KERNEL_OK")
</pallas_src>

<mosaic_0001>
module attributes {stable_mosaic.version = 11 : i64} {
  func.func @_nl_block_kernel(%arg0: i32, %arg1: memref<1x16x16x4xbf16, #tpu.memory_space<vmem>>, %arg2: memref<3x3x4x4xbf16, #tpu.memory_space<vmem>>, %arg3: memref<1x4xf32, #tpu.memory_space<vmem>>, %arg4: memref<1x4xf32, #tpu.memory_space<vmem>>, %arg5: memref<3x3x4x4xbf16, #tpu.memory_space<vmem>>, %arg6: memref<1x4xf32, #tpu.memory_space<vmem>>, %arg7: memref<1x4xf32, #tpu.memory_space<vmem>>, %arg8: memref<1x16x16x4xf32, #tpu.memory_space<vmem>>) attributes {dimension_semantics = [#tpu.dimension_semantics<parallel>], iteration_bounds = array<i64: 2>, scalar_prefetch = 0 : i64, scratch_operands = 0 : i64, tpu.core_type = #tpu.core_type<tc>, window_params = [{transform_indices = @transform_0, window_bounds = array<i64: 1, 16, 16, 4>}, {pipeline_mode = #tpu.pipeline_mode<synchronous>, transform_indices = @transform_1, window_bounds = array<i64: 3, 3, 4, 4>}, {pipeline_mode = #tpu.pipeline_mode<synchronous>, transform_indices = @transform_2, window_bounds = array<i64: 1, 4>}, {pipeline_mode = #tpu.pipeline_mode<synchronous>, transform_indices = @transform_3, window_bounds = array<i64: 1, 4>}, {pipeline_mode = #tpu.pipeline_mode<synchronous>, transform_indices = @transform_4, window_bounds = array<i64: 3, 3, 4, 4>}, {pipeline_mode = #tpu.pipeline_mode<synchronous>, transform_indices = @transform_5, window_bounds = array<i64: 1, 4>}, {pipeline_mode = #tpu.pipeline_mode<synchronous>, transform_indices = @transform_6, window_bounds = array<i64: 1, 4>}, {transform_indices = @transform_7, window_bounds = array<i64: 1, 16, 16, 4>}]} {
    %c0 = arith.constant 0 : index
    %c0_0 = arith.constant 0 : index
    %c0_1 = arith.constant 0 : index
    %c0_2 = arith.constant 0 : index
    %0 = vector.load %arg1[%c0, %c0_0, %c0_1, %c0_2] : memref<1x16x16x4xbf16, #tpu.memory_space<vmem>>, vector<1x16x16x4xbf16>
    %1 = vector.shape_cast %0 : vector<1x16x16x4xbf16> to vector<16x16x4xbf16>
    %2 = vector.shape_cast %1 : vector<16x16x4xbf16> to vector<256x4xbf16>
    %3 = arith.extf %2 : vector<256x4xbf16> to vector<256x4xf32>
    %4 = tpu.iota {dimensions = array<i32: 0>} : vector<16x16x4xi32>
    %5 = vector.shape_cast %4 : vector<16x16x4xi32> to vector<256x4xi32>
    %6 = tpu.iota {dimensions = array<i32: 1>} : vector<16x16x4xi32>
    %7 = vector.shape_cast %6 : vector<16x16x4xi32> to vector<256x4xi32>
    %cst = arith.constant 0.000000e+00 : f32
    %8 = vector.broadcast %cst : f32 to vector<256x4xf32>
    %c17_i32 = arith.constant 17 : i32
    %9 = tpu.dynamic_rotate %3 by %c17_i32 dim 0 : vector<256x4xf32>, i32 -> vector<256x4xf32>
    %c1_i32 = arith.constant 1 : i32
    %10 = vector.broadcast %c1_i32 : i32 to vector<256x4xi32>
    %11 = arith.cmpi sge, %5, %10 : vector<256x4xi32>
    %c17_i32_3 = arith.constant 17 : i32
    %12 = vector.broadcast %c17_i32_3 : i32 to vector<256x4xi32>
    %13 = arith.cmpi slt, %5, %12 : vector<256x4xi32>
    %14 = arith.andi %11, %13 : vector<256x4xi1>
    %c1_i32_4 = arith.constant 1 : i32
    %15 = vector.broadcast %c1_i32_4 : i32 to vector<256x4xi32>
    %16 = arith.cmpi sge, %7, %15 : vector<256x4xi32>
    %17 = arith.andi %14, %16 : vector<256x4xi1>
    %c17_i32_5 = arith.constant 17 : i32
    %18 = vector.broadcast %c17_i32_5 : i32 to vector<256x4xi32>
    %19 = arith.cmpi slt, %7, %18 : vector<256x4xi32>
    %20 = arith.andi %17, %19 : vector<256x4xi1>
    %cst_6 = arith.constant 0.000000e+00 : f32
    %21 = vector.broadcast %cst_6 : f32 to vector<256x4xf32>
    %22 = arith.select %20, %9, %21 : vector<256x4xi1>, vector<256x4xf32>
    %23 = arith.truncf %22 : vector<256x4xf32> to vector<256x4xbf16>
    %c0_7 = arith.constant 0 : index
    %c0_8 = arith.constant 0 : index
    %c0_9 = arith.constant 0 : index
    %c0_10 = arith.constant 0 : index
    %24 = vector.load %arg2[%c0_7, %c0_8, %c0_9, %c0_10] : memref<3x3x4x4xbf16, #tpu.memory_space<vmem>>, vector<1x1x4x4xbf16>
    %25 = vector.shape_cast %24 : vector<1x1x4x4xbf16> to vector<4x4xbf16>
    %cst_11 = arith.constant dense<0.000000e+00> : vector<256x4xf32>
    %26 = tpu.matmul %23, %25, %cst_11 {dimension_numbers = #tpu.dot_dimension_numbers<[1], [0], [0], [1], [0, 0, 1, 1], [], []>} : vector<256x4xbf16>, vector<4x4xbf16>, vector<256x4xf32> -> vector<256x4xf32>
    %27 = arith.addf %8, %26 : vector<256x4xf32>
    %c16_i32 = arith.constant 16 : i32
    %28 = tpu.dynamic_rotate %3 by %c16_i32 dim 0 : vector<256x4xf32>, i32 -> vector<256x4xf32>
    %c1_i32_12 = arith.constant 1 : i32
    %29 = vector.broadcast %c1_i32_12 : i32 to vector<256x4xi32>
    %30 = arith.cmpi sge, %5, %29 : vector<256x4xi32>
    %c17_i32_13 = arith.constant 17 : i32
    %31 = vector.broadcast %c17_i32_13 : i32 to vector<256x4xi32>
    %32 = arith.cmpi slt, %5, %31 : vector<256x4xi32>
    %33 = arith.andi %30, %32 : vector<256x4xi1>
    %c0_i32 = arith.constant 0 : i32
    %34 = vector.broadcast %c0_i32 : i32 to vector<256x4xi32>
    %35 = arith.cmpi sge, %7, %34 : vector<256x4xi32>
    %36 = arith.andi %33, %35 : vector<256x4xi1>
    %c16_i32_14 = arith.constant 16 : i32
    %37 = vector.broadcast %c16_i32_14 : i32 to vector<256x4xi32>
    %38 = arith.cmpi slt, %7, %37 : vector<256x4xi32>
    %39 = arith.andi %36, %38 : vector<256x4xi1>
    %cst_15 = arith.constant 0.000000e+00 : f32
    %40 = vector.broadcast %cst_15 : f32 to vector<256x4xf32>
    %41 = arith.select %39, %28, %40 : vector<256x4xi1>, vector<256x4xf32>
    %42 = arith.truncf %41 : vector<256x4xf32> to vector<256x4xbf16>
    %c0_16 = arith.constant 0 : index
    %c1 = arith.constant 1 : index
    %c0_17 = arith.constant 0 : index
    %c0_18 = arith.constant 0 : index
    %43 = vector.load %arg2[%c0_16, %c1, %c0_17, %c0_18] : memref<3x3x4x4xbf16, #tpu.memory_space<vmem>>, vector<1x1x4x4xbf16>
    %44 = vector.shape_cast %43 : vector<1x1x4x4xbf16> to vector<4x4xbf16>
    %cst_19 = arith.constant dense<0.000000e+00> : vector<256x4xf32>
    %45 = tpu.matmul %42, %44, %cst_19 {dimension_numbers = #tpu.dot_dimension_numbers<[1], [0], [0], [1], [0, 0, 1, 1], [], []>} : vector<256x4xbf16>, vector<4x4xbf16>, vector<256x4xf32> -> vector<256x4xf32>
    %46 = arith.addf %27, %45 : vector<256x4xf32>
    %c15_i32 = arith.constant 15 : i32
    %47 = tpu.dynamic_rotate %3 by %c15_i32 dim 0 : vector<256x4xf32>, i32 -> vector<256x4xf32>
    %c1_i32_20 = arith.constant 1 : i32
    %48 = vector.broadcast %c1_i32_20 : i32 to vector<256x4xi32>
    %49 = arith.cmpi sge, %5, %48 : vector<256x4xi32>
    %c17_i32_21 = arith.constant 17 : i32
    %50 = vector.broadcast %c17_i32_21 : i32 to vector<256x4xi32>
    %51 = arith.cmpi slt, %5, %50 : vector<256x4xi32>
    %52 = arith.andi %49, %51 : vector<256x4xi1>
    %c-1_i32 = arith.constant -1 : i32
    %53 = vector.broadcast %c-1_i32 : i32 to vector<256x4xi32>
    %54 = arith.cmpi sge, %7, %53 : vector<256x4xi32>
    %55 = arith.andi %52, %54 : vector<256x4xi1>
    %c15_i32_22 = arith.constant 15 : i32
    %56 = vector.broadcast %c15_i32_22 : i32 to vector<256x4xi32>
    %57 = arith.cmpi slt, %7, %56 : vector<256x4xi32>
    %58 = arith.andi %55, %57 : vector<256x4xi1>
    %cst_23 = arith.constant 0.000000e+00 : f32
    %59 = vector.broadcast %cst_23 : f32 to vector<256x4xf32>
    %60 = arith.select %58, %47, %59 : vector<256x4xi1>, vector<256x4xf32>
    %61 = arith.truncf %60 : vector<256x4xf32> to vector<256x4xbf16>
    %c0_24 = arith.constant 0 : index
    %c2 = arith.constant 2 : index
    %c0_25 = arith.constant 0 : index
    %c0_26 = arith.constant 0 : index
    %62 = vector.load %arg2[%c0_24, %c2, %c0_25, %c0_26] : memref<3x3x4x4xbf16, #tpu.memory_space<vmem>>, vector<1x1x4x4xbf16>
    %63 = vector.shape_cast %62 : vector<1x1x4x4xbf16> to vector<4x4xbf16>
    %cst_27 = arith.constant dense<0.000000e+00> : vector<256x4xf32>
    %64 = tpu.matmul %61, %63, %cst_27 {dimension_numbers = #tpu.dot_dimension_numbers<[1], [0], [0], [1], [0, 0, 1, 1], [], []>} : vector<256x4xbf16>, vector<4x4xbf16>, vector<256x4xf32> -> vector<256x4xf32>
    %65 = arith.addf %46, %64 : vector<256x4xf32>
    %c1_i32_28 = arith.constant 1 : i32
    %66 = tpu.dynamic_rotate %3 by %c1_i32_28 dim 0 : vector<256x4xf32>, i32 -> vector<256x4xf32>
    %c0_i32_29 = arith.constant 0 : i32
    %67 = vector.broadcast %c0_i32_29 : i32 to vector<256x4xi32>
    %68 = arith.cmpi sge, %5, %67 : vector<256x4xi32>
    %c16_i32_30 = arith.constant 16 : i32
    %69 = vector.broadcast %c16_i32_30 : i32 to vector<256x4xi32>
    %70 = arith.cmpi slt, %5, %69 : vector<256x4xi32>
    %71 = arith.andi %68, %70 : vector<256x4xi1>
    %c1_i32_31 = arith.constant 1 : i32
    %72 = vector.broadcast %c1_i32_31 : i32 to vector<256x4xi32>
    %73 = arith.cmpi sge, %7, %72 : vector<256x4xi32>
    %74 = arith.andi %71, %73 : vector<256x4xi1>
    %c17_i32_32 = arith.constant 17 : i32
    %75 = vector.broadcast %c17_i32_32 : i32 to vector<256x4xi32>
    %76 = arith.cmpi slt, %7, %75 : vector<256x4xi32>
    %77 = arith.andi %74, %76 : vector<256x4xi1>
    %cst_33 = arith.constant 0.000000e+00 : f32
    %78 = vector.broadcast %cst_33 : f32 to vector<256x4xf32>
    %79 = arith.select %77, %66, %78 : vector<256x4xi1>, vector<256x4xf32>
    %80 = arith.truncf %79 : vector<256x4xf32> to vector<256x4xbf16>
    %c1_34 = arith.constant 1 : index
    %c0_35 = arith.constant 0 : index
    %c0_36 = arith.constant 0 : index
    %c0_37 = arith.constant 0 : index
    %81 = vector.load %arg2[%c1_34, %c0_35, %c0_36, %c0_37] : memref<3x3x4x4xbf16, #tpu.memory_space<vmem>>, vector<1x1x4x4xbf16>
    %82 = vector.shape_cast %81 : vector<1x1x4x4xbf16> to vector<4x4xbf16>
    %cst_38 = arith.constant dense<0.000000e+00> : vector<256x4xf32>
    %83 = tpu.matmul %80, %82, %cst_38 {dimension_numbers = #tpu.dot_dimension_numbers<[1], [0], [0], [1], [0, 0, 1, 1], [], []>} : vector<256x4xbf16>, vector<4x4xbf16>, vector<256x4xf32> -> vector<256x4xf32>
    %84 = arith.addf %65, %83 : vector<256x4xf32>
    %c0_i32_39 = arith.constant 0 : i32
    %85 = vector.broadcast %c0_i32_39 : i32 to vector<256x4xi32>
    %86 = arith.cmpi sge, %5, %85 : vector<256x4xi32>
    %c16_i32_40 = arith.constant 16 : i32
    %87 = vector.broadcast %c16_i32_40 : i32 to vector<256x4xi32>
    %88 = arith.cmpi slt, %5, %87 : vector<256x4xi32>
    %89 = arith.andi %86, %88 : vector<256x4xi1>
    %c0_i32_41 = arith.constant 0 : i32
    %90 = vector.broadcast %c0_i32_41 : i32 to vector<256x4xi32>
    %91 = arith.cmpi sge, %7, %90 : vector<256x4xi32>
    %92 = arith.andi %89, %91 : vector<256x4xi1>
    %c16_i32_42 = arith.constant 16 : i32
    %93 = vector.broadcast %c16_i32_42 : i32 to vector<256x4xi32>
    %94 = arith.cmpi slt, %7, %93 : vector<256x4xi32>
    %95 = arith.andi %92, %94 : vector<256x4xi1>
    %cst_43 = arith.constant 0.000000e+00 : f32
    %96 = vector.broadcast %cst_43 : f32 to vector<256x4xf32>
    %97 = arith.select %95, %3, %96 : vector<256x4xi1>, vector<256x4xf32>
    %98 = arith.truncf %97 : vector<256x4xf32> to vector<256x4xbf16>
    %c1_44 = arith.constant 1 : index
    %c1_45 = arith.constant 1 : index
    %c0_46 = arith.constant 0 : index
    %c0_47 = arith.constant 0 : index
    %99 = vector.load %arg2[%c1_44, %c1_45, %c0_46, %c0_47] : memref<3x3x4x4xbf16, #tpu.memory_space<vmem>>, vector<1x1x4x4xbf16>
    %100 = vector.shape_cast %99 : vector<1x1x4x4xbf16> to vector<4x4xbf16>
    %cst_48 = arith.constant dense<0.000000e+00> : vector<256x4xf32>
    %101 = tpu.matmul %98, %100, %cst_48 {dimension_numbers = #tpu.dot_dimension_numbers<[1], [0], [0], [1], [0, 0, 1, 1], [], []>} : vector<256x4xbf16>, vector<4x4xbf16>, vector<256x4xf32> -> vector<256x4xf32>
    %102 = arith.addf %84, %101 : vector<256x4xf32>
    %c255_i32 = arith.constant 255 : i32
    %103 = tpu.dynamic_rotate %3 by %c255_i32 dim 0 : vector<256x4xf32>, i32 -> vector<256x4xf32>
    %c0_i32_49 = arith.constant 0 : i32
    %104 = vector.broadcast %c0_i32_49 : i32 to vector<256x4xi32>
    %105 = arith.cmpi sge, %5, %104 : vector<256x4xi32>
    %c16_i32_50 = arith.constant 16 : i32
    %106 = vector.broadcast %c16_i32_50 : i32 to vector<256x4xi32>
    %107 = arith.cmpi slt, %5, %106 : vector<256x4xi32>
    %108 = arith.andi %105, %107 : vector<256x4xi1>
    %c-1_i32_51 = arith.constant -1 : i32
    %109 = vector.broadcast %c-1_i32_51 : i32 to vector<256x4xi32>
    %110 = arith.cmpi sge, %7, %109 : vector<256x4xi32>
    %111 = arith.andi %108, %110 : vector<256x4xi1>
    %c15_i32_52 = arith.constant 15 : i32
    %112 = vector.broadcast %c15_i32_52 : i32 to vector<256x4xi32>
    %113 = arith.cmpi slt, %7, %112 : vector<256x4xi32>
    %114 = arith.andi %111, %113 : vector<256x4xi1>
    %cst_53 = arith.constant 0.000000e+00 : f32
    %115 = vector.broadcast %cst_53 : f32 to vector<256x4xf32>
    %116 = arith.select %114, %103, %115 : vector<256x4xi1>, vector<256x4xf32>
    %117 = arith.truncf %116 : vector<256x4xf32> to vector<256x4xbf16>
    %c1_54 = arith.constant 1 : index
    %c2_55 = arith.constant 2 : index
    %c0_56 = arith.constant 0 : index
    %c0_57 = arith.constant 0 : index
    %118 = vector.load %arg2[%c1_54, %c2_55, %c0_56, %c0_57] : memref<3x3x4x4xbf16, #tpu.memory_space<vmem>>, vector<1x1x4x4xbf16>
    %119 = vector.shape_cast %118 : vector<1x1x4x4xbf16> to vector<4x4xbf16>
    %cst_58 = arith.constant dense<0.000000e+00> : vector<256x4xf32>
    %120 = tpu.matmul %117, %119, %cst_58 {dimension_numbers = #tpu.dot_dimension_numbers<[1], [0], [0], [1], [0, 0, 1, 1], [], []>} : vector<256x4xbf16>, vector<4x4xbf16>, vector<256x4xf32> -> vector<256x4xf32>
    %121 = arith.addf %102, %120 : vector<256x4xf32>
    %c241_i32 = arith.constant 241 : i32
    %122 = tpu.dynamic_rotate %3 by %c241_i32 dim 0 : vector<256x4xf32>, i32 -> vector<256x4xf32>
    %c-1_i32_59 = arith.constant -1 : i32
    %123 = vector.broadcast %c-1_i32_59 : i32 to vector<256x4xi32>
    %124 = arith.cmpi sge, %5, %123 : vector<256x4xi32>
    %c15_i32_60 = arith.constant 15 : i32
    %125 = vector.broadcast %c15_i32_60 : i32 to vector<256x4xi32>
    %126 = arith.cmpi slt, %5, %125 : vector<256x4xi32>
    %127 = arith.andi %124, %126 : vector<256x4xi1>
    %c1_i32_61 = arith.constant 1 : i32
    %128 = vector.broadcast %c1_i32_61 : i32 to vector<256x4xi32>
    %129 = arith.cmpi sge, %7, %128 : vector<256x4xi32>
    %130 = arith.andi %127, %129 : vector<256x4xi1>
    %c17_i32_62 = arith.constant 17 : i32
    %131 = vector.broadcast %c17_i32_62 : i32 to vector<256x4xi32>
    %132 = arith.cmpi slt, %7, %131 : vector<256x4xi32>
    %133 = arith.andi %130, %132 : vector<256x4xi1>
    %cst_63 = arith.constant 0.000000e+00 : f32
    %134 = vector.broadcast %cst_63 : f32 to vector<256x4xf32>
    %135 = arith.select %133, %122, %134 : vector<256x4xi1>, vector<256x4xf32>
    %136 = arith.truncf %135 : vector<256x4xf32> to vector<256x4xbf16>
    %c2_64 = arith.constant 2 : index
    %c0_65 = arith.constant 0 : index
    %c0_66 = arith.constant 0 : index
    %c0_67 = arith.constant 0 : index
    %137 = vector.load %arg2[%c2_64, %c0_65, %c0_66, %c0_67] : memref<3x3x4x4xbf16, #tpu.memory_space<vmem>>, vector<1x1x4x4xbf16>
    %138 = vector.shape_cast %137 : vector<1x1x4x4xbf16> to vector<4x4xbf16>
    %cst_68 = arith.constant dense<0.000000e+00> : vector<256x4xf32>
    %139 = tpu.matmul %136, %138, %cst_68 {dimension_numbers = #tpu.dot_dimension_numbers<[1], [0], [0], [1], [0, 0, 1, 1], [], []>} : vector<256x4xbf16>, vector<4x4xbf16>, vector<256x4xf32> -> vector<256x4xf32>
    %140 = arith.addf %121, %139 : vector<256x4xf32>
    %c240_i32 = arith.constant 240 : i32
    %141 = tpu.dynamic_rotate %3 by %c240_i32 dim 0 : vector<256x4xf32>, i32 -> vector<256x4xf32>
    %c-1_i32_69 = arith.constant -1 : i32
    %142 = vector.broadcast %c-1_i32_69 : i32 to vector<256x4xi32>
    %143 = arith.cmpi sge, %5, %142 : vector<256x4xi32>
    %c15_i32_70 = arith.constant 15 : i32
    %144 = vector.broadcast %c15_i32_70 : i32 to vector<256x4xi32>
    %145 = arith.cmpi slt, %5, %144 : vector<256x4xi32>
    %146 = arith.andi %143, %145 : vector<256x4xi1>
    %c0_i32_71 = arith.constant 0 : i32
    %147 = vector.broadcast %c0_i32_71 : i32 to vector<256x4xi32>
    %148 = arith.cmpi sge, %7, %147 : vector<256x4xi32>
    %149 = arith.andi %146, %148 : vector<256x4xi1>
    %c16_i32_72 = arith.constant 16 : i32
    %150 = vector.broadcast %c16_i32_72 : i32 to vector<256x4xi32>
    %151 = arith.cmpi slt, %7, %150 : vector<256x4xi32>
    %152 = arith.andi %149, %151 : vector<256x4xi1>
    %cst_73 = arith.constant 0.000000e+00 : f32
    %153 = vector.broadcast %cst_73 : f32 to vector<256x4xf32>
    %154 = arith.select %152, %141, %153 : vector<256x4xi1>, vector<256x4xf32>
    %155 = arith.truncf %154 : vector<256x4xf32> to vector<256x4xbf16>
    %c2_74 = arith.constant 2 : index
    %c1_75 = arith.constant 1 : index
    %c0_76 = arith.constant 0 : index
    %c0_77 = arith.constant 0 : index
    %156 = vector.load %arg2[%c2_74, %c1_75, %c0_76, %c0_77] : memref<3x3x4x4xbf16, #tpu.memory_space<vmem>>, vector<1x1x4x4xbf16>
    %157 = vector.shape_cast %156 : vector<1x1x4x4xbf16> to vector<4x4xbf16>
    %cst_78 = arith.constant dense<0.000000e+00> : vector<256x4xf32>
    %158 = tpu.matmul %155, %157, %cst_78 {dimension_numbers = #tpu.dot_dimension_numbers<[1], [0], [0], [1], [0, 0, 1, 1], [], []>} : vector<256x4xbf16>, vector<4x4xbf16>, vector<256x4xf32> -> vector<256x4xf32>
    %159 = arith.addf %140, %158 : vector<256x4xf32>
    %c239_i32 = arith.constant 239 : i32
    %160 = tpu.dynamic_rotate %3 by %c239_i32 dim 0 : vector<256x4xf32>, i32 -> vector<256x4xf32>
    %c-1_i32_79 = arith.constant -1 : i32
    %161 = vector.broadcast %c-1_i32_79 : i32 to vector<256x4xi32>
    %162 = arith.cmpi sge, %5, %161 : vector<256x4xi32>
    %c15_i32_80 = arith.constant 15 : i32
    %163 = vector.broadcast %c15_i32_80 : i32 to vector<256x4xi32>
    %164 = arith.cmpi slt, %5, %163 : vector<256x4xi32>
    %165 = arith.andi %162, %164 : vector<256x4xi1>
    %c-1_i32_81 = arith.constant -1 : i32
    %166 = vector.broadcast %c-1_i32_81 : i32 to vector<256x4xi32>
    %167 = arith.cmpi sge, %7, %166 : vector<256x4xi32>
    %168 = arith.andi %165, %167 : vector<256x4xi1>
    %c15_i32_82 = arith.constant 15 : i32
    %169 = vector.broadcast %c15_i32_82 : i32 to vector<256x4xi32>
    %170 = arith.cmpi slt, %7, %169 : vector<256x4xi32>
    %171 = arith.andi %168, %170 : vector<256x4xi1>
    %cst_83 = arith.constant 0.000000e+00 : f32
    %172 = vector.broadcast %cst_83 : f32 to vector<256x4xf32>
    %173 = arith.select %171, %160, %172 : vector<256x4xi1>, vector<256x4xf32>
    %174 = arith.truncf %173 : vector<256x4xf32> to vector<256x4xbf16>
    %c2_84 = arith.constant 2 : index
    %c2_85 = arith.constant 2 : index
    %c0_86 = arith.constant 0 : index
    %c0_87 = arith.constant 0 : index
    %175 = vector.load %arg2[%c2_84, %c2_85, %c0_86, %c0_87] : memref<3x3x4x4xbf16, #tpu.memory_space<vmem>>, vector<1x1x4x4xbf16>
    %176 = vector.shape_cast %175 : vector<1x1x4x4xbf16> to vector<4x4xbf16>
    %cst_88 = arith.constant dense<0.000000e+00> : vector<256x4xf32>
    %177 = tpu.matmul %174, %176, %cst_88 {dimension_numbers = #tpu.dot_dimension_numbers<[1], [0], [0], [1], [0, 0, 1, 1], [], []>} : vector<256x4xbf16>, vector<4x4xbf16>, vector<256x4xf32> -> vector<256x4xf32>
    %178 = arith.addf %159, %177 : vector<256x4xf32>
    %c0_89 = arith.constant 0 : index
    %c0_90 = arith.constant 0 : index
    %179 = vector.load %arg3[%c0_89, %c0_90] : memref<1x4xf32, #tpu.memory_space<vmem>>, vector<1x4xf32>
    %180 = vector.broadcast %179 : vector<1x4xf32> to vector<256x4xf32>
    %181 = arith.mulf %178, %180 : vector<256x4xf32>
    %c0_91 = arith.constant 0 : index
    %c0_92 = arith.constant 0 : index
    %182 = vector.load %arg4[%c0_91, %c0_92] : memref<1x4xf32, #tpu.memory_space<vmem>>, vector<1x4xf32>
    %183 = vector.broadcast %182 : vector<1x4xf32> to vector<256x4xf32>
    %184 = arith.addf %181, %183 : vector<256x4xf32>
    %185 = arith.truncf %184 : vector<256x4xf32> to vector<256x4xbf16>
    %cst_93 = arith.constant 0xFF800000 : f32
    %186 = vector.broadcast %cst_93 : f32 to vector<256x1xf32>
    %cst_94 = arith.constant 0.000000e+00 : f32
    %187 = vector.broadcast %cst_94 : f32 to vector<256x1xf32>
    %cst_95 = arith.constant 0.000000e+00 : f32
    %188 = vector.broadcast %cst_95 : f32 to vector<256x4xf32>
    %cst_96 = arith.constant dense<0.000000e+00> : vector<256x256xf32>
    %189 = tpu.matmul %2, %2, %cst_96 {dimension_numbers = #tpu.dot_dimension_numbers<[1], [1], [0], [0], [0, 0, 1, 0], [], []>} : vector<256x4xbf16>, vector<256x4xbf16>, vector<256x256xf32> -> vector<256x256xf32>
    %cst_97 = arith.constant 5.000000e-01 : f32
    %190 = vector.broadcast %cst_97 : f32 to vector<256x256xf32>
    %191 = arith.mulf %189, %190 : vector<256x256xf32>
    %cst_98 = arith.constant dense<0xFF800000> : vector<256xf32>
    %192 = vector.multi_reduction <maximumf>, %191, %cst_98 [1] : vector<256x256xf32> to vector<256xf32>
    %193 = vector.shape_cast %192 : vector<256xf32> to vector<256x1xf32>
    %194 = arith.maximumf %186, %193 : vector<256x1xf32>
    %195 = arith.subf %186, %194 : vector<256x1xf32>
    %196 = math.exp %195 : vector<256x1xf32>
    %197 = vector.broadcast %194 : vector<256x1xf32> to vector<256x256xf32>
    %198 = arith.subf %191, %197 : vector<256x256xf32>
    %199 = math.exp %198 : vector<256x256xf32>
    %200 = arith.mulf %196, %187 : vector<256x1xf32>
    %cst_99 = arith.constant dense<0.000000e+00> : vector<256xf32>
    %201 = vector.multi_reduction <add>, %199, %cst_99 [1] : vector<256x256xf32> to vector<256xf32>
    %202 = vector.shape_cast %201 : vector<256xf32> to vector<256x1xf32>
    %203 = arith.addf %200, %202 : vector<256x1xf32>
    %204 = vector.broadcast %196 : vector<256x1xf32> to vector<256x4xf32>
    %205 = arith.mulf %204, %188 : vector<256x4xf32>
    %206 = arith.truncf %199 : vector<256x256xf32> to vector<256x256xbf16>
    %cst_100 = arith.constant dense<0.000000e+00> : vector<256x4xf32>
    %207 = tpu.matmul %206, %185, %cst_100 {dimension_numbers = #tpu.dot_dimension_numbers<[1], [0], [0], [1], [0, 0, 1, 1], [], []>} : vector<256x256xbf16>, vector<256x4xbf16>, vector<256x4xf32> -> vector<256x4xf32>
    %208 = arith.addf %205, %207 : vector<256x4xf32>
    %209 = tpu.reciprocal %203 {approx = true} : vector<256x1xf32> -> vector<256x1xf32>
    %210 = vector.broadcast %209 : vector<256x1xf32> to vector<256x4xf32>
    %211 = arith.mulf %208, %210 : vector<256x4xf32>
    %cst_101 = arith.constant 0.000000e+00 : f32
    %212 = vector.broadcast %cst_101 : f32 to vector<256x4xf32>
    %c17_i32_102 = arith.constant 17 : i32
    %213 = tpu.dynamic_rotate %211 by %c17_i32_102 dim 0 : vector<256x4xf32>, i32 -> vector<256x4xf32>
    %c1_i32_103 = arith.constant 1 : i32
    %214 = vector.broadcast %c1_i32_103 : i32 to vector<256x4xi32>
    %215 = arith.cmpi sge, %5, %214 : vector<256x4xi32>
    %c17_i32_104 = arith.constant 17 : i32
    %216 = vector.broadcast %c17_i32_104 : i32 to vector<256x4xi32>
    %217 = arith.cmpi slt, %5, %216 : vector<256x4xi32>
    %218 = arith.andi %215, %217 : vector<256x4xi1>
    %c1_i32_105 = arith.constant 1 : i32
    %219 = vector.broadcast %c1_i32_105 : i32 to vector<256x4xi32>
    %220 = arith.cmpi sge, %7, %219 : vector<256x4xi32>
    %221 = arith.andi %218, %220 : vector<256x4xi1>
    %c17_i32_106 = arith.constant 17 : i32
    %222 = vector.broadcast %c17_i32_106 : i32 to vector<256x4xi32>
    %223 = arith.cmpi slt, %7, %222 : vector<256x4xi32>
    %224 = arith.andi %221, %223 : vector<256x4xi1>
    %cst_107 = arith.constant 0.000000e+00 : f32
    %225 = vector.broadcast %cst_107 : f32 to vector<256x4xf32>
    %226 = arith.select %224, %213, %225 : vector<256x4xi1>, vector<256x4xf32>
    %227 = arith.truncf %226 : vector<256x4xf32> to vector<256x4xbf16>
    %c0_108 = arith.constant 0 : index
    %c0_109 = arith.constant 0 : index
    %c0_110 = arith.constant 0 : index
    %c0_111 = arith.constant 0 : index
    %228 = vector.load %arg5[%c0_108, %c0_109, %c0_110, %c0_111] : memref<3x3x4x4xbf16, #tpu.memory_space<vmem>>, vector<1x1x4x4xbf16>
    %229 = vector.shape_cast %228 : vector<1x1x4x4xbf16> to vector<4x4xbf16>
    %cst_112 = arith.constant dense<0.000000e+00> : vector<256x4xf32>
    %230 = tpu.matmul %227, %229, %cst_112 {dimension_numbers = #tpu.dot_dimension_numbers<[1], [0], [0], [1], [0, 0, 1, 1], [], []>} : vector<256x4xbf16>, vector<4x4xbf16>, vector<256x4xf32> -> vector<256x4xf32>
    %231 = arith.addf %212, %230 : vector<256x4xf32>
    %c16_i32_113 = arith.constant 16 : i32
    %232 = tpu.dynamic_rotate %211 by %c16_i32_113 dim 0 : vector<256x4xf32>, i32 -> vector<256x4xf32>
    %c1_i32_114 = arith.constant 1 : i32
    %233 = vector.broadcast %c1_i32_114 : i32 to vector<256x4xi32>
    %234 = arith.cmpi sge, %5, %233 : vector<256x4xi32>
    %c17_i32_115 = arith.constant 17 : i32
    %235 = vector.broadcast %c17_i32_115 : i32 to vector<256x4xi32>
    %236 = arith.cmpi slt, %5, %235 : vector<256x4xi32>
    %237 = arith.andi %234, %236 : vector<256x4xi1>
    %c0_i32_116 = arith.constant 0 : i32
    %238 = vector.broadcast %c0_i32_116 : i32 to vector<256x4xi32>
    %239 = arith.cmpi sge, %7, %238 : vector<256x4xi32>
    %240 = arith.andi %237, %239 : vector<256x4xi1>
    %c16_i32_117 = arith.constant 16 : i32
    %241 = vector.broadcast %c16_i32_117 : i32 to vector<256x4xi32>
    %242 = arith.cmpi slt, %7, %241 : vector<256x4xi32>
    %243 = arith.andi %240, %242 : vector<256x4xi1>
    %cst_118 = arith.constant 0.000000e+00 : f32
    %244 = vector.broadcast %cst_118 : f32 to vector<256x4xf32>
    %245 = arith.select %243, %232, %244 : vector<256x4xi1>, vector<256x4xf32>
    %246 = arith.truncf %245 : vector<256x4xf32> to vector<256x4xbf16>
    %c0_119 = arith.constant 0 : index
    %c1_120 = arith.constant 1 : index
    %c0_121 = arith.constant 0 : index
    %c0_122 = arith.constant 0 : index
    %247 = vector.load %arg5[%c0_119, %c1_120, %c0_121, %c0_122] : memref<3x3x4x4xbf16, #tpu.memory_space<vmem>>, vector<1x1x4x4xbf16>
    %248 = vector.shape_cast %247 : vector<1x1x4x4xbf16> to vector<4x4xbf16>
    %cst_123 = arith.constant dense<0.000000e+00> : vector<256x4xf32>
    %249 = tpu.matmul %246, %248, %cst_123 {dimension_numbers = #tpu.dot_dimension_numbers<[1], [0], [0], [1], [0, 0, 1, 1], [], []>} : vector<256x4xbf16>, vector<4x4xbf16>, vector<256x4xf32> -> vector<256x4xf32>
    %250 = arith.addf %231, %249 : vector<256x4xf32>
    %c15_i32_124 = arith.constant 15 : i32
    %251 = tpu.dynamic_rotate %211 by %c15_i32_124 dim 0 : vector<256x4xf32>, i32 -> vector<256x4xf32>
    %c1_i32_125 = arith.constant 1 : i32
    %252 = vector.broadcast %c1_i32_125 : i32 to vector<256x4xi32>
    %253 = arith.cmpi sge, %5, %252 : vector<256x4xi32>
    %c17_i32_126 = arith.constant 17 : i32
    %254 = vector.broadcast %c17_i32_126 : i32 to vector<256x4xi32>
    %255 = arith.cmpi slt, %5, %254 : vector<256x4xi32>
    %256 = arith.andi %253, %255 : vector<256x4xi1>
    %c-1_i32_127 = arith.constant -1 : i32
    %257 = vector.broadcast %c-1_i32_127 : i32 to vector<256x4xi32>
    %258 = arith.cmpi sge, %7, %257 : vector<256x4xi32>
    %259 = arith.andi %256, %258 : vector<256x4xi1>
    %c15_i32_128 = arith.constant 15 : i32
    %260 = vector.broadcast %c15_i32_128 : i32 to vector<256x4xi32>
    %261 = arith.cmpi slt, %7, %260 : vector<256x4xi32>
    %262 = arith.andi %259, %261 : vector<256x4xi1>
    %cst_129 = arith.constant 0.000000e+00 : f32
    %263 = vector.broadcast %cst_129 : f32 to vector<256x4xf32>
    %264 = arith.select %262, %251, %263 : vector<256x4xi1>, vector<256x4xf32>
    %265 = arith.truncf %264 : vector<256x4xf32> to vector<256x4xbf16>
    %c0_130 = arith.constant 0 : index
    %c2_131 = arith.constant 2 : index
    %c0_132 = arith.constant 0 : index
    %c0_133 = arith.constant 0 : index
    %266 = vector.load %arg5[%c0_130, %c2_131, %c0_132, %c0_133] : memref<3x3x4x4xbf16, #tpu.memory_space<vmem>>, vector<1x1x4x4xbf16>
    %267 = vector.shape_cast %266 : vector<1x1x4x4xbf16> to vector<4x4xbf16>
    %cst_134 = arith.constant dense<0.000000e+00> : vector<256x4xf32>
    %268 = tpu.matmul %265, %267, %cst_134 {dimension_numbers = #tpu.dot_dimension_numbers<[1], [0], [0], [1], [0, 0, 1, 1], [], []>} : vector<256x4xbf16>, vector<4x4xbf16>, vector<256x4xf32> -> vector<256x4xf32>
    %269 = arith.addf %250, %268 : vector<256x4xf32>
    %c1_i32_135 = arith.constant 1 : i32
    %270 = tpu.dynamic_rotate %211 by %c1_i32_135 dim 0 : vector<256x4xf32>, i32 -> vector<256x4xf32>
    %c0_i32_136 = arith.constant 0 : i32
    %271 = vector.broadcast %c0_i32_136 : i32 to vector<256x4xi32>
    %272 = arith.cmpi sge, %5, %271 : vector<256x4xi32>
    %c16_i32_137 = arith.constant 16 : i32
    %273 = vector.broadcast %c16_i32_137 : i32 to vector<256x4xi32>
    %274 = arith.cmpi slt, %5, %273 : vector<256x4xi32>
    %275 = arith.andi %272, %274 : vector<256x4xi1>
    %c1_i32_138 = arith.constant 1 : i32
    %276 = vector.broadcast %c1_i32_138 : i32 to vector<256x4xi32>
    %277 = arith.cmpi sge, %7, %276 : vector<256x4xi32>
    %278 = arith.andi %275, %277 : vector<256x4xi1>
    %c17_i32_139 = arith.constant 17 : i32
    %279 = vector.broadcast %c17_i32_139 : i32 to vector<256x4xi32>
    %280 = arith.cmpi slt, %7, %279 : vector<256x4xi32>
    %281 = arith.andi %278, %280 : vector<256x4xi1>
    %cst_140 = arith.constant 0.000000e+00 : f32
    %282 = vector.broadcast %cst_140 : f32 to vector<256x4xf32>
    %283 = arith.select %281, %270, %282 : vector<256x4xi1>, vector<256x4xf32>
    %284 = arith.truncf %283 : vector<256x4xf32> to vector<256x4xbf16>
    %c1_141 = arith.constant 1 : index
    %c0_142 = arith.constant 0 : index
    %c0_143 = arith.constant 0 : index
    %c0_144 = arith.constant 0 : index
    %285 = vector.load %arg5[%c1_141, %c0_142, %c0_143, %c0_144] : memref<3x3x4x4xbf16, #tpu.memory_space<vmem>>, vector<1x1x4x4xbf16>
    %286 = vector.shape_cast %285 : vector<1x1x4x4xbf16> to vector<4x4xbf16>
    %cst_145 = arith.constant dense<0.000000e+00> : vector<256x4xf32>
    %287 = tpu.matmul %284, %286, %cst_145 {dimension_numbers = #tpu.dot_dimension_numbers<[1], [0], [0], [1], [0, 0, 1, 1], [], []>} : vector<256x4xbf16>, vector<4x4xbf16>, vector<256x4xf32> -> vector<256x4xf32>
    %288 = arith.addf %269, %287 : vector<256x4xf32>
    %c0_i32_146 = arith.constant 0 : i32
    %289 = vector.broadcast %c0_i32_146 : i32 to vector<256x4xi32>
    %290 = arith.cmpi sge, %5, %289 : vector<256x4xi32>
    %c16_i32_147 = arith.constant 16 : i32
    %291 = vector.broadcast %c16_i32_147 : i32 to vector<256x4xi32>
    %292 = arith.cmpi slt, %5, %291 : vector<256x4xi32>
    %293 = arith.andi %290, %292 : vector<256x4xi1>
    %c0_i32_148 = arith.constant 0 : i32
    %294 = vector.broadcast %c0_i32_148 : i32 to vector<256x4xi32>
    %295 = arith.cmpi sge, %7, %294 : vector<256x4xi32>
    %296 = arith.andi %293, %295 : vector<256x4xi1>
    %c16_i32_149 = arith.constant 16 : i32
    %297 = vector.broadcast %c16_i32_149 : i32 to vector<256x4xi32>
    %298 = arith.cmpi slt, %7, %297 : vector<256x4xi32>
    %299 = arith.andi %296, %298 : vector<256x4xi1>
    %cst_150 = arith.constant 0.000000e+00 : f32
    %300 = vector.broadcast %cst_150 : f32 to vector<256x4xf32>
    %301 = arith.select %299, %211, %300 : vector<256x4xi1>, vector<256x4xf32>
    %302 = arith.truncf %301 : vector<256x4xf32> to vector<256x4xbf16>
    %c1_151 = arith.constant 1 : index
    %c1_152 = arith.constant 1 : index
    %c0_153 = arith.constant 0 : index
    %c0_154 = arith.constant 0 : index
    %303 = vector.load %arg5[%c1_151, %c1_152, %c0_153, %c0_154] : memref<3x3x4x4xbf16, #tpu.memory_space<vmem>>, vector<1x1x4x4xbf16>
    %304 = vector.shape_cast %303 : vector<1x1x4x4xbf16> to vector<4x4xbf16>
    %cst_155 = arith.constant dense<0.000000e+00> : vector<256x4xf32>
    %305 = tpu.matmul %302, %304, %cst_155 {dimension_numbers = #tpu.dot_dimension_numbers<[1], [0], [0], [1], [0, 0, 1, 1], [], []>} : vector<256x4xbf16>, vector<4x4xbf16>, vector<256x4xf32> -> vector<256x4xf32>
    %306 = arith.addf %288, %305 : vector<256x4xf32>
    %c255_i32_156 = arith.constant 255 : i32
    %307 = tpu.dynamic_rotate %211 by %c255_i32_156 dim 0 : vector<256x4xf32>, i32 -> vector<256x4xf32>
    %c0_i32_157 = arith.constant 0 : i32
    %308 = vector.broadcast %c0_i32_157 : i32 to vector<256x4xi32>
    %309 = arith.cmpi sge, %5, %308 : vector<256x4xi32>
    %c16_i32_158 = arith.constant 16 : i32
    %310 = vector.broadcast %c16_i32_158 : i32 to vector<256x4xi32>
    %311 = arith.cmpi slt, %5, %310 : vector<256x4xi32>
    %312 = arith.andi %309, %311 : vector<256x4xi1>
    %c-1_i32_159 = arith.constant -1 : i32
    %313 = vector.broadcast %c-1_i32_159 : i32 to vector<256x4xi32>
    %314 = arith.cmpi sge, %7, %313 : vector<256x4xi32>
    %315 = arith.andi %312, %314 : vector<256x4xi1>
    %c15_i32_160 = arith.constant 15 : i32
    %316 = vector.broadcast %c15_i32_160 : i32 to vector<256x4xi32>
    %317 = arith.cmpi slt, %7, %316 : vector<256x4xi32>
    %318 = arith.andi %315, %317 : vector<256x4xi1>
    %cst_161 = arith.constant 0.000000e+00 : f32
    %319 = vector.broadcast %cst_161 : f32 to vector<256x4xf32>
    %320 = arith.select %318, %307, %319 : vector<256x4xi1>, vector<256x4xf32>
    %321 = arith.truncf %320 : vector<256x4xf32> to vector<256x4xbf16>
    %c1_162 = arith.constant 1 : index
    %c2_163 = arith.constant 2 : index
    %c0_164 = arith.constant 0 : index
    %c0_165 = arith.constant 0 : index
    %322 = vector.load %arg5[%c1_162, %c2_163, %c0_164, %c0_165] : memref<3x3x4x4xbf16, #tpu.memory_space<vmem>>, vector<1x1x4x4xbf16>
    %323 = vector.shape_cast %322 : vector<1x1x4x4xbf16> to vector<4x4xbf16>
    %cst_166 = arith.constant dense<0.000000e+00> : vector<256x4xf32>
    %324 = tpu.matmul %321, %323, %cst_166 {dimension_numbers = #tpu.dot_dimension_numbers<[1], [0], [0], [1], [0, 0, 1, 1], [], []>} : vector<256x4xbf16>, vector<4x4xbf16>, vector<256x4xf32> -> vector<256x4xf32>
    %325 = arith.addf %306, %324 : vector<256x4xf32>
    %c241_i32_167 = arith.constant 241 : i32
    %326 = tpu.dynamic_rotate %211 by %c241_i32_167 dim 0 : vector<256x4xf32>, i32 -> vector<256x4xf32>
    %c-1_i32_168 = arith.constant -1 : i32
    %327 = vector.broadcast %c-1_i32_168 : i32 to vector<256x4xi32>
    %328 = arith.cmpi sge, %5, %327 : vector<256x4xi32>
    %c15_i32_169 = arith.constant 15 : i32
    %329 = vector.broadcast %c15_i32_169 : i32 to vector<256x4xi32>
    %330 = arith.cmpi slt, %5, %329 : vector<256x4xi32>
    %331 = arith.andi %328, %330 : vector<256x4xi1>
    %c1_i32_170 = arith.constant 1 : i32
    %332 = vector.broadcast %c1_i32_170 : i32 to vector<256x4xi32>
    %333 = arith.cmpi sge, %7, %332 : vector<256x4xi32>
    %334 = arith.andi %331, %333 : vector<256x4xi1>
    %c17_i32_171 = arith.constant 17 : i32
    %335 = vector.broadcast %c17_i32_171 : i32 to vector<256x4xi32>
    %336 = arith.cmpi slt, %7, %335 : vector<256x4xi32>
    %337 = arith.andi %334, %336 : vector<256x4xi1>
    %cst_172 = arith.constant 0.000000e+00 : f32
    %338 = vector.broadcast %cst_172 : f32 to vector<256x4xf32>
    %339 = arith.select %337, %326, %338 : vector<256x4xi1>, vector<256x4xf32>
    %340 = arith.truncf %339 : vector<256x4xf32> to vector<256x4xbf16>
    %c2_173 = arith.constant 2 : index
    %c0_174 = arith.constant 0 : index
    %c0_175 = arith.constant 0 : index
    %c0_176 = arith.constant 0 : index
    %341 = vector.load %arg5[%c2_173, %c0_174, %c0_175, %c0_176] : memref<3x3x4x4xbf16, #tpu.memory_space<vmem>>, vector<1x1x4x4xbf16>
    %342 = vector.shape_cast %341 : vector<1x1x4x4xbf16> to vector<4x4xbf16>
    %cst_177 = arith.constant dense<0.000000e+00> : vector<256x4xf32>
    %343 = tpu.matmul %340, %342, %cst_177 {dimension_numbers = #tpu.dot_dimension_numbers<[1], [0], [0], [1], [0, 0, 1, 1], [], []>} : vector<256x4xbf16>, vector<4x4xbf16>, vector<256x4xf32> -> vector<256x4xf32>
    %344 = arith.addf %325, %343 : vector<256x4xf32>
    %c240_i32_178 = arith.constant 240 : i32
    %345 = tpu.dynamic_rotate %211 by %c240_i32_178 dim 0 : vector<256x4xf32>, i32 -> vector<256x4xf32>
    %c-1_i32_179 = arith.constant -1 : i32
    %346 = vector.broadcast %c-1_i32_179 : i32 to vector<256x4xi32>
    %347 = arith.cmpi sge, %5, %346 : vector<256x4xi32>
    %c15_i32_180 = arith.constant 15 : i32
    %348 = vector.broadcast %c15_i32_180 : i32 to vector<256x4xi32>
    %349 = arith.cmpi slt, %5, %348 : vector<256x4xi32>
    %350 = arith.andi %347, %349 : vector<256x4xi1>
    %c0_i32_181 = arith.constant 0 : i32
    %351 = vector.broadcast %c0_i32_181 : i32 to vector<256x4xi32>
    %352 = arith.cmpi sge, %7, %351 : vector<256x4xi32>
    %353 = arith.andi %350, %352 : vector<256x4xi1>
    %c16_i32_182 = arith.constant 16 : i32
    %354 = vector.broadcast %c16_i32_182 : i32 to vector<256x4xi32>
    %355 = arith.cmpi slt, %7, %354 : vector<256x4xi32>
    %356 = arith.andi %353, %355 : vector<256x4xi1>
    %cst_183 = arith.constant 0.000000e+00 : f32
    %357 = vector.broadcast %cst_183 : f32 to vector<256x4xf32>
    %358 = arith.select %356, %345, %357 : vector<256x4xi1>, vector<256x4xf32>
    %359 = arith.truncf %358 : vector<256x4xf32> to vector<256x4xbf16>
    %c2_184 = arith.constant 2 : index
    %c1_185 = arith.constant 1 : index
    %c0_186 = arith.constant 0 : index
    %c0_187 = arith.constant 0 : index
    %360 = vector.load %arg5[%c2_184, %c1_185, %c0_186, %c0_187] : memref<3x3x4x4xbf16, #tpu.memory_space<vmem>>, vector<1x1x4x4xbf16>
    %361 = vector.shape_cast %360 : vector<1x1x4x4xbf16> to vector<4x4xbf16>
    %cst_188 = arith.constant dense<0.000000e+00> : vector<256x4xf32>
    %362 = tpu.matmul %359, %361, %cst_188 {dimension_numbers = #tpu.dot_dimension_numbers<[1], [0], [0], [1], [0, 0, 1, 1], [], []>} : vector<256x4xbf16>, vector<4x4xbf16>, vector<256x4xf32> -> vector<256x4xf32>
    %363 = arith.addf %344, %362 : vector<256x4xf32>
    %c239_i32_189 = arith.constant 239 : i32
    %364 = tpu.dynamic_rotate %211 by %c239_i32_189 dim 0 : vector<256x4xf32>, i32 -> vector<256x4xf32>
    %c-1_i32_190 = arith.constant -1 : i32
    %365 = vector.broadcast %c-1_i32_190 : i32 to vector<256x4xi32>
    %366 = arith.cmpi sge, %5, %365 : vector<256x4xi32>
    %c15_i32_191 = arith.constant 15 : i32
    %367 = vector.broadcast %c15_i32_191 : i32 to vector<256x4xi32>
    %368 = arith.cmpi slt, %5, %367 : vector<256x4xi32>
    %369 = arith.andi %366, %368 : vector<256x4xi1>
    %c-1_i32_192 = arith.constant -1 : i32
    %370 = vector.broadcast %c-1_i32_192 : i32 to vector<256x4xi32>
    %371 = arith.cmpi sge, %7, %370 : vector<256x4xi32>
    %372 = arith.andi %369, %371 : vector<256x4xi1>
    %c15_i32_193 = arith.constant 15 : i32
    %373 = vector.broadcast %c15_i32_193 : i32 to vector<256x4xi32>
    %374 = arith.cmpi slt, %7, %373 : vector<256x4xi32>
    %375 = arith.andi %372, %374 : vector<256x4xi1>
    %cst_194 = arith.constant 0.000000e+00 : f32
    %376 = vector.broadcast %cst_194 : f32 to vector<256x4xf32>
    %377 = arith.select %375, %364, %376 : vector<256x4xi1>, vector<256x4xf32>
    %378 = arith.truncf %377 : vector<256x4xf32> to vector<256x4xbf16>
    %c2_195 = arith.constant 2 : index
    %c2_196 = arith.constant 2 : index
    %c0_197 = arith.constant 0 : index
    %c0_198 = arith.constant 0 : index
    %379 = vector.load %arg5[%c2_195, %c2_196, %c0_197, %c0_198] : memref<3x3x4x4xbf16, #tpu.memory_space<vmem>>, vector<1x1x4x4xbf16>
    %380 = vector.shape_cast %379 : vector<1x1x4x4xbf16> to vector<4x4xbf16>
    %cst_199 = arith.constant dense<0.000000e+00> : vector<256x4xf32>
    %381 = tpu.matmul %378, %380, %cst_199 {dimension_numbers = #tpu.dot_dimension_numbers<[1], [0], [0], [1], [0, 0, 1, 1], [], []>} : vector<256x4xbf16>, vector<4x4xbf16>, vector<256x4xf32> -> vector<256x4xf32>
    %382 = arith.addf %363, %381 : vector<256x4xf32>
    %c0_200 = arith.constant 0 : index
    %c0_201 = arith.constant 0 : index
    %383 = vector.load %arg6[%c0_200, %c0_201] : memref<1x4xf32, #tpu.memory_space<vmem>>, vector<1x4xf32>
    %384 = vector.broadcast %383 : vector<1x4xf32> to vector<256x4xf32>
    %385 = arith.mulf %382, %384 : vector<256x4xf32>
    %c0_202 = arith.constant 0 : index
    %c0_203 = arith.constant 0 : index
    %386 = vector.load %arg7[%c0_202, %c0_203] : memref<1x4xf32, #tpu.memory_space<vmem>>, vector<1x4xf32>
    %387 = vector.broadcast %386 : vector<1x4xf32> to vector<256x4xf32>
    %388 = arith.addf %385, %387 : vector<256x4xf32>
    %cst_204 = arith.constant 0.000000e+00 : f32
    %389 = vector.broadcast %cst_204 : f32 to vector<256x4xf32>
    %390 = arith.maximumf %388, %389 : vector<256x4xf32>
    %391 = vector.shape_cast %390 : vector<256x4xf32> to vector<16x16x4xf32>
    %c0_205 = arith.constant 0 : index
    %c0_206 = arith.constant 0 : index
    %c0_207 = arith.constant 0 : index
    %c0_208 = arith.constant 0 : index
    %392 = vector.load %arg8[%c0_205, %c0_206, %c0_207, %c0_208] : memref<1x16x16x4xf32, #tpu.memory_space<vmem>>, vector<1x16x16x4xf32>
    %393 = vector.shape_cast %392 : vector<1x16x16x4xf32> to vector<16x16x4xf32>
    %394 = vector.shape_cast %391 : vector<16x16x4xf32> to vector<1x16x16x4xf32>
    tpu.vector_store %arg8[%c0_205, %c0_206, %c0_207, %c0_208], %394 {strides = array<i32>} : memref<1x16x16x4xf32, #tpu.memory_space<vmem>>, vector<1x16x16x4xf32>,
    return
  }
  func.func @transform_0(%arg0: i32) -> (i32, i32, i32, i32) {
    %c0_i32 = arith.constant 0 : i32
    %c0_i32_0 = arith.constant 0 : i32
    %c0_i32_1 = arith.constant 0 : i32
    %c0_i32_2 = arith.constant 0 : i32
    return %arg0, %c0_i32, %c0_i32_0, %c0_i32_1 : i32, i32, i32, i32
  }
  func.func @transform_1(%arg0: i32) -> (i32, i32, i32, i32) {
    %c0_i32 = arith.constant 0 : i32
    %c0_i32_0 = arith.constant 0 : i32
    %c0_i32_1 = arith.constant 0 : i32
    %c0_i32_2 = arith.constant 0 : i32
    %c0_i32_3 = arith.constant 0 : i32
    return %c0_i32, %c0_i32_0, %c0_i32_1, %c0_i32_2 : i32, i32, i32, i32
  }
  func.func @transform_2(%arg0: i32) -> (i32, i32) {
    %c0_i32 = arith.constant 0 : i32
    %c0_i32_0 = arith.constant 0 : i32
    %c0_i32_1 = arith.constant 0 : i32
    return %c0_i32, %c0_i32_0 : i32, i32
  }
  func.func @transform_3(%arg0: i32) -> (i32, i32) {
    %c0_i32 = arith.constant 0 : i32
    %c0_i32_0 = arith.constant 0 : i32
    %c0_i32_1 = arith.constant 0 : i32
    return %c0_i32, %c0_i32_0 : i32, i32
  }
  func.func @transform_4(%arg0: i32) -> (i32, i32, i32, i32) {
    %c0_i32 = arith.constant 0 : i32
    %c0_i32_0 = arith.constant 0 : i32
    %c0_i32_1 = arith.constant 0 : i32
    %c0_i32_2 = arith.constant 0 : i32
    %c0_i32_3 = arith.constant 0 : i32
    return %c0_i32, %c0_i32_0, %c0_i32_1, %c0_i32_2 : i32, i32, i32, i32
  }
  func.func @transform_5(%arg0: i32) -> (i32, i32) {
    %c0_i32 = arith.constant 0 : i32
    %c0_i32_0 = arith.constant 0 : i32
    %c0_i32_1 = arith.constant 0 : i32
    return %c0_i32, %c0_i32_0 : i32, i32
  }
  func.func @transform_6(%arg0: i32) -> (i32, i32) {
    %c0_i32 = arith.constant 0 : i32
    %c0_i32_0 = arith.constant 0 : i32
    %c0_i32_1 = arith.constant 0 : i32
    return %c0_i32, %c0_i32_0 : i32, i32
  }
  func.func @transform_7(%arg0: i32) -> (i32, i32, i32, i32) {
    %c0_i32 = arith.constant 0 : i32
    %c0_i32_0 = arith.constant 0 : i32
    %c0_i32_1 = arith.constant 0 : i32
    %c0_i32_2 = arith.constant 0 : i32
    return %arg0, %c0_i32, %c0_i32_0, %c0_i32_1 : i32, i32, i32, i32
  }
}

</mosaic_0001>

<llo_original>
// kernel: nl_block_apply.1
$region0: #{nl_block_apply.1}
  #allocation0 [shape = 'u32[]', space=smem, size = 0x4, offset = 0x4, fixed_abs, tag = 'smem constant byte address 0x4 - core index']
  #allocation1 [shape = 'u32[144,128]{1,0:T(1,128)}', space=vmem, size = 0x12000, scoped, tag = 'internal scratch']
  %s0 = inlined_call_operand.vmem [shape: bf16[2,16,16,4], index: 0, kind: input, shape index: {}]
  %s1 = inlined_call_operand.vmem [shape: bf16[3,3,4,4], index: 1, kind: input, shape index: {}]
  %s2 = inlined_call_operand.vmem [shape: f32[1,4], index: 2, kind: input, shape index: {}]
  %s3 = inlined_call_operand.vmem [shape: f32[1,4], index: 3, kind: input, shape index: {}]
  %s4 = inlined_call_operand.vmem [shape: bf16[3,3,4,4], index: 4, kind: input, shape index: {}]
  %s5 = inlined_call_operand.vmem [shape: f32[1,4], index: 5, kind: input, shape index: {}]
  %s6 = inlined_call_operand.vmem [shape: f32[1,4], index: 6, kind: input, shape index: {}]
  %s7 = inlined_call_operand.vmem [shape: f32[2,16,16,4], index: 7, kind: output, shape index: {}]
  %s8 = sld [smem:[#allocation0]]
  $region61: #{nl_block_apply.1} parent=0
    _
  %s10 = ssub.s32 1, %s8
  %s11 = scalar_select 0, %s10, %s8
  loop: start=0, step=1, limit=4
  $region2: #{nl_block_apply.1} parent=0 // loop_pre_header
    _
  $region3: #{nl_block_apply.1} parent=0 // loop_header
    %s13 = sphi 0, %s17
    %p14 = scmp.ge.s32.totalorder %s13, 4
    %s23 = sphi 0, %s25
    %s26 = sphi 0, %s23
    %s27 = sphi 0, %s26
    %s43 = sphi 0, %s27
    %s47 = sphi 0, %s47
    %s49 = sphi 0, %s47
    %s50 = sphi 0, %s49
    %s64 = sphi 0, %s50
    %s68 = sphi 0, %s68
    %s70 = sphi 0, %s68
    %s71 = sphi 0, %s70
    %s85 = sphi 0, %s71
    %s89 = sphi 0, %s89
    %s91 = sphi 0, %s89
    %s92 = sphi 0, %s91
    %s106 = sphi 0, %s92
    %s110 = sphi 0, %s110
    %s112 = sphi 0, %s110
    %s113 = sphi 0, %s112
    %s127 = sphi 0, %s113
    %s131 = sphi 0, %s131
    %s133 = sphi 0, %s131
    %s134 = sphi 0, %s133
    %s148 = sphi 0, %s134
    %s152 = sphi 0, %s152
    %s154 = sphi 0, %s152
    %s155 = sphi 0, %s154
    %s169 = sphi 0, %s155
    %s175 = sphi 0, %s177
    %s178 = sphi 0, %s175
    %s179 = sphi 0, %s178
    %s195 = sphi 0, %s179
  $region4: #{nl_block_apply.1} parent=0 // loop_header_branch
    %16 = sbr.rel (%p14) target = $region8
  $region5: #{nl_block_apply.1} parent=0 // loop_body
    %s18 = ssub.s32 %s13, 1
    %s19 = ssub.s32 %s13, 2
    %s20 = sadd.s32 %s13, 1
    %s21 = ssub.s32 %s13, %s20
    %p22 = scmp.eq.s32.totalorder %s21, 0
    %s24 = sadd.s32 %s23, 1
    %s25 = scalar_select %p22, %s23, %s24
    %p28 = pneg %p22
    %p29 = scmp.eq.s32.totalorder %s13, 1
    %p30 = por %p28, %p29
    %p31 = scmp.ne.s32.totalorder %s23, %s26
    %p32 = scmp.eq.s32.totalorder %s13, 0
    %p33 = por %p31, %p32
    %p34 = scmp.ne.s32.totalorder %s23, %s26
    %p35 = scmp.eq.s32.totalorder %s18, 1
    %p36 = por %p34, %p35
    %p37 = scmp.ne.s32.totalorder %s26, %s27
    %p38 = scmp.eq.s32.totalorder %s18, 0
    %p39 = por %p37, %p38
    %p40 = scmp.ne.s32.totalorder %s26, %s27
    %p41 = scmp.eq.s32.totalorder %s19, 1
    %p42 = por %p40, %p41
    %p44 = scmp.ne.s32.totalorder %s27, %s43
    %p45 = scmp.eq.s32.totalorder %s19, 0
    %p46 = por %p44, %p45
    %s48 = sadd.s32 %s47, 1
    %p51 = scmp.eq.s32.totalorder %s13, 1
    %p52 = scmp.ne.s32.totalorder %s47, %s49
    %p53 = scmp.eq.s32.totalorder %s13, 0
    %p54 = por %p52, %p53
    %p55 = scmp.ne.s32.totalorder %s47, %s49
    %p56 = scmp.eq.s32.totalorder %s18, 1
    %p57 = por %p55, %p56
    %p58 = scmp.ne.s32.totalorder %s49, %s50
    %p59 = scmp.eq.s32.totalorder %s18, 0
    %p60 = por %p58, %p59
    %p61 = scmp.ne.s32.totalorder %s49, %s50
    %p62 = scmp.eq.s32.totalorder %s19, 1
    %p63 = por %p61, %p62
    %p65 = scmp.ne.s32.totalorder %s50, %s64
    %p66 = scmp.eq.s32.totalorder %s19, 0
    %p67 = por %p65, %p66
    %s69 = sadd.s32 %s68, 1
    %p72 = scmp.eq.s32.totalorder %s13, 1
    %p73 = scmp.ne.s32.totalorder %s68, %s70
    %p74 = scmp.eq.s32.totalorder %s13, 0
    %p75 = por %p73, %p74
    %p76 = scmp.ne.s32.totalorder %s68, %s70
    %p77 = scmp.eq.s32.totalorder %s18, 1
    %p78 = por %p76, %p77
    %p79 = scmp.ne.s32.totalorder %s70, %s71
    %p80 = scmp.eq.s32.totalorder %s18, 0
    %p81 = por %p79, %p80
    %p82 = scmp.ne.s32.totalorder %s70, %s71
    %p83 = scmp.eq.s32.totalorder %s19, 1
    %p84 = por %p82, %p83
    %p86 = scmp.ne.s32.totalorder %s71, %s85
    %p87 = scmp.eq.s32.totalorder %s19, 0
    %p88 = por %p86, %p87
    %s90 = sadd.s32 %s89, 1
    %p93 = scmp.eq.s32.totalorder %s13, 1
    %p94 = scmp.ne.s32.totalorder %s89, %s91
    %p95 = scmp.eq.s32.totalorder %s13, 0
    %p96 = por %p94, %p95
    %p97 = scmp.ne.s32.totalorder %s89, %s91
    %p98 = scmp.eq.s32.totalorder %s18, 1
    %p99 = por %p97, %p98
    %p100 = scmp.ne.s32.totalorder %s91, %s92
    %p101 = scmp.eq.s32.totalorder %s18, 0
    %p102 = por %p100, %p101
    %p103 = scmp.ne.s32.totalorder %s91, %s92
    %p104 = scmp.eq.s32.totalorder %s19, 1
    %p105 = por %p103, %p104
    %p107 = scmp.ne.s32.totalorder %s92, %s106
    %p108 = scmp.eq.s32.totalorder %s19, 0
    %p109 = por %p107, %p108
    %s111 = sadd.s32 %s110, 1
    %p114 = scmp.eq.s32.totalorder %s13, 1
    %p115 = scmp.ne.s32.totalorder %s110, %s112
    %p116 = scmp.eq.s32.totalorder %s13, 0
    %p117 = por %p115, %p116
    %p118 = scmp.ne.s32.totalorder %s110, %s112
    %p119 = scmp.eq.s32.totalorder %s18, 1
    %p120 = por %p118, %p119
    %p121 = scmp.ne.s32.totalorder %s112, %s113
    %p122 = scmp.eq.s32.totalorder %s18, 0
    %p123 = por %p121, %p122
    %p124 = scmp.ne.s32.totalorder %s112, %s113
    %p125 = scmp.eq.s32.totalorder %s19, 1
    %p126 = por %p124, %p125
    %p128 = scmp.ne.s32.totalorder %s113, %s127
    %p129 = scmp.eq.s32.totalorder %s19, 0
    %p130 = por %p128, %p129
    %s132 = sadd.s32 %s131, 1
    %p135 = scmp.eq.s32.totalorder %s13, 1
    %p136 = scmp.ne.s32.totalorder %s131, %s133
    %p137 = scmp.eq.s32.totalorder %s13, 0
    %p138 = por %p136, %p137
    %p139 = scmp.ne.s32.totalorder %s131, %s133
    %p140 = scmp.eq.s32.totalorder %s18, 1
    %p141 = por %p139, %p140
    %p142 = scmp.ne.s32.totalorder %s133, %s134
    %p143 = scmp.eq.s32.totalorder %s18, 0
    %p144 = por %p142, %p143
    %p145 = scmp.ne.s32.totalorder %s133, %s134
    %p146 = scmp.eq.s32.totalorder %s19, 1
    %p147 = por %p145, %p146
    %p149 = scmp.ne.s32.totalorder %s134, %s148
    %p150 = scmp.eq.s32.totalorder %s19, 0
    %p151 = por %p149, %p150
    %s153 = sadd.s32 %s152, 1
    %p156 = scmp.eq.s32.totalorder %s13, 1
    %p157 = scmp.ne.s32.totalorder %s152, %s154
    %p158 = scmp.eq.s32.totalorder %s13, 0
    %p159 = por %p157, %p158
    %p160 = scmp.ne.s32.totalorder %s152, %s154
    %p161 = scmp.eq.s32.totalorder %s18, 1
    %p162 = por %p160, %p161
    %p163 = scmp.ne.s32.totalorder %s154, %s155
    %p164 = scmp.eq.s32.totalorder %s18, 0
    %p165 = por %p163, %p164
    %p166 = scmp.ne.s32.totalorder %s154, %s155
    %p167 = scmp.eq.s32.totalorder %s19, 1
    %p168 = por %p166, %p167
    %p170 = scmp.ne.s32.totalorder %s155, %s169
    %p171 = scmp.eq.s32.totalorder %s19, 0
    %p172 = por %p170, %p171
    %s173 = ssub.s32 %s13, %s20
    %p174 = scmp.eq.s32.totalorder %s173, 0
    %s176 = sadd.s32 %s175, 1
    %s177 = scalar_select %p174, %s175, %s176
    %p180 = pneg %p174
    %p181 = scmp.eq.s32.totalorder %s13, 1
    %p182 = por %p180, %p181
    %p183 = scmp.ne.s32.totalorder %s175, %s178
    %p184 = scmp.eq.s32.totalorder %s13, 0
    %p185 = por %p183, %p184
    %p186 = scmp.ne.s32.totalorder %s175, %s178
    %p187 = scmp.eq.s32.totalorder %s18, 1
    %p188 = por %p186, %p187
    %p189 = scmp.ne.s32.totalorder %s178, %s179
    %p190 = scmp.eq.s32.totalorder %s18, 0
    %p191 = por %p189, %p190
    %p192 = scmp.ne.s32.totalorder %s178, %s179
    %p193 = scmp.eq.s32.totalorder %s19, 1
    %p194 = por %p192, %p193
    %p196 = scmp.ne.s32.totalorder %s179, %s195
    %p197 = scmp.eq.s32.totalorder %s19, 0
    %p198 = por %p196, %p197
    %p199 = scmp.le.s32.totalorder 1, %s13
    %p200 = scmp.lt.s32.totalorder %s13, 3
    %p201 = pnand %p199, %p200
    %p202 = pneg %p201
    // Predicated region
    $region9: #{nl_block_apply.1} parent=5 // pred_check
      _
    $region10: #{nl_block_apply.1} parent=5 // pred_check_branch
      %204 = sbr.rel (%p201) target = $region12
    $region11: #{nl_block_apply.1} parent=5 // pred_region
      %s205 = ssub.s32 %s13, 1
      // Predicated region
      $region13: #{nl_block_apply.1} parent=11 // pred_check
        %p206 = pneg %p60
      $region14: #{nl_block_apply.1} parent=11 // pred_check_branch
        %208 = sbr.rel (%p206) target = $region16
      $region15: #{nl_block_apply.1} parent=11 // pred_region
        _
      $region16: #{nl_block_apply.1} parent=11 // pred_fallthru
        _
      // Predicated region
      $region17: #{nl_block_apply.1} parent=11 // pred_check
        %p209 = pneg %p81
      $region18: #{nl_block_apply.1} parent=11 // pred_check_branch
        %211 = sbr.rel (%p209) target = $region20
      $region19: #{nl_block_apply.1} parent=11 // pred_region
        _
      $region20: #{nl_block_apply.1} parent=11 // pred_fallthru
        _
      // Predicated region
      $region21: #{nl_block_apply.1} parent=11 // pred_check
        %p212 = pneg %p102
      $region22: #{nl_block_apply.1} parent=11 // pred_check_branch
        %214 = sbr.rel (%p212) target = $region24
      $region23: #{nl_block_apply.1} parent=11 // pred_region
        _
      $region24: #{nl_block_apply.1} parent=11 // pred_fallthru
        _
      // Predicated region
      $region25: #{nl_block_apply.1} parent=11 // pred_check
        %p215 = pneg %p123
      $region26: #{nl_block_apply.1} parent=11 // pred_check_branch
        %217 = sbr.rel (%p215) target = $region28
      $region27: #{nl_block_apply.1} parent=11 // pred_region
        _
      $region28: #{nl_block_apply.1} parent=11 // pred_fallthru
        _
      // Predicated region
      $region29: #{nl_block_apply.1} parent=11 // pred_check
        %p218 = pneg %p144
      $region30: #{nl_block_apply.1} parent=11 // pred_check_branch
        %220 = sbr.rel (%p218) target = $region32
      $region31: #{nl_block_apply.1} parent=11 // pred_region
        _
      $region32: #{nl_block_apply.1} parent=11 // pred_fallthru
        _
      // Predicated region
      $region33: #{nl_block_apply.1} parent=11 // pred_check
        %p221 = pneg %p165
      $region34: #{nl_block_apply.1} parent=11 // pred_check_branch
        %223 = sbr.rel (%p221) target = $region36
      $region35: #{nl_block_apply.1} parent=11 // pred_region
        _
      $region36: #{nl_block_apply.1} parent=11 // pred_fallthru
        _
    $region12: #{nl_block_apply.1} parent=5 // pred_fallthru
      _
    %p224 = scmp.lt.s32.totalorder %s13, 2
    // Predicated region
    $region37: #{nl_block_apply.1} parent=5 // pred_check
      %p225 = pneg %p224
    $region38: #{nl_block_apply.1} parent=5 // pred_check_branch
      %227 = sbr.rel (%p225) target = $region40
    $region39: #{nl_block_apply.1} parent=5 // pred_region
      // Predicated region
      $region41: #{nl_block_apply.1} parent=39 // pred_check
        %p228 = pneg %p33
      $region42: #{nl_block_apply.1} parent=39 // pred_check_branch
        %230 = sbr.rel (%p228) target = $region44
      $region43: #{nl_block_apply.1} parent=39 // pred_region
        %p231 = scmp.lt.s32.totalorder %s13, 1
        %s232 = scalar_select %p231, %s13, 1
        %s233 = smul.addr %s232, 32
        %s234 = smul.addr %s233, 4
        %s235 = scalar_lea.vmem %s0, %s234
      $region44: #{nl_block_apply.1} parent=39 // pred_fallthru
        _
    $region40: #{nl_block_apply.1} parent=5 // pred_fallthru
      _
    %p236 = scmp.le.s32.totalorder 1, %s13
    %p237 = scmp.lt.s32.totalorder %s13, 3
    %p238 = pnand %p236, %p237
    %p239 = pneg %p238
    // Predicated region
    $region45: #{nl_block_apply.1} parent=5 // pred_check
      _
    $region46: #{nl_block_apply.1} parent=5 // pred_check_branch
      %241 = sbr.rel (%p238) target = $region48
    $region47: #{nl_block_apply.1} parent=5 // pred_region
      %s242 = ssub.s32 %s13, 1
      %p243 = scmp.lt.s32.totalorder %s18, 1
      %s244 = scalar_select %p243, %s18, 1
      %s245 = smul.addr %s244, 32
      %s246 = smul.addr %s245, 4
      %s247 = scalar_lea.vmem %s0, %s246
      %p248 = pneg %p39
      %p249 = pneg %p36
      %p250 = pneg %p60
      %p251 = pneg %p57
      %p252 = pneg %p81
      %p253 = pneg %p78
      %p254 = pneg %p102
      %p255 = pneg %p99
      %p256 = pneg %p123
      %p257 = pneg %p120
      %p258 = pneg %p144
      %p259 = pneg %p141
      %p260 = pneg %p165
      %p261 = pneg %p162
      %p262 = pneg %p191
      %p263 = pneg %p188
      %p264 = scmp.lt.s32.totalorder %s18, 1
      %s265 = scalar_select %p264, %s18, 1
      %s266 = smul.addr %s265, 32
      %s267 = smul.addr %s266, 8
      %s268 = scalar_lea.vmem %s7, %s267
      %p269 = scmp.lt.s32.totalorder %s18, 1
      %s270 = scalar_select %p269, %s18, 1
      %s271 = smul.addr %s270, 32
      %s272 = smul.addr %s271, 4
      %s273 = scalar_lea.vmem %s0, %s272
      %p274 = scmp.lt.s32.totalorder %s18, 1
      %s275 = scalar_select %p274, %s18, 1
      %s276 = smul.addr %s275, 32
      %s277 = smul.addr %s276, 8
      %s278 = scalar_lea.vmem %s7, %s277
      %v280 = vld [vmem:[%s273] sm:$0xf]
      %v281 = vld [vmem:[%s273 + $0x4] sm:$0xf]
      %v282 = vld [vmem:[%s273 + $0x8] sm:$0xf]
      %v283 = vld [vmem:[%s273 + $0xc] sm:$0xf]
      %v284 = vld [vmem:[%s273 + $0x10] sm:$0xf]
      %v285 = vld [vmem:[%s273 + $0x14] sm:$0xf]
      %v286 = vld [vmem:[%s273 + $0x18] sm:$0xf]
      %v287 = vld [vmem:[%s273 + $0x1c] sm:$0xf]
      %v288 = vld [vmem:[%s273 + $0x20] sm:$0xf]
      %v289 = vld [vmem:[%s273 + $0x24] sm:$0xf]
      %v290 = vld [vmem:[%s273 + $0x28] sm:$0xf]
      %v291 = vld [vmem:[%s273 + $0x2c] sm:$0xf]
      %v292 = vld [vmem:[%s273 + $0x30] sm:$0xf]
      %v293 = vld [vmem:[%s273 + $0x34] sm:$0xf]
      %v294 = vld [vmem:[%s273 + $0x38] sm:$0xf]
      %v295 = vld [vmem:[%s273 + $0x3c] sm:$0xf]
      %v296 = vld [vmem:[%s273 + $0x40] sm:$0xf]
      %v297 = vld [vmem:[%s273 + $0x44] sm:$0xf]
      %v298 = vld [vmem:[%s273 + $0x48] sm:$0xf]
      %v299 = vld [vmem:[%s273 + $0x4c] sm:$0xf]
      %v300 = vld [vmem:[%s273 + $0x50] sm:$0xf]
      %v301 = vld [vmem:[%s273 + $0x54] sm:$0xf]
      %v302 = vld [vmem:[%s273 + $0x58] sm:$0xf]
      %v303 = vld [vmem:[%s273 + $0x5c] sm:$0xf]
      %v304 = vld [vmem:[%s273 + $0x60] sm:$0xf]
      %v305 = vld [vmem:[%s273 + $0x64] sm:$0xf]
      %v306 = vld [vmem:[%s273 + $0x68] sm:$0xf]
      %v307 = vld [vmem:[%s273 + $0x6c] sm:$0xf]
      %v308 = vld [vmem:[%s273 + $0x70] sm:$0xf]
      %v309 = vld [vmem:[%s273 + $0x74] sm:$0xf]
      %v310 = vld [vmem:[%s273 + $0x78] sm:$0xf]
      %v311 = vld [vmem:[%s273 + $0x7c] sm:$0xf]
      %v312 = vunpack.c.l.bf16 %v280
      %v313 = vunpack.c.l.bf16 %v281
      %v314 = vunpack.c.l.bf16 %v282
      %v315 = vunpack.c.l.bf16 %v283
      %v316 = vunpack.c.l.bf16 %v284
      %v317 = vunpack.c.l.bf16 %v285
      %v318 = vunpack.c.l.bf16 %v286
      %v319 = vunpack.c.l.bf16 %v287
      %v320 = vunpack.c.l.bf16 %v288
      %v321 = vunpack.c.l.bf16 %v289
      %v322 = vunpack.c.l.bf16 %v290
      %v323 = vunpack.c.l.bf16 %v291
      %v324 = vunpack.c.l.bf16 %v292
      %v325 = vunpack.c.l.bf16 %v293
      %v326 = vunpack.c.l.bf16 %v294
      %v327 = vunpack.c.l.bf16 %v295
      %v328 = vunpack.c.l.bf16 %v296
      %v329 = vunpack.c.l.bf16 %v297
      %v330 = vunpack.c.l.bf16 %v298
      %v331 = vunpack.c.l.bf16 %v299
      %v332 = vunpack.c.l.bf16 %v300
      %v333 = vunpack.c.l.bf16 %v301
      %v334 = vunpack.c.l.bf16 %v302
      %v335 = vunpack.c.l.bf16 %v303
      %v336 = vunpack.c.l.bf16 %v304
      %v337 = vunpack.c.l.bf16 %v305
      %v338 = vunpack.c.l.bf16 %v306
      %v339 = vunpack.c.l.bf16 %v307
      %v340 = vunpack.c.l.bf16 %v308
      %v341 = vunpack.c.l.bf16 %v309
      %v342 = vunpack.c.l.bf16 %v310
      %v343 = vunpack.c.l.bf16 %v311
      %v344 = vlaneseq
      %v345 = vshrl.u32 %v344, 7
      %v346 = vadd.s32 %v345, 8
      %v347 = vrot.slane %v312, 7
      %v348 = vrot.slane %v313, 7
      %v349 = vrot.slane %v314, 7
      %v350 = vrot.slane %v315, 7
      %v351 = vrot.slane %v316, 7
      %v352 = vrot.slane %v317, 7
      %v353 = vrot.slane %v318, 7
      %v354 = vrot.slane %v319, 7
      %v355 = vrot.slane %v320, 7
      %v356 = vrot.slane %v321, 7
      %v357 = vrot.slane %v322, 7
      %v358 = vrot.slane %v323, 7
      %v359 = vrot.slane %v324, 7
      %v360 = vrot.slane %v325, 7
      %v361 = vrot.slane %v326, 7
      %v362 = vrot.slane %v327, 7
      %v363 = vrot.slane %v328, 7
      %v364 = vrot.slane %v329, 7
      %v365 = vrot.slane %v330, 7
      %v366 = vrot.slane %v331, 7
      %v367 = vrot.slane %v332, 7
      %v368 = vrot.slane %v333, 7
      %v369 = vrot.slane %v334, 7
      %v370 = vrot.slane %v335, 7
      %v371 = vrot.slane %v336, 7
      %v372 = vrot.slane %v337, 7
      %v373 = vrot.slane %v338, 7
      %v374 = vrot.slane %v339, 7
      %v375 = vrot.slane %v340, 7
      %v376 = vrot.slane %v341, 7
      %v377 = vrot.slane %v343, 7
      %vm378 = vcmp.lt.s32.totalorder %v345, 1
      %v379 = vsel %vm378, %v375, %v376
      %v380 = vsel %vm378, %v374, %v375
      %v381 = vsel %vm378, %v373, %v374
      %v382 = vsel %vm378, %v372, %v373
      %v383 = vsel %vm378, %v371, %v372
      %v384 = vsel %vm378, %v370, %v371
      %v385 = vsel %vm378, %v369, %v370
      %v386 = vsel %vm378, %v368, %v369
      %v387 = vsel %vm378, %v367, %v368
      %v388 = vsel %vm378, %v366, %v367
      %v389 = vsel %vm378, %v365, %v366
      %v390 = vsel %vm378, %v364, %v365
      %v391 = vsel %vm378, %v363, %v364
      %v392 = vsel %vm378, %v362, %v363
      %v393 = vsel %vm378, %v361, %v362
      %v394 = vsel %vm378, %v360, %v361
      %v395 = vsel %vm378, %v359, %v360
      %v396 = vsel %vm378, %v358, %v359
      %v397 = vsel %vm378, %v357, %v358
      %v398 = vsel %vm378, %v356, %v357
      %v399 = vsel %vm378, %v355, %v356
      %v400 = vsel %vm378, %v354, %v355
      %v401 = vsel %vm378, %v353, %v354
      %v402 = vsel %vm378, %v352, %v353
      %v403 = vsel %vm378, %v351, %v352
      %v404 = vsel %vm378, %v350, %v351
      %v405 = vsel %vm378, %v349, %v350
      %v406 = vsel %vm378, %v348, %v349
      %v407 = vsel %vm378, %v347, %v348
      %v408 = vsel %vm378, %v377, %v347
      %vm409 = vcmp.ge.s32.totalorder %v345, 1
      %vm410 = vcmp.ge.s32.totalorder %v346, 1
      %vm411 = vcmp.lt.s32.totalorder %v345, 17
      %vm412 = vcmp.lt.s32.totalorder %v346, 17
      %vm413 = vmand %vm409, %vm411
      %vm414 = vmand %vm410, %vm412
      %v415 = vsel %vm413, %v408, 0.0
      %v416 = vsel %vm414, %v407, 0.0
      %v417 = vsel %vm413, %v406, 0.0
      %v418 = vsel %vm414, %v405, 0.0
      %v419 = vsel %vm413, %v404, 0.0
      %v420 = vsel %vm414, %v403, 0.0
      %v421 = vsel %vm413, %v402, 0.0
      %v422 = vsel %vm414, %v401, 0.0
      %v423 = vsel %vm413, %v400, 0.0
      %v424 = vsel %vm414, %v399, 0.0
      %v425 = vsel %vm413, %v398, 0.0
      %v426 = vsel %vm414, %v397, 0.0
      %v427 = vsel %vm413, %v396, 0.0
      %v428 = vsel %vm414, %v395, 0.0
      %v429 = vsel %vm413, %v394, 0.0
      %v430 = vsel %vm414, %v393, 0.0
      %v431 = vsel %vm413, %v392, 0.0
      %v432 = vsel %vm414, %v391, 0.0
      %v433 = vsel %vm413, %v390, 0.0
      %v434 = vsel %vm414, %v389, 0.0
      %v435 = vsel %vm413, %v388, 0.0
      %v436 = vsel %vm414, %v387, 0.0
      %v437 = vsel %vm413, %v386, 0.0
      %v438 = vsel %vm414, %v385, 0.0
      %v439 = vsel %vm413, %v384, 0.0
      %v440 = vsel %vm414, %v383, 0.0
      %v441 = vsel %vm413, %v382, 0.0
      %v442 = vsel %vm414, %v381, 0.0
      %v443 = vsel %vm413, %v380, 0.0
      %v444 = vsel %vm414, %v379, 0.0
      %v445 = vpack.c.bf16 0.0, 0.0
      %v446 = vpack.c.bf16 %v416, %v415
      %v447 = vpack.c.bf16 %v418, %v417
      %v448 = vpack.c.bf16 %v420, %v419
      %v449 = vpack.c.bf16 %v422, %v421
      %v450 = vpack.c.bf16 %v424, %v423
      %v451 = vpack.c.bf16 %v426, %v425
      %v452 = vpack.c.bf16 %v428, %v427
      %v453 = vpack.c.bf16 %v430, %v429
      %v454 = vpack.c.bf16 %v432, %v431
      %v455 = vpack.c.bf16 %v434, %v433
      %v456 = vpack.c.bf16 %v436, %v435
      %v457 = vpack.c.bf16 %v438, %v437
      %v458 = vpack.c.bf16 %v440, %v439
      %v459 = vpack.c.bf16 %v442, %v441
      %v460 = vpack.c.bf16 %v444, %v443
      %v461 = vld [vmem:[%s1] sm:$0x3]
      %vm462 = vcmp.ge.s32.totalorder %v345, 0
      %vm463 = vcmp.ge.s32.totalorder %v346, 0
      %vm464 = vcmp.lt.s32.totalorder %v345, 16
      %vm465 = vcmp.lt.s32.totalorder %v346, 16
      %vm466 = vmand %vm462, %vm464
      %vm467 = vmand %vm463, %vm465
      %v468 = vsel %vm466, %v312, 0.0
      %v469 = vsel %vm467, %v313, 0.0
      %v470 = vsel %vm466, %v314, 0.0
      %v471 = vsel %vm467, %v315, 0.0
      %v472 = vsel %vm466, %v316, 0.0
      %v473 = vsel %vm467, %v317, 0.0
      %v474 = vsel %vm466, %v318, 0.0
      %v475 = vsel %vm467, %v319, 0.0
      %v476 = vsel %vm466, %v320, 0.0
      %v477 = vsel %vm467, %v321, 0.0
      %v478 = vsel %vm466, %v322, 0.0
      %v479 = vsel %vm467, %v323, 0.0
      %v480 = vsel %vm466, %v324, 0.0
      %v481 = vsel %vm467, %v325, 0.0
      %v482 = vsel %vm466, %v326, 0.0
      %v483 = vsel %vm467, %v327, 0.0
      %v484 = vsel %vm466, %v328, 0.0
      %v485 = vsel %vm467, %v329, 0.0
      %v486 = vsel %vm466, %v330, 0.0
      %v487 = vsel %vm467, %v331, 0.0
      %v488 = vsel %vm466, %v332, 0.0
      %v489 = vsel %vm467, %v333, 0.0
      %v490 = vsel %vm466, %v334, 0.0
      %v491 = vsel %vm467, %v335, 0.0
      %v492 = vsel %vm466, %v336, 0.0
      %v493 = vsel %vm467, %v337, 0.0
      %v494 = vsel %vm466, %v338, 0.0
      %v495 = vsel %vm467, %v339, 0.0
      %v496 = vsel %vm466, %v340, 0.0
      %v497 = vsel %vm467, %v341, 0.0
      %v498 = vpack.c.bf16 %v469, %v468
      %v499 = vpack.c.bf16 %v471, %v470
      %v500 = vpack.c.bf16 %v473, %v472
      %v501 = vpack.c.bf16 %v475, %v474
      %v502 = vpack.c.bf16 %v477, %v476
      %v503 = vpack.c.bf16 %v479, %v478
      %v504 = vpack.c.bf16 %v481, %v480
      %v505 = vpack.c.bf16 %v483, %v482
      %v506 = vpack.c.bf16 %v485, %v484
      %v507 = vpack.c.bf16 %v487, %v486
      %v508 = vpack.c.bf16 %v489, %v488
      %v509 = vpack.c.bf16 %v491, %v490
      %v510 = vpack.c.bf16 %v493, %v492
      %v511 = vpack.c.bf16 %v495, %v494
      %v512 = vpack.c.bf16 %v497, %v496
      %s513 = scalar_lea.vmem %s1, 2
      %v514 = vld [vmem:[%s513] sm:$0x3]
      %vm515 = vcmask 31744
      %v517 = vsel %vm515, %v445, 0
      %v520 = vsel %vm515, %v498, 0
      %v523 = vsel %vm515, %v499, 0
      %v526 = vsel %vm515, %v500, 0
      %v529 = vsel %vm515, %v501, 0
      %v532 = vsel %vm515, %v502, 0
      %v535 = vsel %vm515, %v503, 0
      %v538 = vsel %vm515, %v504, 0
      %v541 = vsel %vm515, %v505, 0
      %v544 = vsel %vm515, %v506, 0
      %v547 = vsel %vm515, %v507, 0
      %v550 = vsel %vm515, %v508, 0
      %v553 = vsel %vm515, %v509, 0
      %v556 = vsel %vm515, %v510, 0
      %v559 = vsel %vm515, %v511, 0
      %v562 = vsel %vm515, %v512, 0
      %vm564 = vcmask 1041408
      %v566 = vsel %vm564, %v514, 0
      %568 = vmatprep.subr.bf16.mxu0 0
      %569 = vmatpush1.bf16.msra.mxu0 0
      %570 = vmatprep.subr.bf16.mxu0 0
      %571 = vmatpush1.bf16.msra.mxu0 0
      %572 = vmatprep.subr.bf16.mxu0 0
      %573 = vmatpush1.bf16.msra.mxu0 0
      %574 = vmatprep.subr.bf16.mxu0 0
      %575 = vmatpush1.bf16.msra.mxu0 0
      %576 = vmatprep.subr.bf16.mxu0 0
      %577 = vmatpush1.bf16.msra.mxu0 0
      %578 = vmatprep.subr.bf16.mxu0 0
      %579 = vmatpush1.bf16.msra.mxu0 0
      %580 = vmatprep.subr.bf16.mxu0 0
      %581 = vmatpush1.bf16.msra.mxu0 0
      %582 = vmatprep.subr.bf16.mxu0 0
      %583 = vmatpush1.bf16.msra.mxu0 %v566
      %584 = vmatprep.subr.bf16.mxu0 0
      %585 = vmatpush2.bf16.msra.mxu0 0
      %586 = vmatprep.subr.bf16.mxu0 0
      %587 = vmatpush2.bf16.msra.mxu0 0
      %588 = vmatprep.subr.bf16.mxu0 0
      %589 = vmatpush2.bf16.msra.mxu0 0
      %590 = vmatprep.subr.bf16.mxu0 0
      %591 = vmatpush2.bf16.msra.mxu0 0
      %592 = vmatprep.subr.bf16.mxu0 0
      %593 = vmatpush2.bf16.msra.mxu0 0
      %594 = vmatprep.subr.bf16.mxu0 0
      %595 = vmatpush2.bf16.msra.mxu0 0
      %596 = vmatprep.subr.bf16.mxu0 0
      %597 = vmatpush2.bf16.msra.mxu0 0
      %598 = vmatprep.subr.bf16.mxu0 0
      %599 = vmatpush2.bf16.msra.mxu0 0
      %600 = vmatprep.mubr.bf16.mxu0 0
      %601 = vmatmul.mubr.bf16.gmra.mxu0 %v517
      %v602 = vpop.f32.mrf.mxu0
      %v603 = vadd.f32 0.0, %v602
      %v604 = vpop.f32.mrf.mxu0
      %v605 = vpop.f32.mrf.mxu0
      %v606 = vadd.f32 0.0, %v605
      %v607 = vpop.f32.mrf.mxu0
      %608 = vmatprep.mubr.bf16.mxu0 0
      %609 = vmatmul.mubr.bf16.gmra.mxu0 %v520
      %v610 = vpop.f32.mrf.mxu0
      %v611 = vadd.f32 0.0, %v610
      %v612 = vpop.f32.mrf.mxu0
      %v613 = vpop.f32.mrf.mxu0
      %v614 = vadd.f32 0.0, %v613
      %v615 = vpop.f32.mrf.mxu0
      %616 = vmatprep.mubr.bf16.mxu0 0
      %617 = vmatmul.mubr.bf16.gmra.mxu0 %v523
      %v618 = vpop.f32.mrf.mxu0
      %v619 = vadd.f32 0.0, %v618
      %v620 = vpop.f32.mrf.mxu0
      %v621 = vpop.f32.mrf.mxu0
      %v622 = vadd.f32 0.0, %v621
      %v623 = vpop.f32.mrf.mxu0
      %624 = vmatprep.mubr.bf16.mxu0 0
      %625 = vmatmul.mubr.bf16.gmra.mxu0 %v526
      %v626 = vpop.f32.mrf.mxu0
      %v627 = vadd.f32 0.0, %v626
      %v628 = vpop.f32.mrf.mxu0
      %v629 = vpop.f32.mrf.mxu0
      %v630 = vadd.f32 0.0, %v629
      %v631 = vpop.f32.mrf.mxu0
      %632 = vmatprep.mubr.bf16.mxu0 0
      %633 = vmatmul.mubr.bf16.gmra.mxu0 %v529
      %v634 = vpop.f32.mrf.mxu0
      %v635 = vadd.f32 0.0, %v634
      %v636 = vpop.f32.mrf.mxu0
      %v637 = vpop.f32.mrf.mxu0
      %v638 = vadd.f32 0.0, %v637
      %v639 = vpop.f32.mrf.mxu0
      %640 = vmatprep.mubr.bf16.mxu0 0
      %641 = vmatmul.mubr.bf16.gmra.mxu0 %v532
      %v642 = vpop.f32.mrf.mxu0
      %v643 = vadd.f32 0.0, %v642
      %v644 = vpop.f32.mrf.mxu0
      %v645 = vpop.f32.mrf.mxu0
      %v646 = vadd.f32 0.0, %v645
      %v647 = vpop.f32.mrf.mxu0
      %648 = vmatprep.mubr.bf16.mxu0 0
      %649 = vmatmul.mubr.bf16.gmra.mxu0 %v535
      %v650 = vpop.f32.mrf.mxu0
      %v651 = vadd.f32 0.0, %v650
      %v652 = vpop.f32.mrf.mxu0
      %v653 = vpop.f32.mrf.mxu0
      %v654 = vadd.f32 0.0, %v653
      %v655 = vpop.f32.mrf.mxu0
      %656 = vmatprep.mubr.bf16.mxu0 0
      %657 = vmatmul.mubr.bf16.gmra.mxu0 %v538
      %v658 = vpop.f32.mrf.mxu0
      %v659 = vadd.f32 0.0, %v658
      %v660 = vpop.f32.mrf.mxu0
      %v661 = vpop.f32.mrf.mxu0
      %v662 = vadd.f32 0.0, %v661
      %v663 = vpop.f32.mrf.mxu0
      %664 = vmatprep.mubr.bf16.mxu0 0
      %665 = vmatmul.mubr.bf16.gmra.mxu0 %v541
      %v666 = vpop.f32.mrf.mxu0
      %v667 = vadd.f32 0.0, %v666
      %v668 = vpop.f32.mrf.mxu0
      %v669 = vpop.f32.mrf.mxu0
      %v670 = vadd.f32 0.0, %v669
      %v671 = vpop.f32.mrf.mxu0
      %672 = vmatprep.mubr.bf16.mxu0 0
      %673 = vmatmul.mubr.bf16.gmra.mxu0 %v544
      %v674 = vpop.f32.mrf.mxu0
      %v675 = vadd.f32 0.0, %v674
      %v676 = vpop.f32.mrf.mxu0
      %v677 = vpop.f32.mrf.mxu0
      %v678 = vadd.f32 0.0, %v677
      %v679 = vpop.f32.mrf.mxu0
      %680 = vmatprep.mubr.bf16.mxu0 0
      %681 = vmatmul.mubr.bf16.gmra.mxu0 %v547
      %v682 = vpop.f32.mrf.mxu0
      %v683 = vadd.f32 0.0, %v682
      %v684 = vpop.f32.mrf.mxu0
      %v685 = vpop.f32.mrf.mxu0
      %v686 = vadd.f32 0.0, %v685
      %v687 = vpop.f32.mrf.mxu0
      %688 = vmatprep.mubr.bf16.mxu0 0
      %689 = vmatmul.mubr.bf16.gmra.mxu0 %v550
      %v690 = vpop.f32.mrf.mxu0
      %v691 = vadd.f32 0.0, %v690
      %v692 = vpop.f32.mrf.mxu0
      %v693 = vpop.f32.mrf.mxu0
      %v694 = vadd.f32 0.0, %v693
      %v695 = vpop.f32.mrf.mxu0
      %696 = vmatprep.mubr.bf16.mxu0 0
      %697 = vmatmul.mubr.bf16.gmra.mxu0 %v553
      %v698 = vpop.f32.mrf.mxu0
      %v699 = vadd.f32 0.0, %v698
      %v700 = vpop.f32.mrf.mxu0
      %v701 = vpop.f32.mrf.mxu0
      %v702 = vadd.f32 0.0, %v701
      %v703 = vpop.f32.mrf.mxu0
      %704 = vmatprep.mubr.bf16.mxu0 0
      %705 = vmatmul.mubr.bf16.gmra.mxu0 %v556
      %v706 = vpop.f32.mrf.mxu0
      %v707 = vadd.f32 0.0, %v706
      %v708 = vpop.f32.mrf.mxu0
      %v709 = vpop.f32.mrf.mxu0
      %v710 = vadd.f32 0.0, %v709
      %v711 = vpop.f32.mrf.mxu0
      %712 = vmatprep.mubr.bf16.mxu0 0
      %713 = vmatmul.mubr.bf16.gmra.mxu0 %v559
      %v714 = vpop.f32.mrf.mxu0
      %v715 = vadd.f32 0.0, %v714
      %v716 = vpop.f32.mrf.mxu0
      %v717 = vpop.f32.mrf.mxu0
      %v718 = vadd.f32 0.0, %v717
      %v719 = vpop.f32.mrf.mxu0
      %720 = vmatprep.mubr.bf16.mxu0 0
      %721 = vmatmul.mubr.bf16.gmra.mxu0 %v562
      %v722 = vpop.f32.mrf.mxu0
      %v723 = vadd.f32 0.0, %v722
      %v724 = vpop.f32.mrf.mxu0
      %v725 = vpop.f32.mrf.mxu0
      %v726 = vadd.f32 0.0, %v725
      %v727 = vpop.f32.mrf.mxu0
      %728 = vdwg.mxu0
      %v730 = vsel %vm515, %v446, 0
      %v733 = vsel %vm515, %v447, 0
      %v736 = vsel %vm515, %v448, 0
      %v739 = vsel %vm515, %v449, 0
      %v742 = vsel %vm515, %v450, 0
      %v745 = vsel %vm515, %v451, 0
      %v748 = vsel %vm515, %v452, 0
      %v751 = vsel %vm515, %v453, 0
      %v754 = vsel %vm515, %v454, 0
      %v757 = vsel %vm515, %v455, 0
      %v760 = vsel %vm515, %v456, 0
      %v763 = vsel %vm515, %v457, 0
      %v766 = vsel %vm515, %v458, 0
      %v769 = vsel %vm515, %v459, 0
      %v772 = vsel %vm515, %v460, 0
      %v775 = vsel %vm564, %v461, 0
      %777 = vmatprep.subr.bf16.mxu0 0
      %778 = vmatpush1.bf16.msra.mxu0 0
      %779 = vmatprep.subr.bf16.mxu0 0
      %780 = vmatpush1.bf16.msra.mxu0 0
      %781 = vmatprep.subr.bf16.mxu0 0
      %782 = vmatpush1.bf16.msra.mxu0 0
      %783 = vmatprep.subr.bf16.mxu0 0
      %784 = vmatpush1.bf16.msra.mxu0 0
      %785 = vmatprep.subr.bf16.mxu0 0
      %786 = vmatpush1.bf16.msra.mxu0 0
      %787 = vmatprep.subr.bf16.mxu0 0
      %788 = vmatpush1.bf16.msra.mxu0 0
      %789 = vmatprep.subr.bf16.mxu0 0
      %790 = vmatpush1.bf16.msra.mxu0 0
      %791 = vmatprep.subr.bf16.mxu0 0
      %792 = vmatpush1.bf16.msra.mxu0 %v775
      %793 = vmatprep.subr.bf16.mxu0 0
      %794 = vmatpush2.bf16.msra.mxu0 0
      %795 = vmatprep.subr.bf16.mxu0 0
      %796 = vmatpush2.bf16.msra.mxu0 0
      %797 = vmatprep.subr.bf16.mxu0 0
      %798 = vmatpush2.bf16.msra.mxu0 0
      %799 = vmatprep.subr.bf16.mxu0 0
      %800 = vmatpush2.bf16.msra.mxu0 0
      %801 = vmatprep.subr.bf16.mxu0 0
      %802 = vmatpush2.bf16.msra.mxu0 0
      %803 = vmatprep.subr.bf16.mxu0 0
      %804 = vmatpush2.bf16.msra.mxu0 0
      %805 = vmatprep.subr.bf16.mxu0 0
      %806 = vmatpush2.bf16.msra.mxu0 0
      %807 = vmatprep.subr.bf16.mxu0 0
      %808 = vmatpush2.bf16.msra.mxu0 0
      %809 = vmatprep.mubr.bf16.mxu0 0
      %810 = vmatmul.mubr.bf16.gmra.mxu0 %v517
      %v811 = vpop.f32.mrf.mxu0
      %v812 = vadd.f32 %v603, %v811
      %v813 = vpop.f32.mrf.mxu0
      %v814 = vpop.f32.mrf.mxu0
      %v815 = vadd.f32 %v606, %v814
      %v816 = vpop.f32.mrf.mxu0
      %817 = vmatprep.mubr.bf16.mxu0 0
      %818 = vmatmul.mubr.bf16.gmra.mxu0 %v730
      %v819 = vpop.f32.mrf.mxu0
      %v820 = vadd.f32 %v611, %v819
      %v821 = vpop.f32.mrf.mxu0
      %v822 = vpop.f32.mrf.mxu0
      %v823 = vadd.f32 %v614, %v822
      %v824 = vpop.f32.mrf.mxu0
      %825 = vmatprep.mubr.bf16.mxu0 0
      %826 = vmatmul.mubr.bf16.gmra.mxu0 %v733
      %v827 = vpop.f32.mrf.mxu0
      %v828 = vadd.f32 %v619, %v827
      %v829 = vpop.f32.mrf.mxu0
      %v830 = vpop.f32.mrf.mxu0
      %v831 = vadd.f32 %v622, %v830
      %v832 = vpop.f32.mrf.mxu0
      %833 = vmatprep.mubr.bf16.mxu0 0
      %834 = vmatmul.mubr.bf16.gmra.mxu0 %v736
      %v835 = vpop.f32.mrf.mxu0
      %v836 = vadd.f32 %v627, %v835
      %v837 = vpop.f32.mrf.mxu0
      %v838 = vpop.f32.mrf.mxu0
      %v839 = vadd.f32 %v630, %v838
      %v840 = vpop.f32.mrf.mxu0
      %841 = vmatprep.mubr.bf16.mxu0 0
      %842 = vmatmul.mubr.bf16.gmra.mxu0 %v739
      %v843 = vpop.f32.mrf.mxu0
      %v844 = vadd.f32 %v635, %v843
      %v845 = vpop.f32.mrf.mxu0
      %v846 = vpop.f32.mrf.mxu0
      %v847 = vadd.f32 %v638, %v846
      %v848 = vpop.f32.mrf.mxu0
      %849 = vmatprep.mubr.bf16.mxu0 0
      %850 = vmatmul.mubr.bf16.gmra.mxu0 %v742
      %v851 = vpop.f32.mrf.mxu0
      %v852 = vadd.f32 %v643, %v851
      %v853 = vpop.f32.mrf.mxu0
      %v854 = vpop.f32.mrf.mxu0
      %v855 = vadd.f32 %v646, %v854
      %v856 = vpop.f32.mrf.mxu0
      %857 = vmatprep.mubr.bf16.mxu0 0
      %858 = vmatmul.mubr.bf16.gmra.mxu0 %v745
      %v859 = vpop.f32.mrf.mxu0
      %v860 = vadd.f32 %v651, %v859
      %v861 = vpop.f32.mrf.mxu0
      %v862 = vpop.f32.mrf.mxu0
      %v863 = vadd.f32 %v654, %v862
      %v864 = vpop.f32.mrf.mxu0
      %865 = vmatprep.mubr.bf16.mxu0 0
      %866 = vmatmul.mubr.bf16.gmra.mxu0 %v748
      %v867 = vpop.f32.mrf.mxu0
      %v868 = vadd.f32 %v659, %v867
      %v869 = vpop.f32.mrf.mxu0
      %v870 = vpop.f32.mrf.mxu0
      %v871 = vadd.f32 %v662, %v870
      %v872 = vpop.f32.mrf.mxu0
      %873 = vmatprep.mubr.bf16.mxu0 0
      %874 = vmatmul.mubr.bf16.gmra.mxu0 %v751
      %v875 = vpop.f32.mrf.mxu0
      %v876 = vadd.f32 %v667, %v875
      %v877 = vpop.f32.mrf.mxu0
      %v878 = vpop.f32.mrf.mxu0
      %v879 = vadd.f32 %v670, %v878
      %v880 = vpop.f32.mrf.mxu0
      %881 = vmatprep.mubr.bf16.mxu0 0
      %882 = vmatmul.mubr.bf16.gmra.mxu0 %v754
      %v883 = vpop.f32.mrf.mxu0
      %v884 = vadd.f32 %v675, %v883
      %v885 = vpop.f32.mrf.mxu0
      %v886 = vpop.f32.mrf.mxu0
      %v887 = vadd.f32 %v678, %v886
      %v888 = vpop.f32.mrf.mxu0
      %889 = vmatprep.mubr.bf16.mxu0 0
      %890 = vmatmul.mubr.bf16.gmra.mxu0 %v757
      %v891 = vpop.f32.mrf.mxu0
      %v892 = vadd.f32 %v683, %v891
      %v893 = vpop.f32.mrf.mxu0
      %v894 = vpop.f32.mrf.mxu0
      %v895 = vadd.f32 %v686, %v894
      %v896 = vpop.f32.mrf.mxu0
      %897 = vmatprep.mubr.bf16.mxu0 0
      %898 = vmatmul.mubr.bf16.gmra.mxu0 %v760
      %v899 = vpop.f32.mrf.mxu0
      %v900 = vadd.f32 %v691, %v899
      %v901 = vpop.f32.mrf.mxu0
      %v902 = vpop.f32.mrf.mxu0
      %v903 = vadd.f32 %v694, %v902
      %v904 = vpop.f32.mrf.mxu0
      %905 = vmatprep.mubr.bf16.mxu0 0
      %906 = vmatmul.mubr.bf16.gmra.mxu0 %v763
      %v907 = vpop.f32.mrf.mxu0
      %v908 = vadd.f32 %v699, %v907
      %v909 = vpop.f32.mrf.mxu0
      %v910 = vpop.f32.mrf.mxu0
      %v911 = vadd.f32 %v702, %v910
      %v912 = vpop.f32.mrf.mxu0
      %913 = vmatprep.mubr.bf16.mxu0 0
      %914 = vmatmul.mubr.bf16.gmra.mxu0 %v766
      %v915 = vpop.f32.mrf.mxu0
      %v916 = vadd.f32 %v707, %v915
      %v917 = vpop.f32.mrf.mxu0
      %v918 = vpop.f32.mrf.mxu0
      %v919 = vadd.f32 %v710, %v918
      %v920 = vpop.f32.mrf.mxu0
      %921 = vmatprep.mubr.bf16.mxu0 0
      %922 = vmatmul.mubr.bf16.gmra.mxu0 %v769
      %v923 = vpop.f32.mrf.mxu0
      %v924 = vadd.f32 %v715, %v923
      %v925 = vpop.f32.mrf.mxu0
      %v926 = vpop.f32.mrf.mxu0
      %v927 = vadd.f32 %v718, %v926
      %v928 = vpop.f32.mrf.mxu0
      %929 = vmatprep.mubr.bf16.mxu0 0
      %930 = vmatmul.mubr.bf16.gmra.mxu0 %v772
      %v931 = vpop.f32.mrf.mxu0
      %v932 = vadd.f32 %v723, %v931
      %v933 = vpop.f32.mrf.mxu0
      %v934 = vpop.f32.mrf.mxu0
      %v935 = vadd.f32 %v726, %v934
      %v936 = vpop.f32.mrf.mxu0
      %937 = vdwg.mxu0
      %v938 = vrot.slane %v312, 1
      %v939 = vrot.slane %v313, 1
      %v940 = vrot.slane %v314, 1
      %v941 = vrot.slane %v315, 1
      %v942 = vrot.slane %v316, 1
      %v943 = vrot.slane %v317, 1
      %v944 = vrot.slane %v318, 1
      %v945 = vrot.slane %v319, 1
      %v946 = vrot.slane %v320, 1
      %v947 = vrot.slane %v321, 1
      %v948 = vrot.slane %v322, 1
      %v949 = vrot.slane %v323, 1
      %v950 = vrot.slane %v324, 1
      %v951 = vrot.slane %v325, 1
      %v952 = vrot.slane %v326, 1
      %v953 = vrot.slane %v327, 1
      %v954 = vrot.slane %v328, 1
      %v955 = vrot.slane %v329, 1
      %v956 = vrot.slane %v330, 1
      %v957 = vrot.slane %v331, 1
      %v958 = vrot.slane %v332, 1
      %v959 = vrot.slane %v333, 1
      %v960 = vrot.slane %v334, 1
      %v961 = vrot.slane %v335, 1
      %v962 = vrot.slane %v336, 1
      %v963 = vrot.slane %v337, 1
      %v964 = vrot.slane %v338, 1
      %v965 = vrot.slane %v339, 1
      %v966 = vrot.slane %v340, 1
      %v967 = vrot.slane %v341, 1
      %v968 = vrot.slane %v342, 1
      %vm969 = vcmp.lt.s32.totalorder %v345, 7
      %v970 = vsel %vm969, %v967, %v968
      %v971 = vsel %vm969, %v966, %v967
      %v972 = vsel %vm969, %v965, %v966
      %v973 = vsel %vm969, %v964, %v965
      %v974 = vsel %vm969, %v963, %v964
      %v975 = vsel %vm969, %v962, %v963
      %v976 = vsel %vm969, %v961, %v962
      %v977 = vsel %vm969, %v960, %v961
      %v978 = vsel %vm969, %v959, %v960
      %v979 = vsel %vm969, %v958, %v959
      %v980 = vsel %vm969, %v957, %v958
      %v981 = vsel %vm969, %v956, %v957
      %v982 = vsel %vm969, %v955, %v956
      %v983 = vsel %vm969, %v954, %v955
      %v984 = vsel %vm969, %v953, %v954
      %v985 = vsel %vm969, %v952, %v953
      %v986 = vsel %vm969, %v951, %v952
      %v987 = vsel %vm969, %v950, %v951
      %v988 = vsel %vm969, %v949, %v950
      %v989 = vsel %vm969, %v948, %v949
      %v990 = vsel %vm969, %v947, %v948
      %v991 = vsel %vm969, %v946, %v947
      %v992 = vsel %vm969, %v945, %v946
      %v993 = vsel %vm969, %v944, %v945
      %v994 = vsel %vm969, %v943, %v944
      %v995 = vsel %vm969, %v942, %v943
      %v996 = vsel %vm969, %v941, %v942
      %v997 = vsel %vm969, %v940, %v941
      %v998 = vsel %vm969, %v939, %v940
      %v999 = vsel %vm969, %v938, %v939
      %vm1000 = vcmp.ge.s32.totalorder %v345, 4294967295
      %vm1001 = vcmp.ge.s32.totalorder %v346, 4294967295
      %vm1002 = vcmp.lt.s32.totalorder %v345, 15
      %vm1003 = vcmp.lt.s32.totalorder %v346, 15
      %vm1004 = vmand %vm1000, %vm1002
      %vm1005 = vmand %vm1001, %vm1003
      %v1006 = vsel %vm1004, %v999, 0.0
      %v1007 = vsel %vm1005, %v998, 0.0
      %v1008 = vsel %vm1004, %v997, 0.0
      %v1009 = vsel %vm1005, %v996, 0.0
      %v1010 = vsel %vm1004, %v995, 0.0
      %v1011 = vsel %vm1005, %v994, 0.0
      %v1012 = vsel %vm1004, %v993, 0.0
      %v1013 = vsel %vm1005, %v992, 0.0
      %v1014 = vsel %vm1004, %v991, 0.0
      %v1015 = vsel %vm1005, %v990, 0.0
      %v1016 = vsel %vm1004, %v989, 0.0
      %v1017 = vsel %vm1005, %v988, 0.0
      %v1018 = vsel %vm1004, %v987, 0.0
      %v1019 = vsel %vm1005, %v986, 0.0
      %v1020 = vsel %vm1004, %v985, 0.0
      %v1021 = vsel %vm1005, %v984, 0.0
      %v1022 = vsel %vm1004, %v983, 0.0
      %v1023 = vsel %vm1005, %v982, 0.0
      %v1024 = vsel %vm1004, %v981, 0.0
      %v1025 = vsel %vm1005, %v980, 0.0
      %v1026 = vsel %vm1004, %v979, 0.0
      %v1027 = vsel %vm1005, %v978, 0.0
      %v1028 = vsel %vm1004, %v977, 0.0
      %v1029 = vsel %vm1005, %v976, 0.0
      %v1030 = vsel %vm1004, %v975, 0.0
      %v1031 = vsel %vm1005, %v974, 0.0
      %v1032 = vsel %vm1004, %v973, 0.0
      %v1033 = vsel %vm1005, %v972, 0.0
      %v1034 = vsel %vm1004, %v971, 0.0
      %v1035 = vsel %vm1005, %v970, 0.0
      %v1036 = vpack.c.bf16 %v1007, %v1006
      %v1037 = vpack.c.bf16 %v1009, %v1008
      %v1038 = vpack.c.bf16 %v1011, %v1010
      %v1039 = vpack.c.bf16 %v1013, %v1012
      %v1040 = vpack.c.bf16 %v1015, %v1014
      %v1041 = vpack.c.bf16 %v1017, %v1016
      %v1042 = vpack.c.bf16 %v1019, %v1018
      %v1043 = vpack.c.bf16 %v1021, %v1020
      %v1044 = vpack.c.bf16 %v1023, %v1022
      %v1045 = vpack.c.bf16 %v1025, %v1024
      %v1046 = vpack.c.bf16 %v1027, %v1026
      %v1047 = vpack.c.bf16 %v1029, %v1028
      %v1048 = vpack.c.bf16 %v1031, %v1030
      %v1049 = vpack.c.bf16 %v1033, %v1032
      %v1050 = vpack.c.bf16 %v1035, %v1034
      %s1051 = scalar_lea.vmem %s1, 4
      %v1052 = vld [vmem:[%s1051] sm:$0x3]
      %v1054 = vsel %vm515, %v1036, 0
      %v1057 = vsel %vm515, %v1037, 0
      %v1060 = vsel %vm515, %v1038, 0
      %v1063 = vsel %vm515, %v1039, 0
      %v1066 = vsel %vm515, %v1040, 0
      %v1069 = vsel %vm515, %v1041, 0
      %v1072 = vsel %vm515, %v1042, 0
      %v1075 = vsel %vm515, %v1043, 0
      %v1078 = vsel %vm515, %v1044, 0
      %v1081 = vsel %vm515, %v1045, 0
      %v1084 = vsel %vm515, %v1046, 0
      %v1087 = vsel %vm515, %v1047, 0
      %v1090 = vsel %vm515, %v1048, 0
      %v1093 = vsel %vm515, %v1049, 0
      %v1096 = vsel %vm515, %v1050, 0
      %v1099 = vsel %vm564, %v1052, 0
      %1101 = vmatprep.subr.bf16.mxu0 0
      %1102 = vmatpush1.bf16.msra.mxu0 0
      %1103 = vmatprep.subr.bf16.mxu0 0
      %1104 = vmatpush1.bf16.msra.mxu0 0
      %1105 = vmatprep.subr.bf16.mxu0 0
      %1106 = vmatpush1.bf16.msra.mxu0 0
      %1107 = vmatprep.subr.bf16.mxu0 0
      %1108 = vmatpush1.bf16.msra.mxu0 0
      %1109 = vmatprep.subr.bf16.mxu0 0
      %1110 = vmatpush1.bf16.msra.mxu0 0
      %1111 = vmatprep.subr.bf16.mxu0 0
      %1112 = vmatpush1.bf16.msra.mxu0 0
      %1113 = vmatprep.subr.bf16.mxu0 0
      %1114 = vmatpush1.bf16.msra.mxu0 0
      %1115 = vmatprep.subr.bf16.mxu0 0
      %1116 = vmatpush1.bf16.msra.mxu0 %v1099
      %1117 = vmatprep.subr.bf16.mxu0 0
      %1118 = vmatpush2.bf16.msra.mxu0 0
      %1119 = vmatprep.subr.bf16.mxu0 0
      %1120 = vmatpush2.bf16.msra.mxu0 0
      %1121 = vmatprep.subr.bf16.mxu0 0
      %1122 = vmatpush2.bf16.msra.mxu0 0
      %1123 = vmatprep.subr.bf16.mxu0 0
      %1124 = vmatpush2.bf16.msra.mxu0 0
      %1125 = vmatprep.subr.bf16.mxu0 0
      %1126 = vmatpush2.bf16.msra.mxu0 0
      %1127 = vmatprep.subr.bf16.mxu0 0
      %1128 = vmatpush2.bf16.msra.mxu0 0
      %1129 = vmatprep.subr.bf16.mxu0 0
      %1130 = vmatpush2.bf16.msra.mxu0 0
      %1131 = vmatprep.subr.bf16.mxu0 0
      %1132 = vmatpush2.bf16.msra.mxu0 0
      %1133 = vmatprep.mubr.bf16.mxu0 0
      %1134 = vmatmul.mubr.bf16.gmra.mxu0 %v517
      %v1135 = vpop.f32.mrf.mxu0
      %v1136 = vadd.f32 0.0, %v1135
      %v1137 = vpop.f32.mrf.mxu0
      %v1138 = vpop.f32.mrf.mxu0
      %v1139 = vadd.f32 0.0, %v1138
      %v1140 = vpop.f32.mrf.mxu0
      %1141 = vmatprep.mubr.bf16.mxu0 0
      %1142 = vmatmul.mubr.bf16.gmra.mxu0 %v1054
      %v1143 = vpop.f32.mrf.mxu0
      %v1144 = vadd.f32 0.0, %v1143
      %v1145 = vpop.f32.mrf.mxu0
      %v1146 = vpop.f32.mrf.mxu0
      %v1147 = vadd.f32 0.0, %v1146
      %v1148 = vpop.f32.mrf.mxu0
      %1149 = vmatprep.mubr.bf16.mxu0 0
      %1150 = vmatmul.mubr.bf16.gmra.mxu0 %v1057
      %v1151 = vpop.f32.mrf.mxu0
      %v1152 = vadd.f32 0.0, %v1151
      %v1153 = vpop.f32.mrf.mxu0
      %v1154 = vpop.f32.mrf.mxu0
      %v1155 = vadd.f32 0.0, %v1154
      %v1156 = vpop.f32.mrf.mxu0
      %1157 = vmatprep.mubr.bf16.mxu0 0
      %1158 = vmatmul.mubr.bf16.gmra.mxu0 %v1060
      %v1159 = vpop.f32.mrf.mxu0
      %v1160 = vadd.f32 0.0, %v1159
      %v1161 = vpop.f32.mrf.mxu0
      %v1162 = vpop.f32.mrf.mxu0
      %v1163 = vadd.f32 0.0, %v1162
      %v1164 = vpop.f32.mrf.mxu0
      %1165 = vmatprep.mubr.bf16.mxu0 0
      %1166 = vmatmul.mubr.bf16.gmra.mxu0 %v1063
      %v1167 = vpop.f32.mrf.mxu0
      %v1168 = vadd.f32 0.0, %v1167
      %v1169 = vpop.f32.mrf.mxu0
      %v1170 = vpop.f32.mrf.mxu0
      %v1171 = vadd.f32 0.0, %v1170
      %v1172 = vpop.f32.mrf.mxu0
      %1173 = vmatprep.mubr.bf16.mxu0 0
      %1174 = vmatmul.mubr.bf16.gmra.mxu0 %v1066
      %v1175 = vpop.f32.mrf.mxu0
      %v1176 = vadd.f32 0.0, %v1175
      %v1177 = vpop.f32.mrf.mxu0
      %v1178 = vpop.f32.mrf.mxu0
      %v1179 = vadd.f32 0.0, %v1178
      %v1180 = vpop.f32.mrf.mxu0
      %1181 = vmatprep.mubr.bf16.mxu0 0
      %1182 = vmatmul.mubr.bf16.gmra.mxu0 %v1069
      %v1183 = vpop.f32.mrf.mxu0
      %v1184 = vadd.f32 0.0, %v1183
      %v1185 = vpop.f32.mrf.mxu0
      %v1186 = vpop.f32.mrf.mxu0
      %v1187 = vadd.f32 0.0, %v1186
      %v1188 = vpop.f32.mrf.mxu0
      %1189 = vmatprep.mubr.bf16.mxu0 0
      %1190 = vmatmul.mubr.bf16.gmra.mxu0 %v1072
      %v1191 = vpop.f32.mrf.mxu0
      %v1192 = vadd.f32 0.0, %v1191
      %v1193 = vpop.f32.mrf.mxu0
      %v1194 = vpop.f32.mrf.mxu0
      %v1195 = vadd.f32 0.0, %v1194
      %v1196 = vpop.f32.mrf.mxu0
      %1197 = vmatprep.mubr.bf16.mxu0 0
      %1198 = vmatmul.mubr.bf16.gmra.mxu0 %v1075
      %v1199 = vpop.f32.mrf.mxu0
      %v1200 = vadd.f32 0.0, %v1199
      %v1201 = vpop.f32.mrf.mxu0
      %v1202 = vpop.f32.mrf.mxu0
      %v1203 = vadd.f32 0.0, %v1202
      %v1204 = vpop.f32.mrf.mxu0
      %1205 = vmatprep.mubr.bf16.mxu0 0
      %1206 = vmatmul.mubr.bf16.gmra.mxu0 %v1078
      %v1207 = vpop.f32.mrf.mxu0
      %v1208 = vadd.f32 0.0, %v1207
      %v1209 = vpop.f32.mrf.mxu0
      %v1210 = vpop.f32.mrf.mxu0
      %v1211 = vadd.f32 0.0, %v1210
      %v1212 = vpop.f32.mrf.mxu0
      %1213 = vmatprep.mubr.bf16.mxu0 0
      %1214 = vmatmul.mubr.bf16.gmra.mxu0 %v1081
      %v1215 = vpop.f32.mrf.mxu0
      %v1216 = vadd.f32 0.0, %v1215
      %v1217 = vpop.f32.mrf.mxu0
      %v1218 = vpop.f32.mrf.mxu0
      %v1219 = vadd.f32 0.0, %v1218
      %v1220 = vpop.f32.mrf.mxu0
      %1221 = vmatprep.mubr.bf16.mxu0 0
      %1222 = vmatmul.mubr.bf16.gmra.mxu0 %v1084
      %v1223 = vpop.f32.mrf.mxu0
      %v1224 = vadd.f32 0.0, %v1223
      %v1225 = vpop.f32.mrf.mxu0
      %v1226 = vpop.f32.mrf.mxu0
      %v1227 = vadd.f32 0.0, %v1226
      %v1228 = vpop.f32.mrf.mxu0
      %1229 = vmatprep.mubr.bf16.mxu0 0
      %1230 = vmatmul.mubr.bf16.gmra.mxu0 %v1087
      %v1231 = vpop.f32.mrf.mxu0
      %v1232 = vadd.f32 0.0, %v1231
      %v1233 = vpop.f32.mrf.mxu0
      %v1234 = vpop.f32.mrf.mxu0
      %v1235 = vadd.f32 0.0, %v1234
      %v1236 = vpop.f32.mrf.mxu0
      %1237 = vmatprep.mubr.bf16.mxu0 0
      %1238 = vmatmul.mubr.bf16.gmra.mxu0 %v1090
      %v1239 = vpop.f32.mrf.mxu0
      %v1240 = vadd.f32 0.0, %v1239
      %v1241 = vpop.f32.mrf.mxu0
      %v1242 = vpop.f32.mrf.mxu0
      %v1243 = vadd.f32 0.0, %v1242
      %v1244 = vpop.f32.mrf.mxu0
      %1245 = vmatprep.mubr.bf16.mxu0 0
      %1246 = vmatmul.mubr.bf16.gmra.mxu0 %v1093
      %v1247 = vpop.f32.mrf.mxu0
      %v1248 = vadd.f32 0.0, %v1247
      %v1249 = vpop.f32.mrf.mxu0
      %v1250 = vpop.f32.mrf.mxu0
      %v1251 = vadd.f32 0.0, %v1250
      %v1252 = vpop.f32.mrf.mxu0
      %1253 = vmatprep.mubr.bf16.mxu0 0
      %1254 = vmatmul.mubr.bf16.gmra.mxu0 %v1096
      %v1255 = vpop.f32.mrf.mxu0
      %v1256 = vadd.f32 0.0, %v1255
      %v1257 = vpop.f32.mrf.mxu0
      %v1258 = vpop.f32.mrf.mxu0
      %v1259 = vadd.f32 0.0, %v1258
      %v1260 = vpop.f32.mrf.mxu0
      %1261 = vdwg.mxu0
      %v1262 = vadd.f32 %v812, %v1136
      %v1263 = vadd.f32 %v815, %v1139
      %v1264 = vadd.f32 %v820, %v1144
      %v1265 = vadd.f32 %v823, %v1147
      %v1266 = vadd.f32 %v828, %v1152
      %v1267 = vadd.f32 %v831, %v1155
      %v1268 = vadd.f32 %v836, %v1160
      %v1269 = vadd.f32 %v839, %v1163
      %v1270 = vadd.f32 %v844, %v1168
      %v1271 = vadd.f32 %v847, %v1171
      %v1272 = vadd.f32 %v852, %v1176
      %v1273 = vadd.f32 %v855, %v1179
      %v1274 = vadd.f32 %v860, %v1184
      %v1275 = vadd.f32 %v863, %v1187
      %v1276 = vadd.f32 %v868, %v1192
      %v1277 = vadd.f32 %v871, %v1195
      %v1278 = vadd.f32 %v876, %v1200
      %v1279 = vadd.f32 %v879, %v1203
      %v1280 = vadd.f32 %v884, %v1208
      %v1281 = vadd.f32 %v887, %v1211
      %v1282 = vadd.f32 %v892, %v1216
      %v1283 = vadd.f32 %v895, %v1219
      %v1284 = vadd.f32 %v900, %v1224
      %v1285 = vadd.f32 %v903, %v1227
      %v1286 = vadd.f32 %v908, %v1232
      %v1287 = vadd.f32 %v911, %v1235
      %v1288 = vadd.f32 %v916, %v1240
      %v1289 = vadd.f32 %v919, %v1243
      %v1290 = vadd.f32 %v924, %v1248
      %v1291 = vadd.f32 %v927, %v1251
      %v1292 = vadd.f32 %v932, %v1256
      %v1293 = vadd.f32 %v935, %v1259
      %v1294 = vrot.slane %v342, 7
      %v1295 = vsel %vm378, %v1294, %v377
      %v1296 = vsel %vm378, %v376, %v1294
      %v1297 = vsel %vm413, %v1296, 0.0
      %v1298 = vsel %vm414, %v1295, 0.0
      %v1299 = vpack.c.bf16 %v1298, %v1297
      %s1300 = scalar_lea.vmem %s1, 6
      %v1301 = vld [vmem:[%s1300] sm:$0x3]
      %v1303 = vsel %vm515, %v1299, 0
      %v1306 = vsel %vm564, %v1301, 0
      %1308 = vmatprep.subr.bf16.mxu0 0
      %1309 = vmatpush1.bf16.msra.mxu0 0
      %1310 = vmatprep.subr.bf16.mxu0 0
      %1311 = vmatpush1.bf16.msra.mxu0 0
      %1312 = vmatprep.subr.bf16.mxu0 0
      %1313 = vmatpush1.bf16.msra.mxu0 0
      %1314 = vmatprep.subr.bf16.mxu0 0
      %1315 = vmatpush1.bf16.msra.mxu0 0
      %1316 = vmatprep.subr.bf16.mxu0 0
      %1317 = vmatpush1.bf16.msra.mxu0 0
      %1318 = vmatprep.subr.bf16.mxu0 0
      %1319 = vmatpush1.bf16.msra.mxu0 0
      %1320 = vmatprep.subr.bf16.mxu0 0
      %1321 = vmatpush1.bf16.msra.mxu0 0
      %1322 = vmatprep.subr.bf16.mxu0 0
      %1323 = vmatpush1.bf16.msra.mxu0 %v1306
      %1324 = vmatprep.subr.bf16.mxu0 0
      %1325 = vmatpush2.bf16.msra.mxu0 0
      %1326 = vmatprep.subr.bf16.mxu0 0
      %1327 = vmatpush2.bf16.msra.mxu0 0
      %1328 = vmatprep.subr.bf16.mxu0 0
      %1329 = vmatpush2.bf16.msra.mxu0 0
      %1330 = vmatprep.subr.bf16.mxu0 0
      %1331 = vmatpush2.bf16.msra.mxu0 0
      %1332 = vmatprep.subr.bf16.mxu0 0
      %1333 = vmatpush2.bf16.msra.mxu0 0
      %1334 = vmatprep.subr.bf16.mxu0 0
      %1335 = vmatpush2.bf16.msra.mxu0 0
      %1336 = vmatprep.subr.bf16.mxu0 0
      %1337 = vmatpush2.bf16.msra.mxu0 0
      %1338 = vmatprep.subr.bf16.mxu0 0
      %1339 = vmatpush2.bf16.msra.mxu0 0
      %1340 = vmatprep.mubr.bf16.mxu0 0
      %1341 = vmatmul.mubr.bf16.gmra.mxu0 %v730
      %v1342 = vpop.f32.mrf.mxu0
      %v1343 = vadd.f32 0.0, %v1342
      %v1344 = vpop.f32.mrf.mxu0
      %v1345 = vpop.f32.mrf.mxu0
      %v1346 = vadd.f32 0.0, %v1345
      %v1347 = vpop.f32.mrf.mxu0
      %1348 = vmatprep.mubr.bf16.mxu0 0
      %1349 = vmatmul.mubr.bf16.gmra.mxu0 %v733
      %v1350 = vpop.f32.mrf.mxu0
      %v1351 = vadd.f32 0.0, %v1350
      %v1352 = vpop.f32.mrf.mxu0
      %v1353 = vpop.f32.mrf.mxu0
      %v1354 = vadd.f32 0.0, %v1353
      %v1355 = vpop.f32.mrf.mxu0
      %1356 = vmatprep.mubr.bf16.mxu0 0
      %1357 = vmatmul.mubr.bf16.gmra.mxu0 %v736
      %v1358 = vpop.f32.mrf.mxu0
      %v1359 = vadd.f32 0.0, %v1358
      %v1360 = vpop.f32.mrf.mxu0
      %v1361 = vpop.f32.mrf.mxu0
      %v1362 = vadd.f32 0.0, %v1361
      %v1363 = vpop.f32.mrf.mxu0
      %1364 = vmatprep.mubr.bf16.mxu0 0
      %1365 = vmatmul.mubr.bf16.gmra.mxu0 %v739
      %v1366 = vpop.f32.mrf.mxu0
      %v1367 = vadd.f32 0.0, %v1366
      %v1368 = vpop.f32.mrf.mxu0
      %v1369 = vpop.f32.mrf.mxu0
      %v1370 = vadd.f32 0.0, %v1369
      %v1371 = vpop.f32.mrf.mxu0
      %1372 = vmatprep.mubr.bf16.mxu0 0
      %1373 = vmatmul.mubr.bf16.gmra.mxu0 %v742
      %v1374 = vpop.f32.mrf.mxu0
      %v1375 = vadd.f32 0.0, %v1374
      %v1376 = vpop.f32.mrf.mxu0
      %v1377 = vpop.f32.mrf.mxu0
      %v1378 = vadd.f32 0.0, %v1377
      %v1379 = vpop.f32.mrf.mxu0
      %1380 = vmatprep.mubr.bf16.mxu0 0
      %1381 = vmatmul.mubr.bf16.gmra.mxu0 %v745
      %v1382 = vpop.f32.mrf.mxu0
      %v1383 = vadd.f32 0.0, %v1382
      %v1384 = vpop.f32.mrf.mxu0
      %v1385 = vpop.f32.mrf.mxu0
      %v1386 = vadd.f32 0.0, %v1385
      %v1387 = vpop.f32.mrf.mxu0
      %1388 = vmatprep.mubr.bf16.mxu0 0
      %1389 = vmatmul.mubr.bf16.gmra.mxu0 %v748
      %v1390 = vpop.f32.mrf.mxu0
      %v1391 = vadd.f32 0.0, %v1390
      %v1392 = vpop.f32.mrf.mxu0
      %v1393 = vpop.f32.mrf.mxu0
      %v1394 = vadd.f32 0.0, %v1393
      %v1395 = vpop.f32.mrf.mxu0
      %1396 = vmatprep.mubr.bf16.mxu0 0
      %1397 = vmatmul.mubr.bf16.gmra.mxu0 %v751
      %v1398 = vpop.f32.mrf.mxu0
      %v1399 = vadd.f32 0.0, %v1398
      %v1400 = vpop.f32.mrf.mxu0
      %v1401 = vpop.f32.mrf.mxu0
      %v1402 = vadd.f32 0.0, %v1401
      %v1403 = vpop.f32.mrf.mxu0
      %1404 = vmatprep.mubr.bf16.mxu0 0
      %1405 = vmatmul.mubr.bf16.gmra.mxu0 %v754
      %v1406 = vpop.f32.mrf.mxu0
      %v1407 = vadd.f32 0.0, %v1406
      %v1408 = vpop.f32.mrf.mxu0
      %v1409 = vpop.f32.mrf.mxu0
      %v1410 = vadd.f32 0.0, %v1409
      %v1411 = vpop.f32.mrf.mxu0
      %1412 = vmatprep.mubr.bf16.mxu0 0
      %1413 = vmatmul.mubr.bf16.gmra.mxu0 %v757
      %v1414 = vpop.f32.mrf.mxu0
      %v1415 = vadd.f32 0.0, %v1414
      %v1416 = vpop.f32.mrf.mxu0
      %v1417 = vpop.f32.mrf.mxu0
      %v1418 = vadd.f32 0.0, %v1417
      %v1419 = vpop.f32.mrf.mxu0
      %1420 = vmatprep.mubr.bf16.mxu0 0
      %1421 = vmatmul.mubr.bf16.gmra.mxu0 %v760
      %v1422 = vpop.f32.mrf.mxu0
      %v1423 = vadd.f32 0.0, %v1422
      %v1424 = vpop.f32.mrf.mxu0
      %v1425 = vpop.f32.mrf.mxu0
      %v1426 = vadd.f32 0.0, %v1425
      %v1427 = vpop.f32.mrf.mxu0
      %1428 = vmatprep.mubr.bf16.mxu0 0
      %1429 = vmatmul.mubr.bf16.gmra.mxu0 %v763
      %v1430 = vpop.f32.mrf.mxu0
      %v1431 = vadd.f32 0.0, %v1430
      %v1432 = vpop.f32.mrf.mxu0
      %v1433 = vpop.f32.mrf.mxu0
      %v1434 = vadd.f32 0.0, %v1433
      %v1435 = vpop.f32.mrf.mxu0
      %1436 = vmatprep.mubr.bf16.mxu0 0
      %1437 = vmatmul.mubr.bf16.gmra.mxu0 %v766
      %v1438 = vpop.f32.mrf.mxu0
      %v1439 = vadd.f32 0.0, %v1438
      %v1440 = vpop.f32.mrf.mxu0
      %v1441 = vpop.f32.mrf.mxu0
      %v1442 = vadd.f32 0.0, %v1441
      %v1443 = vpop.f32.mrf.mxu0
      %1444 = vmatprep.mubr.bf16.mxu0 0
      %1445 = vmatmul.mubr.bf16.gmra.mxu0 %v769
      %v1446 = vpop.f32.mrf.mxu0
      %v1447 = vadd.f32 0.0, %v1446
      %v1448 = vpop.f32.mrf.mxu0
      %v1449 = vpop.f32.mrf.mxu0
      %v1450 = vadd.f32 0.0, %v1449
      %v1451 = vpop.f32.mrf.mxu0
      %1452 = vmatprep.mubr.bf16.mxu0 0
      %1453 = vmatmul.mubr.bf16.gmra.mxu0 %v772
      %v1454 = vpop.f32.mrf.mxu0
      %v1455 = vadd.f32 0.0, %v1454
      %v1456 = vpop.f32.mrf.mxu0
      %v1457 = vpop.f32.mrf.mxu0
      %v1458 = vadd.f32 0.0, %v1457
      %v1459 = vpop.f32.mrf.mxu0
      %1460 = vmatprep.mubr.bf16.mxu0 0
      %1461 = vmatmul.mubr.bf16.gmra.mxu0 %v1303
      %v1462 = vpop.f32.mrf.mxu0
      %v1463 = vadd.f32 0.0, %v1462
      %v1464 = vpop.f32.mrf.mxu0
      %v1465 = vpop.f32.mrf.mxu0
      %v1466 = vadd.f32 0.0, %v1465
      %v1467 = vpop.f32.mrf.mxu0
      %1468 = vdwg.mxu0
      %v1469 = vadd.f32 %v1262, %v1343
      %v1470 = vadd.f32 %v1263, %v1346
      %v1471 = vadd.f32 %v1264, %v1351
      %v1472 = vadd.f32 %v1265, %v1354
      %v1473 = vadd.f32 %v1266, %v1359
      %v1474 = vadd.f32 %v1267, %v1362
      %v1475 = vadd.f32 %v1268, %v1367
      %v1476 = vadd.f32 %v1269, %v1370
      %v1477 = vadd.f32 %v1270, %v1375
      %v1478 = vadd.f32 %v1271, %v1378
      %v1479 = vadd.f32 %v1272, %v1383
      %v1480 = vadd.f32 %v1273, %v1386
      %v1481 = vadd.f32 %v1274, %v1391
      %v1482 = vadd.f32 %v1275, %v1394
      %v1483 = vadd.f32 %v1276, %v1399
      %v1484 = vadd.f32 %v1277, %v1402
      %v1485 = vadd.f32 %v1278, %v1407
      %v1486 = vadd.f32 %v1279, %v1410
      %v1487 = vadd.f32 %v1280, %v1415
      %v1488 = vadd.f32 %v1281, %v1418
      %v1489 = vadd.f32 %v1282, %v1423
      %v1490 = vadd.f32 %v1283, %v1426
      %v1491 = vadd.f32 %v1284, %v1431
      %v1492 = vadd.f32 %v1285, %v1434
      %v1493 = vadd.f32 %v1286, %v1439
      %v1494 = vadd.f32 %v1287, %v1442
      %v1495 = vadd.f32 %v1288, %v1447
      %v1496 = vadd.f32 %v1289, %v1450
      %v1497 = vadd.f32 %v1290, %v1455
      %v1498 = vadd.f32 %v1291, %v1458
      %v1499 = vadd.f32 %v1292, %v1463
      %v1500 = vadd.f32 %v1293, %v1466
      %v1501 = vsel %vm466, %v342, 0.0
      %v1502 = vsel %vm467, %v343, 0.0
      %v1503 = vpack.c.bf16 %v1502, %v1501
      %s1504 = scalar_lea.vmem %s1, 8
      %v1505 = vld [vmem:[%s1504] sm:$0x3]
      %v1507 = vsel %vm515, %v1503, 0
      %v1510 = vsel %vm564, %v1505, 0
      %1512 = vmatprep.subr.bf16.mxu0 0
      %1513 = vmatpush1.bf16.msra.mxu0 0
      %1514 = vmatprep.subr.bf16.mxu0 0
      %1515 = vmatpush1.bf16.msra.mxu0 0
      %1516 = vmatprep.subr.bf16.mxu0 0
      %1517 = vmatpush1.bf16.msra.mxu0 0
      %1518 = vmatprep.subr.bf16.mxu0 0
      %1519 = vmatpush1.bf16.msra.mxu0 0
      %1520 = vmatprep.subr.bf16.mxu0 0
      %1521 = vmatpush1.bf16.msra.mxu0 0
      %1522 = vmatprep.subr.bf16.mxu0 0
      %1523 = vmatpush1.bf16.msra.mxu0 0
      %1524 = vmatprep.subr.bf16.mxu0 0
      %1525 = vmatpush1.bf16.msra.mxu0 0
      %1526 = vmatprep.subr.bf16.mxu0 0
      %1527 = vmatpush1.bf16.msra.mxu0 %v1510
      %1528 = vmatprep.subr.bf16.mxu0 0
      %1529 = vmatpush2.bf16.msra.mxu0 0
      %1530 = vmatprep.subr.bf16.mxu0 0
      %1531 = vmatpush2.bf16.msra.mxu0 0
      %1532 = vmatprep.subr.bf16.mxu0 0
      %1533 = vmatpush2.bf16.msra.mxu0 0
      %1534 = vmatprep.subr.bf16.mxu0 0
      %1535 = vmatpush2.bf16.msra.mxu0 0
      %1536 = vmatprep.subr.bf16.mxu0 0
      %1537 = vmatpush2.bf16.msra.mxu0 0
      %1538 = vmatprep.subr.bf16.mxu0 0
      %1539 = vmatpush2.bf16.msra.mxu0 0
      %1540 = vmatprep.subr.bf16.mxu0 0
      %1541 = vmatpush2.bf16.msra.mxu0 0
      %1542 = vmatprep.subr.bf16.mxu0 0
      %1543 = vmatpush2.bf16.msra.mxu0 0
      %1544 = vmatprep.mubr.bf16.mxu0 0
      %1545 = vmatmul.mubr.bf16.gmra.mxu0 %v520
      %v1546 = vpop.f32.mrf.mxu0
      %v1547 = vadd.f32 0.0, %v1546
      %v1548 = vpop.f32.mrf.mxu0
      %v1549 = vpop.f32.mrf.mxu0
      %v1550 = vadd.f32 0.0, %v1549
      %v1551 = vpop.f32.mrf.mxu0
      %1552 = vmatprep.mubr.bf16.mxu0 0
      %1553 = vmatmul.mubr.bf16.gmra.mxu0 %v523
      %v1554 = vpop.f32.mrf.mxu0
      %v1555 = vadd.f32 0.0, %v1554
      %v1556 = vpop.f32.mrf.mxu0
      %v1557 = vpop.f32.mrf.mxu0
      %v1558 = vadd.f32 0.0, %v1557
      %v1559 = vpop.f32.mrf.mxu0
      %1560 = vmatprep.mubr.bf16.mxu0 0
      %1561 = vmatmul.mubr.bf16.gmra.mxu0 %v526
      %v1562 = vpop.f32.mrf.mxu0
      %v1563 = vadd.f32 0.0, %v1562
      %v1564 = vpop.f32.mrf.mxu0
      %v1565 = vpop.f32.mrf.mxu0
      %v1566 = vadd.f32 0.0, %v1565
      %v1567 = vpop.f32.mrf.mxu0
      %1568 = vmatprep.mubr.bf16.mxu0 0
      %1569 = vmatmul.mubr.bf16.gmra.mxu0 %v529
      %v1570 = vpop.f32.mrf.mxu0
      %v1571 = vadd.f32 0.0, %v1570
      %v1572 = vpop.f32.mrf.mxu0
      %v1573 = vpop.f32.mrf.mxu0
      %v1574 = vadd.f32 0.0, %v1573
      %v1575 = vpop.f32.mrf.mxu0
      %1576 = vmatprep.mubr.bf16.mxu0 0
      %1577 = vmatmul.mubr.bf16.gmra.mxu0 %v532
      %v1578 = vpop.f32.mrf.mxu0
      %v1579 = vadd.f32 0.0, %v1578
      %v1580 = vpop.f32.mrf.mxu0
      %v1581 = vpop.f32.mrf.mxu0
      %v1582 = vadd.f32 0.0, %v1581
      %v1583 = vpop.f32.mrf.mxu0
      %1584 = vmatprep.mubr.bf16.mxu0 0
      %1585 = vmatmul.mubr.bf16.gmra.mxu0 %v535
      %v1586 = vpop.f32.mrf.mxu0
      %v1587 = vadd.f32 0.0, %v1586
      %v1588 = vpop.f32.mrf.mxu0
      %v1589 = vpop.f32.mrf.mxu0
      %v1590 = vadd.f32 0.0, %v1589
      %v1591 = vpop.f32.mrf.mxu0
      %1592 = vmatprep.mubr.bf16.mxu0 0
      %1593 = vmatmul.mubr.bf16.gmra.mxu0 %v538
      %v1594 = vpop.f32.mrf.mxu0
      %v1595 = vadd.f32 0.0, %v1594
      %v1596 = vpop.f32.mrf.mxu0
      %v1597 = vpop.f32.mrf.mxu0
      %v1598 = vadd.f32 0.0, %v1597
      %v1599 = vpop.f32.mrf.mxu0
      %1600 = vmatprep.mubr.bf16.mxu0 0
      %1601 = vmatmul.mubr.bf16.gmra.mxu0 %v541
      %v1602 = vpop.f32.mrf.mxu0
      %v1603 = vadd.f32 0.0, %v1602
      %v1604 = vpop.f32.mrf.mxu0
      %v1605 = vpop.f32.mrf.mxu0
      %v1606 = vadd.f32 0.0, %v1605
      %v1607 = vpop.f32.mrf.mxu0
      %1608 = vmatprep.mubr.bf16.mxu0 0
      %1609 = vmatmul.mubr.bf16.gmra.mxu0 %v544
      %v1610 = vpop.f32.mrf.mxu0
      %v1611 = vadd.f32 0.0, %v1610
      %v1612 = vpop.f32.mrf.mxu0
      %v1613 = vpop.f32.mrf.mxu0
      %v1614 = vadd.f32 0.0, %v1613
      %v1615 = vpop.f32.mrf.mxu0
      %1616 = vmatprep.mubr.bf16.mxu0 0
      %1617 = vmatmul.mubr.bf16.gmra.mxu0 %v547
      %v1618 = vpop.f32.mrf.mxu0
      %v1619 = vadd.f32 0.0, %v1618
      %v1620 = vpop.f32.mrf.mxu0
      %v1621 = vpop.f32.mrf.mxu0
      %v1622 = vadd.f32 0.0, %v1621
      %v1623 = vpop.f32.mrf.mxu0
      %1624 = vmatprep.mubr.bf16.mxu0 0
      %1625 = vmatmul.mubr.bf16.gmra.mxu0 %v550
      %v1626 = vpop.f32.mrf.mxu0
      %v1627 = vadd.f32 0.0, %v1626
      %v1628 = vpop.f32.mrf.mxu0
      %v1629 = vpop.f32.mrf.mxu0
      %v1630 = vadd.f32 0.0, %v1629
      %v1631 = vpop.f32.mrf.mxu0
      %1632 = vmatprep.mubr.bf16.mxu0 0
      %1633 = vmatmul.mubr.bf16.gmra.mxu0 %v553
      %v1634 = vpop.f32.mrf.mxu0
      %v1635 = vadd.f32 0.0, %v1634
      %v1636 = vpop.f32.mrf.mxu0
      %v1637 = vpop.f32.mrf.mxu0
      %v1638 = vadd.f32 0.0, %v1637
      %v1639 = vpop.f32.mrf.mxu0
      %1640 = vmatprep.mubr.bf16.mxu0 0
      %1641 = vmatmul.mubr.bf16.gmra.mxu0 %v556
      %v1642 = vpop.f32.mrf.mxu0
      %v1643 = vadd.f32 0.0, %v1642
      %v1644 = vpop.f32.mrf.mxu0
      %v1645 = vpop.f32.mrf.mxu0
      %v1646 = vadd.f32 0.0, %v1645
      %v1647 = vpop.f32.mrf.mxu0
      %1648 = vmatprep.mubr.bf16.mxu0 0
      %1649 = vmatmul.mubr.bf16.gmra.mxu0 %v559
      %v1650 = vpop.f32.mrf.mxu0
      %v1651 = vadd.f32 0.0, %v1650
      %v1652 = vpop.f32.mrf.mxu0
      %v1653 = vpop.f32.mrf.mxu0
      %v1654 = vadd.f32 0.0, %v1653
      %v1655 = vpop.f32.mrf.mxu0
      %1656 = vmatprep.mubr.bf16.mxu0 0
      %1657 = vmatmul.mubr.bf16.gmra.mxu0 %v562
      %v1658 = vpop.f32.mrf.mxu0
      %v1659 = vadd.f32 0.0, %v1658
      %v1660 = vpop.f32.mrf.mxu0
      %v1661 = vpop.f32.mrf.mxu0
      %v1662 = vadd.f32 0.0, %v1661
      %v1663 = vpop.f32.mrf.mxu0
      %1664 = vmatprep.mubr.bf16.mxu0 0
      %1665 = vmatmul.mubr.bf16.gmra.mxu0 %v1507
      %v1666 = vpop.f32.mrf.mxu0
      %v1667 = vadd.f32 0.0, %v1666
      %v1668 = vpop.f32.mrf.mxu0
      %v1669 = vpop.f32.mrf.mxu0
      %v1670 = vadd.f32 0.0, %v1669
      %v1671 = vpop.f32.mrf.mxu0
      %1672 = vdwg.mxu0
      %v1673 = vadd.f32 %v1469, %v1547
      %v1674 = vadd.f32 %v1470, %v1550
      %v1675 = vadd.f32 %v1471, %v1555
      %v1676 = vadd.f32 %v1472, %v1558
      %v1677 = vadd.f32 %v1473, %v1563
      %v1678 = vadd.f32 %v1474, %v1566
      %v1679 = vadd.f32 %v1475, %v1571
      %v1680 = vadd.f32 %v1476, %v1574
      %v1681 = vadd.f32 %v1477, %v1579
      %v1682 = vadd.f32 %v1478, %v1582
      %v1683 = vadd.f32 %v1479, %v1587
      %v1684 = vadd.f32 %v1480, %v1590
      %v1685 = vadd.f32 %v1481, %v1595
      %v1686 = vadd.f32 %v1482, %v1598
      %v1687 = vadd.f32 %v1483, %v1603
      %v1688 = vadd.f32 %v1484, %v1606
      %v1689 = vadd.f32 %v1485, %v1611
      %v1690 = vadd.f32 %v1486, %v1614
      %v1691 = vadd.f32 %v1487, %v1619
      %v1692 = vadd.f32 %v1488, %v1622
      %v1693 = vadd.f32 %v1489, %v1627
      %v1694 = vadd.f32 %v1490, %v1630
      %v1695 = vadd.f32 %v1491, %v1635
      %v1696 = vadd.f32 %v1492, %v1638
      %v1697 = vadd.f32 %v1493, %v1643
      %v1698 = vadd.f32 %v1494, %v1646
      %v1699 = vadd.f32 %v1495, %v1651
      %v1700 = vadd.f32 %v1496, %v1654
      %v1701 = vadd.f32 %v1497, %v1659
      %v1702 = vadd.f32 %v1498, %v1662
      %v1703 = vadd.f32 %v1499, %v1667
      %v1704 = vadd.f32 %v1500, %v1670
      %v1705 = vrot.slane %v343, 1
      %v1706 = vsel %vm969, %v968, %v1705
      %v1707 = vsel %vm969, %v1705, %v938
      %v1708 = vsel %vm1004, %v1706, 0.0
      %v1709 = vsel %vm1005, %v1707, 0.0
      %v1710 = vpack.c.bf16 %v1709, %v1708
      %s1711 = scalar_lea.vmem %s1, 10
      %v1712 = vld [vmem:[%s1711] sm:$0x3]
      %v1714 = vsel %vm515, %v1710, 0
      %v1717 = vsel %vm564, %v1712, 0
      %1719 = vmatprep.subr.bf16.mxu0 0
      %1720 = vmatpush1.bf16.msra.mxu0 0
      %1721 = vmatprep.subr.bf16.mxu0 0
      %1722 = vmatpush1.bf16.msra.mxu0 0
      %1723 = vmatprep.subr.bf16.mxu0 0
      %1724 = vmatpush1.bf16.msra.mxu0 0
      %1725 = vmatprep.subr.bf16.mxu0 0
      %1726 = vmatpush1.bf16.msra.mxu0 0
      %1727 = vmatprep.subr.bf16.mxu0 0
      %1728 = vmatpush1.bf16.msra.mxu0 0
      %1729 = vmatprep.subr.bf16.mxu0 0
      %1730 = vmatpush1.bf16.msra.mxu0 0
      %1731 = vmatprep.subr.bf16.mxu0 0
      %1732 = vmatpush1.bf16.msra.mxu0 0
      %1733 = vmatprep.subr.bf16.mxu0 0
      %1734 = vmatpush1.bf16.msra.mxu0 %v1717
      %1735 = vmatprep.subr.bf16.mxu0 0
      %1736 = vmatpush2.bf16.msra.mxu0 0
      %1737 = vmatprep.subr.bf16.mxu0 0
      %1738 = vmatpush2.bf16.msra.mxu0 0
      %1739 = vmatprep.subr.bf16.mxu0 0
      %1740 = vmatpush2.bf16.msra.mxu0 0
      %1741 = vmatprep.subr.bf16.mxu0 0
      %1742 = vmatpush2.bf16.msra.mxu0 0
      %1743 = vmatprep.subr.bf16.mxu0 0
      %1744 = vmatpush2.bf16.msra.mxu0 0
      %1745 = vmatprep.subr.bf16.mxu0 0
      %1746 = vmatpush2.bf16.msra.mxu0 0
      %1747 = vmatprep.subr.bf16.mxu0 0
      %1748 = vmatpush2.bf16.msra.mxu0 0
      %1749 = vmatprep.subr.bf16.mxu0 0
      %1750 = vmatpush2.bf16.msra.mxu0 0
      %1751 = vmatprep.mubr.bf16.mxu0 0
      %1752 = vmatmul.mubr.bf16.gmra.mxu0 %v1054
      %v1753 = vpop.f32.mrf.mxu0
      %v1754 = vadd.f32 0.0, %v1753
      %v1755 = vpop.f32.mrf.mxu0
      %v1756 = vpop.f32.mrf.mxu0
      %v1757 = vadd.f32 0.0, %v1756
      %v1758 = vpop.f32.mrf.mxu0
      %1759 = vmatprep.mubr.bf16.mxu0 0
      %1760 = vmatmul.mubr.bf16.gmra.mxu0 %v1057
      %v1761 = vpop.f32.mrf.mxu0
      %v1762 = vadd.f32 0.0, %v1761
      %v1763 = vpop.f32.mrf.mxu0
      %v1764 = vpop.f32.mrf.mxu0
      %v1765 = vadd.f32 0.0, %v1764
      %v1766 = vpop.f32.mrf.mxu0
      %1767 = vmatprep.mubr.bf16.mxu0 0
      %1768 = vmatmul.mubr.bf16.gmra.mxu0 %v1060
      %v1769 = vpop.f32.mrf.mxu0
      %v1770 = vadd.f32 0.0, %v1769
      %v1771 = vpop.f32.mrf.mxu0
      %v1772 = vpop.f32.mrf.mxu0
      %v1773 = vadd.f32 0.0, %v1772
      %v1774 = vpop.f32.mrf.mxu0
      %1775 = vmatprep.mubr.bf16.mxu0 0
      %1776 = vmatmul.mubr.bf16.gmra.mxu0 %v1063
      %v1777 = vpop.f32.mrf.mxu0
      %v1778 = vadd.f32 0.0, %v1777
      %v1779 = vpop.f32.mrf.mxu0
      %v1780 = vpop.f32.mrf.mxu0
      %v1781 = vadd.f32 0.0, %v1780
      %v1782 = vpop.f32.mrf.mxu0
      %1783 = vmatprep.mubr.bf16.mxu0 0
      %1784 = vmatmul.mubr.bf16.gmra.mxu0 %v1066
      %v1785 = vpop.f32.mrf.mxu0
      %v1786 = vadd.f32 0.0, %v1785
      %v1787 = vpop.f32.mrf.mxu0
      %v1788 = vpop.f32.mrf.mxu0
      %v1789 = vadd.f32 0.0, %v1788
      %v1790 = vpop.f32.mrf.mxu0
      %1791 = vmatprep.mubr.bf16.mxu0 0
      %1792 = vmatmul.mubr.bf16.gmra.mxu0 %v1069
      %v1793 = vpop.f32.mrf.mxu0
      %v1794 = vadd.f32 0.0, %v1793
      %v1795 = vpop.f32.mrf.mxu0
      %v1796 = vpop.f32.mrf.mxu0
      %v1797 = vadd.f32 0.0, %v1796
      %v1798 = vpop.f32.mrf.mxu0
      %1799 = vmatprep.mubr.bf16.mxu0 0
      %1800 = vmatmul.mubr.bf16.gmra.mxu0 %v1072
      %v1801 = vpop.f32.mrf.mxu0
      %v1802 = vadd.f32 0.0, %v1801
      %v1803 = vpop.f32.mrf.mxu0
      %v1804 = vpop.f32.mrf.mxu0
      %v1805 = vadd.f32 0.0, %v1804
      %v1806 = vpop.f32.mrf.mxu0
      %1807 = vmatprep.mubr.bf16.mxu0 0
      %1808 = vmatmul.mubr.bf16.gmra.mxu0 %v1075
      %v1809 = vpop.f32.mrf.mxu0
      %v1810 = vadd.f32 0.0, %v1809
      %v1811 = vpop.f32.mrf.mxu0
      %v1812 = vpop.f32.mrf.mxu0
      %v1813 = vadd.f32 0.0, %v1812
      %v1814 = vpop.f32.mrf.mxu0
      %1815 = vmatprep.mubr.bf16.mxu0 0
      %1816 = vmatmul.mubr.bf16.gmra.mxu0 %v1078
      %v1817 = vpop.f32.mrf.mxu0
      %v1818 = vadd.f32 0.0, %v1817
      %v1819 = vpop.f32.mrf.mxu0
      %v1820 = vpop.f32.mrf.mxu0
      %v1821 = vadd.f32 0.0, %v1820
      %v1822 = vpop.f32.mrf.mxu0
      %1823 = vmatprep.mubr.bf16.mxu0 0
      %1824 = vmatmul.mubr.bf16.gmra.mxu0 %v1081
      %v1825 = vpop.f32.mrf.mxu0
      %v1826 = vadd.f32 0.0, %v1825
      %v1827 = vpop.f32.mrf.mxu0
      %v1828 = vpop.f32.mrf.mxu0
      %v1829 = vadd.f32 0.0, %v1828
      %v1830 = vpop.f32.mrf.mxu0
      %1831 = vmatprep.mubr.bf16.mxu0 0
      %1832 = vmatmul.mubr.bf16.gmra.mxu0 %v1084
      %v1833 = vpop.f32.mrf.mxu0
      %v1834 = vadd.f32 0.0, %v1833
      %v1835 = vpop.f32.mrf.mxu0
      %v1836 = vpop.f32.mrf.mxu0
      %v1837 = vadd.f32 0.0, %v1836
      %v1838 = vpop.f32.mrf.mxu0
      %1839 = vmatprep.mubr.bf16.mxu0 0
      %1840 = vmatmul.mubr.bf16.gmra.mxu0 %v1087
      %v1841 = vpop.f32.mrf.mxu0
      %v1842 = vadd.f32 0.0, %v1841
      %v1843 = vpop.f32.mrf.mxu0
      %v1844 = vpop.f32.mrf.mxu0
      %v1845 = vadd.f32 0.0, %v1844
      %v1846 = vpop.f32.mrf.mxu0
      %1847 = vmatprep.mubr.bf16.mxu0 0
      %1848 = vmatmul.mubr.bf16.gmra.mxu0 %v1090
      %v1849 = vpop.f32.mrf.mxu0
      %v1850 = vadd.f32 0.0, %v1849
      %v1851 = vpop.f32.mrf.mxu0
      %v1852 = vpop.f32.mrf.mxu0
      %v1853 = vadd.f32 0.0, %v1852
      %v1854 = vpop.f32.mrf.mxu0
      %1855 = vmatprep.mubr.bf16.mxu0 0
      %1856 = vmatmul.mubr.bf16.gmra.mxu0 %v1093
      %v1857 = vpop.f32.mrf.mxu0
      %v1858 = vadd.f32 0.0, %v1857
      %v1859 = vpop.f32.mrf.mxu0
      %v1860 = vpop.f32.mrf.mxu0
      %v1861 = vadd.f32 0.0, %v1860
      %v1862 = vpop.f32.mrf.mxu0
      %1863 = vmatprep.mubr.bf16.mxu0 0
      %1864 = vmatmul.mubr.bf16.gmra.mxu0 %v1096
      %v1865 = vpop.f32.mrf.mxu0
      %v1866 = vadd.f32 0.0, %v1865
      %v1867 = vpop.f32.mrf.mxu0
      %v1868 = vpop.f32.mrf.mxu0
      %v1869 = vadd.f32 0.0, %v1868
      %v1870 = vpop.f32.mrf.mxu0
      %1871 = vmatprep.mubr.bf16.mxu0 0
      %1872 = vmatmul.mubr.bf16.gmra.mxu0 %v1714
      %v1873 = vpop.f32.mrf.mxu0
      %v1874 = vadd.f32 0.0, %v1873
      %v1875 = vpop.f32.mrf.mxu0
      %v1876 = vpop.f32.mrf.mxu0
      %v1877 = vadd.f32 0.0, %v1876
      %v1878 = vpop.f32.mrf.mxu0
      %1879 = vdwg.mxu0
      %v1880 = vadd.f32 %v1673, %v1754
      %v1881 = vadd.f32 %v1674, %v1757
      %v1882 = vadd.f32 %v1675, %v1762
      %v1883 = vadd.f32 %v1676, %v1765
      %v1884 = vadd.f32 %v1677, %v1770
      %v1885 = vadd.f32 %v1678, %v1773
      %v1886 = vadd.f32 %v1679, %v1778
      %v1887 = vadd.f32 %v1680, %v1781
      %v1888 = vadd.f32 %v1681, %v1786
      %v1889 = vadd.f32 %v1682, %v1789
      %v1890 = vadd.f32 %v1683, %v1794
      %v1891 = vadd.f32 %v1684, %v1797
      %v1892 = vadd.f32 %v1685, %v1802
      %v1893 = vadd.f32 %v1686, %v1805
      %v1894 = vadd.f32 %v1687, %v1810
      %v1895 = vadd.f32 %v1688, %v1813
      %v1896 = vadd.f32 %v1689, %v1818
      %v1897 = vadd.f32 %v1690, %v1821
      %v1898 = vadd.f32 %v1691, %v1826
      %v1899 = vadd.f32 %v1692, %v1829
      %v1900 = vadd.f32 %v1693, %v1834
      %v1901 = vadd.f32 %v1694, %v1837
      %v1902 = vadd.f32 %v1695, %v1842
      %v1903 = vadd.f32 %v1696, %v1845
      %v1904 = vadd.f32 %v1697, %v1850
      %v1905 = vadd.f32 %v1698, %v1853
      %v1906 = vadd.f32 %v1699, %v1858
      %v1907 = vadd.f32 %v1700, %v1861
      %v1908 = vadd.f32 %v1701, %v1866
      %v1909 = vadd.f32 %v1702, %v1869
      %v1910 = vadd.f32 %v1703, %v1874
      %v1911 = vadd.f32 %v1704, %v1877
      %s1912 = scalar_lea.vmem %s1, 12
      %v1913 = vld [vmem:[%s1912] sm:$0x3]
      %v1915 = vsel %vm564, %v1913, 0
      %1917 = vmatprep.subr.bf16.mxu0 0
      %1918 = vmatpush1.bf16.msra.mxu0 0
      %1919 = vmatprep.subr.bf16.mxu0 0
      %1920 = vmatpush1.bf16.msra.mxu0 0
      %1921 = vmatprep.subr.bf16.mxu0 0
      %1922 = vmatpush1.bf16.msra.mxu0 0
      %1923 = vmatprep.subr.bf16.mxu0 0
      %1924 = vmatpush1.bf16.msra.mxu0 0
      %1925 = vmatprep.subr.bf16.mxu0 0
      %1926 = vmatpush1.bf16.msra.mxu0 0
      %1927 = vmatprep.subr.bf16.mxu0 0
      %1928 = vmatpush1.bf16.msra.mxu0 0
      %1929 = vmatprep.subr.bf16.mxu0 0
      %1930 = vmatpush1.bf16.msra.mxu0 0
      %1931 = vmatprep.subr.bf16.mxu0 0
      %1932 = vmatpush1.bf16.msra.mxu0 %v1915
      %1933 = vmatprep.subr.bf16.mxu0 0
      %1934 = vmatpush2.bf16.msra.mxu0 0
      %1935 = vmatprep.subr.bf16.mxu0 0
      %1936 = vmatpush2.bf16.msra.mxu0 0
      %1937 = vmatprep.subr.bf16.mxu0 0
      %1938 = vmatpush2.bf16.msra.mxu0 0
      %1939 = vmatprep.subr.bf16.mxu0 0
      %1940 = vmatpush2.bf16.msra.mxu0 0
      %1941 = vmatprep.subr.bf16.mxu0 0
      %1942 = vmatpush2.bf16.msra.mxu0 0
      %1943 = vmatprep.subr.bf16.mxu0 0
      %1944 = vmatpush2.bf16.msra.mxu0 0
      %1945 = vmatprep.subr.bf16.mxu0 0
      %1946 = vmatpush2.bf16.msra.mxu0 0
      %1947 = vmatprep.subr.bf16.mxu0 0
      %1948 = vmatpush2.bf16.msra.mxu0 0
      %1949 = vmatprep.mubr.bf16.mxu0 0
      %1950 = vmatmul.mubr.bf16.gmra.mxu0 %v733
      %v1951 = vpop.f32.mrf.mxu0
      %v1952 = vadd.f32 0.0, %v1951
      %v1953 = vpop.f32.mrf.mxu0
      %v1954 = vpop.f32.mrf.mxu0
      %v1955 = vadd.f32 0.0, %v1954
      %v1956 = vpop.f32.mrf.mxu0
      %1957 = vmatprep.mubr.bf16.mxu0 0
      %1958 = vmatmul.mubr.bf16.gmra.mxu0 %v736
      %v1959 = vpop.f32.mrf.mxu0
      %v1960 = vadd.f32 0.0, %v1959
      %v1961 = vpop.f32.mrf.mxu0
      %v1962 = vpop.f32.mrf.mxu0
      %v1963 = vadd.f32 0.0, %v1962
      %v1964 = vpop.f32.mrf.mxu0
      %1965 = vmatprep.mubr.bf16.mxu0 0
      %1966 = vmatmul.mubr.bf16.gmra.mxu0 %v739
      %v1967 = vpop.f32.mrf.mxu0
      %v1968 = vadd.f32 0.0, %v1967
      %v1969 = vpop.f32.mrf.mxu0
      %v1970 = vpop.f32.mrf.mxu0
      %v1971 = vadd.f32 0.0, %v1970
      %v1972 = vpop.f32.mrf.mxu0
      %1973 = vmatprep.mubr.bf16.mxu0 0
      %1974 = vmatmul.mubr.bf16.gmra.mxu0 %v742
      %v1975 = vpop.f32.mrf.mxu0
      %v1976 = vadd.f32 0.0, %v1975
      %v1977 = vpop.f32.mrf.mxu0
      %v1978 = vpop.f32.mrf.mxu0
      %v1979 = vadd.f32 0.0, %v1978
      %v1980 = vpop.f32.mrf.mxu0
      %1981 = vmatprep.mubr.bf16.mxu0 0
      %1982 = vmatmul.mubr.bf16.gmra.mxu0 %v745
      %v1983 = vpop.f32.mrf.mxu0
      %v1984 = vadd.f32 0.0, %v1983
      %v1985 = vpop.f32.mrf.mxu0
      %v1986 = vpop.f32.mrf.mxu0
      %v1987 = vadd.f32 0.0, %v1986
      %v1988 = vpop.f32.mrf.mxu0
      %1989 = vmatprep.mubr.bf16.mxu0 0
      %1990 = vmatmul.mubr.bf16.gmra.mxu0 %v748
      %v1991 = vpop.f32.mrf.mxu0
      %v1992 = vadd.f32 0.0, %v1991
      %v1993 = vpop.f32.mrf.mxu0
      %v1994 = vpop.f32.mrf.mxu0
      %v1995 = vadd.f32 0.0, %v1994
      %v1996 = vpop.f32.mrf.mxu0
      %1997 = vmatprep.mubr.bf16.mxu0 0
      %1998 = vmatmul.mubr.bf16.gmra.mxu0 %v751
      %v1999 = vpop.f32.mrf.mxu0
      %v2000 = vadd.f32 0.0, %v1999
      %v2001 = vpop.f32.mrf.mxu0
      %v2002 = vpop.f32.mrf.mxu0
      %v2003 = vadd.f32 0.0, %v2002
      %v2004 = vpop.f32.mrf.mxu0
      %2005 = vmatprep.mubr.bf16.mxu0 0
      %2006 = vmatmul.mubr.bf16.gmra.mxu0 %v754
      %v2007 = vpop.f32.mrf.mxu0
      %v2008 = vadd.f32 0.0, %v2007
      %v2009 = vpop.f32.mrf.mxu0
      %v2010 = vpop.f32.mrf.mxu0
      %v2011 = vadd.f32 0.0, %v2010
      %v2012 = vpop.f32.mrf.mxu0
      %2013 = vmatprep.mubr.bf16.mxu0 0
      %2014 = vmatmul.mubr.bf16.gmra.mxu0 %v757
      %v2015 = vpop.f32.mrf.mxu0
      %v2016 = vadd.f32 0.0, %v2015
      %v2017 = vpop.f32.mrf.mxu0
      %v2018 = vpop.f32.mrf.mxu0
      %v2019 = vadd.f32 0.0, %v2018
      %v2020 = vpop.f32.mrf.mxu0
      %2021 = vmatprep.mubr.bf16.mxu0 0
      %2022 = vmatmul.mubr.bf16.gmra.mxu0 %v760
      %v2023 = vpop.f32.mrf.mxu0
      %v2024 = vadd.f32 0.0, %v2023
      %v2025 = vpop.f32.mrf.mxu0
      %v2026 = vpop.f32.mrf.mxu0
      %v2027 = vadd.f32 0.0, %v2026
      %v2028 = vpop.f32.mrf.mxu0
      %2029 = vmatprep.mubr.bf16.mxu0 0
      %2030 = vmatmul.mubr.bf16.gmra.mxu0 %v763
      %v2031 = vpop.f32.mrf.mxu0
      %v2032 = vadd.f32 0.0, %v2031
      %v2033 = vpop.f32.mrf.mxu0
      %v2034 = vpop.f32.mrf.mxu0
      %v2035 = vadd.f32 0.0, %v2034
      %v2036 = vpop.f32.mrf.mxu0
      %2037 = vmatprep.mubr.bf16.mxu0 0
      %2038 = vmatmul.mubr.bf16.gmra.mxu0 %v766
      %v2039 = vpop.f32.mrf.mxu0
      %v2040 = vadd.f32 0.0, %v2039
      %v2041 = vpop.f32.mrf.mxu0
      %v2042 = vpop.f32.mrf.mxu0
      %v2043 = vadd.f32 0.0, %v2042
      %v2044 = vpop.f32.mrf.mxu0
      %2045 = vmatprep.mubr.bf16.mxu0 0
      %2046 = vmatmul.mubr.bf16.gmra.mxu0 %v769
      %v2047 = vpop.f32.mrf.mxu0
      %v2048 = vadd.f32 0.0, %v2047
      %v2049 = vpop.f32.mrf.mxu0
      %v2050 = vpop.f32.mrf.mxu0
      %v2051 = vadd.f32 0.0, %v2050
      %v2052 = vpop.f32.mrf.mxu0
      %2053 = vmatprep.mubr.bf16.mxu0 0
      %2054 = vmatmul.mubr.bf16.gmra.mxu0 %v772
      %v2055 = vpop.f32.mrf.mxu0
      %v2056 = vadd.f32 0.0, %v2055
      %v2057 = vpop.f32.mrf.mxu0
      %v2058 = vpop.f32.mrf.mxu0
      %v2059 = vadd.f32 0.0, %v2058
      %v2060 = vpop.f32.mrf.mxu0
      %2061 = vmatprep.mubr.bf16.mxu0 0
      %2062 = vmatmul.mubr.bf16.gmra.mxu0 %v1303
      %v2063 = vpop.f32.mrf.mxu0
      %v2064 = vadd.f32 0.0, %v2063
      %v2065 = vpop.f32.mrf.mxu0
      %v2066 = vpop.f32.mrf.mxu0
      %v2067 = vadd.f32 0.0, %v2066
      %v2068 = vpop.f32.mrf.mxu0
      %2069 = vmatprep.mubr.bf16.mxu0 0
      %2070 = vmatmul.mubr.bf16.gmra.mxu0 %v517
      %v2071 = vpop.f32.mrf.mxu0
      %v2072 = vadd.f32 0.0, %v2071
      %v2073 = vpop.f32.mrf.mxu0
      %v2074 = vpop.f32.mrf.mxu0
      %v2075 = vadd.f32 0.0, %v2074
      %v2076 = vpop.f32.mrf.mxu0
      %2077 = vdwg.mxu0
      %v2078 = vadd.f32 %v1880, %v1952
      %v2079 = vadd.f32 %v1881, %v1955
      %v2080 = vadd.f32 %v1882, %v1960
      %v2081 = vadd.f32 %v1883, %v1963
      %v2082 = vadd.f32 %v1884, %v1968
      %v2083 = vadd.f32 %v1885, %v1971
      %v2084 = vadd.f32 %v1886, %v1976
      %v2085 = vadd.f32 %v1887, %v1979
      %v2086 = vadd.f32 %v1888, %v1984
      %v2087 = vadd.f32 %v1889, %v1987
      %v2088 = vadd.f32 %v1890, %v1992
      %v2089 = vadd.f32 %v1891, %v1995
      %v2090 = vadd.f32 %v1892, %v2000
      %v2091 = vadd.f32 %v1893, %v2003
      %v2092 = vadd.f32 %v1894, %v2008
      %v2093 = vadd.f32 %v1895, %v2011
      %v2094 = vadd.f32 %v1896, %v2016
      %v2095 = vadd.f32 %v1897, %v2019
      %v2096 = vadd.f32 %v1898, %v2024
      %v2097 = vadd.f32 %v1899, %v2027
      %v2098 = vadd.f32 %v1900, %v2032
      %v2099 = vadd.f32 %v1901, %v2035
      %v2100 = vadd.f32 %v1902, %v2040
      %v2101 = vadd.f32 %v1903, %v2043
      %v2102 = vadd.f32 %v1904, %v2048
      %v2103 = vadd.f32 %v1905, %v2051
      %v2104 = vadd.f32 %v1906, %v2056
      %v2105 = vadd.f32 %v1907, %v2059
      %v2106 = vadd.f32 %v1908, %v2064
      %v2107 = vadd.f32 %v1909, %v2067
      %v2108 = vadd.f32 %v1910, %v2072
      %v2109 = vadd.f32 %v1911, %v2075
      %s2110 = scalar_lea.vmem %s1, 14
      %v2111 = vld [vmem:[%s2110] sm:$0x3]
      %v2113 = vsel %vm564, %v2111, 0
      %2115 = vmatprep.subr.bf16.mxu0 0
      %2116 = vmatpush1.bf16.msra.mxu0 0
      %2117 = vmatprep.subr.bf16.mxu0 0
      %2118 = vmatpush1.bf16.msra.mxu0 0
      %2119 = vmatprep.subr.bf16.mxu0 0
      %2120 = vmatpush1.bf16.msra.mxu0 0
      %2121 = vmatprep.subr.bf16.mxu0 0
      %2122 = vmatpush1.bf16.msra.mxu0 0
      %2123 = vmatprep.subr.bf16.mxu0 0
      %2124 = vmatpush1.bf16.msra.mxu0 0
      %2125 = vmatprep.subr.bf16.mxu0 0
      %2126 = vmatpush1.bf16.msra.mxu0 0
      %2127 = vmatprep.subr.bf16.mxu0 0
      %2128 = vmatpush1.bf16.msra.mxu0 0
      %2129 = vmatprep.subr.bf16.mxu0 0
      %2130 = vmatpush1.bf16.msra.mxu0 %v2113
      %2131 = vmatprep.subr.bf16.mxu0 0
      %2132 = vmatpush2.bf16.msra.mxu0 0
      %2133 = vmatprep.subr.bf16.mxu0 0
      %2134 = vmatpush2.bf16.msra.mxu0 0
      %2135 = vmatprep.subr.bf16.mxu0 0
      %2136 = vmatpush2.bf16.msra.mxu0 0
      %2137 = vmatprep.subr.bf16.mxu0 0
      %2138 = vmatpush2.bf16.msra.mxu0 0
      %2139 = vmatprep.subr.bf16.mxu0 0
      %2140 = vmatpush2.bf16.msra.mxu0 0
      %2141 = vmatprep.subr.bf16.mxu0 0
      %2142 = vmatpush2.bf16.msra.mxu0 0
      %2143 = vmatprep.subr.bf16.mxu0 0
      %2144 = vmatpush2.bf16.msra.mxu0 0
      %2145 = vmatprep.subr.bf16.mxu0 0
      %2146 = vmatpush2.bf16.msra.mxu0 0
      %2147 = vmatprep.mubr.bf16.mxu0 0
      %2148 = vmatmul.mubr.bf16.gmra.mxu0 %v523
      %v2149 = vpop.f32.mrf.mxu0
      %v2150 = vadd.f32 0.0, %v2149
      %v2151 = vpop.f32.mrf.mxu0
      %v2152 = vpop.f32.mrf.mxu0
      %v2153 = vadd.f32 0.0, %v2152
      %v2154 = vpop.f32.mrf.mxu0
      %2155 = vmatprep.mubr.bf16.mxu0 0
      %2156 = vmatmul.mubr.bf16.gmra.mxu0 %v526
      %v2157 = vpop.f32.mrf.mxu0
      %v2158 = vadd.f32 0.0, %v2157
      %v2159 = vpop.f32.mrf.mxu0
      %v2160 = vpop.f32.mrf.mxu0
      %v2161 = vadd.f32 0.0, %v2160
      %v2162 = vpop.f32.mrf.mxu0
      %2163 = vmatprep.mubr.bf16.mxu0 0
      %2164 = vmatmul.mubr.bf16.gmra.mxu0 %v529
      %v2165 = vpop.f32.mrf.mxu0
      %v2166 = vadd.f32 0.0, %v2165
      %v2167 = vpop.f32.mrf.mxu0
      %v2168 = vpop.f32.mrf.mxu0
      %v2169 = vadd.f32 0.0, %v2168
      %v2170 = vpop.f32.mrf.mxu0
      %2171 = vmatprep.mubr.bf16.mxu0 0
      %2172 = vmatmul.mubr.bf16.gmra.mxu0 %v532
      %v2173 = vpop.f32.mrf.mxu0
      %v2174 = vadd.f32 0.0, %v2173
      %v2175 = vpop.f32.mrf.mxu0
      %v2176 = vpop.f32.mrf.mxu0
      %v2177 = vadd.f32 0.0, %v2176
      %v2178 = vpop.f32.mrf.mxu0
      %2179 = vmatprep.mubr.bf16.mxu0 0
      %2180 = vmatmul.mubr.bf16.gmra.mxu0 %v535
      %v2181 = vpop.f32.mrf.mxu0
      %v2182 = vadd.f32 0.0, %v2181
      %v2183 = vpop.f32.mrf.mxu0
      %v2184 = vpop.f32.mrf.mxu0
      %v2185 = vadd.f32 0.0, %v2184
      %v2186 = vpop.f32.mrf.mxu0
      %2187 = vmatprep.mubr.bf16.mxu0 0
      %2188 = vmatmul.mubr.bf16.gmra.mxu0 %v538
      %v2189 = vpop.f32.mrf.mxu0
      %v2190 = vadd.f32 0.0, %v2189
      %v2191 = vpop.f32.mrf.mxu0
      %v2192 = vpop.f32.mrf.mxu0
      %v2193 = vadd.f32 0.0, %v2192
      %v2194 = vpop.f32.mrf.mxu0
      %2195 = vmatprep.mubr.bf16.mxu0 0
      %2196 = vmatmul.mubr.bf16.gmra.mxu0 %v541
      %v2197 = vpop.f32.mrf.mxu0
      %v2198 = vadd.f32 0.0, %v2197
      %v2199 = vpop.f32.mrf.mxu0
      %v2200 = vpop.f32.mrf.mxu0
      %v2201 = vadd.f32 0.0, %v2200
      %v2202 = vpop.f32.mrf.mxu0
      %2203 = vmatprep.mubr.bf16.mxu0 0
      %2204 = vmatmul.mubr.bf16.gmra.mxu0 %v544
      %v2205 = vpop.f32.mrf.mxu0
      %v2206 = vadd.f32 0.0, %v2205
      %v2207 = vpop.f32.mrf.mxu0
      %v2208 = vpop.f32.mrf.mxu0
      %v2209 = vadd.f32 0.0, %v2208
      %v2210 = vpop.f32.mrf.mxu0
      %2211 = vmatprep.mubr.bf16.mxu0 0
      %2212 = vmatmul.mubr.bf16.gmra.mxu0 %v547
      %v2213 = vpop.f32.mrf.mxu0
      %v2214 = vadd.f32 0.0, %v2213
      %v2215 = vpop.f32.mrf.mxu0
      %v2216 = vpop.f32.mrf.mxu0
      %v2217 = vadd.f32 0.0, %v2216
      %v2218 = vpop.f32.mrf.mxu0
      %2219 = vmatprep.mubr.bf16.mxu0 0
      %2220 = vmatmul.mubr.bf16.gmra.mxu0 %v550
      %v2221 = vpop.f32.mrf.mxu0
      %v2222 = vadd.f32 0.0, %v2221
      %v2223 = vpop.f32.mrf.mxu0
      %v2224 = vpop.f32.mrf.mxu0
      %v2225 = vadd.f32 0.0, %v2224
      %v2226 = vpop.f32.mrf.mxu0
      %2227 = vmatprep.mubr.bf16.mxu0 0
      %2228 = vmatmul.mubr.bf16.gmra.mxu0 %v553
      %v2229 = vpop.f32.mrf.mxu0
      %v2230 = vadd.f32 0.0, %v2229
      %v2231 = vpop.f32.mrf.mxu0
      %v2232 = vpop.f32.mrf.mxu0
      %v2233 = vadd.f32 0.0, %v2232
      %v2234 = vpop.f32.mrf.mxu0
      %2235 = vmatprep.mubr.bf16.mxu0 0
      %2236 = vmatmul.mubr.bf16.gmra.mxu0 %v556
      %v2237 = vpop.f32.mrf.mxu0
      %v2238 = vadd.f32 0.0, %v2237
      %v2239 = vpop.f32.mrf.mxu0
      %v2240 = vpop.f32.mrf.mxu0
      %v2241 = vadd.f32 0.0, %v2240
      %v2242 = vpop.f32.mrf.mxu0
      %2243 = vmatprep.mubr.bf16.mxu0 0
      %2244 = vmatmul.mubr.bf16.gmra.mxu0 %v559
      %v2245 = vpop.f32.mrf.mxu0
      %v2246 = vadd.f32 0.0, %v2245
      %v2247 = vpop.f32.mrf.mxu0
      %v2248 = vpop.f32.mrf.mxu0
      %v2249 = vadd.f32 0.0, %v2248
      %v2250 = vpop.f32.mrf.mxu0
      %2251 = vmatprep.mubr.bf16.mxu0 0
      %2252 = vmatmul.mubr.bf16.gmra.mxu0 %v562
      %v2253 = vpop.f32.mrf.mxu0
      %v2254 = vadd.f32 0.0, %v2253
      %v2255 = vpop.f32.mrf.mxu0
      %v2256 = vpop.f32.mrf.mxu0
      %v2257 = vadd.f32 0.0, %v2256
      %v2258 = vpop.f32.mrf.mxu0
      %2259 = vmatprep.mubr.bf16.mxu0 0
      %2260 = vmatmul.mubr.bf16.gmra.mxu0 %v1507
      %v2261 = vpop.f32.mrf.mxu0
      %v2262 = vadd.f32 0.0, %v2261
      %v2263 = vpop.f32.mrf.mxu0
      %v2264 = vpop.f32.mrf.mxu0
      %v2265 = vadd.f32 0.0, %v2264
      %v2266 = vpop.f32.mrf.mxu0
      %2267 = vmatprep.mubr.bf16.mxu0 0
      %2268 = vmatmul.mubr.bf16.gmra.mxu0 %v517
      %v2269 = vpop.f32.mrf.mxu0
      %v2270 = vadd.f32 0.0, %v2269
      %v2271 = vpop.f32.mrf.mxu0
      %v2272 = vpop.f32.mrf.mxu0
      %v2273 = vadd.f32 0.0, %v2272
      %v2274 = vpop.f32.mrf.mxu0
      %2275 = vdwg.mxu0
      %v2276 = vadd.f32 %v2078, %v2150
      %v2277 = vadd.f32 %v2079, %v2153
      %v2278 = vadd.f32 %v2080, %v2158
      %v2279 = vadd.f32 %v2081, %v2161
      %v2280 = vadd.f32 %v2082, %v2166
      %v2281 = vadd.f32 %v2083, %v2169
      %v2282 = vadd.f32 %v2084, %v2174
      %v2283 = vadd.f32 %v2085, %v2177
      %v2284 = vadd.f32 %v2086, %v2182
      %v2285 = vadd.f32 %v2087, %v2185
      %v2286 = vadd.f32 %v2088, %v2190
      %v2287 = vadd.f32 %v2089, %v2193
      %v2288 = vadd.f32 %v2090, %v2198
      %v2289 = vadd.f32 %v2091, %v2201
      %v2290 = vadd.f32 %v2092, %v2206
      %v2291 = vadd.f32 %v2093, %v2209
      %v2292 = vadd.f32 %v2094, %v2214
      %v2293 = vadd.f32 %v2095, %v2217
      %v2294 = vadd.f32 %v2096, %v2222
      %v2295 = vadd.f32 %v2097, %v2225
      %v2296 = vadd.f32 %v2098, %v2230
      %v2297 = vadd.f32 %v2099, %v2233
      %v2298 = vadd.f32 %v2100, %v2238
      %v2299 = vadd.f32 %v2101, %v2241
      %v2300 = vadd.f32 %v2102, %v2246
      %v2301 = vadd.f32 %v2103, %v2249
      %v2302 = vadd.f32 %v2104, %v2254
      %v2303 = vadd.f32 %v2105, %v2257
      %v2304 = vadd.f32 %v2106, %v2262
      %v2305 = vadd.f32 %v2107, %v2265
      %v2306 = vadd.f32 %v2108, %v2270
      %v2307 = vadd.f32 %v2109, %v2273
      %s2308 = scalar_lea.vmem %s1, 16
      %v2309 = vld [vmem:[%s2308] sm:$0x3]
      %v2311 = vsel %vm564, %v2309, 0
      %2313 = vmatprep.subr.bf16.mxu0 0
      %2314 = vmatpush1.bf16.msra.mxu0 0
      %2315 = vmatprep.subr.bf16.mxu0 0
      %2316 = vmatpush1.bf16.msra.mxu0 0
      %2317 = vmatprep.subr.bf16.mxu0 0
      %2318 = vmatpush1.bf16.msra.mxu0 0
      %2319 = vmatprep.subr.bf16.mxu0 0
      %2320 = vmatpush1.bf16.msra.mxu0 0
      %2321 = vmatprep.subr.bf16.mxu0 0
      %2322 = vmatpush1.bf16.msra.mxu0 0
      %2323 = vmatprep.subr.bf16.mxu0 0
      %2324 = vmatpush1.bf16.msra.mxu0 0
      %2325 = vmatprep.subr.bf16.mxu0 0
      %2326 = vmatpush1.bf16.msra.mxu0 0
      %2327 = vmatprep.subr.bf16.mxu0 0
      %2328 = vmatpush1.bf16.msra.mxu0 %v2311
      %2329 = vmatprep.subr.bf16.mxu0 0
      %2330 = vmatpush2.bf16.msra.mxu0 0
      %2331 = vmatprep.subr.bf16.mxu0 0
      %2332 = vmatpush2.bf16.msra.mxu0 0
      %2333 = vmatprep.subr.bf16.mxu0 0
      %2334 = vmatpush2.bf16.msra.mxu0 0
      %2335 = vmatprep.subr.bf16.mxu0 0
      %2336 = vmatpush2.bf16.msra.mxu0 0
      %2337 = vmatprep.subr.bf16.mxu0 0
      %2338 = vmatpush2.bf16.msra.mxu0 0
      %2339 = vmatprep.subr.bf16.mxu0 0
      %2340 = vmatpush2.bf16.msra.mxu0 0
      %2341 = vmatprep.subr.bf16.mxu0 0
      %2342 = vmatpush2.bf16.msra.mxu0 0
      %2343 = vmatprep.subr.bf16.mxu0 0
      %2344 = vmatpush2.bf16.msra.mxu0 0
      %2345 = vmatprep.mubr.bf16.mxu0 0
      %2346 = vmatmul.mubr.bf16.gmra.mxu0 %v1057
      %v2347 = vpop.f32.mrf.mxu0
      %v2348 = vadd.f32 0.0, %v2347
      %v2349 = vpop.f32.mrf.mxu0
      %v2350 = vpop.f32.mrf.mxu0
      %v2351 = vadd.f32 0.0, %v2350
      %v2352 = vpop.f32.mrf.mxu0
      %2353 = vmatprep.mubr.bf16.mxu0 0
      %2354 = vmatmul.mubr.bf16.gmra.mxu0 %v1060
      %v2355 = vpop.f32.mrf.mxu0
      %v2356 = vadd.f32 0.0, %v2355
      %v2357 = vpop.f32.mrf.mxu0
      %v2358 = vpop.f32.mrf.mxu0
      %v2359 = vadd.f32 0.0, %v2358
      %v2360 = vpop.f32.mrf.mxu0
      %2361 = vmatprep.mubr.bf16.mxu0 0
      %2362 = vmatmul.mubr.bf16.gmra.mxu0 %v1063
      %v2363 = vpop.f32.mrf.mxu0
      %v2364 = vadd.f32 0.0, %v2363
      %v2365 = vpop.f32.mrf.mxu0
      %v2366 = vpop.f32.mrf.mxu0
      %v2367 = vadd.f32 0.0, %v2366
      %v2368 = vpop.f32.mrf.mxu0
      %2369 = vmatprep.mubr.bf16.mxu0 0
      %2370 = vmatmul.mubr.bf16.gmra.mxu0 %v1066
      %v2371 = vpop.f32.mrf.mxu0
      %v2372 = vadd.f32 0.0, %v2371
      %v2373 = vpop.f32.mrf.mxu0
      %v2374 = vpop.f32.mrf.mxu0
      %v2375 = vadd.f32 0.0, %v2374
      %v2376 = vpop.f32.mrf.mxu0
      %2377 = vmatprep.mubr.bf16.mxu0 0
      %2378 = vmatmul.mubr.bf16.gmra.mxu0 %v1069
      %v2379 = vpop.f32.mrf.mxu0
      %v2380 = vadd.f32 0.0, %v2379
      %v2381 = vpop.f32.mrf.mxu0
      %v2382 = vpop.f32.mrf.mxu0
      %v2383 = vadd.f32 0.0, %v2382
      %v2384 = vpop.f32.mrf.mxu0
      %2385 = vmatprep.mubr.bf16.mxu0 0
      %2386 = vmatmul.mubr.bf16.gmra.mxu0 %v1072
      %v2387 = vpop.f32.mrf.mxu0
      %v2388 = vadd.f32 0.0, %v2387
      %v2389 = vpop.f32.mrf.mxu0
      %v2390 = vpop.f32.mrf.mxu0
      %v2391 = vadd.f32 0.0, %v2390
      %v2392 = vpop.f32.mrf.mxu0
      %2393 = vmatprep.mubr.bf16.mxu0 0
      %2394 = vmatmul.mubr.bf16.gmra.mxu0 %v1075
      %v2395 = vpop.f32.mrf.mxu0
      %v2396 = vadd.f32 0.0, %v2395
      %v2397 = vpop.f32.mrf.mxu0
      %v2398 = vpop.f32.mrf.mxu0
      %v2399 = vadd.f32 0.0, %v2398
      %v2400 = vpop.f32.mrf.mxu0
      %2401 = vmatprep.mubr.bf16.mxu0 0
      %2402 = vmatmul.mubr.bf16.gmra.mxu0 %v1078
      %v2403 = vpop.f32.mrf.mxu0
      %v2404 = vadd.f32 0.0, %v2403
      %v2405 = vpop.f32.mrf.mxu0
      %v2406 = vpop.f32.mrf.mxu0
      %v2407 = vadd.f32 0.0, %v2406
      %v2408 = vpop.f32.mrf.mxu0
      %2409 = vmatprep.mubr.bf16.mxu0 0
      %2410 = vmatmul.mubr.bf16.gmra.mxu0 %v1081
      %v2411 = vpop.f32.mrf.mxu0
      %v2412 = vadd.f32 0.0, %v2411
      %v2413 = vpop.f32.mrf.mxu0
      %v2414 = vpop.f32.mrf.mxu0
      %v2415 = vadd.f32 0.0, %v2414
      %v2416 = vpop.f32.mrf.mxu0
      %2417 = vmatprep.mubr.bf16.mxu0 0
      %2418 = vmatmul.mubr.bf16.gmra.mxu0 %v1084
      %v2419 = vpop.f32.mrf.mxu0
      %v2420 = vadd.f32 0.0, %v2419
      %v2421 = vpop.f32.mrf.mxu0
      %v2422 = vpop.f32.mrf.mxu0
      %v2423 = vadd.f32 0.0, %v2422
      %v2424 = vpop.f32.mrf.mxu0
      %2425 = vmatprep.mubr.bf16.mxu0 0
      %2426 = vmatmul.mubr.bf16.gmra.mxu0 %v1087
      %v2427 = vpop.f32.mrf.mxu0
      %v2428 = vadd.f32 0.0, %v2427
      %v2429 = vpop.f32.mrf.mxu0
      %v2430 = vpop.f32.mrf.mxu0
      %v2431 = vadd.f32 0.0, %v2430
      %v2432 = vpop.f32.mrf.mxu0
      %2433 = vmatprep.mubr.bf16.mxu0 0
      %2434 = vmatmul.mubr.bf16.gmra.mxu0 %v1090
      %v2435 = vpop.f32.mrf.mxu0
      %v2436 = vadd.f32 0.0, %v2435
      %v2437 = vpop.f32.mrf.mxu0
      %v2438 = vpop.f32.mrf.mxu0
      %v2439 = vadd.f32 0.0, %v2438
      %v2440 = vpop.f32.mrf.mxu0
      %2441 = vmatprep.mubr.bf16.mxu0 0
      %2442 = vmatmul.mubr.bf16.gmra.mxu0 %v1093
      %v2443 = vpop.f32.mrf.mxu0
      %v2444 = vadd.f32 0.0, %v2443
      %v2445 = vpop.f32.mrf.mxu0
      %v2446 = vpop.f32.mrf.mxu0
      %v2447 = vadd.f32 0.0, %v2446
      %v2448 = vpop.f32.mrf.mxu0
      %2449 = vmatprep.mubr.bf16.mxu0 0
      %2450 = vmatmul.mubr.bf16.gmra.mxu0 %v1096
      %v2451 = vpop.f32.mrf.mxu0
      %v2452 = vadd.f32 0.0, %v2451
      %v2453 = vpop.f32.mrf.mxu0
      %v2454 = vpop.f32.mrf.mxu0
      %v2455 = vadd.f32 0.0, %v2454
      %v2456 = vpop.f32.mrf.mxu0
      %2457 = vmatprep.mubr.bf16.mxu0 0
      %2458 = vmatmul.mubr.bf16.gmra.mxu0 %v1714
      %v2459 = vpop.f32.mrf.mxu0
      %v2460 = vadd.f32 0.0, %v2459
      %v2461 = vpop.f32.mrf.mxu0
      %v2462 = vpop.f32.mrf.mxu0
      %v2463 = vadd.f32 0.0, %v2462
      %v2464 = vpop.f32.mrf.mxu0
      %2465 = vmatprep.mubr.bf16.mxu0 0
      %2466 = vmatmul.mubr.bf16.gmra.mxu0 %v517
      %v2467 = vpop.f32.mrf.mxu0
      %v2468 = vadd.f32 0.0, %v2467
      %v2469 = vpop.f32.mrf.mxu0
      %v2470 = vpop.f32.mrf.mxu0
      %v2471 = vadd.f32 0.0, %v2470
      %v2472 = vpop.f32.mrf.mxu0
      %2473 = vdwg.mxu0
      %v2474 = vadd.f32 %v2276, %v2348
      %v2475 = vadd.f32 %v2277, %v2351
      %v2476 = vadd.f32 %v2278, %v2356
      %v2477 = vadd.f32 %v2279, %v2359
      %v2478 = vadd.f32 %v2280, %v2364
      %v2479 = vadd.f32 %v2281, %v2367
      %v2480 = vadd.f32 %v2282, %v2372
      %v2481 = vadd.f32 %v2283, %v2375
      %v2482 = vadd.f32 %v2284, %v2380
      %v2483 = vadd.f32 %v2285, %v2383
      %v2484 = vadd.f32 %v2286, %v2388
      %v2485 = vadd.f32 %v2287, %v2391
      %v2486 = vadd.f32 %v2288, %v2396
      %v2487 = vadd.f32 %v2289, %v2399
      %v2488 = vadd.f32 %v2290, %v2404
      %v2489 = vadd.f32 %v2291, %v2407
      %v2490 = vadd.f32 %v2292, %v2412
      %v2491 = vadd.f32 %v2293, %v2415
      %v2492 = vadd.f32 %v2294, %v2420
      %v2493 = vadd.f32 %v2295, %v2423
      %v2494 = vadd.f32 %v2296, %v2428
      %v2495 = vadd.f32 %v2297, %v2431
      %v2496 = vadd.f32 %v2298, %v2436
      %v2497 = vadd.f32 %v2299, %v2439
      %v2498 = vadd.f32 %v2300, %v2444
      %v2499 = vadd.f32 %v2301, %v2447
      %v2500 = vadd.f32 %v2302, %v2452
      %v2501 = vadd.f32 %v2303, %v2455
      %v2502 = vadd.f32 %v2304, %v2460
      %v2503 = vadd.f32 %v2305, %v2463
      %v2504 = vadd.f32 %v2306, %v2468
      %v2505 = vadd.f32 %v2307, %v2471
      %v2506 = vld [vmem:[%s2] sm:$0x1]
      %v2508 = vlaneseq
      %v2509 = vshrl.u32 %v2508, 7
      %v2510 = vsub.s32 0, %v2509
      %v2511 = vrot.slane %v2506, %v2510
      %v2513 = vmul.f32 %v2474, %v2511
      %v2514 = vmul.f32 %v2475, %v2511
      %v2515 = vmul.f32 %v2476, %v2511
      %v2516 = vmul.f32 %v2477, %v2511
      %v2517 = vmul.f32 %v2478, %v2511
      %v2518 = vmul.f32 %v2479, %v2511
      %v2519 = vmul.f32 %v2480, %v2511
      %v2520 = vmul.f32 %v2481, %v2511
      %v2521 = vmul.f32 %v2482, %v2511
      %v2522 = vmul.f32 %v2483, %v2511
      %v2523 = vmul.f32 %v2484, %v2511
      %v2524 = vmul.f32 %v2485, %v2511
      %v2525 = vmul.f32 %v2486, %v2511
      %v2526 = vmul.f32 %v2487, %v2511
      %v2527 = vmul.f32 %v2488, %v2511
      %v2528 = vmul.f32 %v2489, %v2511
      %v2529 = vmul.f32 %v2490, %v2511
      %v2530 = vmul.f32 %v2491, %v2511
      %v2531 = vmul.f32 %v2492, %v2511
      %v2532 = vmul.f32 %v2493, %v2511
      %v2533 = vmul.f32 %v2494, %v2511
      %v2534 = vmul.f32 %v2495, %v2511
      %v2535 = vmul.f32 %v2496, %v2511
      %v2536 = vmul.f32 %v2497, %v2511
      %v2537 = vmul.f32 %v2498, %v2511
      %v2538 = vmul.f32 %v2499, %v2511
      %v2539 = vmul.f32 %v2500, %v2511
      %v2540 = vmul.f32 %v2501, %v2511
      %v2541 = vmul.f32 %v2502, %v2511
      %v2542 = vmul.f32 %v2503, %v2511
      %v2543 = vmul.f32 %v2504, %v2511
      %v2544 = vmul.f32 %v2505, %v2511
      %v2545 = vld [vmem:[%s3] sm:$0x1]
      %v2547 = vlaneseq
      %v2548 = vshrl.u32 %v2547, 7
      %v2549 = vsub.s32 0, %v2548
      %v2550 = vrot.slane %v2545, %v2549
      %v2552 = vadd.f32 %v2513, %v2550
      %v2553 = vadd.f32 %v2514, %v2550
      %v2554 = vadd.f32 %v2515, %v2550
      %v2555 = vadd.f32 %v2516, %v2550
      %v2556 = vadd.f32 %v2517, %v2550
      %v2557 = vadd.f32 %v2518, %v2550
      %v2558 = vadd.f32 %v2519, %v2550
      %v2559 = vadd.f32 %v2520, %v2550
      %v2560 = vadd.f32 %v2521, %v2550
      %v2561 = vadd.f32 %v2522, %v2550
      %v2562 = vadd.f32 %v2523, %v2550
      %v2563 = vadd.f32 %v2524, %v2550
      %v2564 = vadd.f32 %v2525, %v2550
      %v2565 = vadd.f32 %v2526, %v2550
      %v2566 = vadd.f32 %v2527, %v2550
      %v2567 = vadd.f32 %v2528, %v2550
      %v2568 = vadd.f32 %v2529, %v2550
      %v2569 = vadd.f32 %v2530, %v2550
      %v2570 = vadd.f32 %v2531, %v2550
      %v2571 = vadd.f32 %v2532, %v2550
      %v2572 = vadd.f32 %v2533, %v2550
      %v2573 = vadd.f32 %v2534, %v2550
      %v2574 = vadd.f32 %v2535, %v2550
      %v2575 = vadd.f32 %v2536, %v2550
      %v2576 = vadd.f32 %v2537, %v2550
      %v2577 = vadd.f32 %v2538, %v2550
      %v2578 = vadd.f32 %v2539, %v2550
      %v2579 = vadd.f32 %v2540, %v2550
      %v2580 = vadd.f32 %v2541, %v2550
      %v2581 = vadd.f32 %v2542, %v2550
      %v2582 = vadd.f32 %v2543, %v2550
      %v2583 = vadd.f32 %v2544, %v2550
      %v2584 = vpack.c.bf16 %v2553, %v2552
      %v2585 = vpack.c.bf16 %v2555, %v2554
      %v2586 = vpack.c.bf16 %v2557, %v2556
      %v2587 = vpack.c.bf16 %v2559, %v2558
      %v2588 = vpack.c.bf16 %v2561, %v2560
      %v2589 = vpack.c.bf16 %v2563, %v2562
      %v2590 = vpack.c.bf16 %v2565, %v2564
      %v2591 = vpack.c.bf16 %v2567, %v2566
      %v2592 = vpack.c.bf16 %v2569, %v2568
      %v2593 = vpack.c.bf16 %v2571, %v2570
      %v2594 = vpack.c.bf16 %v2573, %v2572
      %v2595 = vpack.c.bf16 %v2575, %v2574
      %v2596 = vpack.c.bf16 %v2577, %v2576
      %v2597 = vpack.c.bf16 %v2579, %v2578
      %v2598 = vpack.c.bf16 %v2581, %v2580
      %v2599 = vpack.c.bf16 %v2583, %v2582
      %v2632 = vunpack.c.l.b16 %v280
      %v2633 = vunpack.c.l.b16 %v281
      %v2634 = vunpack.c.l.b16 %v282
      %v2635 = vunpack.c.l.b16 %v283
      %v2636 = vunpack.c.l.b16 %v284
      %v2637 = vunpack.c.l.b16 %v285
      %v2638 = vunpack.c.l.b16 %v286
      %v2639 = vunpack.c.l.b16 %v287
      %v2640 = vunpack.c.l.b16 %v288
      %v2641 = vunpack.c.l.b16 %v289
      %v2642 = vunpack.c.l.b16 %v290
      %v2643 = vunpack.c.l.b16 %v291
      %v2644 = vunpack.c.l.b16 %v292
      %v2645 = vunpack.c.l.b16 %v293
      %v2646 = vunpack.c.l.b16 %v294
      %v2647 = vunpack.c.l.b16 %v295
      %v2648 = vunpack.c.l.b16 %v296
      %v2649 = vunpack.c.l.b16 %v297
      %v2650 = vunpack.c.l.b16 %v298
      %v2651 = vunpack.c.l.b16 %v299
      %v2652 = vunpack.c.l.b16 %v300
      %v2653 = vunpack.c.l.b16 %v301
      %v2654 = vunpack.c.l.b16 %v302
      %v2655 = vunpack.c.l.b16 %v303
      %v2656 = vunpack.c.l.b16 %v304
      %v2657 = vunpack.c.l.b16 %v305
      %v2658 = vunpack.c.l.b16 %v306
      %v2659 = vunpack.c.l.b16 %v307
      %v2660 = vunpack.c.l.b16 %v308
      %v2661 = vunpack.c.l.b16 %v309
      %v2662 = vunpack.c.l.b16 %v310
      %v2663 = vunpack.c.l.b16 %v311
      %v2664 = vpack.c.b16 %v2633, %v2632
      %v2665 = vpack.c.b16 %v2635, %v2634
      %v2666 = vpack.c.b16 %v2637, %v2636
      %v2667 = vpack.c.b16 %v2639, %v2638
      %v2668 = vpack.c.b16 %v2641, %v2640
      %v2669 = vpack.c.b16 %v2643, %v2642
      %v2670 = vpack.c.b16 %v2645, %v2644
      %v2671 = vpack.c.b16 %v2647, %v2646
      %v2672 = vpack.c.b16 %v2649, %v2648
      %v2673 = vpack.c.b16 %v2651, %v2650
      %v2674 = vpack.c.b16 %v2653, %v2652
      %v2675 = vpack.c.b16 %v2655, %v2654
      %v2676 = vpack.c.b16 %v2657, %v2656
      %v2677 = vpack.c.b16 %v2659, %v2658
      %v2678 = vpack.c.b16 %v2661, %v2660
      %v2679 = vpack.c.b16 %v2663, %v2662
      %v2681 = vsel %vm515, %v2664, 0
      %v2684 = vsel %vm515, %v2665, 0
      %v2687 = vsel %vm515, %v2666, 0
      %v2690 = vsel %vm515, %v2667, 0
      %v2693 = vsel %vm515, %v2668, 0
      %v2696 = vsel %vm515, %v2669, 0
      %v2699 = vsel %vm515, %v2670, 0
      %v2702 = vsel %vm515, %v2671, 0
      %v2705 = vsel %vm515, %v2672, 0
      %v2708 = vsel %vm515, %v2673, 0
      %v2711 = vsel %vm515, %v2674, 0
      %v2714 = vsel %vm515, %v2675, 0
      %v2717 = vsel %vm515, %v2676, 0
      %v2720 = vsel %vm515, %v2677, 0
      %v2723 = vsel %vm515, %v2678, 0
      %v2726 = vsel %vm515, %v2679, 0
      %2728 = vmatprep.subr.bf16.mxu0 0
      %2729 = vmatpush1.bf16.xpose.msra.mxu0 %v2702
      %2730 = vmatprep.subr.bf16.mxu0 0
      %2731 = vmatpush1.bf16.xpose.msra.mxu0 %v2699
      %2732 = vmatprep.subr.bf16.mxu0 0
      %2733 = vmatpush1.bf16.xpose.msra.mxu0 %v2696
      %2734 = vmatprep.subr.bf16.mxu0 0
      %2735 = vmatpush1.bf16.xpose.msra.mxu0 %v2693
      %2736 = vmatprep.subr.bf16.mxu0 0
      %2737 = vmatpush1.bf16.xpose.msra.mxu0 %v2690
      %2738 = vmatprep.subr.bf16.mxu0 0
      %2739 = vmatpush1.bf16.xpose.msra.mxu0 %v2687
      %2740 = vmatprep.subr.bf16.mxu0 0
      %2741 = vmatpush1.bf16.xpose.msra.mxu0 %v2684
      %2742 = vmatprep.subr.bf16.mxu0 0
      %2743 = vmatpush1.bf16.xpose.msra.mxu0 %v2681
      %2744 = vmatprep.subr.bf16.mxu0 0
      %2745 = vmatpush2.bf16.xpose.msra.mxu0 %v2726
      %2746 = vmatprep.subr.bf16.mxu0 0
      %2747 = vmatpush2.bf16.xpose.msra.mxu0 %v2723
      %2748 = vmatprep.subr.bf16.mxu0 0
      %2749 = vmatpush2.bf16.xpose.msra.mxu0 %v2720
      %2750 = vmatprep.subr.bf16.mxu0 0
      %2751 = vmatpush2.bf16.xpose.msra.mxu0 %v2717
      %2752 = vmatprep.subr.bf16.mxu0 0
      %2753 = vmatpush2.bf16.xpose.msra.mxu0 %v2714
      %2754 = vmatprep.subr.bf16.mxu0 0
      %2755 = vmatpush2.bf16.xpose.msra.mxu0 %v2711
      %2756 = vmatprep.subr.bf16.mxu0 0
      %2757 = vmatpush2.bf16.xpose.msra.mxu0 %v2708
      %2758 = vmatprep.subr.bf16.mxu0 0
      %2759 = vmatpush2.bf16.xpose.msra.mxu0 %v2705
      %2760 = vmatprep.mubr.bf16.mxu0 0
      %2761 = vmatmul.mubr.bf16.gmra.mxu0 %v2681
      %v2762 = vpop.f32.mrf.mxu0
      %v2763 = vadd.f32 0.0, %v2762
      %v2764 = vpop.f32.mrf.mxu0
      %v2765 = vadd.f32 0.0, %v2764
      %v2766 = vpop.f32.mrf.mxu0
      %v2767 = vadd.f32 0.0, %v2766
      %v2768 = vpop.f32.mrf.mxu0
      %v2769 = vadd.f32 0.0, %v2768
      %2770 = vmatprep.mubr.bf16.mxu0 0
      %2771 = vmatmul.mubr.bf16.gmra.mxu0 %v2684
      %v2772 = vpop.f32.mrf.mxu0
      %v2773 = vadd.f32 0.0, %v2772
      %v2774 = vpop.f32.mrf.mxu0
      %v2775 = vadd.f32 0.0, %v2774
      %v2776 = vpop.f32.mrf.mxu0
      %v2777 = vadd.f32 0.0, %v2776
      %v2778 = vpop.f32.mrf.mxu0
      %v2779 = vadd.f32 0.0, %v2778
      %2780 = vmatprep.mubr.bf16.mxu0 0
      %2781 = vmatmul.mubr.bf16.gmra.mxu0 %v2687
      %v2782 = vpop.f32.mrf.mxu0
      %v2783 = vadd.f32 0.0, %v2782
      %v2784 = vpop.f32.mrf.mxu0
      %v2785 = vadd.f32 0.0, %v2784
      %v2786 = vpop.f32.mrf.mxu0
      %v2787 = vadd.f32 0.0, %v2786
      %v2788 = vpop.f32.mrf.mxu0
      %v2789 = vadd.f32 0.0, %v2788
      %2790 = vmatprep.mubr.bf16.mxu0 0
      %2791 = vmatmul.mubr.bf16.gmra.mxu0 %v2690
      %v2792 = vpop.f32.mrf.mxu0
      %v2793 = vadd.f32 0.0, %v2792
      %v2794 = vpop.f32.mrf.mxu0
      %v2795 = vadd.f32 0.0, %v2794
      %v2796 = vpop.f32.mrf.mxu0
      %v2797 = vadd.f32 0.0, %v2796
      %v2798 = vpop.f32.mrf.mxu0
      %v2799 = vadd.f32 0.0, %v2798
      %2800 = vmatprep.mubr.bf16.mxu0 0
      %2801 = vmatmul.mubr.bf16.gmra.mxu0 %v2693
      %v2802 = vpop.f32.mrf.mxu0
      %v2803 = vadd.f32 0.0, %v2802
      %v2804 = vpop.f32.mrf.mxu0
      %v2805 = vadd.f32 0.0, %v2804
      %v2806 = vpop.f32.mrf.mxu0
      %v2807 = vadd.f32 0.0, %v2806
      %v2808 = vpop.f32.mrf.mxu0
      %v2809 = vadd.f32 0.0, %v2808
      %2810 = vmatprep.mubr.bf16.mxu0 0
      %2811 = vmatmul.mubr.bf16.gmra.mxu0 %v2696
      %v2812 = vpop.f32.mrf.mxu0
      %v2813 = vadd.f32 0.0, %v2812
      %v2814 = vpop.f32.mrf.mxu0
      %v2815 = vadd.f32 0.0, %v2814
      %v2816 = vpop.f32.mrf.mxu0
      %v2817 = vadd.f32 0.0, %v2816
      %v2818 = vpop.f32.mrf.mxu0
      %v2819 = vadd.f32 0.0, %v2818
      %2820 = vmatprep.mubr.bf16.mxu0 0
      %2821 = vmatmul.mubr.bf16.gmra.mxu0 %v2699
      %v2822 = vpop.f32.mrf.mxu0
      %v2823 = vadd.f32 0.0, %v2822
      %v2824 = vpop.f32.mrf.mxu0
      %v2825 = vadd.f32 0.0, %v2824
      %v2826 = vpop.f32.mrf.mxu0
      %v2827 = vadd.f32 0.0, %v2826
      %v2828 = vpop.f32.mrf.mxu0
      %v2829 = vadd.f32 0.0, %v2828
      %2830 = vmatprep.mubr.bf16.mxu0 0
      %2831 = vmatmul.mubr.bf16.gmra.mxu0 %v2702
      %v2832 = vpop.f32.mrf.mxu0
      %v2833 = vadd.f32 0.0, %v2832
      %v2834 = vpop.f32.mrf.mxu0
      %v2835 = vadd.f32 0.0, %v2834
      %v2836 = vpop.f32.mrf.mxu0
      %v2837 = vadd.f32 0.0, %v2836
      %v2838 = vpop.f32.mrf.mxu0
      %v2839 = vadd.f32 0.0, %v2838
      %2840 = vmatprep.mubr.bf16.mxu0 0
      %2841 = vmatmul.mubr.bf16.gmra.mxu0 %v2705
      %v2842 = vpop.f32.mrf.mxu0
      %v2843 = vadd.f32 0.0, %v2842
      %v2844 = vpop.f32.mrf.mxu0
      %v2845 = vadd.f32 0.0, %v2844
      %v2846 = vpop.f32.mrf.mxu0
      %v2847 = vadd.f32 0.0, %v2846
      %v2848 = vpop.f32.mrf.mxu0
      %v2849 = vadd.f32 0.0, %v2848
      %2850 = vmatprep.mubr.bf16.mxu0 0
      %2851 = vmatmul.mubr.bf16.gmra.mxu0 %v2708
      %v2852 = vpop.f32.mrf.mxu0
      %v2853 = vadd.f32 0.0, %v2852
      %v2854 = vpop.f32.mrf.mxu0
      %v2855 = vadd.f32 0.0, %v2854
      %v2856 = vpop.f32.mrf.mxu0
      %v2857 = vadd.f32 0.0, %v2856
      %v2858 = vpop.f32.mrf.mxu0
      %v2859 = vadd.f32 0.0, %v2858
      %2860 = vmatprep.mubr.bf16.mxu0 0
      %2861 = vmatmul.mubr.bf16.gmra.mxu0 %v2711
      %v2862 = vpop.f32.mrf.mxu0
      %v2863 = vadd.f32 0.0, %v2862
      %v2864 = vpop.f32.mrf.mxu0
      %v2865 = vadd.f32 0.0, %v2864
      %v2866 = vpop.f32.mrf.mxu0
      %v2867 = vadd.f32 0.0, %v2866
      %v2868 = vpop.f32.mrf.mxu0
      %v2869 = vadd.f32 0.0, %v2868
      %2870 = vmatprep.mubr.bf16.mxu0 0
      %2871 = vmatmul.mubr.bf16.gmra.mxu0 %v2714
      %v2872 = vpop.f32.mrf.mxu0
      %v2873 = vadd.f32 0.0, %v2872
      %v2874 = vpop.f32.mrf.mxu0
      %v2875 = vadd.f32 0.0, %v2874
      %v2876 = vpop.f32.mrf.mxu0
      %v2877 = vadd.f32 0.0, %v2876
      %v2878 = vpop.f32.mrf.mxu0
      %v2879 = vadd.f32 0.0, %v2878
      %2880 = vmatprep.mubr.bf16.mxu0 0
      %2881 = vmatmul.mubr.bf16.gmra.mxu0 %v2717
      %v2882 = vpop.f32.mrf.mxu0
      %v2883 = vadd.f32 0.0, %v2882
      %v2884 = vpop.f32.mrf.mxu0
      %v2885 = vadd.f32 0.0, %v2884
      %v2886 = vpop.f32.mrf.mxu0
      %v2887 = vadd.f32 0.0, %v2886
      %v2888 = vpop.f32.mrf.mxu0
      %v2889 = vadd.f32 0.0, %v2888
      %2890 = vmatprep.mubr.bf16.mxu0 0
      %2891 = vmatmul.mubr.bf16.gmra.mxu0 %v2720
      %v2892 = vpop.f32.mrf.mxu0
      %v2893 = vadd.f32 0.0, %v2892
      %v2894 = vpop.f32.mrf.mxu0
      %v2895 = vadd.f32 0.0, %v2894
      %v2896 = vpop.f32.mrf.mxu0
      %v2897 = vadd.f32 0.0, %v2896
      %v2898 = vpop.f32.mrf.mxu0
      %v2899 = vadd.f32 0.0, %v2898
      %2900 = vmatprep.mubr.bf16.mxu0 0
      %2901 = vmatmul.mubr.bf16.gmra.mxu0 %v2723
      %v2902 = vpop.f32.mrf.mxu0
      %v2903 = vadd.f32 0.0, %v2902
      %v2904 = vpop.f32.mrf.mxu0
      %v2905 = vadd.f32 0.0, %v2904
      %v2906 = vpop.f32.mrf.mxu0
      %v2907 = vadd.f32 0.0, %v2906
      %v2908 = vpop.f32.mrf.mxu0
      %v2909 = vadd.f32 0.0, %v2908
      %2910 = vmatprep.mubr.bf16.mxu0 0
      %2911 = vmatmul.mubr.bf16.gmra.mxu0 %v2726
      %v2912 = vpop.f32.mrf.mxu0
      %v2913 = vadd.f32 0.0, %v2912
      %v2914 = vpop.f32.mrf.mxu0
      %v2915 = vadd.f32 0.0, %v2914
      %v2916 = vpop.f32.mrf.mxu0
      %v2917 = vadd.f32 0.0, %v2916
      %v2918 = vpop.f32.mrf.mxu0
      %v2919 = vadd.f32 0.0, %v2918
      %2920 = vdwg.mxu0
      %v2921 = vmul.f32 %v2763, 0.5
      %v2922 = vmul.f32 %v2765, 0.5
      %v2923 = vmul.f32 %v2767, 0.5
      %v2924 = vmul.f32 %v2769, 0.5
      %v2925 = vmul.f32 %v2773, 0.5
      %v2926 = vmul.f32 %v2775, 0.5
      %v2927 = vmul.f32 %v2777, 0.5
      %v2928 = vmul.f32 %v2779, 0.5
      %v2929 = vmul.f32 %v2783, 0.5
      %v2930 = vmul.f32 %v2785, 0.5
      %v2931 = vmul.f32 %v2787, 0.5
      %v2932 = vmul.f32 %v2789, 0.5
      %v2933 = vmul.f32 %v2793, 0.5
      %v2934 = vmul.f32 %v2795, 0.5
      %v2935 = vmul.f32 %v2797, 0.5
      %v2936 = vmul.f32 %v2799, 0.5
      %v2937 = vmul.f32 %v2803, 0.5
      %v2938 = vmul.f32 %v2805, 0.5
      %v2939 = vmul.f32 %v2807, 0.5
      %v2940 = vmul.f32 %v2809, 0.5
      %v2941 = vmul.f32 %v2813, 0.5
      %v2942 = vmul.f32 %v2815, 0.5
      %v2943 = vmul.f32 %v2817, 0.5
      %v2944 = vmul.f32 %v2819, 0.5
      %v2945 = vmul.f32 %v2823, 0.5
      %v2946 = vmul.f32 %v2825, 0.5
      %v2947 = vmul.f32 %v2827, 0.5
      %v2948 = vmul.f32 %v2829, 0.5
      %v2949 = vmul.f32 %v2833, 0.5
      %v2950 = vmul.f32 %v2835, 0.5
      %v2951 = vmul.f32 %v2837, 0.5
      %v2952 = vmul.f32 %v2839, 0.5
      %v2953 = vmul.f32 %v2843, 0.5
      %v2954 = vmul.f32 %v2845, 0.5
      %v2955 = vmul.f32 %v2847, 0.5
      %v2956 = vmul.f32 %v2849, 0.5
      %v2957 = vmul.f32 %v2853, 0.5
      %v2958 = vmul.f32 %v2855, 0.5
      %v2959 = vmul.f32 %v2857, 0.5
      %v2960 = vmul.f32 %v2859, 0.5
      %v2961 = vmul.f32 %v2863, 0.5
      %v2962 = vmul.f32 %v2865, 0.5
      %v2963 = vmul.f32 %v2867, 0.5
      %v2964 = vmul.f32 %v2869, 0.5
      %v2965 = vmul.f32 %v2873, 0.5
      %v2966 = vmul.f32 %v2875, 0.5
      %v2967 = vmul.f32 %v2877, 0.5
      %v2968 = vmul.f32 %v2879, 0.5
      %v2969 = vmul.f32 %v2883, 0.5
      %v2970 = vmul.f32 %v2885, 0.5
      %v2971 = vmul.f32 %v2887, 0.5
      %v2972 = vmul.f32 %v2889, 0.5
      %v2973 = vmul.f32 %v2893, 0.5
      %v2974 = vmul.f32 %v2895, 0.5
      %v2975 = vmul.f32 %v2897, 0.5
      %v2976 = vmul.f32 %v2899, 0.5
      %v2977 = vmul.f32 %v2903, 0.5
      %v2978 = vmul.f32 %v2905, 0.5
      %v2979 = vmul.f32 %v2907, 0.5
      %v2980 = vmul.f32 %v2909, 0.5
      %v2981 = vmul.f32 %v2913, 0.5
      %v2982 = vmul.f32 %v2915, 0.5
      %v2983 = vmul.f32 %v2917, 0.5
      %v2984 = vmul.f32 %v2919, 0.5
      %v2985 = vmax.f32 %v2921, %v2922
      %2986 = vmax.xlane.f32.xlu0 %v2985
      %v2987 = vpop.xlane.xlu0 %2986
      %v2988 = vmax.f32 %v2923, %v2924
      %2989 = vmax.xlane.f32.xlu0 %v2988
      %v2990 = vpop.xlane.xlu0 %2989
      %v2991 = vmax.f32 %v2925, %v2926
      %2992 = vmax.xlane.f32.xlu0 %v2991
      %v2993 = vpop.xlane.xlu0 %2992
      %v2994 = vmax.f32 %v2927, %v2928
      %2995 = vmax.xlane.f32.xlu0 %v2994
      %v2996 = vpop.xlane.xlu0 %2995
      %v2997 = vmax.f32 %v2929, %v2930
      %2998 = vmax.xlane.f32.xlu0 %v2997
      %v2999 = vpop.xlane.xlu0 %2998
      %v3000 = vmax.f32 %v2931, %v2932
      %3001 = vmax.xlane.f32.xlu0 %v3000
      %v3002 = vpop.xlane.xlu0 %3001
      %v3003 = vmax.f32 %v2933, %v2934
      %3004 = vmax.xlane.f32.xlu0 %v3003
      %v3005 = vpop.xlane.xlu0 %3004
      %v3006 = vmax.f32 %v2935, %v2936
      %3007 = vmax.xlane.f32.xlu0 %v3006
      %v3008 = vpop.xlane.xlu0 %3007
      %v3009 = vmax.f32 %v2937, %v2938
      %3010 = vmax.xlane.f32.xlu0 %v3009
      %v3011 = vpop.xlane.xlu0 %3010
      %v3012 = vmax.f32 %v2939, %v2940
      %3013 = vmax.xlane.f32.xlu0 %v3012
      %v3014 = vpop.xlane.xlu0 %3013
      %v3015 = vmax.f32 %v2941, %v2942
      %3016 = vmax.xlane.f32.xlu0 %v3015
      %v3017 = vpop.xlane.xlu0 %3016
      %v3018 = vmax.f32 %v2943, %v2944
      %3019 = vmax.xlane.f32.xlu0 %v3018
      %v3020 = vpop.xlane.xlu0 %3019
      %v3021 = vmax.f32 %v2945, %v2946
      %3022 = vmax.xlane.f32.xlu0 %v3021
      %v3023 = vpop.xlane.xlu0 %3022
      %v3024 = vmax.f32 %v2947, %v2948
      %3025 = vmax.xlane.f32.xlu0 %v3024
      %v3026 = vpop.xlane.xlu0 %3025
      %v3027 = vmax.f32 %v2949, %v2950
      %3028 = vmax.xlane.f32.xlu0 %v3027
      %v3029 = vpop.xlane.xlu0 %3028
      %v3030 = vmax.f32 %v2951, %v2952
      %3031 = vmax.xlane.f32.xlu0 %v3030
      %v3032 = vpop.xlane.xlu0 %3031
      %v3033 = vmax.f32 %v2953, %v2954
      %3034 = vmax.xlane.f32.xlu0 %v3033
      %v3035 = vpop.xlane.xlu0 %3034
      %v3036 = vmax.f32 %v2955, %v2956
      %3037 = vmax.xlane.f32.xlu0 %v3036
      %v3038 = vpop.xlane.xlu0 %3037
      %v3039 = vmax.f32 %v2957, %v2958
      %3040 = vmax.xlane.f32.xlu0 %v3039
      %v3041 = vpop.xlane.xlu0 %3040
      %v3042 = vmax.f32 %v2959, %v2960
      %3043 = vmax.xlane.f32.xlu0 %v3042
      %v3044 = vpop.xlane.xlu0 %3043
      %v3045 = vmax.f32 %v2961, %v2962
      %3046 = vmax.xlane.f32.xlu0 %v3045
      %v3047 = vpop.xlane.xlu0 %3046
      %v3048 = vmax.f32 %v2963, %v2964
      %3049 = vmax.xlane.f32.xlu0 %v3048
      %v3050 = vpop.xlane.xlu0 %3049
      %v3051 = vmax.f32 %v2965, %v2966
      %3052 = vmax.xlane.f32.xlu0 %v3051
      %v3053 = vpop.xlane.xlu0 %3052
      %v3054 = vmax.f32 %v2967, %v2968
      %3055 = vmax.xlane.f32.xlu0 %v3054
      %v3056 = vpop.xlane.xlu0 %3055
      %v3057 = vmax.f32 %v2969, %v2970
      %3058 = vmax.xlane.f32.xlu0 %v3057
      %v3059 = vpop.xlane.xlu0 %3058
      %v3060 = vmax.f32 %v2971, %v2972
      %3061 = vmax.xlane.f32.xlu0 %v3060
      %v3062 = vpop.xlane.xlu0 %3061
      %v3063 = vmax.f32 %v2973, %v2974
      %3064 = vmax.xlane.f32.xlu0 %v3063
      %v3065 = vpop.xlane.xlu0 %3064
      %v3066 = vmax.f32 %v2975, %v2976
      %3067 = vmax.xlane.f32.xlu0 %v3066
      %v3068 = vpop.xlane.xlu0 %3067
      %v3069 = vmax.f32 %v2977, %v2978
      %3070 = vmax.xlane.f32.xlu0 %v3069
      %v3071 = vpop.xlane.xlu0 %3070
      %v3072 = vmax.f32 %v2979, %v2980
      %3073 = vmax.xlane.f32.xlu0 %v3072
      %v3074 = vpop.xlane.xlu0 %3073
      %v3075 = vmax.f32 %v2981, %v2982
      %3076 = vmax.xlane.f32.xlu0 %v3075
      %v3077 = vpop.xlane.xlu0 %3076
      %v3078 = vmax.f32 %v2983, %v2984
      %3079 = vmax.xlane.f32.xlu0 %v3078
      %v3080 = vpop.xlane.xlu0 %3079
      %v3081 = vsub.f32 -inf, %v2987
      %v3082 = vsub.f32 -inf, %v2990
      %v3083 = vsub.f32 -inf, %v2993
      %v3084 = vsub.f32 -inf, %v2996
      %v3085 = vsub.f32 -inf, %v2999
      %v3086 = vsub.f32 -inf, %v3002
      %v3087 = vsub.f32 -inf, %v3005
      %v3088 = vsub.f32 -inf, %v3008
      %v3089 = vsub.f32 -inf, %v3011
      %v3090 = vsub.f32 -inf, %v3014
      %v3091 = vsub.f32 -inf, %v3017
      %v3092 = vsub.f32 -inf, %v3020
      %v3093 = vsub.f32 -inf, %v3023
      %v3094 = vsub.f32 -inf, %v3026
      %v3095 = vsub.f32 -inf, %v3029
      %v3096 = vsub.f32 -inf, %v3032
      %v3097 = vsub.f32 -inf, %v3035
      %v3098 = vsub.f32 -inf, %v3038
      %v3099 = vsub.f32 -inf, %v3041
      %v3100 = vsub.f32 -inf, %v3044
      %v3101 = vsub.f32 -inf, %v3047
      %v3102 = vsub.f32 -inf, %v3050
      %v3103 = vsub.f32 -inf, %v3053
      %v3104 = vsub.f32 -inf, %v3056
      %v3105 = vsub.f32 -inf, %v3059
      %v3106 = vsub.f32 -inf, %v3062
      %v3107 = vsub.f32 -inf, %v3065
      %v3108 = vsub.f32 -inf, %v3068
      %v3109 = vsub.f32 -inf, %v3071
      %v3110 = vsub.f32 -inf, %v3074
      %v3111 = vsub.f32 -inf, %v3077
      %v3112 = vsub.f32 -inf, %v3080
      %v3113 = vmul.f32 %v3081, 1.442695
      %v3114 = vpow.pop %v3113
      %v3115 = vmul.f32 %v3082, 1.442695
      %v3116 = vpow.pop %v3115
      %v3117 = vmul.f32 %v3083, 1.442695
      %v3118 = vpow.pop %v3117
      %v3119 = vmul.f32 %v3084, 1.442695
      %v3120 = vpow.pop %v3119
      %v3121 = vmul.f32 %v3085, 1.442695
      %v3122 = vpow.pop %v3121
      %v3123 = vmul.f32 %v3086, 1.442695
      %v3124 = vpow.pop %v3123
      %v3125 = vmul.f32 %v3087, 1.442695
      %v3126 = vpow.pop %v3125
      %v3127 = vmul.f32 %v3088, 1.442695
      %v3128 = vpow.pop %v3127
      %v3129 = vmul.f32 %v3089, 1.442695
      %v3130 = vpow.pop %v3129
      %v3131 = vmul.f32 %v3090, 1.442695
      %v3132 = vpow.pop %v3131
      %v3133 = vmul.f32 %v3091, 1.442695
      %v3134 = vpow.pop %v3133
      %v3135 = vmul.f32 %v3092, 1.442695
      %v3136 = vpow.pop %v3135
      %v3137 = vmul.f32 %v3093, 1.442695
      %v3138 = vpow.pop %v3137
      %v3139 = vmul.f32 %v3094, 1.442695
      %v3140 = vpow.pop %v3139
      %v3141 = vmul.f32 %v3095, 1.442695
      %v3142 = vpow.pop %v3141
      %v3143 = vmul.f32 %v3096, 1.442695
      %v3144 = vpow.pop %v3143
      %v3145 = vmul.f32 %v3097, 1.442695
      %v3146 = vpow.pop %v3145
      %v3147 = vmul.f32 %v3098, 1.442695
      %v3148 = vpow.pop %v3147
      %v3149 = vmul.f32 %v3099, 1.442695
      %v3150 = vpow.pop %v3149
      %v3151 = vmul.f32 %v3100, 1.442695
      %v3152 = vpow.pop %v3151
      %v3153 = vmul.f32 %v3101, 1.442695
      %v3154 = vpow.pop %v3153
      %v3155 = vmul.f32 %v3102, 1.442695
      %v3156 = vpow.pop %v3155
      %v3157 = vmul.f32 %v3103, 1.442695
      %v3158 = vpow.pop %v3157
      %v3159 = vmul.f32 %v3104, 1.442695
      %v3160 = vpow.pop %v3159
      %v3161 = vmul.f32 %v3105, 1.442695
      %v3162 = vpow.pop %v3161
      %v3163 = vmul.f32 %v3106, 1.442695
      %v3164 = vpow.pop %v3163
      %v3165 = vmul.f32 %v3107, 1.442695
      %v3166 = vpow.pop %v3165
      %v3167 = vmul.f32 %v3108, 1.442695
      %v3168 = vpow.pop %v3167
      %v3169 = vmul.f32 %v3109, 1.442695
      %v3170 = vpow.pop %v3169
      %v3171 = vmul.f32 %v3110, 1.442695
      %v3172 = vpow.pop %v3171
      %v3173 = vmul.f32 %v3111, 1.442695
      %v3174 = vpow.pop %v3173
      %v3175 = vmul.f32 %v3112, 1.442695
      %v3176 = vpow.pop %v3175
      %v3177 = vsub.f32 %v2921, %v2987
      %v3178 = vsub.f32 %v2922, %v2987
      %v3179 = vsub.f32 %v2923, %v2990
      %v3180 = vsub.f32 %v2924, %v2990
      %v3181 = vsub.f32 %v2925, %v2993
      %v3182 = vsub.f32 %v2926, %v2993
      %v3183 = vsub.f32 %v2927, %v2996
      %v3184 = vsub.f32 %v2928, %v2996
      %v3185 = vsub.f32 %v2929, %v2999
      %v3186 = vsub.f32 %v2930, %v2999
      %v3187 = vsub.f32 %v2931, %v3002
      %v3188 = vsub.f32 %v2932, %v3002
      %v3189 = vsub.f32 %v2933, %v3005
      %v3190 = vsub.f32 %v2934, %v3005
      %v3191 = vsub.f32 %v2935, %v3008
      %v3192 = vsub.f32 %v2936, %v3008
      %v3193 = vsub.f32 %v2937, %v3011
      %v3194 = vsub.f32 %v2938, %v3011
      %v3195 = vsub.f32 %v2939, %v3014
      %v3196 = vsub.f32 %v2940, %v3014
      %v3197 = vsub.f32 %v2941, %v3017
      %v3198 = vsub.f32 %v2942, %v3017
      %v3199 = vsub.f32 %v2943, %v3020
      %v3200 = vsub.f32 %v2944, %v3020
      %v3201 = vsub.f32 %v2945, %v3023
      %v3202 = vsub.f32 %v2946, %v3023
      %v3203 = vsub.f32 %v2947, %v3026
      %v3204 = vsub.f32 %v2948, %v3026
      %v3205 = vsub.f32 %v2949, %v3029
      %v3206 = vsub.f32 %v2950, %v3029
      %v3207 = vsub.f32 %v2951, %v3032
      %v3208 = vsub.f32 %v2952, %v3032
      %v3209 = vsub.f32 %v2953, %v3035
      %v3210 = vsub.f32 %v2954, %v3035
      %v3211 = vsub.f32 %v2955, %v3038
      %v3212 = vsub.f32 %v2956, %v3038
      %v3213 = vsub.f32 %v2957, %v3041
      %v3214 = vsub.f32 %v2958, %v3041
      %v3215 = vsub.f32 %v2959, %v3044
      %v3216 = vsub.f32 %v2960, %v3044
      %v3217 = vsub.f32 %v2961, %v3047
      %v3218 = vsub.f32 %v2962, %v3047
      %v3219 = vsub.f32 %v2963, %v3050
      %v3220 = vsub.f32 %v2964, %v3050
      %v3221 = vsub.f32 %v2965, %v3053
      %v3222 = vsub.f32 %v2966, %v3053
      %v3223 = vsub.f32 %v2967, %v3056
      %v3224 = vsub.f32 %v2968, %v3056
      %v3225 = vsub.f32 %v2969, %v3059
      %v3226 = vsub.f32 %v2970, %v3059
      %v3227 = vsub.f32 %v2971, %v3062
      %v3228 = vsub.f32 %v2972, %v3062
      %v3229 = vsub.f32 %v2973, %v3065
      %v3230 = vsub.f32 %v2974, %v3065
      %v3231 = vsub.f32 %v2975, %v3068
      %v3232 = vsub.f32 %v2976, %v3068
      %v3233 = vsub.f32 %v2977, %v3071
      %v3234 = vsub.f32 %v2978, %v3071
      %v3235 = vsub.f32 %v2979, %v3074
      %v3236 = vsub.f32 %v2980, %v3074
      %v3237 = vsub.f32 %v2981, %v3077
      %v3238 = vsub.f32 %v2982, %v3077
      %v3239 = vsub.f32 %v2983, %v3080
      %v3240 = vsub.f32 %v2984, %v3080
      %v3241 = vmul.f32 %v3177, 1.442695
      %v3242 = vpow.pop %v3241
      %v3243 = vmul.f32 %v3178, 1.442695
      %v3244 = vpow.pop %v3243
      %v3245 = vmul.f32 %v3179, 1.442695
      %v3246 = vpow.pop %v3245
      %v3247 = vmul.f32 %v3180, 1.442695
      %v3248 = vpow.pop %v3247
      %v3249 = vmul.f32 %v3181, 1.442695
      %v3250 = vpow.pop %v3249
      %v3251 = vmul.f32 %v3182, 1.442695
      %v3252 = vpow.pop %v3251
      %v3253 = vmul.f32 %v3183, 1.442695
      %v3254 = vpow.pop %v3253
      %v3255 = vmul.f32 %v3184, 1.442695
      %v3256 = vpow.pop %v3255
      %v3257 = vmul.f32 %v3185, 1.442695
      %v3258 = vpow.pop %v3257
      %v3259 = vmul.f32 %v3186, 1.442695
      %v3260 = vpow.pop %v3259
      %v3261 = vmul.f32 %v3187, 1.442695
      %v3262 = vpow.pop %v3261
      %v3263 = vmul.f32 %v3188, 1.442695
      %v3264 = vpow.pop %v3263
      %v3265 = vmul.f32 %v3189, 1.442695
      %v3266 = vpow.pop %v3265
      %v3267 = vmul.f32 %v3190, 1.442695
      %v3268 = vpow.pop %v3267
      %v3269 = vmul.f32 %v3191, 1.442695
      %v3270 = vpow.pop %v3269
      %v3271 = vmul.f32 %v3192, 1.442695
      %v3272 = vpow.pop %v3271
      %v3273 = vmul.f32 %v3193, 1.442695
      %v3274 = vpow.pop %v3273
      %v3275 = vmul.f32 %v3194, 1.442695
      %v3276 = vpow.pop %v3275
      %v3277 = vmul.f32 %v3195, 1.442695
      %v3278 = vpow.pop %v3277
      %v3279 = vmul.f32 %v3196, 1.442695
      %v3280 = vpow.pop %v3279
      %v3281 = vmul.f32 %v3197, 1.442695
      %v3282 = vpow.pop %v3281
      %v3283 = vmul.f32 %v3198, 1.442695
      %v3284 = vpow.pop %v3283
      %v3285 = vmul.f32 %v3199, 1.442695
      %v3286 = vpow.pop %v3285
      %v3287 = vmul.f32 %v3200, 1.442695
      %v3288 = vpow.pop %v3287
      %v3289 = vmul.f32 %v3201, 1.442695
      %v3290 = vpow.pop %v3289
      %v3291 = vmul.f32 %v3202, 1.442695
      %v3292 = vpow.pop %v3291
      %v3293 = vmul.f32 %v3203, 1.442695
      %v3294 = vpow.pop %v3293
      %v3295 = vmul.f32 %v3204, 1.442695
      %v3296 = vpow.pop %v3295
      %v3297 = vmul.f32 %v3205, 1.442695
      %v3298 = vpow.pop %v3297
      %v3299 = vmul.f32 %v3206, 1.442695
      %v3300 = vpow.pop %v3299
      %v3301 = vmul.f32 %v3207, 1.442695
      %v3302 = vpow.pop %v3301
      %v3303 = vmul.f32 %v3208, 1.442695
      %v3304 = vpow.pop %v3303
      %v3305 = vmul.f32 %v3209, 1.442695
      %v3306 = vpow.pop %v3305
      %v3307 = vmul.f32 %v3210, 1.442695
      %v3308 = vpow.pop %v3307
      %v3309 = vmul.f32 %v3211, 1.442695
      %v3310 = vpow.pop %v3309
      %v3311 = vmul.f32 %v3212, 1.442695
      %v3312 = vpow.pop %v3311
      %v3313 = vmul.f32 %v3213, 1.442695
      %v3314 = vpow.pop %v3313
      %v3315 = vmul.f32 %v3214, 1.442695
      %v3316 = vpow.pop %v3315
      %v3317 = vmul.f32 %v3215, 1.442695
      %v3318 = vpow.pop %v3317
      %v3319 = vmul.f32 %v3216, 1.442695
      %v3320 = vpow.pop %v3319
      %v3321 = vmul.f32 %v3217, 1.442695
      %v3322 = vpow.pop %v3321
      %v3323 = vmul.f32 %v3218, 1.442695
      %v3324 = vpow.pop %v3323
      %v3325 = vmul.f32 %v3219, 1.442695
      %v3326 = vpow.pop %v3325
      %v3327 = vmul.f32 %v3220, 1.442695
      %v3328 = vpow.pop %v3327
      %v3329 = vmul.f32 %v3221, 1.442695
      %v3330 = vpow.pop %v3329
      %v3331 = vmul.f32 %v3222, 1.442695
      %v3332 = vpow.pop %v3331
      %v3333 = vmul.f32 %v3223, 1.442695
      %v3334 = vpow.pop %v3333
      %v3335 = vmul.f32 %v3224, 1.442695
      %v3336 = vpow.pop %v3335
      %v3337 = vmul.f32 %v3225, 1.442695
      %v3338 = vpow.pop %v3337
      %v3339 = vmul.f32 %v3226, 1.442695
      %v3340 = vpow.pop %v3339
      %v3341 = vmul.f32 %v3227, 1.442695
      %v3342 = vpow.pop %v3341
      %v3343 = vmul.f32 %v3228, 1.442695
      %v3344 = vpow.pop %v3343
      %v3345 = vmul.f32 %v3229, 1.442695
      %v3346 = vpow.pop %v3345
      %v3347 = vmul.f32 %v3230, 1.442695
      %v3348 = vpow.pop %v3347
      %v3349 = vmul.f32 %v3231, 1.442695
      %v3350 = vpow.pop %v3349
      %v3351 = vmul.f32 %v3232, 1.442695
      %v3352 = vpow.pop %v3351
      %v3353 = vmul.f32 %v3233, 1.442695
      %v3354 = vpow.pop %v3353
      %v3355 = vmul.f32 %v3234, 1.442695
      %v3356 = vpow.pop %v3355
      %v3357 = vmul.f32 %v3235, 1.442695
      %v3358 = vpow.pop %v3357
      %v3359 = vmul.f32 %v3236, 1.442695
      %v3360 = vpow.pop %v3359
      %v3361 = vmul.f32 %v3237, 1.442695
      %v3362 = vpow.pop %v3361
      %v3363 = vmul.f32 %v3238, 1.442695
      %v3364 = vpow.pop %v3363
      %v3365 = vmul.f32 %v3239, 1.442695
      %v3366 = vpow.pop %v3365
      %v3367 = vmul.f32 %v3240, 1.442695
      %v3368 = vpow.pop %v3367
      %v3369 = vmul.f32 %v3114, 0.0
      %v3370 = vmul.f32 %v3116, 0.0
      %v3371 = vmul.f32 %v3118, 0.0
      %v3372 = vmul.f32 %v3120, 0.0
      %v3373 = vmul.f32 %v3122, 0.0
      %v3374 = vmul.f32 %v3124, 0.0
      %v3375 = vmul.f32 %v3126, 0.0
      %v3376 = vmul.f32 %v3128, 0.0
      %v3377 = vmul.f32 %v3130, 0.0
      %v3378 = vmul.f32 %v3132, 0.0
      %v3379 = vmul.f32 %v3134, 0.0
      %v3380 = vmul.f32 %v3136, 0.0
      %v3381 = vmul.f32 %v3138, 0.0
      %v3382 = vmul.f32 %v3140, 0.0
      %v3383 = vmul.f32 %v3142, 0.0
      %v3384 = vmul.f32 %v3144, 0.0
      %v3385 = vmul.f32 %v3146, 0.0
      %v3386 = vmul.f32 %v3148, 0.0
      %v3387 = vmul.f32 %v3150, 0.0
      %v3388 = vmul.f32 %v3152, 0.0
      %v3389 = vmul.f32 %v3154, 0.0
      %v3390 = vmul.f32 %v3156, 0.0
      %v3391 = vmul.f32 %v3158, 0.0
      %v3392 = vmul.f32 %v3160, 0.0
      %v3393 = vmul.f32 %v3162, 0.0
      %v3394 = vmul.f32 %v3164, 0.0
      %v3395 = vmul.f32 %v3166, 0.0
      %v3396 = vmul.f32 %v3168, 0.0
      %v3397 = vmul.f32 %v3170, 0.0
      %v3398 = vmul.f32 %v3172, 0.0
      %v3399 = vmul.f32 %v3174, 0.0
      %v3400 = vmul.f32 %v3176, 0.0
      %v3401 = vadd.f32 %v3242, %v3244
      %3402 = vadd.xlane.f32.xlu0 %v3401
      %v3403 = vpop.xlane.xlu0 %3402
      %v3404 = vadd.f32 %v3246, %v3248
      %3405 = vadd.xlane.f32.xlu0 %v3404
      %v3406 = vpop.xlane.xlu0 %3405
      %v3407 = vadd.f32 %v3250, %v3252
      %3408 = vadd.xlane.f32.xlu0 %v3407
      %v3409 = vpop.xlane.xlu0 %3408
      %v3410 = vadd.f32 %v3254, %v3256
      %3411 = vadd.xlane.f32.xlu0 %v3410
      %v3412 = vpop.xlane.xlu0 %3411
      %v3413 = vadd.f32 %v3258, %v3260
      %3414 = vadd.xlane.f32.xlu0 %v3413
      %v3415 = vpop.xlane.xlu0 %3414
      %v3416 = vadd.f32 %v3262, %v3264
      %3417 = vadd.xlane.f32.xlu0 %v3416
      %v3418 = vpop.xlane.xlu0 %3417
      %v3419 = vadd.f32 %v3266, %v3268
      %3420 = vadd.xlane.f32.xlu0 %v3419
      %v3421 = vpop.xlane.xlu0 %3420
      %v3422 = vadd.f32 %v3270, %v3272
      %3423 = vadd.xlane.f32.xlu0 %v3422
      %v3424 = vpop.xlane.xlu0 %3423
      %v3425 = vadd.f32 %v3274, %v3276
      %3426 = vadd.xlane.f32.xlu0 %v3425
      %v3427 = vpop.xlane.xlu0 %3426
      %v3428 = vadd.f32 %v3278, %v3280
      %3429 = vadd.xlane.f32.xlu0 %v3428
      %v3430 = vpop.xlane.xlu0 %3429
      %v3431 = vadd.f32 %v3282, %v3284
      %3432 = vadd.xlane.f32.xlu0 %v3431
      %v3433 = vpop.xlane.xlu0 %3432
      %v3434 = vadd.f32 %v3286, %v3288
      %3435 = vadd.xlane.f32.xlu0 %v3434
      %v3436 = vpop.xlane.xlu0 %3435
      %v3437 = vadd.f32 %v3290, %v3292
      %3438 = vadd.xlane.f32.xlu0 %v3437
      %v3439 = vpop.xlane.xlu0 %3438
      %v3440 = vadd.f32 %v3294, %v3296
      %3441 = vadd.xlane.f32.xlu0 %v3440
      %v3442 = vpop.xlane.xlu0 %3441
      %v3443 = vadd.f32 %v3298, %v3300
      %3444 = vadd.xlane.f32.xlu0 %v3443
      %v3445 = vpop.xlane.xlu0 %3444
      %v3446 = vadd.f32 %v3302, %v3304
      %3447 = vadd.xlane.f32.xlu0 %v3446
      %v3448 = vpop.xlane.xlu0 %3447
      %v3449 = vadd.f32 %v3306, %v3308
      %3450 = vadd.xlane.f32.xlu0 %v3449
      %v3451 = vpop.xlane.xlu0 %3450
      %v3452 = vadd.f32 %v3310, %v3312
      %3453 = vadd.xlane.f32.xlu0 %v3452
      %v3454 = vpop.xlane.xlu0 %3453
      %v3455 = vadd.f32 %v3314, %v3316
      %3456 = vadd.xlane.f32.xlu0 %v3455
      %v3457 = vpop.xlane.xlu0 %3456
      %v3458 = vadd.f32 %v3318, %v3320
      %3459 = vadd.xlane.f32.xlu0 %v3458
      %v3460 = vpop.xlane.xlu0 %3459
      %v3461 = vadd.f32 %v3322, %v3324
      %3462 = vadd.xlane.f32.xlu0 %v3461
      %v3463 = vpop.xlane.xlu0 %3462
      %v3464 = vadd.f32 %v3326, %v3328
      %3465 = vadd.xlane.f32.xlu0 %v3464
      %v3466 = vpop.xlane.xlu0 %3465
      %v3467 = vadd.f32 %v3330, %v3332
      %3468 = vadd.xlane.f32.xlu0 %v3467
      %v3469 = vpop.xlane.xlu0 %3468
      %v3470 = vadd.f32 %v3334, %v3336
      %3471 = vadd.xlane.f32.xlu0 %v3470
      %v3472 = vpop.xlane.xlu0 %3471
      %v3473 = vadd.f32 %v3338, %v3340
      %3474 = vadd.xlane.f32.xlu0 %v3473
      %v3475 = vpop.xlane.xlu0 %3474
      %v3476 = vadd.f32 %v3342, %v3344
      %3477 = vadd.xlane.f32.xlu0 %v3476
      %v3478 = vpop.xlane.xlu0 %3477
      %v3479 = vadd.f32 %v3346, %v3348
      %3480 = vadd.xlane.f32.xlu0 %v3479
      %v3481 = vpop.xlane.xlu0 %3480
      %v3482 = vadd.f32 %v3350, %v3352
      %3483 = vadd.xlane.f32.xlu0 %v3482
      %v3484 = vpop.xlane.xlu0 %3483
      %v3485 = vadd.f32 %v3354, %v3356
      %3486 = vadd.xlane.f32.xlu0 %v3485
      %v3487 = vpop.xlane.xlu0 %3486
      %v3488 = vadd.f32 %v3358, %v3360
      %3489 = vadd.xlane.f32.xlu0 %v3488
      %v3490 = vpop.xlane.xlu0 %3489
      %v3491 = vadd.f32 %v3362, %v3364
      %3492 = vadd.xlane.f32.xlu0 %v3491
      %v3493 = vpop.xlane.xlu0 %3492
      %v3494 = vadd.f32 %v3366, %v3368
      %3495 = vadd.xlane.f32.xlu0 %v3494
      %v3496 = vpop.xlane.xlu0 %3495
      %v3497 = vadd.f32 %v3369, %v3403
      %v3498 = vadd.f32 %v3370, %v3406
      %v3499 = vadd.f32 %v3371, %v3409
      %v3500 = vadd.f32 %v3372, %v3412
      %v3501 = vadd.f32 %v3373, %v3415
      %v3502 = vadd.f32 %v3374, %v3418
      %v3503 = vadd.f32 %v3375, %v3421
      %v3504 = vadd.f32 %v3376, %v3424
      %v3505 = vadd.f32 %v3377, %v3427
      %v3506 = vadd.f32 %v3378, %v3430
      %v3507 = vadd.f32 %v3379, %v3433
      %v3508 = vadd.f32 %v3380, %v3436
      %v3509 = vadd.f32 %v3381, %v3439
      %v3510 = vadd.f32 %v3382, %v3442
      %v3511 = vadd.f32 %v3383, %v3445
      %v3512 = vadd.f32 %v3384, %v3448
      %v3513 = vadd.f32 %v3385, %v3451
      %v3514 = vadd.f32 %v3386, %v3454
      %v3515 = vadd.f32 %v3387, %v3457
      %v3516 = vadd.f32 %v3388, %v3460
      %v3517 = vadd.f32 %v3389, %v3463
      %v3518 = vadd.f32 %v3390, %v3466
      %v3519 = vadd.f32 %v3391, %v3469
      %v3520 = vadd.f32 %v3392, %v3472
      %v3521 = vadd.f32 %v3393, %v3475
      %v3522 = vadd.f32 %v3394, %v3478
      %v3523 = vadd.f32 %v3395, %v3481
      %v3524 = vadd.f32 %v3396, %v3484
      %v3525 = vadd.f32 %v3397, %v3487
      %v3526 = vadd.f32 %v3398, %v3490
      %v3527 = vadd.f32 %v3399, %v3493
      %v3528 = vadd.f32 %v3400, %v3496
      %v3529 = vpack.c.bf16 %v3246, %v3242
      %v3530 = vpack.c.bf16 %v3248, %v3244
      %v3531 = vpack.c.bf16 %v3254, %v3250
      %v3532 = vpack.c.bf16 %v3256, %v3252
      %v3533 = vpack.c.bf16 %v3262, %v3258
      %v3534 = vpack.c.bf16 %v3264, %v3260
      %v3535 = vpack.c.bf16 %v3270, %v3266
      %v3536 = vpack.c.bf16 %v3272, %v3268
      %v3537 = vpack.c.bf16 %v3278, %v3274
      %v3538 = vpack.c.bf16 %v3280, %v3276
      %v3539 = vpack.c.bf16 %v3286, %v3282
      %v3540 = vpack.c.bf16 %v3288, %v3284
      %v3541 = vpack.c.bf16 %v3294, %v3290
      %v3542 = vpack.c.bf16 %v3296, %v3292
      %v3543 = vpack.c.bf16 %v3302, %v3298
      %v3544 = vpack.c.bf16 %v3304, %v3300
      %v3545 = vpack.c.bf16 %v3310, %v3306
      %v3546 = vpack.c.bf16 %v3312, %v3308
      %v3547 = vpack.c.bf16 %v3318, %v3314
      %v3548 = vpack.c.bf16 %v3320, %v3316
      %v3549 = vpack.c.bf16 %v3326, %v3322
      %v3550 = vpack.c.bf16 %v3328, %v3324
      %v3551 = vpack.c.bf16 %v3334, %v3330
      %v3552 = vpack.c.bf16 %v3336, %v3332
      %v3553 = vpack.c.bf16 %v3342, %v3338
      %v3554 = vpack.c.bf16 %v3344, %v3340
      %v3555 = vpack.c.bf16 %v3350, %v3346
      %v3556 = vpack.c.bf16 %v3352, %v3348
      %v3557 = vpack.c.bf16 %v3358, %v3354
      %v3558 = vpack.c.bf16 %v3360, %v3356
      %v3559 = vpack.c.bf16 %v3366, %v3362
      %v3560 = vpack.c.bf16 %v3368, %v3364
      %3561 = vmatprep.subr.bf16.mxu0 0
      %3562 = vmatpush1.bf16.msra.mxu0 %v2591
      %3563 = vmatprep.subr.bf16.mxu0 0
      %3564 = vmatpush1.bf16.msra.mxu0 %v2590
      %3565 = vmatprep.subr.bf16.mxu0 0
      %3566 = vmatpush1.bf16.msra.mxu0 %v2589
      %3567 = vmatprep.subr.bf16.mxu0 0
      %3568 = vmatpush1.bf16.msra.mxu0 %v2588
      %3569 = vmatprep.subr.bf16.mxu0 0
      %3570 = vmatpush1.bf16.msra.mxu0 %v2587
      %3571 = vmatprep.subr.bf16.mxu0 0
      %3572 = vmatpush1.bf16.msra.mxu0 %v2586
      %3573 = vmatprep.subr.bf16.mxu0 0
      %3574 = vmatpush1.bf16.msra.mxu0 %v2585
      %3575 = vmatprep.subr.bf16.mxu0 0
      %3576 = vmatpush1.bf16.msra.mxu0 %v2584
      %3577 = vmatprep.subr.bf16.mxu0 0
      %3578 = vmatpush2.bf16.msra.mxu0 %v2599
      %3579 = vmatprep.subr.bf16.mxu0 0
      %3580 = vmatpush2.bf16.msra.mxu0 %v2598
      %3581 = vmatprep.subr.bf16.mxu0 0
      %3582 = vmatpush2.bf16.msra.mxu0 %v2597
      %3583 = vmatprep.subr.bf16.mxu0 0
      %3584 = vmatpush2.bf16.msra.mxu0 %v2596
      %3585 = vmatprep.subr.bf16.mxu0 0
      %3586 = vmatpush2.bf16.msra.mxu0 %v2595
      %3587 = vmatprep.subr.bf16.mxu0 0
      %3588 = vmatpush2.bf16.msra.mxu0 %v2594
      %3589 = vmatprep.subr.bf16.mxu0 0
      %3590 = vmatpush2.bf16.msra.mxu0 %v2593
      %3591 = vmatprep.subr.bf16.mxu0 0
      %3592 = vmatpush2.bf16.msra.mxu0 %v2592
      %3593 = vmatprep.mubr.bf16.mxu0 %v3530
      %3594 = vmatmul.mubr.bf16.gmra.mxu0 %v3529
      %v3595 = vpop.f32.mrf.mxu0
      %v3596 = vadd.f32 0.0, %v3595
      %v3597 = vpop.f32.mrf.mxu0
      %v3598 = vpop.f32.mrf.mxu0
      %v3599 = vadd.f32 0.0, %v3598
      %v3600 = vpop.f32.mrf.mxu0
      %3601 = vmatprep.mubr.bf16.mxu0 %v3532
      %3602 = vmatmul.mubr.bf16.gmra.mxu0 %v3531
      %v3603 = vpop.f32.mrf.mxu0
      %v3604 = vadd.f32 0.0, %v3603
      %v3605 = vpop.f32.mrf.mxu0
      %v3606 = vpop.f32.mrf.mxu0
      %v3607 = vadd.f32 0.0, %v3606
      %v3608 = vpop.f32.mrf.mxu0
      %3609 = vmatprep.mubr.bf16.mxu0 %v3534
      %3610 = vmatmul.mubr.bf16.gmra.mxu0 %v3533
      %v3611 = vpop.f32.mrf.mxu0
      %v3612 = vadd.f32 0.0, %v3611
      %v3613 = vpop.f32.mrf.mxu0
      %v3614 = vpop.f32.mrf.mxu0
      %v3615 = vadd.f32 0.0, %v3614
      %v3616 = vpop.f32.mrf.mxu0
      %3617 = vmatprep.mubr.bf16.mxu0 %v3536
      %3618 = vmatmul.mubr.bf16.gmra.mxu0 %v3535
      %v3619 = vpop.f32.mrf.mxu0
      %v3620 = vadd.f32 0.0, %v3619
      %v3621 = vpop.f32.mrf.mxu0
      %v3622 = vpop.f32.mrf.mxu0
      %v3623 = vadd.f32 0.0, %v3622
      %v3624 = vpop.f32.mrf.mxu0
      %3625 = vmatprep.mubr.bf16.mxu0 %v3538
      %3626 = vmatmul.mubr.bf16.gmra.mxu0 %v3537
      %v3627 = vpop.f32.mrf.mxu0
      %v3628 = vadd.f32 0.0, %v3627
      %v3629 = vpop.f32.mrf.mxu0
      %v3630 = vpop.f32.mrf.mxu0
      %v3631 = vadd.f32 0.0, %v3630
      %v3632 = vpop.f32.mrf.mxu0
      %3633 = vmatprep.mubr.bf16.mxu0 %v3540
      %3634 = vmatmul.mubr.bf16.gmra.mxu0 %v3539
      %v3635 = vpop.f32.mrf.mxu0
      %v3636 = vadd.f32 0.0, %v3635
      %v3637 = vpop.f32.mrf.mxu0
      %v3638 = vpop.f32.mrf.mxu0
      %v3639 = vadd.f32 0.0, %v3638
      %v3640 = vpop.f32.mrf.mxu0
      %3641 = vmatprep.mubr.bf16.mxu0 %v3542
      %3642 = vmatmul.mubr.bf16.gmra.mxu0 %v3541
      %v3643 = vpop.f32.mrf.mxu0
      %v3644 = vadd.f32 0.0, %v3643
      %v3645 = vpop.f32.mrf.mxu0
      %v3646 = vpop.f32.mrf.mxu0
      %v3647 = vadd.f32 0.0, %v3646
      %v3648 = vpop.f32.mrf.mxu0
      %3649 = vmatprep.mubr.bf16.mxu0 %v3544
      %3650 = vmatmul.mubr.bf16.gmra.mxu0 %v3543
      %v3651 = vpop.f32.mrf.mxu0
      %v3652 = vadd.f32 0.0, %v3651
      %v3653 = vpop.f32.mrf.mxu0
      %v3654 = vpop.f32.mrf.mxu0
      %v3655 = vadd.f32 0.0, %v3654
      %v3656 = vpop.f32.mrf.mxu0
      %3657 = vmatprep.mubr.bf16.mxu0 %v3546
      %3658 = vmatmul.mubr.bf16.gmra.mxu0 %v3545
      %v3659 = vpop.f32.mrf.mxu0
      %v3660 = vadd.f32 0.0, %v3659
      %v3661 = vpop.f32.mrf.mxu0
      %v3662 = vpop.f32.mrf.mxu0
      %v3663 = vadd.f32 0.0, %v3662
      %v3664 = vpop.f32.mrf.mxu0
      %3665 = vmatprep.mubr.bf16.mxu0 %v3548
      %3666 = vmatmul.mubr.bf16.gmra.mxu0 %v3547
      %v3667 = vpop.f32.mrf.mxu0
      %v3668 = vadd.f32 0.0, %v3667
      %v3669 = vpop.f32.mrf.mxu0
      %v3670 = vpop.f32.mrf.mxu0
      %v3671 = vadd.f32 0.0, %v3670
      %v3672 = vpop.f32.mrf.mxu0
      %3673 = vmatprep.mubr.bf16.mxu0 %v3550
      %3674 = vmatmul.mubr.bf16.gmra.mxu0 %v3549
      %v3675 = vpop.f32.mrf.mxu0
      %v3676 = vadd.f32 0.0, %v3675
      %v3677 = vpop.f32.mrf.mxu0
      %v3678 = vpop.f32.mrf.mxu0
      %v3679 = vadd.f32 0.0, %v3678
      %v3680 = vpop.f32.mrf.mxu0
      %3681 = vmatprep.mubr.bf16.mxu0 %v3552
      %3682 = vmatmul.mubr.bf16.gmra.mxu0 %v3551
      %v3683 = vpop.f32.mrf.mxu0
      %v3684 = vadd.f32 0.0, %v3683
      %v3685 = vpop.f32.mrf.mxu0
      %v3686 = vpop.f32.mrf.mxu0
      %v3687 = vadd.f32 0.0, %v3686
      %v3688 = vpop.f32.mrf.mxu0
      %3689 = vmatprep.mubr.bf16.mxu0 %v3554
      %3690 = vmatmul.mubr.bf16.gmra.mxu0 %v3553
      %v3691 = vpop.f32.mrf.mxu0
      %v3692 = vadd.f32 0.0, %v3691
      %v3693 = vpop.f32.mrf.mxu0
      %v3694 = vpop.f32.mrf.mxu0
      %v3695 = vadd.f32 0.0, %v3694
      %v3696 = vpop.f32.mrf.mxu0
      %3697 = vmatprep.mubr.bf16.mxu0 %v3556
      %3698 = vmatmul.mubr.bf16.gmra.mxu0 %v3555
      %v3699 = vpop.f32.mrf.mxu0
      %v3700 = vadd.f32 0.0, %v3699
      %v3701 = vpop.f32.mrf.mxu0
      %v3702 = vpop.f32.mrf.mxu0
      %v3703 = vadd.f32 0.0, %v3702
      %v3704 = vpop.f32.mrf.mxu0
      %3705 = vmatprep.mubr.bf16.mxu0 %v3558
      %3706 = vmatmul.mubr.bf16.gmra.mxu0 %v3557
      %v3707 = vpop.f32.mrf.mxu0
      %v3708 = vadd.f32 0.0, %v3707
      %v3709 = vpop.f32.mrf.mxu0
      %v3710 = vpop.f32.mrf.mxu0
      %v3711 = vadd.f32 0.0, %v3710
      %v3712 = vpop.f32.mrf.mxu0
      %3713 = vmatprep.mubr.bf16.mxu0 %v3560
      %3714 = vmatmul.mubr.bf16.gmra.mxu0 %v3559
      %v3715 = vpop.f32.mrf.mxu0
      %v3716 = vadd.f32 0.0, %v3715
      %v3717 = vpop.f32.mrf.mxu0
      %v3718 = vpop.f32.mrf.mxu0
      %v3719 = vadd.f32 0.0, %v3718
      %v3720 = vpop.f32.mrf.mxu0
      %3721 = vdwg.mxu0
      %v3722 = vadd.f32 %v3369, %v3596
      %v3723 = vadd.f32 %v3370, %v3599
      %v3724 = vadd.f32 %v3371, %v3604
      %v3725 = vadd.f32 %v3372, %v3607
      %v3726 = vadd.f32 %v3373, %v3612
      %v3727 = vadd.f32 %v3374, %v3615
      %v3728 = vadd.f32 %v3375, %v3620
      %v3729 = vadd.f32 %v3376, %v3623
      %v3730 = vadd.f32 %v3377, %v3628
      %v3731 = vadd.f32 %v3378, %v3631
      %v3732 = vadd.f32 %v3379, %v3636
      %v3733 = vadd.f32 %v3380, %v3639
      %v3734 = vadd.f32 %v3381, %v3644
      %v3735 = vadd.f32 %v3382, %v3647
      %v3736 = vadd.f32 %v3383, %v3652
      %v3737 = vadd.f32 %v3384, %v3655
      %v3738 = vadd.f32 %v3385, %v3660
      %v3739 = vadd.f32 %v3386, %v3663
      %v3740 = vadd.f32 %v3387, %v3668
      %v3741 = vadd.f32 %v3388, %v3671
      %v3742 = vadd.f32 %v3389, %v3676
      %v3743 = vadd.f32 %v3390, %v3679
      %v3744 = vadd.f32 %v3391, %v3684
      %v3745 = vadd.f32 %v3392, %v3687
      %v3746 = vadd.f32 %v3393, %v3692
      %v3747 = vadd.f32 %v3394, %v3695
      %v3748 = vadd.f32 %v3395, %v3700
      %v3749 = vadd.f32 %v3396, %v3703
      %v3750 = vadd.f32 %v3397, %v3708
      %v3751 = vadd.f32 %v3398, %v3711
      %v3752 = vadd.f32 %v3399, %v3716
      %v3753 = vadd.f32 %v3400, %v3719
      %v3754 = vrcp.pop %v3497
      %v3755 = vrcp.pop %v3498
      %v3756 = vrcp.pop %v3499
      %v3757 = vrcp.pop %v3500
      %v3758 = vrcp.pop %v3501
      %v3759 = vrcp.pop %v3502
      %v3760 = vrcp.pop %v3503
      %v3761 = vrcp.pop %v3504
      %v3762 = vrcp.pop %v3505
      %v3763 = vrcp.pop %v3506
      %v3764 = vrcp.pop %v3507
      %v3765 = vrcp.pop %v3508
      %v3766 = vrcp.pop %v3509
      %v3767 = vrcp.pop %v3510
      %v3768 = vrcp.pop %v3511
      %v3769 = vrcp.pop %v3512
      %v3770 = vrcp.pop %v3513
      %v3771 = vrcp.pop %v3514
      %v3772 = vrcp.pop %v3515
      %v3773 = vrcp.pop %v3516
      %v3774 = vrcp.pop %v3517
      %v3775 = vrcp.pop %v3518
      %v3776 = vrcp.pop %v3519
      %v3777 = vrcp.pop %v3520
      %v3778 = vrcp.pop %v3521
      %v3779 = vrcp.pop %v3522
      %v3780 = vrcp.pop %v3523
      %v3781 = vrcp.pop %v3524
      %v3782 = vrcp.pop %v3525
      %v3783 = vrcp.pop %v3526
      %v3784 = vrcp.pop %v3527
      %v3785 = vrcp.pop %v3528
      %v3786 = vmul.f32 %v3722, %v3754
      %v3787 = vmul.f32 %v3723, %v3755
      %v3788 = vmul.f32 %v3724, %v3756
      %v3789 = vmul.f32 %v3725, %v3757
      %v3790 = vmul.f32 %v3726, %v3758
      %v3791 = vmul.f32 %v3727, %v3759
      %v3792 = vmul.f32 %v3728, %v3760
      %v3793 = vmul.f32 %v3729, %v3761
      %v3794 = vmul.f32 %v3730, %v3762
      %v3795 = vmul.f32 %v3731, %v3763
      %v3796 = vmul.f32 %v3732, %v3764
      %v3797 = vmul.f32 %v3733, %v3765
      %v3798 = vmul.f32 %v3734, %v3766
      %v3799 = vmul.f32 %v3735, %v3767
      %v3800 = vmul.f32 %v3736, %v3768
      %v3801 = vmul.f32 %v3737, %v3769
      %v3802 = vmul.f32 %v3738, %v3770
      %v3803 = vmul.f32 %v3739, %v3771
      %v3804 = vmul.f32 %v3740, %v3772
      %v3805 = vmul.f32 %v3741, %v3773
      %v3806 = vmul.f32 %v3742, %v3774
      %v3807 = vmul.f32 %v3743, %v3775
      %v3808 = vmul.f32 %v3744, %v3776
      %v3809 = vmul.f32 %v3745, %v3777
      %v3810 = vmul.f32 %v3746, %v3778
      %v3811 = vmul.f32 %v3747, %v3779
      %v3812 = vmul.f32 %v3748, %v3780
      %v3813 = vmul.f32 %v3749, %v3781
      %v3814 = vmul.f32 %v3750, %v3782
      %v3815 = vmul.f32 %v3751, %v3783
      %v3816 = vmul.f32 %v3752, %v3784
      %v3817 = vmul.f32 %v3753, %v3785
      %v3818 = vrot.slane %v3786, 7
      %v3819 = vrot.slane %v3787, 7
      %v3820 = vrot.slane %v3788, 7
      %v3821 = vrot.slane %v3789, 7
      %v3822 = vrot.slane %v3790, 7
      %v3823 = vrot.slane %v3791, 7
      %v3824 = vrot.slane %v3792, 7
      %v3825 = vrot.slane %v3793, 7
      %v3826 = vrot.slane %v3794, 7
      %v3827 = vrot.slane %v3795, 7
      %v3828 = vrot.slane %v3796, 7
      %v3829 = vrot.slane %v3797, 7
      %v3830 = vrot.slane %v3798, 7
      %v3831 = vrot.slane %v3799, 7
      %v3832 = vrot.slane %v3800, 7
      %v3833 = vrot.slane %v3801, 7
      %v3834 = vrot.slane %v3802, 7
      %v3835 = vrot.slane %v3803, 7
      %v3836 = vrot.slane %v3804, 7
      %v3837 = vrot.slane %v3805, 7
      %v3838 = vrot.slane %v3806, 7
      %v3839 = vrot.slane %v3807, 7
      %v3840 = vrot.slane %v3808, 7
      %v3841 = vrot.slane %v3809, 7
      %v3842 = vrot.slane %v3810, 7
      %v3843 = vrot.slane %v3811, 7
      %v3844 = vrot.slane %v3812, 7
      %v3845 = vrot.slane %v3813, 7
      %v3846 = vrot.slane %v3814, 7
      %v3847 = vrot.slane %v3815, 7
      %v3848 = vrot.slane %v3817, 7
      %v3849 = vsel %vm378, %v3846, %v3847
      %v3850 = vsel %vm378, %v3845, %v3846
      %v3851 = vsel %vm378, %v3844, %v3845
      %v3852 = vsel %vm378, %v3843, %v3844
      %v3853 = vsel %vm378, %v3842, %v3843
      %v3854 = vsel %vm378, %v3841, %v3842
      %v3855 = vsel %vm378, %v3840, %v3841
      %v3856 = vsel %vm378, %v3839, %v3840
      %v3857 = vsel %vm378, %v3838, %v3839
      %v3858 = vsel %vm378, %v3837, %v3838
      %v3859 = vsel %vm378, %v3836, %v3837
      %v3860 = vsel %vm378, %v3835, %v3836
      %v3861 = vsel %vm378, %v3834, %v3835
      %v3862 = vsel %vm378, %v3833, %v3834
      %v3863 = vsel %vm378, %v3832, %v3833
      %v3864 = vsel %vm378, %v3831, %v3832
      %v3865 = vsel %vm378, %v3830, %v3831
      %v3866 = vsel %vm378, %v3829, %v3830
      %v3867 = vsel %vm378, %v3828, %v3829
      %v3868 = vsel %vm378, %v3827, %v3828
      %v3869 = vsel %vm378, %v3826, %v3827
      %v3870 = vsel %vm378, %v3825, %v3826
      %v3871 = vsel %vm378, %v3824, %v3825
      %v3872 = vsel %vm378, %v3823, %v3824
      %v3873 = vsel %vm378, %v3822, %v3823
      %v3874 = vsel %vm378, %v3821, %v3822
      %v3875 = vsel %vm378, %v3820, %v3821
      %v3876 = vsel %vm378, %v3819, %v3820
      %v3877 = vsel %vm378, %v3818, %v3819
      %v3878 = vsel %vm378, %v3848, %v3818
      %v3879 = vsel %vm413, %v3878, 0.0
      %v3880 = vsel %vm414, %v3877, 0.0
      %v3881 = vsel %vm413, %v3876, 0.0
      %v3882 = vsel %vm414, %v3875, 0.0
      %v3883 = vsel %vm413, %v3874, 0.0
      %v3884 = vsel %vm414, %v3873, 0.0
      %v3885 = vsel %vm413, %v3872, 0.0
      %v3886 = vsel %vm414, %v3871, 0.0
      %v3887 = vsel %vm413, %v3870, 0.0
      %v3888 = vsel %vm414, %v3869, 0.0
      %v3889 = vsel %vm413, %v3868, 0.0
      %v3890 = vsel %vm414, %v3867, 0.0
      %v3891 = vsel %vm413, %v3866, 0.0
      %v3892 = vsel %vm414, %v3865, 0.0
      %v3893 = vsel %vm413, %v3864, 0.0
      %v3894 = vsel %vm414, %v3863, 0.0
      %v3895 = vsel %vm413, %v3862, 0.0
      %v3896 = vsel %vm414, %v3861, 0.0
      %v3897 = vsel %vm413, %v3860, 0.0
      %v3898 = vsel %vm414, %v3859, 0.0
      %v3899 = vsel %vm413, %v3858, 0.0
      %v3900 = vsel %vm414, %v3857, 0.0
      %v3901 = vsel %vm413, %v3856, 0.0
      %v3902 = vsel %vm414, %v3855, 0.0
      %v3903 = vsel %vm413, %v3854, 0.0
      %v3904 = vsel %vm414, %v3853, 0.0
      %v3905 = vsel %vm413, %v3852, 0.0
      %v3906 = vsel %vm414, %v3851, 0.0
      %v3907 = vsel %vm413, %v3850, 0.0
      %v3908 = vsel %vm414, %v3849, 0.0
      %v3909 = vpack.c.bf16 %v3880, %v3879
      %v3910 = vpack.c.bf16 %v3882, %v3881
      %v3911 = vpack.c.bf16 %v3884, %v3883
      %v3912 = vpack.c.bf16 %v3886, %v3885
      %v3913 = vpack.c.bf16 %v3888, %v3887
      %v3914 = vpack.c.bf16 %v3890, %v3889
      %v3915 = vpack.c.bf16 %v3892, %v3891
      %v3916 = vpack.c.bf16 %v3894, %v3893
      %v3917 = vpack.c.bf16 %v3896, %v3895
      %v3918 = vpack.c.bf16 %v3898, %v3897
      %v3919 = vpack.c.bf16 %v3900, %v3899
      %v3920 = vpack.c.bf16 %v3902, %v3901
      %v3921 = vpack.c.bf16 %v3904, %v3903
      %v3922 = vpack.c.bf16 %v3906, %v3905
      %v3923 = vpack.c.bf16 %v3908, %v3907
      %v3924 = vld [vmem:[%s4] sm:$0x3]
      %v3925 = vsel %vm466, %v3786, 0.0
      %v3926 = vsel %vm467, %v3787, 0.0
      %v3927 = vsel %vm466, %v3788, 0.0
      %v3928 = vsel %vm467, %v3789, 0.0
      %v3929 = vsel %vm466, %v3790, 0.0
      %v3930 = vsel %vm467, %v3791, 0.0
      %v3931 = vsel %vm466, %v3792, 0.0
      %v3932 = vsel %vm467, %v3793, 0.0
      %v3933 = vsel %vm466, %v3794, 0.0
      %v3934 = vsel %vm467, %v3795, 0.0
      %v3935 = vsel %vm466, %v3796, 0.0
      %v3936 = vsel %vm467, %v3797, 0.0
      %v3937 = vsel %vm466, %v3798, 0.0
      %v3938 = vsel %vm467, %v3799, 0.0
      %v3939 = vsel %vm466, %v3800, 0.0
      %v3940 = vsel %vm467, %v3801, 0.0
      %v3941 = vsel %vm466, %v3802, 0.0
      %v3942 = vsel %vm467, %v3803, 0.0
      %v3943 = vsel %vm466, %v3804, 0.0
      %v3944 = vsel %vm467, %v3805, 0.0
      %v3945 = vsel %vm466, %v3806, 0.0
      %v3946 = vsel %vm467, %v3807, 0.0
      %v3947 = vsel %vm466, %v3808, 0.0
      %v3948 = vsel %vm467, %v3809, 0.0
      %v3949 = vsel %vm466, %v3810, 0.0
      %v3950 = vsel %vm467, %v3811, 0.0
      %v3951 = vsel %vm466, %v3812, 0.0
      %v3952 = vsel %vm467, %v3813, 0.0
      %v3953 = vsel %vm466, %v3814, 0.0
      %v3954 = vsel %vm467, %v3815, 0.0
      %v3955 = vpack.c.bf16 %v3926, %v3925
      %v3956 = vpack.c.bf16 %v3928, %v3927
      %v3957 = vpack.c.bf16 %v3930, %v3929
      %v3958 = vpack.c.bf16 %v3932, %v3931
      %v3959 = vpack.c.bf16 %v3934, %v3933
      %v3960 = vpack.c.bf16 %v3936, %v3935
      %v3961 = vpack.c.bf16 %v3938, %v3937
      %v3962 = vpack.c.bf16 %v3940, %v3939
      %v3963 = vpack.c.bf16 %v3942, %v3941
      %v3964 = vpack.c.bf16 %v3944, %v3943
      %v3965 = vpack.c.bf16 %v3946, %v3945
      %v3966 = vpack.c.bf16 %v3948, %v3947
      %v3967 = vpack.c.bf16 %v3950, %v3949
      %v3968 = vpack.c.bf16 %v3952, %v3951
      %v3969 = vpack.c.bf16 %v3954, %v3953
      %s3970 = scalar_lea.vmem %s4, 2
      %v3971 = vld [vmem:[%s3970] sm:$0x3]
      %v3973 = vsel %vm515, %v3955, 0
      %v3976 = vsel %vm515, %v3956, 0
      %v3979 = vsel %vm515, %v3957, 0
      %v3982 = vsel %vm515, %v3958, 0
      %v3985 = vsel %vm515, %v3959, 0
      %v3988 = vsel %vm515, %v3960, 0
      %v3991 = vsel %vm515, %v3961, 0
      %v3994 = vsel %vm515, %v3962, 0
      %v3997 = vsel %vm515, %v3963, 0
      %v4000 = vsel %vm515, %v3964, 0
      %v4003 = vsel %vm515, %v3965, 0
      %v4006 = vsel %vm515, %v3966, 0
      %v4009 = vsel %vm515, %v3967, 0
      %v4012 = vsel %vm515, %v3968, 0
      %v4015 = vsel %vm515, %v3969, 0
      %v4018 = vsel %vm564, %v3971, 0
      %4020 = vmatprep.subr.bf16.mxu0 0
      %4021 = vmatpush1.bf16.msra.mxu0 0
      %4022 = vmatprep.subr.bf16.mxu0 0
      %4023 = vmatpush1.bf16.msra.mxu0 0
      %4024 = vmatprep.subr.bf16.mxu0 0
      %4025 = vmatpush1.bf16.msra.mxu0 0
      %4026 = vmatprep.subr.bf16.mxu0 0
      %4027 = vmatpush1.bf16.msra.mxu0 0
      %4028 = vmatprep.subr.bf16.mxu0 0
      %4029 = vmatpush1.bf16.msra.mxu0 0
      %4030 = vmatprep.subr.bf16.mxu0 0
      %4031 = vmatpush1.bf16.msra.mxu0 0
      %4032 = vmatprep.subr.bf16.mxu0 0
      %4033 = vmatpush1.bf16.msra.mxu0 0
      %4034 = vmatprep.subr.bf16.mxu0 0
      %4035 = vmatpush1.bf16.msra.mxu0 %v4018
      %4036 = vmatprep.subr.bf16.mxu0 0
      %4037 = vmatpush2.bf16.msra.mxu0 0
      %4038 = vmatprep.subr.bf16.mxu0 0
      %4039 = vmatpush2.bf16.msra.mxu0 0
      %4040 = vmatprep.subr.bf16.mxu0 0
      %4041 = vmatpush2.bf16.msra.mxu0 0
      %4042 = vmatprep.subr.bf16.mxu0 0
      %4043 = vmatpush2.bf16.msra.mxu0 0
      %4044 = vmatprep.subr.bf16.mxu0 0
      %4045 = vmatpush2.bf16.msra.mxu0 0
      %4046 = vmatprep.subr.bf16.mxu0 0
      %4047 = vmatpush2.bf16.msra.mxu0 0
      %4048 = vmatprep.subr.bf16.mxu0 0
      %4049 = vmatpush2.bf16.msra.mxu0 0
      %4050 = vmatprep.subr.bf16.mxu0 0
      %4051 = vmatpush2.bf16.msra.mxu0 0
      %4052 = vmatprep.mubr.bf16.mxu0 0
      %4053 = vmatmul.mubr.bf16.gmra.mxu0 %v517
      %v4054 = vpop.f32.mrf.mxu0
      %v4055 = vadd.f32 0.0, %v4054
      %v4056 = vpop.f32.mrf.mxu0
      %v4057 = vpop.f32.mrf.mxu0
      %v4058 = vadd.f32 0.0, %v4057
      %v4059 = vpop.f32.mrf.mxu0
      %4060 = vmatprep.mubr.bf16.mxu0 0
      %4061 = vmatmul.mubr.bf16.gmra.mxu0 %v3973
      %v4062 = vpop.f32.mrf.mxu0
      %v4063 = vadd.f32 0.0, %v4062
      %v4064 = vpop.f32.mrf.mxu0
      %v4065 = vpop.f32.mrf.mxu0
      %v4066 = vadd.f32 0.0, %v4065
      %v4067 = vpop.f32.mrf.mxu0
      %4068 = vmatprep.mubr.bf16.mxu0 0
      %4069 = vmatmul.mubr.bf16.gmra.mxu0 %v3976
      %v4070 = vpop.f32.mrf.mxu0
      %v4071 = vadd.f32 0.0, %v4070
      %v4072 = vpop.f32.mrf.mxu0
      %v4073 = vpop.f32.mrf.mxu0
      %v4074 = vadd.f32 0.0, %v4073
      %v4075 = vpop.f32.mrf.mxu0
      %4076 = vmatprep.mubr.bf16.mxu0 0
      %4077 = vmatmul.mubr.bf16.gmra.mxu0 %v3979
      %v4078 = vpop.f32.mrf.mxu0
      %v4079 = vadd.f32 0.0, %v4078
      %v4080 = vpop.f32.mrf.mxu0
      %v4081 = vpop.f32.mrf.mxu0
      %v4082 = vadd.f32 0.0, %v4081
      %v4083 = vpop.f32.mrf.mxu0
      %4084 = vmatprep.mubr.bf16.mxu0 0
      %4085 = vmatmul.mubr.bf16.gmra.mxu0 %v3982
      %v4086 = vpop.f32.mrf.mxu0
      %v4087 = vadd.f32 0.0, %v4086
      %v4088 = vpop.f32.mrf.mxu0
      %v4089 = vpop.f32.mrf.mxu0
      %v4090 = vadd.f32 0.0, %v4089
      %v4091 = vpop.f32.mrf.mxu0
      %4092 = vmatprep.mubr.bf16.mxu0 0
      %4093 = vmatmul.mubr.bf16.gmra.mxu0 %v3985
      %v4094 = vpop.f32.mrf.mxu0
      %v4095 = vadd.f32 0.0, %v4094
      %v4096 = vpop.f32.mrf.mxu0
      %v4097 = vpop.f32.mrf.mxu0
      %v4098 = vadd.f32 0.0, %v4097
      %v4099 = vpop.f32.mrf.mxu0
      %4100 = vmatprep.mubr.bf16.mxu0 0
      %4101 = vmatmul.mubr.bf16.gmra.mxu0 %v3988
      %v4102 = vpop.f32.mrf.mxu0
      %v4103 = vadd.f32 0.0, %v4102
      %v4104 = vpop.f32.mrf.mxu0
      %v4105 = vpop.f32.mrf.mxu0
      %v4106 = vadd.f32 0.0, %v4105
      %v4107 = vpop.f32.mrf.mxu0
      %4108 = vmatprep.mubr.bf16.mxu0 0
      %4109 = vmatmul.mubr.bf16.gmra.mxu0 %v3991
      %v4110 = vpop.f32.mrf.mxu0
      %v4111 = vadd.f32 0.0, %v4110
      %v4112 = vpop.f32.mrf.mxu0
      %v4113 = vpop.f32.mrf.mxu0
      %v4114 = vadd.f32 0.0, %v4113
      %v4115 = vpop.f32.mrf.mxu0
      %4116 = vmatprep.mubr.bf16.mxu0 0
      %4117 = vmatmul.mubr.bf16.gmra.mxu0 %v3994
      %v4118 = vpop.f32.mrf.mxu0
      %v4119 = vadd.f32 0.0, %v4118
      %v4120 = vpop.f32.mrf.mxu0
      %v4121 = vpop.f32.mrf.mxu0
      %v4122 = vadd.f32 0.0, %v4121
      %v4123 = vpop.f32.mrf.mxu0
      %4124 = vmatprep.mubr.bf16.mxu0 0
      %4125 = vmatmul.mubr.bf16.gmra.mxu0 %v3997
      %v4126 = vpop.f32.mrf.mxu0
      %v4127 = vadd.f32 0.0, %v4126
      %v4128 = vpop.f32.mrf.mxu0
      %v4129 = vpop.f32.mrf.mxu0
      %v4130 = vadd.f32 0.0, %v4129
      %v4131 = vpop.f32.mrf.mxu0
      %4132 = vmatprep.mubr.bf16.mxu0 0
      %4133 = vmatmul.mubr.bf16.gmra.mxu0 %v4000
      %v4134 = vpop.f32.mrf.mxu0
      %v4135 = vadd.f32 0.0, %v4134
      %v4136 = vpop.f32.mrf.mxu0
      %v4137 = vpop.f32.mrf.mxu0
      %v4138 = vadd.f32 0.0, %v4137
      %v4139 = vpop.f32.mrf.mxu0
      %4140 = vmatprep.mubr.bf16.mxu0 0
      %4141 = vmatmul.mubr.bf16.gmra.mxu0 %v4003
      %v4142 = vpop.f32.mrf.mxu0
      %v4143 = vadd.f32 0.0, %v4142
      %v4144 = vpop.f32.mrf.mxu0
      %v4145 = vpop.f32.mrf.mxu0
      %v4146 = vadd.f32 0.0, %v4145
      %v4147 = vpop.f32.mrf.mxu0
      %4148 = vmatprep.mubr.bf16.mxu0 0
      %4149 = vmatmul.mubr.bf16.gmra.mxu0 %v4006
      %v4150 = vpop.f32.mrf.mxu0
      %v4151 = vadd.f32 0.0, %v4150
      %v4152 = vpop.f32.mrf.mxu0
      %v4153 = vpop.f32.mrf.mxu0
      %v4154 = vadd.f32 0.0, %v4153
      %v4155 = vpop.f32.mrf.mxu0
      %4156 = vmatprep.mubr.bf16.mxu0 0
      %4157 = vmatmul.mubr.bf16.gmra.mxu0 %v4009
      %v4158 = vpop.f32.mrf.mxu0
      %v4159 = vadd.f32 0.0, %v4158
      %v4160 = vpop.f32.mrf.mxu0
      %v4161 = vpop.f32.mrf.mxu0
      %v4162 = vadd.f32 0.0, %v4161
      %v4163 = vpop.f32.mrf.mxu0
      %4164 = vmatprep.mubr.bf16.mxu0 0
      %4165 = vmatmul.mubr.bf16.gmra.mxu0 %v4012
      %v4166 = vpop.f32.mrf.mxu0
      %v4167 = vadd.f32 0.0, %v4166
      %v4168 = vpop.f32.mrf.mxu0
      %v4169 = vpop.f32.mrf.mxu0
      %v4170 = vadd.f32 0.0, %v4169
      %v4171 = vpop.f32.mrf.mxu0
      %4172 = vmatprep.mubr.bf16.mxu0 0
      %4173 = vmatmul.mubr.bf16.gmra.mxu0 %v4015
      %v4174 = vpop.f32.mrf.mxu0
      %v4175 = vadd.f32 0.0, %v4174
      %v4176 = vpop.f32.mrf.mxu0
      %v4177 = vpop.f32.mrf.mxu0
      %v4178 = vadd.f32 0.0, %v4177
      %v4179 = vpop.f32.mrf.mxu0
      %4180 = vdwg.mxu0
      %v4182 = vsel %vm515, %v3909, 0
      %v4185 = vsel %vm515, %v3910, 0
      %v4188 = vsel %vm515, %v3911, 0
      %v4191 = vsel %vm515, %v3912, 0
      %v4194 = vsel %vm515, %v3913, 0
      %v4197 = vsel %vm515, %v3914, 0
      %v4200 = vsel %vm515, %v3915, 0
      %v4203 = vsel %vm515, %v3916, 0
      %v4206 = vsel %vm515, %v3917, 0
      %v4209 = vsel %vm515, %v3918, 0
      %v4212 = vsel %vm515, %v3919, 0
      %v4215 = vsel %vm515, %v3920, 0
      %v4218 = vsel %vm515, %v3921, 0
      %v4221 = vsel %vm515, %v3922, 0
      %v4224 = vsel %vm515, %v3923, 0
      %v4227 = vsel %vm564, %v3924, 0
      %4229 = vmatprep.subr.bf16.mxu0 0
      %4230 = vmatpush1.bf16.msra.mxu0 0
      %4231 = vmatprep.subr.bf16.mxu0 0
      %4232 = vmatpush1.bf16.msra.mxu0 0
      %4233 = vmatprep.subr.bf16.mxu0 0
      %4234 = vmatpush1.bf16.msra.mxu0 0
      %4235 = vmatprep.subr.bf16.mxu0 0
      %4236 = vmatpush1.bf16.msra.mxu0 0
      %4237 = vmatprep.subr.bf16.mxu0 0
      %4238 = vmatpush1.bf16.msra.mxu0 0
      %4239 = vmatprep.subr.bf16.mxu0 0
      %4240 = vmatpush1.bf16.msra.mxu0 0
      %4241 = vmatprep.subr.bf16.mxu0 0
      %4242 = vmatpush1.bf16.msra.mxu0 0
      %4243 = vmatprep.subr.bf16.mxu0 0
      %4244 = vmatpush1.bf16.msra.mxu0 %v4227
      %4245 = vmatprep.subr.bf16.mxu0 0
      %4246 = vmatpush2.bf16.msra.mxu0 0
      %4247 = vmatprep.subr.bf16.mxu0 0
      %4248 = vmatpush2.bf16.msra.mxu0 0
      %4249 = vmatprep.subr.bf16.mxu0 0
      %4250 = vmatpush2.bf16.msra.mxu0 0
      %4251 = vmatprep.subr.bf16.mxu0 0
      %4252 = vmatpush2.bf16.msra.mxu0 0
      %4253 = vmatprep.subr.bf16.mxu0 0
      %4254 = vmatpush2.bf16.msra.mxu0 0
      %4255 = vmatprep.subr.bf16.mxu0 0
      %4256 = vmatpush2.bf16.msra.mxu0 0
      %4257 = vmatprep.subr.bf16.mxu0 0
      %4258 = vmatpush2.bf16.msra.mxu0 0
      %4259 = vmatprep.subr.bf16.mxu0 0
      %4260 = vmatpush2.bf16.msra.mxu0 0
      %4261 = vmatprep.mubr.bf16.mxu0 0
      %4262 = vmatmul.mubr.bf16.gmra.mxu0 %v517
      %v4263 = vpop.f32.mrf.mxu0
      %v4264 = vadd.f32 %v4055, %v4263
      %v4265 = vpop.f32.mrf.mxu0
      %v4266 = vpop.f32.mrf.mxu0
      %v4267 = vadd.f32 %v4058, %v4266
      %v4268 = vpop.f32.mrf.mxu0
      %4269 = vmatprep.mubr.bf16.mxu0 0
      %4270 = vmatmul.mubr.bf16.gmra.mxu0 %v4182
      %v4271 = vpop.f32.mrf.mxu0
      %v4272 = vadd.f32 %v4063, %v4271
      %v4273 = vpop.f32.mrf.mxu0
      %v4274 = vpop.f32.mrf.mxu0
      %v4275 = vadd.f32 %v4066, %v4274
      %v4276 = vpop.f32.mrf.mxu0
      %4277 = vmatprep.mubr.bf16.mxu0 0
      %4278 = vmatmul.mubr.bf16.gmra.mxu0 %v4185
      %v4279 = vpop.f32.mrf.mxu0
      %v4280 = vadd.f32 %v4071, %v4279
      %v4281 = vpop.f32.mrf.mxu0
      %v4282 = vpop.f32.mrf.mxu0
      %v4283 = vadd.f32 %v4074, %v4282
      %v4284 = vpop.f32.mrf.mxu0
      %4285 = vmatprep.mubr.bf16.mxu0 0
      %4286 = vmatmul.mubr.bf16.gmra.mxu0 %v4188
      %v4287 = vpop.f32.mrf.mxu0
      %v4288 = vadd.f32 %v4079, %v4287
      %v4289 = vpop.f32.mrf.mxu0
      %v4290 = vpop.f32.mrf.mxu0
      %v4291 = vadd.f32 %v4082, %v4290
      %v4292 = vpop.f32.mrf.mxu0
      %4293 = vmatprep.mubr.bf16.mxu0 0
      %4294 = vmatmul.mubr.bf16.gmra.mxu0 %v4191
      %v4295 = vpop.f32.mrf.mxu0
      %v4296 = vadd.f32 %v4087, %v4295
      %v4297 = vpop.f32.mrf.mxu0
      %v4298 = vpop.f32.mrf.mxu0
      %v4299 = vadd.f32 %v4090, %v4298
      %v4300 = vpop.f32.mrf.mxu0
      %4301 = vmatprep.mubr.bf16.mxu0 0
      %4302 = vmatmul.mubr.bf16.gmra.mxu0 %v4194
      %v4303 = vpop.f32.mrf.mxu0
      %v4304 = vadd.f32 %v4095, %v4303
      %v4305 = vpop.f32.mrf.mxu0
      %v4306 = vpop.f32.mrf.mxu0
      %v4307 = vadd.f32 %v4098, %v4306
      %v4308 = vpop.f32.mrf.mxu0
      %4309 = vmatprep.mubr.bf16.mxu0 0
      %4310 = vmatmul.mubr.bf16.gmra.mxu0 %v4197
      %v4311 = vpop.f32.mrf.mxu0
      %v4312 = vadd.f32 %v4103, %v4311
      %v4313 = vpop.f32.mrf.mxu0
      %v4314 = vpop.f32.mrf.mxu0
      %v4315 = vadd.f32 %v4106, %v4314
      %v4316 = vpop.f32.mrf.mxu0
      %4317 = vmatprep.mubr.bf16.mxu0 0
      %4318 = vmatmul.mubr.bf16.gmra.mxu0 %v4200
      %v4319 = vpop.f32.mrf.mxu0
      %v4320 = vadd.f32 %v4111, %v4319
      %v4321 = vpop.f32.mrf.mxu0
      %v4322 = vpop.f32.mrf.mxu0
      %v4323 = vadd.f32 %v4114, %v4322
      %v4324 = vpop.f32.mrf.mxu0
      %4325 = vmatprep.mubr.bf16.mxu0 0
      %4326 = vmatmul.mubr.bf16.gmra.mxu0 %v4203
      %v4327 = vpop.f32.mrf.mxu0
      %v4328 = vadd.f32 %v4119, %v4327
      %v4329 = vpop.f32.mrf.mxu0
      %v4330 = vpop.f32.mrf.mxu0
      %v4331 = vadd.f32 %v4122, %v4330
      %v4332 = vpop.f32.mrf.mxu0
      %4333 = vmatprep.mubr.bf16.mxu0 0
      %4334 = vmatmul.mubr.bf16.gmra.mxu0 %v4206
      %v4335 = vpop.f32.mrf.mxu0
      %v4336 = vadd.f32 %v4127, %v4335
      %v4337 = vpop.f32.mrf.mxu0
      %v4338 = vpop.f32.mrf.mxu0
      %v4339 = vadd.f32 %v4130, %v4338
      %v4340 = vpop.f32.mrf.mxu0
      %4341 = vmatprep.mubr.bf16.mxu0 0
      %4342 = vmatmul.mubr.bf16.gmra.mxu0 %v4209
      %v4343 = vpop.f32.mrf.mxu0
      %v4344 = vadd.f32 %v4135, %v4343
      %v4345 = vpop.f32.mrf.mxu0
      %v4346 = vpop.f32.mrf.mxu0
      %v4347 = vadd.f32 %v4138, %v4346
      %v4348 = vpop.f32.mrf.mxu0
      %4349 = vmatprep.mubr.bf16.mxu0 0
      %4350 = vmatmul.mubr.bf16.gmra.mxu0 %v4212
      %v4351 = vpop.f32.mrf.mxu0
      %v4352 = vadd.f32 %v4143, %v4351
      %v4353 = vpop.f32.mrf.mxu0
      %v4354 = vpop.f32.mrf.mxu0
      %v4355 = vadd.f32 %v4146, %v4354
      %v4356 = vpop.f32.mrf.mxu0
      %4357 = vmatprep.mubr.bf16.mxu0 0
      %4358 = vmatmul.mubr.bf16.gmra.mxu0 %v4215
      %v4359 = vpop.f32.mrf.mxu0
      %v4360 = vadd.f32 %v4151, %v4359
      %v4361 = vpop.f32.mrf.mxu0
      %v4362 = vpop.f32.mrf.mxu0
      %v4363 = vadd.f32 %v4154, %v4362
      %v4364 = vpop.f32.mrf.mxu0
      %4365 = vmatprep.mubr.bf16.mxu0 0
      %4366 = vmatmul.mubr.bf16.gmra.mxu0 %v4218
      %v4367 = vpop.f32.mrf.mxu0
      %v4368 = vadd.f32 %v4159, %v4367
      %v4369 = vpop.f32.mrf.mxu0
      %v4370 = vpop.f32.mrf.mxu0
      %v4371 = vadd.f32 %v4162, %v4370
      %v4372 = vpop.f32.mrf.mxu0
      %4373 = vmatprep.mubr.bf16.mxu0 0
      %4374 = vmatmul.mubr.bf16.gmra.mxu0 %v4221
      %v4375 = vpop.f32.mrf.mxu0
      %v4376 = vadd.f32 %v4167, %v4375
      %v4377 = vpop.f32.mrf.mxu0
      %v4378 = vpop.f32.mrf.mxu0
      %v4379 = vadd.f32 %v4170, %v4378
      %v4380 = vpop.f32.mrf.mxu0
      %4381 = vmatprep.mubr.bf16.mxu0 0
      %4382 = vmatmul.mubr.bf16.gmra.mxu0 %v4224
      %v4383 = vpop.f32.mrf.mxu0
      %v4384 = vadd.f32 %v4175, %v4383
      %v4385 = vpop.f32.mrf.mxu0
      %v4386 = vpop.f32.mrf.mxu0
      %v4387 = vadd.f32 %v4178, %v4386
      %v4388 = vpop.f32.mrf.mxu0
      %4389 = vdwg.mxu0
      %v4390 = vrot.slane %v3786, 1
      %v4391 = vrot.slane %v3787, 1
      %v4392 = vrot.slane %v3788, 1
      %v4393 = vrot.slane %v3789, 1
      %v4394 = vrot.slane %v3790, 1
      %v4395 = vrot.slane %v3791, 1
      %v4396 = vrot.slane %v3792, 1
      %v4397 = vrot.slane %v3793, 1
      %v4398 = vrot.slane %v3794, 1
      %v4399 = vrot.slane %v3795, 1
      %v4400 = vrot.slane %v3796, 1
      %v4401 = vrot.slane %v3797, 1
      %v4402 = vrot.slane %v3798, 1
      %v4403 = vrot.slane %v3799, 1
      %v4404 = vrot.slane %v3800, 1
      %v4405 = vrot.slane %v3801, 1
      %v4406 = vrot.slane %v3802, 1
      %v4407 = vrot.slane %v3803, 1
      %v4408 = vrot.slane %v3804, 1
      %v4409 = vrot.slane %v3805, 1
      %v4410 = vrot.slane %v3806, 1
      %v4411 = vrot.slane %v3807, 1
      %v4412 = vrot.slane %v3808, 1
      %v4413 = vrot.slane %v3809, 1
      %v4414 = vrot.slane %v3810, 1
      %v4415 = vrot.slane %v3811, 1
      %v4416 = vrot.slane %v3812, 1
      %v4417 = vrot.slane %v3813, 1
      %v4418 = vrot.slane %v3814, 1
      %v4419 = vrot.slane %v3815, 1
      %v4420 = vrot.slane %v3816, 1
      %v4421 = vsel %vm969, %v4419, %v4420
      %v4422 = vsel %vm969, %v4418, %v4419
      %v4423 = vsel %vm969, %v4417, %v4418
      %v4424 = vsel %vm969, %v4416, %v4417
      %v4425 = vsel %vm969, %v4415, %v4416
      %v4426 = vsel %vm969, %v4414, %v4415
      %v4427 = vsel %vm969, %v4413, %v4414
      %v4428 = vsel %vm969, %v4412, %v4413
      %v4429 = vsel %vm969, %v4411, %v4412
      %v4430 = vsel %vm969, %v4410, %v4411
      %v4431 = vsel %vm969, %v4409, %v4410
      %v4432 = vsel %vm969, %v4408, %v4409
      %v4433 = vsel %vm969, %v4407, %v4408
      %v4434 = vsel %vm969, %v4406, %v4407
      %v4435 = vsel %vm969, %v4405, %v4406
      %v4436 = vsel %vm969, %v4404, %v4405
      %v4437 = vsel %vm969, %v4403, %v4404
      %v4438 = vsel %vm969, %v4402, %v4403
      %v4439 = vsel %vm969, %v4401, %v4402
      %v4440 = vsel %vm969, %v4400, %v4401
      %v4441 = vsel %vm969, %v4399, %v4400
      %v4442 = vsel %vm969, %v4398, %v4399
      %v4443 = vsel %vm969, %v4397, %v4398
      %v4444 = vsel %vm969, %v4396, %v4397
      %v4445 = vsel %vm969, %v4395, %v4396
      %v4446 = vsel %vm969, %v4394, %v4395
      %v4447 = vsel %vm969, %v4393, %v4394
      %v4448 = vsel %vm969, %v4392, %v4393
      %v4449 = vsel %vm969, %v4391, %v4392
      %v4450 = vsel %vm969, %v4390, %v4391
      %v4451 = vsel %vm1004, %v4450, 0.0
      %v4452 = vsel %vm1005, %v4449, 0.0
      %v4453 = vsel %vm1004, %v4448, 0.0
      %v4454 = vsel %vm1005, %v4447, 0.0
      %v4455 = vsel %vm1004, %v4446, 0.0
      %v4456 = vsel %vm1005, %v4445, 0.0
      %v4457 = vsel %vm1004, %v4444, 0.0
      %v4458 = vsel %vm1005, %v4443, 0.0
      %v4459 = vsel %vm1004, %v4442, 0.0
      %v4460 = vsel %vm1005, %v4441, 0.0
      %v4461 = vsel %vm1004, %v4440, 0.0
      %v4462 = vsel %vm1005, %v4439, 0.0
      %v4463 = vsel %vm1004, %v4438, 0.0
      %v4464 = vsel %vm1005, %v4437, 0.0
      %v4465 = vsel %vm1004, %v4436, 0.0
      %v4466 = vsel %vm1005, %v4435, 0.0
      %v4467 = vsel %vm1004, %v4434, 0.0
      %v4468 = vsel %vm1005, %v4433, 0.0
      %v4469 = vsel %vm1004, %v4432, 0.0
      %v4470 = vsel %vm1005, %v4431, 0.0
      %v4471 = vsel %vm1004, %v4430, 0.0
      %v4472 = vsel %vm1005, %v4429, 0.0
      %v4473 = vsel %vm1004, %v4428, 0.0
      %v4474 = vsel %vm1005, %v4427, 0.0
      %v4475 = vsel %vm1004, %v4426, 0.0
      %v4476 = vsel %vm1005, %v4425, 0.0
      %v4477 = vsel %vm1004, %v4424, 0.0
      %v4478 = vsel %vm1005, %v4423, 0.0
      %v4479 = vsel %vm1004, %v4422, 0.0
      %v4480 = vsel %vm1005, %v4421, 0.0
      %v4481 = vpack.c.bf16 %v4452, %v4451
      %v4482 = vpack.c.bf16 %v4454, %v4453
      %v4483 = vpack.c.bf16 %v4456, %v4455
      %v4484 = vpack.c.bf16 %v4458, %v4457
      %v4485 = vpack.c.bf16 %v4460, %v4459
      %v4486 = vpack.c.bf16 %v4462, %v4461
      %v4487 = vpack.c.bf16 %v4464, %v4463
      %v4488 = vpack.c.bf16 %v4466, %v4465
      %v4489 = vpack.c.bf16 %v4468, %v4467
      %v4490 = vpack.c.bf16 %v4470, %v4469
      %v4491 = vpack.c.bf16 %v4472, %v4471
      %v4492 = vpack.c.bf16 %v4474, %v4473
      %v4493 = vpack.c.bf16 %v4476, %v4475
      %v4494 = vpack.c.bf16 %v4478, %v4477
      %v4495 = vpack.c.bf16 %v4480, %v4479
      %s4496 = scalar_lea.vmem %s4, 4
      %v4497 = vld [vmem:[%s4496] sm:$0x3]
      %v4499 = vsel %vm515, %v4481, 0
      %v4502 = vsel %vm515, %v4482, 0
      %v4505 = vsel %vm515, %v4483, 0
      %v4508 = vsel %vm515, %v4484, 0
      %v4511 = vsel %vm515, %v4485, 0
      %v4514 = vsel %vm515, %v4486, 0
      %v4517 = vsel %vm515, %v4487, 0
      %v4520 = vsel %vm515, %v4488, 0
      %v4523 = vsel %vm515, %v4489, 0
      %v4526 = vsel %vm515, %v4490, 0
      %v4529 = vsel %vm515, %v4491, 0
      %v4532 = vsel %vm515, %v4492, 0
      %v4535 = vsel %vm515, %v4493, 0
      %v4538 = vsel %vm515, %v4494, 0
      %v4541 = vsel %vm515, %v4495, 0
      %v4544 = vsel %vm564, %v4497, 0
      %4546 = vmatprep.subr.bf16.mxu0 0
      %4547 = vmatpush1.bf16.msra.mxu0 0
      %4548 = vmatprep.subr.bf16.mxu0 0
      %4549 = vmatpush1.bf16.msra.mxu0 0
      %4550 = vmatprep.subr.bf16.mxu0 0
      %4551 = vmatpush1.bf16.msra.mxu0 0
      %4552 = vmatprep.subr.bf16.mxu0 0
      %4553 = vmatpush1.bf16.msra.mxu0 0
      %4554 = vmatprep.subr.bf16.mxu0 0
      %4555 = vmatpush1.bf16.msra.mxu0 0
      %4556 = vmatprep.subr.bf16.mxu0 0
      %4557 = vmatpush1.bf16.msra.mxu0 0
      %4558 = vmatprep.subr.bf16.mxu0 0
      %4559 = vmatpush1.bf16.msra.mxu0 0
      %4560 = vmatprep.subr.bf16.mxu0 0
      %4561 = vmatpush1.bf16.msra.mxu0 %v4544
      %4562 = vmatprep.subr.bf16.mxu0 0
      %4563 = vmatpush2.bf16.msra.mxu0 0
      %4564 = vmatprep.subr.bf16.mxu0 0
      %4565 = vmatpush2.bf16.msra.mxu0 0
      %4566 = vmatprep.subr.bf16.mxu0 0
      %4567 = vmatpush2.bf16.msra.mxu0 0
      %4568 = vmatprep.subr.bf16.mxu0 0
      %4569 = vmatpush2.bf16.msra.mxu0 0
      %4570 = vmatprep.subr.bf16.mxu0 0
      %4571 = vmatpush2.bf16.msra.mxu0 0
      %4572 = vmatprep.subr.bf16.mxu0 0
      %4573 = vmatpush2.bf16.msra.mxu0 0
      %4574 = vmatprep.subr.bf16.mxu0 0
      %4575 = vmatpush2.bf16.msra.mxu0 0
      %4576 = vmatprep.subr.bf16.mxu0 0
      %4577 = vmatpush2.bf16.msra.mxu0 0
      %4578 = vmatprep.mubr.bf16.mxu0 0
      %4579 = vmatmul.mubr.bf16.gmra.mxu0 %v517
      %v4580 = vpop.f32.mrf.mxu0
      %v4581 = vadd.f32 0.0, %v4580
      %v4582 = vpop.f32.mrf.mxu0
      %v4583 = vpop.f32.mrf.mxu0
      %v4584 = vadd.f32 0.0, %v4583
      %v4585 = vpop.f32.mrf.mxu0
      %4586 = vmatprep.mubr.bf16.mxu0 0
      %4587 = vmatmul.mubr.bf16.gmra.mxu0 %v4499
      %v4588 = vpop.f32.mrf.mxu0
      %v4589 = vadd.f32 0.0, %v4588
      %v4590 = vpop.f32.mrf.mxu0
      %v4591 = vpop.f32.mrf.mxu0
      %v4592 = vadd.f32 0.0, %v4591
      %v4593 = vpop.f32.mrf.mxu0
      %4594 = vmatprep.mubr.bf16.mxu0 0
      %4595 = vmatmul.mubr.bf16.gmra.mxu0 %v4502
      %v4596 = vpop.f32.mrf.mxu0
      %v4597 = vadd.f32 0.0, %v4596
      %v4598 = vpop.f32.mrf.mxu0
      %v4599 = vpop.f32.mrf.mxu0
      %v4600 = vadd.f32 0.0, %v4599
      %v4601 = vpop.f32.mrf.mxu0
      %4602 = vmatprep.mubr.bf16.mxu0 0
      %4603 = vmatmul.mubr.bf16.gmra.mxu0 %v4505
      %v4604 = vpop.f32.mrf.mxu0
      %v4605 = vadd.f32 0.0, %v4604
      %v4606 = vpop.f32.mrf.mxu0
      %v4607 = vpop.f32.mrf.mxu0
      %v4608 = vadd.f32 0.0, %v4607
      %v4609 = vpop.f32.mrf.mxu0
      %4610 = vmatprep.mubr.bf16.mxu0 0
      %4611 = vmatmul.mubr.bf16.gmra.mxu0 %v4508
      %v4612 = vpop.f32.mrf.mxu0
      %v4613 = vadd.f32 0.0, %v4612
      %v4614 = vpop.f32.mrf.mxu0
      %v4615 = vpop.f32.mrf.mxu0
      %v4616 = vadd.f32 0.0, %v4615
      %v4617 = vpop.f32.mrf.mxu0
      %4618 = vmatprep.mubr.bf16.mxu0 0
      %4619 = vmatmul.mubr.bf16.gmra.mxu0 %v4511
      %v4620 = vpop.f32.mrf.mxu0
      %v4621 = vadd.f32 0.0, %v4620
      %v4622 = vpop.f32.mrf.mxu0
      %v4623 = vpop.f32.mrf.mxu0
      %v4624 = vadd.f32 0.0, %v4623
      %v4625 = vpop.f32.mrf.mxu0
      %4626 = vmatprep.mubr.bf16.mxu0 0
      %4627 = vmatmul.mubr.bf16.gmra.mxu0 %v4514
      %v4628 = vpop.f32.mrf.mxu0
      %v4629 = vadd.f32 0.0, %v4628
      %v4630 = vpop.f32.mrf.mxu0
      %v4631 = vpop.f32.mrf.mxu0
      %v4632 = vadd.f32 0.0, %v4631
      %v4633 = vpop.f32.mrf.mxu0
      %4634 = vmatprep.mubr.bf16.mxu0 0
      %4635 = vmatmul.mubr.bf16.gmra.mxu0 %v4517
      %v4636 = vpop.f32.mrf.mxu0
      %v4637 = vadd.f32 0.0, %v4636
      %v4638 = vpop.f32.mrf.mxu0
      %v4639 = vpop.f32.mrf.mxu0
      %v4640 = vadd.f32 0.0, %v4639
      %v4641 = vpop.f32.mrf.mxu0
      %4642 = vmatprep.mubr.bf16.mxu0 0
      %4643 = vmatmul.mubr.bf16.gmra.mxu0 %v4520
      %v4644 = vpop.f32.mrf.mxu0
      %v4645 = vadd.f32 0.0, %v4644
      %v4646 = vpop.f32.mrf.mxu0
      %v4647 = vpop.f32.mrf.mxu0
      %v4648 = vadd.f32 0.0, %v4647
      %v4649 = vpop.f32.mrf.mxu0
      %4650 = vmatprep.mubr.bf16.mxu0 0
      %4651 = vmatmul.mubr.bf16.gmra.mxu0 %v4523
      %v4652 = vpop.f32.mrf.mxu0
      %v4653 = vadd.f32 0.0, %v4652
      %v4654 = vpop.f32.mrf.mxu0
      %v4655 = vpop.f32.mrf.mxu0
      %v4656 = vadd.f32 0.0, %v4655
      %v4657 = vpop.f32.mrf.mxu0
      %4658 = vmatprep.mubr.bf16.mxu0 0
      %4659 = vmatmul.mubr.bf16.gmra.mxu0 %v4526
      %v4660 = vpop.f32.mrf.mxu0
      %v4661 = vadd.f32 0.0, %v4660
      %v4662 = vpop.f32.mrf.mxu0
      %v4663 = vpop.f32.mrf.mxu0
      %v4664 = vadd.f32 0.0, %v4663
      %v4665 = vpop.f32.mrf.mxu0
      %4666 = vmatprep.mubr.bf16.mxu0 0
      %4667 = vmatmul.mubr.bf16.gmra.mxu0 %v4529
      %v4668 = vpop.f32.mrf.mxu0
      %v4669 = vadd.f32 0.0, %v4668
      %v4670 = vpop.f32.mrf.mxu0
      %v4671 = vpop.f32.mrf.mxu0
      %v4672 = vadd.f32 0.0, %v4671
      %v4673 = vpop.f32.mrf.mxu0
      %4674 = vmatprep.mubr.bf16.mxu0 0
      %4675 = vmatmul.mubr.bf16.gmra.mxu0 %v4532
      %v4676 = vpop.f32.mrf.mxu0
      %v4677 = vadd.f32 0.0, %v4676
      %v4678 = vpop.f32.mrf.mxu0
      %v4679 = vpop.f32.mrf.mxu0
      %v4680 = vadd.f32 0.0, %v4679
      %v4681 = vpop.f32.mrf.mxu0
      %4682 = vmatprep.mubr.bf16.mxu0 0
      %4683 = vmatmul.mubr.bf16.gmra.mxu0 %v4535
      %v4684 = vpop.f32.mrf.mxu0
      %v4685 = vadd.f32 0.0, %v4684
      %v4686 = vpop.f32.mrf.mxu0
      %v4687 = vpop.f32.mrf.mxu0
      %v4688 = vadd.f32 0.0, %v4687
      %v4689 = vpop.f32.mrf.mxu0
      %4690 = vmatprep.mubr.bf16.mxu0 0
      %4691 = vmatmul.mubr.bf16.gmra.mxu0 %v4538
      %v4692 = vpop.f32.mrf.mxu0
      %v4693 = vadd.f32 0.0, %v4692
      %v4694 = vpop.f32.mrf.mxu0
      %v4695 = vpop.f32.mrf.mxu0
      %v4696 = vadd.f32 0.0, %v4695
      %v4697 = vpop.f32.mrf.mxu0
      %4698 = vmatprep.mubr.bf16.mxu0 0
      %4699 = vmatmul.mubr.bf16.gmra.mxu0 %v4541
      %v4700 = vpop.f32.mrf.mxu0
      %v4701 = vadd.f32 0.0, %v4700
      %v4702 = vpop.f32.mrf.mxu0
      %v4703 = vpop.f32.mrf.mxu0
      %v4704 = vadd.f32 0.0, %v4703
      %v4705 = vpop.f32.mrf.mxu0
      %4706 = vdwg.mxu0
      %v4707 = vadd.f32 %v4264, %v4581
      %v4708 = vadd.f32 %v4267, %v4584
      %v4709 = vadd.f32 %v4272, %v4589
      %v4710 = vadd.f32 %v4275, %v4592
      %v4711 = vadd.f32 %v4280, %v4597
      %v4712 = vadd.f32 %v4283, %v4600
      %v4713 = vadd.f32 %v4288, %v4605
      %v4714 = vadd.f32 %v4291, %v4608
      %v4715 = vadd.f32 %v4296, %v4613
      %v4716 = vadd.f32 %v4299, %v4616
      %v4717 = vadd.f32 %v4304, %v4621
      %v4718 = vadd.f32 %v4307, %v4624
      %v4719 = vadd.f32 %v4312, %v4629
      %v4720 = vadd.f32 %v4315, %v4632
      %v4721 = vadd.f32 %v4320, %v4637
      %v4722 = vadd.f32 %v4323, %v4640
      %v4723 = vadd.f32 %v4328, %v4645
      %v4724 = vadd.f32 %v4331, %v4648
      %v4725 = vadd.f32 %v4336, %v4653
      %v4726 = vadd.f32 %v4339, %v4656
      %v4727 = vadd.f32 %v4344, %v4661
      %v4728 = vadd.f32 %v4347, %v4664
      %v4729 = vadd.f32 %v4352, %v4669
      %v4730 = vadd.f32 %v4355, %v4672
      %v4731 = vadd.f32 %v4360, %v4677
      %v4732 = vadd.f32 %v4363, %v4680
      %v4733 = vadd.f32 %v4368, %v4685
      %v4734 = vadd.f32 %v4371, %v4688
      %v4735 = vadd.f32 %v4376, %v4693
      %v4736 = vadd.f32 %v4379, %v4696
      %v4737 = vadd.f32 %v4384, %v4701
      %v4738 = vadd.f32 %v4387, %v4704
      %v4739 = vrot.slane %v3816, 7
      %v4740 = vsel %vm378, %v4739, %v3848
      %v4741 = vsel %vm378, %v3847, %v4739
      %v4742 = vsel %vm413, %v4741, 0.0
      %v4743 = vsel %vm414, %v4740, 0.0
      %v4744 = vpack.c.bf16 %v4743, %v4742
      %s4745 = scalar_lea.vmem %s4, 6
      %v4746 = vld [vmem:[%s4745] sm:$0x3]
      %v4748 = vsel %vm515, %v4744, 0
      %v4751 = vsel %vm564, %v4746, 0
      %4753 = vmatprep.subr.bf16.mxu0 0
      %4754 = vmatpush1.bf16.msra.mxu0 0
      %4755 = vmatprep.subr.bf16.mxu0 0
      %4756 = vmatpush1.bf16.msra.mxu0 0
      %4757 = vmatprep.subr.bf16.mxu0 0
      %4758 = vmatpush1.bf16.msra.mxu0 0
      %4759 = vmatprep.subr.bf16.mxu0 0
      %4760 = vmatpush1.bf16.msra.mxu0 0
      %4761 = vmatprep.subr.bf16.mxu0 0
      %4762 = vmatpush1.bf16.msra.mxu0 0
      %4763 = vmatprep.subr.bf16.mxu0 0
      %4764 = vmatpush1.bf16.msra.mxu0 0
      %4765 = vmatprep.subr.bf16.mxu0 0
      %4766 = vmatpush1.bf16.msra.mxu0 0
      %4767 = vmatprep.subr.bf16.mxu0 0
      %4768 = vmatpush1.bf16.msra.mxu0 %v4751
      %4769 = vmatprep.subr.bf16.mxu0 0
      %4770 = vmatpush2.bf16.msra.mxu0 0
      %4771 = vmatprep.subr.bf16.mxu0 0
      %4772 = vmatpush2.bf16.msra.mxu0 0
      %4773 = vmatprep.subr.bf16.mxu0 0
      %4774 = vmatpush2.bf16.msra.mxu0 0
      %4775 = vmatprep.subr.bf16.mxu0 0
      %4776 = vmatpush2.bf16.msra.mxu0 0
      %4777 = vmatprep.subr.bf16.mxu0 0
      %4778 = vmatpush2.bf16.msra.mxu0 0
      %4779 = vmatprep.subr.bf16.mxu0 0
      %4780 = vmatpush2.bf16.msra.mxu0 0
      %4781 = vmatprep.subr.bf16.mxu0 0
      %4782 = vmatpush2.bf16.msra.mxu0 0
      %4783 = vmatprep.subr.bf16.mxu0 0
      %4784 = vmatpush2.bf16.msra.mxu0 0
      %4785 = vmatprep.mubr.bf16.mxu0 0
      %4786 = vmatmul.mubr.bf16.gmra.mxu0 %v4182
      %v4787 = vpop.f32.mrf.mxu0
      %v4788 = vadd.f32 0.0, %v4787
      %v4789 = vpop.f32.mrf.mxu0
      %v4790 = vpop.f32.mrf.mxu0
      %v4791 = vadd.f32 0.0, %v4790
      %v4792 = vpop.f32.mrf.mxu0
      %4793 = vmatprep.mubr.bf16.mxu0 0
      %4794 = vmatmul.mubr.bf16.gmra.mxu0 %v4185
      %v4795 = vpop.f32.mrf.mxu0
      %v4796 = vadd.f32 0.0, %v4795
      %v4797 = vpop.f32.mrf.mxu0
      %v4798 = vpop.f32.mrf.mxu0
      %v4799 = vadd.f32 0.0, %v4798
      %v4800 = vpop.f32.mrf.mxu0
      %4801 = vmatprep.mubr.bf16.mxu0 0
      %4802 = vmatmul.mubr.bf16.gmra.mxu0 %v4188
      %v4803 = vpop.f32.mrf.mxu0
      %v4804 = vadd.f32 0.0, %v4803
      %v4805 = vpop.f32.mrf.mxu0
      %v4806 = vpop.f32.mrf.mxu0
      %v4807 = vadd.f32 0.0, %v4806
      %v4808 = vpop.f32.mrf.mxu0
      %4809 = vmatprep.mubr.bf16.mxu0 0
      %4810 = vmatmul.mubr.bf16.gmra.mxu0 %v4191
      %v4811 = vpop.f32.mrf.mxu0
      %v4812 = vadd.f32 0.0, %v4811
      %v4813 = vpop.f32.mrf.mxu0
      %v4814 = vpop.f32.mrf.mxu0
      %v4815 = vadd.f32 0.0, %v4814
      %v4816 = vpop.f32.mrf.mxu0
      %4817 = vmatprep.mubr.bf16.mxu0 0
      %4818 = vmatmul.mubr.bf16.gmra.mxu0 %v4194
      %v4819 = vpop.f32.mrf.mxu0
      %v4820 = vadd.f32 0.0, %v4819
      %v4821 = vpop.f32.mrf.mxu0
      %v4822 = vpop.f32.mrf.mxu0
      %v4823 = vadd.f32 0.0, %v4822
      %v4824 = vpop.f32.mrf.mxu0
      %4825 = vmatprep.mubr.bf16.mxu0 0
      %4826 = vmatmul.mubr.bf16.gmra.mxu0 %v4197
      %v4827 = vpop.f32.mrf.mxu0
      %v4828 = vadd.f32 0.0, %v4827
      %v4829 = vpop.f32.mrf.mxu0
      %v4830 = vpop.f32.mrf.mxu0
      %v4831 = vadd.f32 0.0, %v4830
      %v4832 = vpop.f32.mrf.mxu0
      %4833 = vmatprep.mubr.bf16.mxu0 0
      %4834 = vmatmul.mubr.bf16.gmra.mxu0 %v4200
      %v4835 = vpop.f32.mrf.mxu0
      %v4836 = vadd.f32 0.0, %v4835
      %v4837 = vpop.f32.mrf.mxu0
      %v4838 = vpop.f32.mrf.mxu0
      %v4839 = vadd.f32 0.0, %v4838
      %v4840 = vpop.f32.mrf.mxu0
      %4841 = vmatprep.mubr.bf16.mxu0 0
      %4842 = vmatmul.mubr.bf16.gmra.mxu0 %v4203
      %v4843 = vpop.f32.mrf.mxu0
      %v4844 = vadd.f32 0.0, %v4843
      %v4845 = vpop.f32.mrf.mxu0
      %v4846 = vpop.f32.mrf.mxu0
      %v4847 = vadd.f32 0.0, %v4846
      %v4848 = vpop.f32.mrf.mxu0
      %4849 = vmatprep.mubr.bf16.mxu0 0
      %4850 = vmatmul.mubr.bf16.gmra.mxu0 %v4206
      %v4851 = vpop.f32.mrf.mxu0
      %v4852 = vadd.f32 0.0, %v4851
      %v4853 = vpop.f32.mrf.mxu0
      %v4854 = vpop.f32.mrf.mxu0
      %v4855 = vadd.f32 0.0, %v4854
      %v4856 = vpop.f32.mrf.mxu0
      %4857 = vmatprep.mubr.bf16.mxu0 0
      %4858 = vmatmul.mubr.bf16.gmra.mxu0 %v4209
      %v4859 = vpop.f32.mrf.mxu0
      %v4860 = vadd.f32 0.0, %v4859
      %v4861 = vpop.f32.mrf.mxu0
      %v4862 = vpop.f32.mrf.mxu0
      %v4863 = vadd.f32 0.0, %v4862
      %v4864 = vpop.f32.mrf.mxu0
      %4865 = vmatprep.mubr.bf16.mxu0 0
      %4866 = vmatmul.mubr.bf16.gmra.mxu0 %v4212
      %v4867 = vpop.f32.mrf.mxu0
      %v4868 = vadd.f32 0.0, %v4867
      %v4869 = vpop.f32.mrf.mxu0
      %v4870 = vpop.f32.mrf.mxu0
      %v4871 = vadd.f32 0.0, %v4870
      %v4872 = vpop.f32.mrf.mxu0
      %4873 = vmatprep.mubr.bf16.mxu0 0
      %4874 = vmatmul.mubr.bf16.gmra.mxu0 %v4215
      %v4875 = vpop.f32.mrf.mxu0
      %v4876 = vadd.f32 0.0, %v4875
      %v4877 = vpop.f32.mrf.mxu0
      %v4878 = vpop.f32.mrf.mxu0
      %v4879 = vadd.f32 0.0, %v4878
      %v4880 = vpop.f32.mrf.mxu0
      %4881 = vmatprep.mubr.bf16.mxu0 0
      %4882 = vmatmul.mubr.bf16.gmra.mxu0 %v4218
      %v4883 = vpop.f32.mrf.mxu0
      %v4884 = vadd.f32 0.0, %v4883
      %v4885 = vpop.f32.mrf.mxu0
      %v4886 = vpop.f32.mrf.mxu0
      %v4887 = vadd.f32 0.0, %v4886
      %v4888 = vpop.f32.mrf.mxu0
      %4889 = vmatprep.mubr.bf16.mxu0 0
      %4890 = vmatmul.mubr.bf16.gmra.mxu0 %v4221
      %v4891 = vpop.f32.mrf.mxu0
      %v4892 = vadd.f32 0.0, %v4891
      %v4893 = vpop.f32.mrf.mxu0
      %v4894 = vpop.f32.mrf.mxu0
      %v4895 = vadd.f32 0.0, %v4894
      %v4896 = vpop.f32.mrf.mxu0
      %4897 = vmatprep.mubr.bf16.mxu0 0
      %4898 = vmatmul.mubr.bf16.gmra.mxu0 %v4224
      %v4899 = vpop.f32.mrf.mxu0
      %v4900 = vadd.f32 0.0, %v4899
      %v4901 = vpop.f32.mrf.mxu0
      %v4902 = vpop.f32.mrf.mxu0
      %v4903 = vadd.f32 0.0, %v4902
      %v4904 = vpop.f32.mrf.mxu0
      %4905 = vmatprep.mubr.bf16.mxu0 0
      %4906 = vmatmul.mubr.bf16.gmra.mxu0 %v4748
      %v4907 = vpop.f32.mrf.mxu0
      %v4908 = vadd.f32 0.0, %v4907
      %v4909 = vpop.f32.mrf.mxu0
      %v4910 = vpop.f32.mrf.mxu0
      %v4911 = vadd.f32 0.0, %v4910
      %v4912 = vpop.f32.mrf.mxu0
      %4913 = vdwg.mxu0
      %v4914 = vadd.f32 %v4707, %v4788
      %v4915 = vadd.f32 %v4708, %v4791
      %v4916 = vadd.f32 %v4709, %v4796
      %v4917 = vadd.f32 %v4710, %v4799
      %v4918 = vadd.f32 %v4711, %v4804
      %v4919 = vadd.f32 %v4712, %v4807
      %v4920 = vadd.f32 %v4713, %v4812
      %v4921 = vadd.f32 %v4714, %v4815
      %v4922 = vadd.f32 %v4715, %v4820
      %v4923 = vadd.f32 %v4716, %v4823
      %v4924 = vadd.f32 %v4717, %v4828
      %v4925 = vadd.f32 %v4718, %v4831
      %v4926 = vadd.f32 %v4719, %v4836
      %v4927 = vadd.f32 %v4720, %v4839
      %v4928 = vadd.f32 %v4721, %v4844
      %v4929 = vadd.f32 %v4722, %v4847
      %v4930 = vadd.f32 %v4723, %v4852
      %v4931 = vadd.f32 %v4724, %v4855
      %v4932 = vadd.f32 %v4725, %v4860
      %v4933 = vadd.f32 %v4726, %v4863
      %v4934 = vadd.f32 %v4727, %v4868
      %v4935 = vadd.f32 %v4728, %v4871
      %v4936 = vadd.f32 %v4729, %v4876
      %v4937 = vadd.f32 %v4730, %v4879
      %v4938 = vadd.f32 %v4731, %v4884
      %v4939 = vadd.f32 %v4732, %v4887
      %v4940 = vadd.f32 %v4733, %v4892
      %v4941 = vadd.f32 %v4734, %v4895
      %v4942 = vadd.f32 %v4735, %v4900
      %v4943 = vadd.f32 %v4736, %v4903
      %v4944 = vadd.f32 %v4737, %v4908
      %v4945 = vadd.f32 %v4738, %v4911
      %v4946 = vsel %vm466, %v3816, 0.0
      %v4947 = vsel %vm467, %v3817, 0.0
      %v4948 = vpack.c.bf16 %v4947, %v4946
      %s4949 = scalar_lea.vmem %s4, 8
      %v4950 = vld [vmem:[%s4949] sm:$0x3]
      %v4952 = vsel %vm515, %v4948, 0
      %v4955 = vsel %vm564, %v4950, 0
      %4957 = vmatprep.subr.bf16.mxu0 0
      %4958 = vmatpush1.bf16.msra.mxu0 0
      %4959 = vmatprep.subr.bf16.mxu0 0
      %4960 = vmatpush1.bf16.msra.mxu0 0
      %4961 = vmatprep.subr.bf16.mxu0 0
      %4962 = vmatpush1.bf16.msra.mxu0 0
      %4963 = vmatprep.subr.bf16.mxu0 0
      %4964 = vmatpush1.bf16.msra.mxu0 0
      %4965 = vmatprep.subr.bf16.mxu0 0
      %4966 = vmatpush1.bf16.msra.mxu0 0
      %4967 = vmatprep.subr.bf16.mxu0 0
      %4968 = vmatpush1.bf16.msra.mxu0 0
      %4969 = vmatprep.subr.bf16.mxu0 0
      %4970 = vmatpush1.bf16.msra.mxu0 0
      %4971 = vmatprep.subr.bf16.mxu0 0
      %4972 = vmatpush1.bf16.msra.mxu0 %v4955
      %4973 = vmatprep.subr.bf16.mxu0 0
      %4974 = vmatpush2.bf16.msra.mxu0 0
      %4975 = vmatprep.subr.bf16.mxu0 0
      %4976 = vmatpush2.bf16.msra.mxu0 0
      %4977 = vmatprep.subr.bf16.mxu0 0
      %4978 = vmatpush2.bf16.msra.mxu0 0
      %4979 = vmatprep.subr.bf16.mxu0 0
      %4980 = vmatpush2.bf16.msra.mxu0 0
      %4981 = vmatprep.subr.bf16.mxu0 0
      %4982 = vmatpush2.bf16.msra.mxu0 0
      %4983 = vmatprep.subr.bf16.mxu0 0
      %4984 = vmatpush2.bf16.msra.mxu0 0
      %4985 = vmatprep.subr.bf16.mxu0 0
      %4986 = vmatpush2.bf16.msra.mxu0 0
      %4987 = vmatprep.subr.bf16.mxu0 0
      %4988 = vmatpush2.bf16.msra.mxu0 0
      %4989 = vmatprep.mubr.bf16.mxu0 0
      %4990 = vmatmul.mubr.bf16.gmra.mxu0 %v3973
      %v4991 = vpop.f32.mrf.mxu0
      %v4992 = vadd.f32 0.0, %v4991
      %v4993 = vpop.f32.mrf.mxu0
      %v4994 = vpop.f32.mrf.mxu0
      %v4995 = vadd.f32 0.0, %v4994
      %v4996 = vpop.f32.mrf.mxu0
      %4997 = vmatprep.mubr.bf16.mxu0 0
      %4998 = vmatmul.mubr.bf16.gmra.mxu0 %v3976
      %v4999 = vpop.f32.mrf.mxu0
      %v5000 = vadd.f32 0.0, %v4999
      %v5001 = vpop.f32.mrf.mxu0
      %v5002 = vpop.f32.mrf.mxu0
      %v5003 = vadd.f32 0.0, %v5002
      %v5004 = vpop.f32.mrf.mxu0
      %5005 = vmatprep.mubr.bf16.mxu0 0
      %5006 = vmatmul.mubr.bf16.gmra.mxu0 %v3979
      %v5007 = vpop.f32.mrf.mxu0
      %v5008 = vadd.f32 0.0, %v5007
      %v5009 = vpop.f32.mrf.mxu0
      %v5010 = vpop.f32.mrf.mxu0
      %v5011 = vadd.f32 0.0, %v5010
      %v5012 = vpop.f32.mrf.mxu0
      %5013 = vmatprep.mubr.bf16.mxu0 0
      %5014 = vmatmul.mubr.bf16.gmra.mxu0 %v3982
      %v5015 = vpop.f32.mrf.mxu0
      %v5016 = vadd.f32 0.0, %v5015
      %v5017 = vpop.f32.mrf.mxu0
      %v5018 = vpop.f32.mrf.mxu0
      %v5019 = vadd.f32 0.0, %v5018
      %v5020 = vpop.f32.mrf.mxu0
      %5021 = vmatprep.mubr.bf16.mxu0 0
      %5022 = vmatmul.mubr.bf16.gmra.mxu0 %v3985
      %v5023 = vpop.f32.mrf.mxu0
      %v5024 = vadd.f32 0.0, %v5023
      %v5025 = vpop.f32.mrf.mxu0
      %v5026 = vpop.f32.mrf.mxu0
      %v5027 = vadd.f32 0.0, %v5026
      %v5028 = vpop.f32.mrf.mxu0
      %5029 = vmatprep.mubr.bf16.mxu0 0
      %5030 = vmatmul.mubr.bf16.gmra.mxu0 %v3988
      %v5031 = vpop.f32.mrf.mxu0
      %v5032 = vadd.f32 0.0, %v5031
      %v5033 = vpop.f32.mrf.mxu0
      %v5034 = vpop.f32.mrf.mxu0
      %v5035 = vadd.f32 0.0, %v5034
      %v5036 = vpop.f32.mrf.mxu0
      %5037 = vmatprep.mubr.bf16.mxu0 0
      %5038 = vmatmul.mubr.bf16.gmra.mxu0 %v3991
      %v5039 = vpop.f32.mrf.mxu0
      %v5040 = vadd.f32 0.0, %v5039
      %v5041 = vpop.f32.mrf.mxu0
      %v5042 = vpop.f32.mrf.mxu0
      %v5043 = vadd.f32 0.0, %v5042
      %v5044 = vpop.f32.mrf.mxu0
      %5045 = vmatprep.mubr.bf16.mxu0 0
      %5046 = vmatmul.mubr.bf16.gmra.mxu0 %v3994
      %v5047 = vpop.f32.mrf.mxu0
      %v5048 = vadd.f32 0.0, %v5047
      %v5049 = vpop.f32.mrf.mxu0
      %v5050 = vpop.f32.mrf.mxu0
      %v5051 = vadd.f32 0.0, %v5050
      %v5052 = vpop.f32.mrf.mxu0
      %5053 = vmatprep.mubr.bf16.mxu0 0
      %5054 = vmatmul.mubr.bf16.gmra.mxu0 %v3997
      %v5055 = vpop.f32.mrf.mxu0
      %v5056 = vadd.f32 0.0, %v5055
      %v5057 = vpop.f32.mrf.mxu0
      %v5058 = vpop.f32.mrf.mxu0
      %v5059 = vadd.f32 0.0, %v5058
      %v5060 = vpop.f32.mrf.mxu0
      %5061 = vmatprep.mubr.bf16.mxu0 0
      %5062 = vmatmul.mubr.bf16.gmra.mxu0 %v4000
      %v5063 = vpop.f32.mrf.mxu0
      %v5064 = vadd.f32 0.0, %v5063
      %v5065 = vpop.f32.mrf.mxu0
      %v5066 = vpop.f32.mrf.mxu0
      %v5067 = vadd.f32 0.0, %v5066
      %v5068 = vpop.f32.mrf.mxu0
      %5069 = vmatprep.mubr.bf16.mxu0 0
      %5070 = vmatmul.mubr.bf16.gmra.mxu0 %v4003
      %v5071 = vpop.f32.mrf.mxu0
      %v5072 = vadd.f32 0.0, %v5071
      %v5073 = vpop.f32.mrf.mxu0
      %v5074 = vpop.f32.mrf.mxu0
      %v5075 = vadd.f32 0.0, %v5074
      %v5076 = vpop.f32.mrf.mxu0
      %5077 = vmatprep.mubr.bf16.mxu0 0
      %5078 = vmatmul.mubr.bf16.gmra.mxu0 %v4006
      %v5079 = vpop.f32.mrf.mxu0
      %v5080 = vadd.f32 0.0, %v5079
      %v5081 = vpop.f32.mrf.mxu0
      %v5082 = vpop.f32.mrf.mxu0
      %v5083 = vadd.f32 0.0, %v5082
      %v5084 = vpop.f32.mrf.mxu0
      %5085 = vmatprep.mubr.bf16.mxu0 0
      %5086 = vmatmul.mubr.bf16.gmra.mxu0 %v4009
      %v5087 = vpop.f32.mrf.mxu0
      %v5088 = vadd.f32 0.0, %v5087
      %v5089 = vpop.f32.mrf.mxu0
      %v5090 = vpop.f32.mrf.mxu0
      %v5091 = vadd.f32 0.0, %v5090
      %v5092 = vpop.f32.mrf.mxu0
      %5093 = vmatprep.mubr.bf16.mxu0 0
      %5094 = vmatmul.mubr.bf16.gmra.mxu0 %v4012
      %v5095 = vpop.f32.mrf.mxu0
      %v5096 = vadd.f32 0.0, %v5095
      %v5097 = vpop.f32.mrf.mxu0
      %v5098 = vpop.f32.mrf.mxu0
      %v5099 = vadd.f32 0.0, %v5098
      %v5100 = vpop.f32.mrf.mxu0
      %5101 = vmatprep.mubr.bf16.mxu0 0
      %5102 = vmatmul.mubr.bf16.gmra.mxu0 %v4015
      %v5103 = vpop.f32.mrf.mxu0
      %v5104 = vadd.f32 0.0, %v5103
      %v5105 = vpop.f32.mrf.mxu0
      %v5106 = vpop.f32.mrf.mxu0
      %v5107 = vadd.f32 0.0, %v5106
      %v5108 = vpop.f32.mrf.mxu0
      %5109 = vmatprep.mubr.bf16.mxu0 0
      %5110 = vmatmul.mubr.bf16.gmra.mxu0 %v4952
      %v5111 = vpop.f32.mrf.mxu0
      %v5112 = vadd.f32 0.0, %v5111
      %v5113 = vpop.f32.mrf.mxu0
      %v5114 = vpop.f32.mrf.mxu0
      %v5115 = vadd.f32 0.0, %v5114
      %v5116 = vpop.f32.mrf.mxu0
      %5117 = vdwg.mxu0
      %v5118 = vadd.f32 %v4914, %v4992
      %v5119 = vadd.f32 %v4915, %v4995
      %v5120 = vadd.f32 %v4916, %v5000
      %v5121 = vadd.f32 %v4917, %v5003
      %v5122 = vadd.f32 %v4918, %v5008
      %v5123 = vadd.f32 %v4919, %v5011
      %v5124 = vadd.f32 %v4920, %v5016
      %v5125 = vadd.f32 %v4921, %v5019
      %v5126 = vadd.f32 %v4922, %v5024
      %v5127 = vadd.f32 %v4923, %v5027
      %v5128 = vadd.f32 %v4924, %v5032
      %v5129 = vadd.f32 %v4925, %v5035
      %v5130 = vadd.f32 %v4926, %v5040
      %v5131 = vadd.f32 %v4927, %v5043
      %v5132 = vadd.f32 %v4928, %v5048
      %v5133 = vadd.f32 %v4929, %v5051
      %v5134 = vadd.f32 %v4930, %v5056
      %v5135 = vadd.f32 %v4931, %v5059
      %v5136 = vadd.f32 %v4932, %v5064
      %v5137 = vadd.f32 %v4933, %v5067
      %v5138 = vadd.f32 %v4934, %v5072
      %v5139 = vadd.f32 %v4935, %v5075
      %v5140 = vadd.f32 %v4936, %v5080
      %v5141 = vadd.f32 %v4937, %v5083
      %v5142 = vadd.f32 %v4938, %v5088
      %v5143 = vadd.f32 %v4939, %v5091
      %v5144 = vadd.f32 %v4940, %v5096
      %v5145 = vadd.f32 %v4941, %v5099
      %v5146 = vadd.f32 %v4942, %v5104
      %v5147 = vadd.f32 %v4943, %v5107
      %v5148 = vadd.f32 %v4944, %v5112
      %v5149 = vadd.f32 %v4945, %v5115
      %v5150 = vrot.slane %v3817, 1
      %v5151 = vsel %vm969, %v4420, %v5150
      %v5152 = vsel %vm969, %v5150, %v4390
      %v5153 = vsel %vm1004, %v5151, 0.0
      %v5154 = vsel %vm1005, %v5152, 0.0
      %v5155 = vpack.c.bf16 %v5154, %v5153
      %s5156 = scalar_lea.vmem %s4, 10
      %v5157 = vld [vmem:[%s5156] sm:$0x3]
      %v5159 = vsel %vm515, %v5155, 0
      %v5162 = vsel %vm564, %v5157, 0
      %5164 = vmatprep.subr.bf16.mxu0 0
      %5165 = vmatpush1.bf16.msra.mxu0 0
      %5166 = vmatprep.subr.bf16.mxu0 0
      %5167 = vmatpush1.bf16.msra.mxu0 0
      %5168 = vmatprep.subr.bf16.mxu0 0
      %5169 = vmatpush1.bf16.msra.mxu0 0
      %5170 = vmatprep.subr.bf16.mxu0 0
      %5171 = vmatpush1.bf16.msra.mxu0 0
      %5172 = vmatprep.subr.bf16.mxu0 0
      %5173 = vmatpush1.bf16.msra.mxu0 0
      %5174 = vmatprep.subr.bf16.mxu0 0
      %5175 = vmatpush1.bf16.msra.mxu0 0
      %5176 = vmatprep.subr.bf16.mxu0 0
      %5177 = vmatpush1.bf16.msra.mxu0 0
      %5178 = vmatprep.subr.bf16.mxu0 0
      %5179 = vmatpush1.bf16.msra.mxu0 %v5162
      %5180 = vmatprep.subr.bf16.mxu0 0
      %5181 = vmatpush2.bf16.msra.mxu0 0
      %5182 = vmatprep.subr.bf16.mxu0 0
      %5183 = vmatpush2.bf16.msra.mxu0 0
      %5184 = vmatprep.subr.bf16.mxu0 0
      %5185 = vmatpush2.bf16.msra.mxu0 0
      %5186 = vmatprep.subr.bf16.mxu0 0
      %5187 = vmatpush2.bf16.msra.mxu0 0
      %5188 = vmatprep.subr.bf16.mxu0 0
      %5189 = vmatpush2.bf16.msra.mxu0 0
      %5190 = vmatprep.subr.bf16.mxu0 0
      %5191 = vmatpush2.bf16.msra.mxu0 0
      %5192 = vmatprep.subr.bf16.mxu0 0
      %5193 = vmatpush2.bf16.msra.mxu0 0
      %5194 = vmatprep.subr.bf16.mxu0 0
      %5195 = vmatpush2.bf16.msra.mxu0 0
      %5196 = vmatprep.mubr.bf16.mxu0 0
      %5197 = vmatmul.mubr.bf16.gmra.mxu0 %v4499
      %v5198 = vpop.f32.mrf.mxu0
      %v5199 = vadd.f32 0.0, %v5198
      %v5200 = vpop.f32.mrf.mxu0
      %v5201 = vpop.f32.mrf.mxu0
      %v5202 = vadd.f32 0.0, %v5201
      %v5203 = vpop.f32.mrf.mxu0
      %5204 = vmatprep.mubr.bf16.mxu0 0
      %5205 = vmatmul.mubr.bf16.gmra.mxu0 %v4502
      %v5206 = vpop.f32.mrf.mxu0
      %v5207 = vadd.f32 0.0, %v5206
      %v5208 = vpop.f32.mrf.mxu0
      %v5209 = vpop.f32.mrf.mxu0
      %v5210 = vadd.f32 0.0, %v5209
      %v5211 = vpop.f32.mrf.mxu0
      %5212 = vmatprep.mubr.bf16.mxu0 0
      %5213 = vmatmul.mubr.bf16.gmra.mxu0 %v4505
      %v5214 = vpop.f32.mrf.mxu0
      %v5215 = vadd.f32 0.0, %v5214
      %v5216 = vpop.f32.mrf.mxu0
      %v5217 = vpop.f32.mrf.mxu0
      %v5218 = vadd.f32 0.0, %v5217
      %v5219 = vpop.f32.mrf.mxu0
      %5220 = vmatprep.mubr.bf16.mxu0 0
      %5221 = vmatmul.mubr.bf16.gmra.mxu0 %v4508
      %v5222 = vpop.f32.mrf.mxu0
      %v5223 = vadd.f32 0.0, %v5222
      %v5224 = vpop.f32.mrf.mxu0
      %v5225 = vpop.f32.mrf.mxu0
      %v5226 = vadd.f32 0.0, %v5225
      %v5227 = vpop.f32.mrf.mxu0
      %5228 = vmatprep.mubr.bf16.mxu0 0
      %5229 = vmatmul.mubr.bf16.gmra.mxu0 %v4511
      %v5230 = vpop.f32.mrf.mxu0
      %v5231 = vadd.f32 0.0, %v5230
      %v5232 = vpop.f32.mrf.mxu0
      %v5233 = vpop.f32.mrf.mxu0
      %v5234 = vadd.f32 0.0, %v5233
      %v5235 = vpop.f32.mrf.mxu0
      %5236 = vmatprep.mubr.bf16.mxu0 0
      %5237 = vmatmul.mubr.bf16.gmra.mxu0 %v4514
      %v5238 = vpop.f32.mrf.mxu0
      %v5239 = vadd.f32 0.0, %v5238
      %v5240 = vpop.f32.mrf.mxu0
      %v5241 = vpop.f32.mrf.mxu0
      %v5242 = vadd.f32 0.0, %v5241
      %v5243 = vpop.f32.mrf.mxu0
      %5244 = vmatprep.mubr.bf16.mxu0 0
      %5245 = vmatmul.mubr.bf16.gmra.mxu0 %v4517
      %v5246 = vpop.f32.mrf.mxu0
      %v5247 = vadd.f32 0.0, %v5246
      %v5248 = vpop.f32.mrf.mxu0
      %v5249 = vpop.f32.mrf.mxu0
      %v5250 = vadd.f32 0.0, %v5249
      %v5251 = vpop.f32.mrf.mxu0
      %5252 = vmatprep.mubr.bf16.mxu0 0
      %5253 = vmatmul.mubr.bf16.gmra.mxu0 %v4520
      %v5254 = vpop.f32.mrf.mxu0
      %v5255 = vadd.f32 0.0, %v5254
      %v5256 = vpop.f32.mrf.mxu0
      %v5257 = vpop.f32.mrf.mxu0
      %v5258 = vadd.f32 0.0, %v5257
      %v5259 = vpop.f32.mrf.mxu0
      %5260 = vmatprep.mubr.bf16.mxu0 0
      %5261 = vmatmul.mubr.bf16.gmra.mxu0 %v4523
      %v5262 = vpop.f32.mrf.mxu0
      %v5263 = vadd.f32 0.0, %v5262
      %v5264 = vpop.f32.mrf.mxu0
      %v5265 = vpop.f32.mrf.mxu0
      %v5266 = vadd.f32 0.0, %v5265
      %v5267 = vpop.f32.mrf.mxu0
      %5268 = vmatprep.mubr.bf16.mxu0 0
      %5269 = vmatmul.mubr.bf16.gmra.mxu0 %v4526
      %v5270 = vpop.f32.mrf.mxu0
      %v5271 = vadd.f32 0.0, %v5270
      %v5272 = vpop.f32.mrf.mxu0
      %v5273 = vpop.f32.mrf.mxu0
      %v5274 = vadd.f32 0.0, %v5273
      %v5275 = vpop.f32.mrf.mxu0
      %5276 = vmatprep.mubr.bf16.mxu0 0
      %5277 = vmatmul.mubr.bf16.gmra.mxu0 %v4529
      %v5278 = vpop.f32.mrf.mxu0
      %v5279 = vadd.f32 0.0, %v5278
      %v5280 = vpop.f32.mrf.mxu0
      %v5281 = vpop.f32.mrf.mxu0
      %v5282 = vadd.f32 0.0, %v5281
      %v5283 = vpop.f32.mrf.mxu0
      %5284 = vmatprep.mubr.bf16.mxu0 0
      %5285 = vmatmul.mubr.bf16.gmra.mxu0 %v4532
      %v5286 = vpop.f32.mrf.mxu0
      %v5287 = vadd.f32 0.0, %v5286
      %v5288 = vpop.f32.mrf.mxu0
      %v5289 = vpop.f32.mrf.mxu0
      %v5290 = vadd.f32 0.0, %v5289
      %v5291 = vpop.f32.mrf.mxu0
      %5292 = vmatprep.mubr.bf16.mxu0 0
      %5293 = vmatmul.mubr.bf16.gmra.mxu0 %v4535
      %v5294 = vpop.f32.mrf.mxu0
      %v5295 = vadd.f32 0.0, %v5294
      %v5296 = vpop.f32.mrf.mxu0
      %v5297 = vpop.f32.mrf.mxu0
      %v5298 = vadd.f32 0.0, %v5297
      %v5299 = vpop.f32.mrf.mxu0
      %5300 = vmatprep.mubr.bf16.mxu0 0
      %5301 = vmatmul.mubr.bf16.gmra.mxu0 %v4538
      %v5302 = vpop.f32.mrf.mxu0
      %v5303 = vadd.f32 0.0, %v5302
      %v5304 = vpop.f32.mrf.mxu0
      %v5305 = vpop.f32.mrf.mxu0
      %v5306 = vadd.f32 0.0, %v5305
      %v5307 = vpop.f32.mrf.mxu0
      %5308 = vmatprep.mubr.bf16.mxu0 0
      %5309 = vmatmul.mubr.bf16.gmra.mxu0 %v4541
      %v5310 = vpop.f32.mrf.mxu0
      %v5311 = vadd.f32 0.0, %v5310
      %v5312 = vpop.f32.mrf.mxu0
      %v5313 = vpop.f32.mrf.mxu0
      %v5314 = vadd.f32 0.0, %v5313
      %v5315 = vpop.f32.mrf.mxu0
      %5316 = vmatprep.mubr.bf16.mxu0 0
      %5317 = vmatmul.mubr.bf16.gmra.mxu0 %v5159
      %v5318 = vpop.f32.mrf.mxu0
      %v5319 = vadd.f32 0.0, %v5318
      %v5320 = vpop.f32.mrf.mxu0
      %v5321 = vpop.f32.mrf.mxu0
      %v5322 = vadd.f32 0.0, %v5321
      %v5323 = vpop.f32.mrf.mxu0
      %5324 = vdwg.mxu0
      %v5325 = vadd.f32 %v5118, %v5199
      %v5326 = vadd.f32 %v5119, %v5202
      %v5327 = vadd.f32 %v5120, %v5207
      %v5328 = vadd.f32 %v5121, %v5210
      %v5329 = vadd.f32 %v5122, %v5215
      %v5330 = vadd.f32 %v5123, %v5218
      %v5331 = vadd.f32 %v5124, %v5223
      %v5332 = vadd.f32 %v5125, %v5226
      %v5333 = vadd.f32 %v5126, %v5231
      %v5334 = vadd.f32 %v5127, %v5234
      %v5335 = vadd.f32 %v5128, %v5239
      %v5336 = vadd.f32 %v5129, %v5242
      %v5337 = vadd.f32 %v5130, %v5247
      %v5338 = vadd.f32 %v5131, %v5250
      %v5339 = vadd.f32 %v5132, %v5255
      %v5340 = vadd.f32 %v5133, %v5258
      %v5341 = vadd.f32 %v5134, %v5263
      %v5342 = vadd.f32 %v5135, %v5266
      %v5343 = vadd.f32 %v5136, %v5271
      %v5344 = vadd.f32 %v5137, %v5274
      %v5345 = vadd.f32 %v5138, %v5279
      %v5346 = vadd.f32 %v5139, %v5282
      %v5347 = vadd.f32 %v5140, %v5287
      %v5348 = vadd.f32 %v5141, %v5290
      %v5349 = vadd.f32 %v5142, %v5295
      %v5350 = vadd.f32 %v5143, %v5298
      %v5351 = vadd.f32 %v5144, %v5303
      %v5352 = vadd.f32 %v5145, %v5306
      %v5353 = vadd.f32 %v5146, %v5311
      %v5354 = vadd.f32 %v5147, %v5314
      %v5355 = vadd.f32 %v5148, %v5319
      %v5356 = vadd.f32 %v5149, %v5322
      %s5357 = scalar_lea.vmem %s4, 12
      %v5358 = vld [vmem:[%s5357] sm:$0x3]
      %v5360 = vsel %vm564, %v5358, 0
      %5362 = vmatprep.subr.bf16.mxu0 0
      %5363 = vmatpush1.bf16.msra.mxu0 0
      %5364 = vmatprep.subr.bf16.mxu0 0
      %5365 = vmatpush1.bf16.msra.mxu0 0
      %5366 = vmatprep.subr.bf16.mxu0 0
      %5367 = vmatpush1.bf16.msra.mxu0 0
      %5368 = vmatprep.subr.bf16.mxu0 0
      %5369 = vmatpush1.bf16.msra.mxu0 0
      %5370 = vmatprep.subr.bf16.mxu0 0
      %5371 = vmatpush1.bf16.msra.mxu0 0
      %5372 = vmatprep.subr.bf16.mxu0 0
      %5373 = vmatpush1.bf16.msra.mxu0 0
      %5374 = vmatprep.subr.bf16.mxu0 0
      %5375 = vmatpush1.bf16.msra.mxu0 0
      %5376 = vmatprep.subr.bf16.mxu0 0
      %5377 = vmatpush1.bf16.msra.mxu0 %v5360
      %5378 = vmatprep.subr.bf16.mxu0 0
      %5379 = vmatpush2.bf16.msra.mxu0 0
      %5380 = vmatprep.subr.bf16.mxu0 0
      %5381 = vmatpush2.bf16.msra.mxu0 0
      %5382 = vmatprep.subr.bf16.mxu0 0
      %5383 = vmatpush2.bf16.msra.mxu0 0
      %5384 = vmatprep.subr.bf16.mxu0 0
      %5385 = vmatpush2.bf16.msra.mxu0 0
      %5386 = vmatprep.subr.bf16.mxu0 0
      %5387 = vmatpush2.bf16.msra.mxu0 0
      %5388 = vmatprep.subr.bf16.mxu0 0
      %5389 = vmatpush2.bf16.msra.mxu0 0
      %5390 = vmatprep.subr.bf16.mxu0 0
      %5391 = vmatpush2.bf16.msra.mxu0 0
      %5392 = vmatprep.subr.bf16.mxu0 0
      %5393 = vmatpush2.bf16.msra.mxu0 0
      %5394 = vmatprep.mubr.bf16.mxu0 0
      %5395 = vmatmul.mubr.bf16.gmra.mxu0 %v4185
      %v5396 = vpop.f32.mrf.mxu0
      %v5397 = vadd.f32 0.0, %v5396
      %v5398 = vpop.f32.mrf.mxu0
      %v5399 = vpop.f32.mrf.mxu0
      %v5400 = vadd.f32 0.0, %v5399
      %v5401 = vpop.f32.mrf.mxu0
      %5402 = vmatprep.mubr.bf16.mxu0 0
      %5403 = vmatmul.mubr.bf16.gmra.mxu0 %v4188
      %v5404 = vpop.f32.mrf.mxu0
      %v5405 = vadd.f32 0.0, %v5404
      %v5406 = vpop.f32.mrf.mxu0
      %v5407 = vpop.f32.mrf.mxu0
      %v5408 = vadd.f32 0.0, %v5407
      %v5409 = vpop.f32.mrf.mxu0
      %5410 = vmatprep.mubr.bf16.mxu0 0
      %5411 = vmatmul.mubr.bf16.gmra.mxu0 %v4191
      %v5412 = vpop.f32.mrf.mxu0
      %v5413 = vadd.f32 0.0, %v5412
      %v5414 = vpop.f32.mrf.mxu0
      %v5415 = vpop.f32.mrf.mxu0
      %v5416 = vadd.f32 0.0, %v5415
      %v5417 = vpop.f32.mrf.mxu0
      %5418 = vmatprep.mubr.bf16.mxu0 0
      %5419 = vmatmul.mubr.bf16.gmra.mxu0 %v4194
      %v5420 = vpop.f32.mrf.mxu0
      %v5421 = vadd.f32 0.0, %v5420
      %v5422 = vpop.f32.mrf.mxu0
      %v5423 = vpop.f32.mrf.mxu0
      %v5424 = vadd.f32 0.0, %v5423
      %v5425 = vpop.f32.mrf.mxu0
      %5426 = vmatprep.mubr.bf16.mxu0 0
      %5427 = vmatmul.mubr.bf16.gmra.mxu0 %v4197
      %v5428 = vpop.f32.mrf.mxu0
      %v5429 = vadd.f32 0.0, %v5428
      %v5430 = vpop.f32.mrf.mxu0
      %v5431 = vpop.f32.mrf.mxu0
      %v5432 = vadd.f32 0.0, %v5431
      %v5433 = vpop.f32.mrf.mxu0
      %5434 = vmatprep.mubr.bf16.mxu0 0
      %5435 = vmatmul.mubr.bf16.gmra.mxu0 %v4200
      %v5436 = vpop.f32.mrf.mxu0
      %v5437 = vadd.f32 0.0, %v5436
      %v5438 = vpop.f32.mrf.mxu0
      %v5439 = vpop.f32.mrf.mxu0
      %v5440 = vadd.f32 0.0, %v5439
      %v5441 = vpop.f32.mrf.mxu0
      %5442 = vmatprep.mubr.bf16.mxu0 0
      %5443 = vmatmul.mubr.bf16.gmra.mxu0 %v4203
      %v5444 = vpop.f32.mrf.mxu0
      %v5445 = vadd.f32 0.0, %v5444
      %v5446 = vpop.f32.mrf.mxu0
      %v5447 = vpop.f32.mrf.mxu0
      %v5448 = vadd.f32 0.0, %v5447
      %v5449 = vpop.f32.mrf.mxu0
      %5450 = vmatprep.mubr.bf16.mxu0 0
      %5451 = vmatmul.mubr.bf16.gmra.mxu0 %v4206
      %v5452 = vpop.f32.mrf.mxu0
      %v5453 = vadd.f32 0.0, %v5452
      %v5454 = vpop.f32.mrf.mxu0
      %v5455 = vpop.f32.mrf.mxu0
      %v5456 = vadd.f32 0.0, %v5455
      %v5457 = vpop.f32.mrf.mxu0
      %5458 = vmatprep.mubr.bf16.mxu0 0
      %5459 = vmatmul.mubr.bf16.gmra.mxu0 %v4209
      %v5460 = vpop.f32.mrf.mxu0
      %v5461 = vadd.f32 0.0, %v5460
      %v5462 = vpop.f32.mrf.mxu0
      %v5463 = vpop.f32.mrf.mxu0
      %v5464 = vadd.f32 0.0, %v5463
      %v5465 = vpop.f32.mrf.mxu0
      %5466 = vmatprep.mubr.bf16.mxu0 0
      %5467 = vmatmul.mubr.bf16.gmra.mxu0 %v4212
      %v5468 = vpop.f32.mrf.mxu0
      %v5469 = vadd.f32 0.0, %v5468
      %v5470 = vpop.f32.mrf.mxu0
      %v5471 = vpop.f32.mrf.mxu0
      %v5472 = vadd.f32 0.0, %v5471
      %v5473 = vpop.f32.mrf.mxu0
      %5474 = vmatprep.mubr.bf16.mxu0 0
      %5475 = vmatmul.mubr.bf16.gmra.mxu0 %v4215
      %v5476 = vpop.f32.mrf.mxu0
      %v5477 = vadd.f32 0.0, %v5476
      %v5478 = vpop.f32.mrf.mxu0
      %v5479 = vpop.f32.mrf.mxu0
      %v5480 = vadd.f32 0.0, %v5479
      %v5481 = vpop.f32.mrf.mxu0
      %5482 = vmatprep.mubr.bf16.mxu0 0
      %5483 = vmatmul.mubr.bf16.gmra.mxu0 %v4218
      %v5484 = vpop.f32.mrf.mxu0
      %v5485 = vadd.f32 0.0, %v5484
      %v5486 = vpop.f32.mrf.mxu0
      %v5487 = vpop.f32.mrf.mxu0
      %v5488 = vadd.f32 0.0, %v5487
      %v5489 = vpop.f32.mrf.mxu0
      %5490 = vmatprep.mubr.bf16.mxu0 0
      %5491 = vmatmul.mubr.bf16.gmra.mxu0 %v4221
      %v5492 = vpop.f32.mrf.mxu0
      %v5493 = vadd.f32 0.0, %v5492
      %v5494 = vpop.f32.mrf.mxu0
      %v5495 = vpop.f32.mrf.mxu0
      %v5496 = vadd.f32 0.0, %v5495
      %v5497 = vpop.f32.mrf.mxu0
      %5498 = vmatprep.mubr.bf16.mxu0 0
      %5499 = vmatmul.mubr.bf16.gmra.mxu0 %v4224
      %v5500 = vpop.f32.mrf.mxu0
      %v5501 = vadd.f32 0.0, %v5500
      %v5502 = vpop.f32.mrf.mxu0
      %v5503 = vpop.f32.mrf.mxu0
      %v5504 = vadd.f32 0.0, %v5503
      %v5505 = vpop.f32.mrf.mxu0
      %5506 = vmatprep.mubr.bf16.mxu0 0
      %5507 = vmatmul.mubr.bf16.gmra.mxu0 %v4748
      %v5508 = vpop.f32.mrf.mxu0
      %v5509 = vadd.f32 0.0, %v5508
      %v5510 = vpop.f32.mrf.mxu0
      %v5511 = vpop.f32.mrf.mxu0
      %v5512 = vadd.f32 0.0, %v5511
      %v5513 = vpop.f32.mrf.mxu0
      %5514 = vmatprep.mubr.bf16.mxu0 0
      %5515 = vmatmul.mubr.bf16.gmra.mxu0 %v517
      %v5516 = vpop.f32.mrf.mxu0
      %v5517 = vadd.f32 0.0, %v5516
      %v5518 = vpop.f32.mrf.mxu0
      %v5519 = vpop.f32.mrf.mxu0
      %v5520 = vadd.f32 0.0, %v5519
      %v5521 = vpop.f32.mrf.mxu0
      %5522 = vdwg.mxu0
      %v5523 = vadd.f32 %v5325, %v5397
      %v5524 = vadd.f32 %v5326, %v5400
      %v5525 = vadd.f32 %v5327, %v5405
      %v5526 = vadd.f32 %v5328, %v5408
      %v5527 = vadd.f32 %v5329, %v5413
      %v5528 = vadd.f32 %v5330, %v5416
      %v5529 = vadd.f32 %v5331, %v5421
      %v5530 = vadd.f32 %v5332, %v5424
      %v5531 = vadd.f32 %v5333, %v5429
      %v5532 = vadd.f32 %v5334, %v5432
      %v5533 = vadd.f32 %v5335, %v5437
      %v5534 = vadd.f32 %v5336, %v5440
      %v5535 = vadd.f32 %v5337, %v5445
      %v5536 = vadd.f32 %v5338, %v5448
      %v5537 = vadd.f32 %v5339, %v5453
      %v5538 = vadd.f32 %v5340, %v5456
      %v5539 = vadd.f32 %v5341, %v5461
      %v5540 = vadd.f32 %v5342, %v5464
      %v5541 = vadd.f32 %v5343, %v5469
      %v5542 = vadd.f32 %v5344, %v5472
      %v5543 = vadd.f32 %v5345, %v5477
      %v5544 = vadd.f32 %v5346, %v5480
      %v5545 = vadd.f32 %v5347, %v5485
      %v5546 = vadd.f32 %v5348, %v5488
      %v5547 = vadd.f32 %v5349, %v5493
      %v5548 = vadd.f32 %v5350, %v5496
      %v5549 = vadd.f32 %v5351, %v5501
      %v5550 = vadd.f32 %v5352, %v5504
      %v5551 = vadd.f32 %v5353, %v5509
      %v5552 = vadd.f32 %v5354, %v5512
      %v5553 = vadd.f32 %v5355, %v5517
      %v5554 = vadd.f32 %v5356, %v5520
      %s5555 = scalar_lea.vmem %s4, 14
      %v5556 = vld [vmem:[%s5555] sm:$0x3]
      %v5558 = vsel %vm564, %v5556, 0
      %5560 = vmatprep.subr.bf16.mxu0 0
      %5561 = vmatpush1.bf16.msra.mxu0 0
      %5562 = vmatprep.subr.bf16.mxu0 0
      %5563 = vmatpush1.bf16.msra.mxu0 0
      %5564 = vmatprep.subr.bf16.mxu0 0
      %5565 = vmatpush1.bf16.msra.mxu0 0
      %5566 = vmatprep.subr.bf16.mxu0 0
      %5567 = vmatpush1.bf16.msra.mxu0 0
      %5568 = vmatprep.subr.bf16.mxu0 0
      %5569 = vmatpush1.bf16.msra.mxu0 0
      %5570 = vmatprep.subr.bf16.mxu0 0
      %5571 = vmatpush1.bf16.msra.mxu0 0
      %5572 = vmatprep.subr.bf16.mxu0 0
      %5573 = vmatpush1.bf16.msra.mxu0 0
      %5574 = vmatprep.subr.bf16.mxu0 0
      %5575 = vmatpush1.bf16.msra.mxu0 %v5558
      %5576 = vmatprep.subr.bf16.mxu0 0
      %5577 = vmatpush2.bf16.msra.mxu0 0
      %5578 = vmatprep.subr.bf16.mxu0 0
      %5579 = vmatpush2.bf16.msra.mxu0 0
      %5580 = vmatprep.subr.bf16.mxu0 0
      %5581 = vmatpush2.bf16.msra.mxu0 0
      %5582 = vmatprep.subr.bf16.mxu0 0
      %5583 = vmatpush2.bf16.msra.mxu0 0
      %5584 = vmatprep.subr.bf16.mxu0 0
      %5585 = vmatpush2.bf16.msra.mxu0 0
      %5586 = vmatprep.subr.bf16.mxu0 0
      %5587 = vmatpush2.bf16.msra.mxu0 0
      %5588 = vmatprep.subr.bf16.mxu0 0
      %5589 = vmatpush2.bf16.msra.mxu0 0
      %5590 = vmatprep.subr.bf16.mxu0 0
      %5591 = vmatpush2.bf16.msra.mxu0 0
      %5592 = vmatprep.mubr.bf16.mxu0 0
      %5593 = vmatmul.mubr.bf16.gmra.mxu0 %v3976
      %v5594 = vpop.f32.mrf.mxu0
      %v5595 = vadd.f32 0.0, %v5594
      %v5596 = vpop.f32.mrf.mxu0
      %v5597 = vpop.f32.mrf.mxu0
      %v5598 = vadd.f32 0.0, %v5597
      %v5599 = vpop.f32.mrf.mxu0
      %5600 = vmatprep.mubr.bf16.mxu0 0
      %5601 = vmatmul.mubr.bf16.gmra.mxu0 %v3979
      %v5602 = vpop.f32.mrf.mxu0
      %v5603 = vadd.f32 0.0, %v5602
      %v5604 = vpop.f32.mrf.mxu0
      %v5605 = vpop.f32.mrf.mxu0
      %v5606 = vadd.f32 0.0, %v5605
      %v5607 = vpop.f32.mrf.mxu0
      %5608 = vmatprep.mubr.bf16.mxu0 0
      %5609 = vmatmul.mubr.bf16.gmra.mxu0 %v3982
      %v5610 = vpop.f32.mrf.mxu0
      %v5611 = vadd.f32 0.0, %v5610
      %v5612 = vpop.f32.mrf.mxu0
      %v5613 = vpop.f32.mrf.mxu0
      %v5614 = vadd.f32 0.0, %v5613
      %v5615 = vpop.f32.mrf.mxu0
      %5616 = vmatprep.mubr.bf16.mxu0 0
      %5617 = vmatmul.mubr.bf16.gmra.mxu0 %v3985
      %v5618 = vpop.f32.mrf.mxu0
      %v5619 = vadd.f32 0.0, %v5618
      %v5620 = vpop.f32.mrf.mxu0
      %v5621 = vpop.f32.mrf.mxu0
      %v5622 = vadd.f32 0.0, %v5621
      %v5623 = vpop.f32.mrf.mxu0
      %5624 = vmatprep.mubr.bf16.mxu0 0
      %5625 = vmatmul.mubr.bf16.gmra.mxu0 %v3988
      %v5626 = vpop.f32.mrf.mxu0
      %v5627 = vadd.f32 0.0, %v5626
      %v5628 = vpop.f32.mrf.mxu0
      %v5629 = vpop.f32.mrf.mxu0
      %v5630 = vadd.f32 0.0, %v5629
      %v5631 = vpop.f32.mrf.mxu0
      %5632 = vmatprep.mubr.bf16.mxu0 0
      %5633 = vmatmul.mubr.bf16.gmra.mxu0 %v3991
      %v5634 = vpop.f32.mrf.mxu0
      %v5635 = vadd.f32 0.0, %v5634
      %v5636 = vpop.f32.mrf.mxu0
      %v5637 = vpop.f32.mrf.mxu0
      %v5638 = vadd.f32 0.0, %v5637
      %v5639 = vpop.f32.mrf.mxu0
      %5640 = vmatprep.mubr.bf16.mxu0 0
      %5641 = vmatmul.mubr.bf16.gmra.mxu0 %v3994
      %v5642 = vpop.f32.mrf.mxu0
      %v5643 = vadd.f32 0.0, %v5642
      %v5644 = vpop.f32.mrf.mxu0
      %v5645 = vpop.f32.mrf.mxu0
      %v5646 = vadd.f32 0.0, %v5645
      %v5647 = vpop.f32.mrf.mxu0
      %5648 = vmatprep.mubr.bf16.mxu0 0
      %5649 = vmatmul.mubr.bf16.gmra.mxu0 %v3997
      %v5650 = vpop.f32.mrf.mxu0
      %v5651 = vadd.f32 0.0, %v5650
      %v5652 = vpop.f32.mrf.mxu0
      %v5653 = vpop.f32.mrf.mxu0
      %v5654 = vadd.f32 0.0, %v5653
      %v5655 = vpop.f32.mrf.mxu0
      %5656 = vmatprep.mubr.bf16.mxu0 0
      %5657 = vmatmul.mubr.bf16.gmra.mxu0 %v4000
      %v5658 = vpop.f32.mrf.mxu0
      %v5659 = vadd.f32 0.0, %v5658
      %v5660 = vpop.f32.mrf.mxu0
      %v5661 = vpop.f32.mrf.mxu0
      %v5662 = vadd.f32 0.0, %v5661
      %v5663 = vpop.f32.mrf.mxu0
      %5664 = vmatprep.mubr.bf16.mxu0 0
      %5665 = vmatmul.mubr.bf16.gmra.mxu0 %v4003
      %v5666 = vpop.f32.mrf.mxu0
      %v5667 = vadd.f32 0.0, %v5666
      %v5668 = vpop.f32.mrf.mxu0
      %v5669 = vpop.f32.mrf.mxu0
      %v5670 = vadd.f32 0.0, %v5669
      %v5671 = vpop.f32.mrf.mxu0
      %5672 = vmatprep.mubr.bf16.mxu0 0
      %5673 = vmatmul.mubr.bf16.gmra.mxu0 %v4006
      %v5674 = vpop.f32.mrf.mxu0
      %v5675 = vadd.f32 0.0, %v5674
      %v5676 = vpop.f32.mrf.mxu0
      %v5677 = vpop.f32.mrf.mxu0
      %v5678 = vadd.f32 0.0, %v5677
      %v5679 = vpop.f32.mrf.mxu0
      %5680 = vmatprep.mubr.bf16.mxu0 0
      %5681 = vmatmul.mubr.bf16.gmra.mxu0 %v4009
      %v5682 = vpop.f32.mrf.mxu0
      %v5683 = vadd.f32 0.0, %v5682
      %v5684 = vpop.f32.mrf.mxu0
      %v5685 = vpop.f32.mrf.mxu0
      %v5686 = vadd.f32 0.0, %v5685
      %v5687 = vpop.f32.mrf.mxu0
      %5688 = vmatprep.mubr.bf16.mxu0 0
      %5689 = vmatmul.mubr.bf16.gmra.mxu0 %v4012
      %v5690 = vpop.f32.mrf.mxu0
      %v5691 = vadd.f32 0.0, %v5690
      %v5692 = vpop.f32.mrf.mxu0
      %v5693 = vpop.f32.mrf.mxu0
      %v5694 = vadd.f32 0.0, %v5693
      %v5695 = vpop.f32.mrf.mxu0
      %5696 = vmatprep.mubr.bf16.mxu0 0
      %5697 = vmatmul.mubr.bf16.gmra.mxu0 %v4015
      %v5698 = vpop.f32.mrf.mxu0
      %v5699 = vadd.f32 0.0, %v5698
      %v5700 = vpop.f32.mrf.mxu0
      %v5701 = vpop.f32.mrf.mxu0
      %v5702 = vadd.f32 0.0, %v5701
      %v5703 = vpop.f32.mrf.mxu0
      %5704 = vmatprep.mubr.bf16.mxu0 0
      %5705 = vmatmul.mubr.bf16.gmra.mxu0 %v4952
      %v5706 = vpop.f32.mrf.mxu0
      %v5707 = vadd.f32 0.0, %v5706
      %v5708 = vpop.f32.mrf.mxu0
      %v5709 = vpop.f32.mrf.mxu0
      %v5710 = vadd.f32 0.0, %v5709
      %v5711 = vpop.f32.mrf.mxu0
      %5712 = vmatprep.mubr.bf16.mxu0 0
      %5713 = vmatmul.mubr.bf16.gmra.mxu0 %v517
      %v5714 = vpop.f32.mrf.mxu0
      %v5715 = vadd.f32 0.0, %v5714
      %v5716 = vpop.f32.mrf.mxu0
      %v5717 = vpop.f32.mrf.mxu0
      %v5718 = vadd.f32 0.0, %v5717
      %v5719 = vpop.f32.mrf.mxu0
      %5720 = vdwg.mxu0
      %v5721 = vadd.f32 %v5523, %v5595
      %v5722 = vadd.f32 %v5524, %v5598
      %v5723 = vadd.f32 %v5525, %v5603
      %v5724 = vadd.f32 %v5526, %v5606
      %v5725 = vadd.f32 %v5527, %v5611
      %v5726 = vadd.f32 %v5528, %v5614
      %v5727 = vadd.f32 %v5529, %v5619
      %v5728 = vadd.f32 %v5530, %v5622
      %v5729 = vadd.f32 %v5531, %v5627
      %v5730 = vadd.f32 %v5532, %v5630
      %v5731 = vadd.f32 %v5533, %v5635
      %v5732 = vadd.f32 %v5534, %v5638
      %v5733 = vadd.f32 %v5535, %v5643
      %v5734 = vadd.f32 %v5536, %v5646
      %v5735 = vadd.f32 %v5537, %v5651
      %v5736 = vadd.f32 %v5538, %v5654
      %v5737 = vadd.f32 %v5539, %v5659
      %v5738 = vadd.f32 %v5540, %v5662
      %v5739 = vadd.f32 %v5541, %v5667
      %v5740 = vadd.f32 %v5542, %v5670
      %v5741 = vadd.f32 %v5543, %v5675
      %v5742 = vadd.f32 %v5544, %v5678
      %v5743 = vadd.f32 %v5545, %v5683
      %v5744 = vadd.f32 %v5546, %v5686
      %v5745 = vadd.f32 %v5547, %v5691
      %v5746 = vadd.f32 %v5548, %v5694
      %v5747 = vadd.f32 %v5549, %v5699
      %v5748 = vadd.f32 %v5550, %v5702
      %v5749 = vadd.f32 %v5551, %v5707
      %v5750 = vadd.f32 %v5552, %v5710
      %v5751 = vadd.f32 %v5553, %v5715
      %v5752 = vadd.f32 %v5554, %v5718
      %s5753 = scalar_lea.vmem %s4, 16
      %v5754 = vld [vmem:[%s5753] sm:$0x3]
      %v5756 = vsel %vm564, %v5754, 0
      %5758 = vmatprep.subr.bf16.mxu0 0
      %5759 = vmatpush1.bf16.msra.mxu0 0
      %5760 = vmatprep.subr.bf16.mxu0 0
      %5761 = vmatpush1.bf16.msra.mxu0 0
      %5762 = vmatprep.subr.bf16.mxu0 0
      %5763 = vmatpush1.bf16.msra.mxu0 0
      %5764 = vmatprep.subr.bf16.mxu0 0
      %5765 = vmatpush1.bf16.msra.mxu0 0
      %5766 = vmatprep.subr.bf16.mxu0 0
      %5767 = vmatpush1.bf16.msra.mxu0 0
      %5768 = vmatprep.subr.bf16.mxu0 0
      %5769 = vmatpush1.bf16.msra.mxu0 0
      %5770 = vmatprep.subr.bf16.mxu0 0
      %5771 = vmatpush1.bf16.msra.mxu0 0
      %5772 = vmatprep.subr.bf16.mxu0 0
      %5773 = vmatpush1.bf16.msra.mxu0 %v5756
      %5774 = vmatprep.subr.bf16.mxu0 0
      %5775 = vmatpush2.bf16.msra.mxu0 0
      %5776 = vmatprep.subr.bf16.mxu0 0
      %5777 = vmatpush2.bf16.msra.mxu0 0
      %5778 = vmatprep.subr.bf16.mxu0 0
      %5779 = vmatpush2.bf16.msra.mxu0 0
      %5780 = vmatprep.subr.bf16.mxu0 0
      %5781 = vmatpush2.bf16.msra.mxu0 0
      %5782 = vmatprep.subr.bf16.mxu0 0
      %5783 = vmatpush2.bf16.msra.mxu0 0
      %5784 = vmatprep.subr.bf16.mxu0 0
      %5785 = vmatpush2.bf16.msra.mxu0 0
      %5786 = vmatprep.subr.bf16.mxu0 0
      %5787 = vmatpush2.bf16.msra.mxu0 0
      %5788 = vmatprep.subr.bf16.mxu0 0
      %5789 = vmatpush2.bf16.msra.mxu0 0
      %5790 = vmatprep.mubr.bf16.mxu0 0
      %5791 = vmatmul.mubr.bf16.gmra.mxu0 %v4502
      %v5792 = vpop.f32.mrf.mxu0
      %v5793 = vadd.f32 0.0, %v5792
      %v5794 = vpop.f32.mrf.mxu0
      %v5795 = vpop.f32.mrf.mxu0
      %v5796 = vadd.f32 0.0, %v5795
      %v5797 = vpop.f32.mrf.mxu0
      %5798 = vmatprep.mubr.bf16.mxu0 0
      %5799 = vmatmul.mubr.bf16.gmra.mxu0 %v4505
      %v5800 = vpop.f32.mrf.mxu0
      %v5801 = vadd.f32 0.0, %v5800
      %v5802 = vpop.f32.mrf.mxu0
      %v5803 = vpop.f32.mrf.mxu0
      %v5804 = vadd.f32 0.0, %v5803
      %v5805 = vpop.f32.mrf.mxu0
      %5806 = vmatprep.mubr.bf16.mxu0 0
      %5807 = vmatmul.mubr.bf16.gmra.mxu0 %v4508
      %v5808 = vpop.f32.mrf.mxu0
      %v5809 = vadd.f32 0.0, %v5808
      %v5810 = vpop.f32.mrf.mxu0
      %v5811 = vpop.f32.mrf.mxu0
      %v5812 = vadd.f32 0.0, %v5811
      %v5813 = vpop.f32.mrf.mxu0
      %5814 = vmatprep.mubr.bf16.mxu0 0
      %5815 = vmatmul.mubr.bf16.gmra.mxu0 %v4511
      %v5816 = vpop.f32.mrf.mxu0
      %v5817 = vadd.f32 0.0, %v5816
      %v5818 = vpop.f32.mrf.mxu0
      %v5819 = vpop.f32.mrf.mxu0
      %v5820 = vadd.f32 0.0, %v5819
      %v5821 = vpop.f32.mrf.mxu0
      %5822 = vmatprep.mubr.bf16.mxu0 0
      %5823 = vmatmul.mubr.bf16.gmra.mxu0 %v4514
      %v5824 = vpop.f32.mrf.mxu0
      %v5825 = vadd.f32 0.0, %v5824
      %v5826 = vpop.f32.mrf.mxu0
      %v5827 = vpop.f32.mrf.mxu0
      %v5828 = vadd.f32 0.0, %v5827
      %v5829 = vpop.f32.mrf.mxu0
      %5830 = vmatprep.mubr.bf16.mxu0 0
      %5831 = vmatmul.mubr.bf16.gmra.mxu0 %v4517
      %v5832 = vpop.f32.mrf.mxu0
      %v5833 = vadd.f32 0.0, %v5832
      %v5834 = vpop.f32.mrf.mxu0
      %v5835 = vpop.f32.mrf.mxu0
      %v5836 = vadd.f32 0.0, %v5835
      %v5837 = vpop.f32.mrf.mxu0
      %5838 = vmatprep.mubr.bf16.mxu0 0
      %5839 = vmatmul.mubr.bf16.gmra.mxu0 %v4520
      %v5840 = vpop.f32.mrf.mxu0
      %v5841 = vadd.f32 0.0, %v5840
      %v5842 = vpop.f32.mrf.mxu0
      %v5843 = vpop.f32.mrf.mxu0
      %v5844 = vadd.f32 0.0, %v5843
      %v5845 = vpop.f32.mrf.mxu0
      %5846 = vmatprep.mubr.bf16.mxu0 0
      %5847 = vmatmul.mubr.bf16.gmra.mxu0 %v4523
      %v5848 = vpop.f32.mrf.mxu0
      %v5849 = vadd.f32 0.0, %v5848
      %v5850 = vpop.f32.mrf.mxu0
      %v5851 = vpop.f32.mrf.mxu0
      %v5852 = vadd.f32 0.0, %v5851
      %v5853 = vpop.f32.mrf.mxu0
      %5854 = vmatprep.mubr.bf16.mxu0 0
      %5855 = vmatmul.mubr.bf16.gmra.mxu0 %v4526
      %v5856 = vpop.f32.mrf.mxu0
      %v5857 = vadd.f32 0.0, %v5856
      %v5858 = vpop.f32.mrf.mxu0
      %v5859 = vpop.f32.mrf.mxu0
      %v5860 = vadd.f32 0.0, %v5859
      %v5861 = vpop.f32.mrf.mxu0
      %5862 = vmatprep.mubr.bf16.mxu0 0
      %5863 = vmatmul.mubr.bf16.gmra.mxu0 %v4529
      %v5864 = vpop.f32.mrf.mxu0
      %v5865 = vadd.f32 0.0, %v5864
      %v5866 = vpop.f32.mrf.mxu0
      %v5867 = vpop.f32.mrf.mxu0
      %v5868 = vadd.f32 0.0, %v5867
      %v5869 = vpop.f32.mrf.mxu0
      %5870 = vmatprep.mubr.bf16.mxu0 0
      %5871 = vmatmul.mubr.bf16.gmra.mxu0 %v4532
      %v5872 = vpop.f32.mrf.mxu0
      %v5873 = vadd.f32 0.0, %v5872
      %v5874 = vpop.f32.mrf.mxu0
      %v5875 = vpop.f32.mrf.mxu0
      %v5876 = vadd.f32 0.0, %v5875
      %v5877 = vpop.f32.mrf.mxu0
      %5878 = vmatprep.mubr.bf16.mxu0 0
      %5879 = vmatmul.mubr.bf16.gmra.mxu0 %v4535
      %v5880 = vpop.f32.mrf.mxu0
      %v5881 = vadd.f32 0.0, %v5880
      %v5882 = vpop.f32.mrf.mxu0
      %v5883 = vpop.f32.mrf.mxu0
      %v5884 = vadd.f32 0.0, %v5883
      %v5885 = vpop.f32.mrf.mxu0
      %5886 = vmatprep.mubr.bf16.mxu0 0
      %5887 = vmatmul.mubr.bf16.gmra.mxu0 %v4538
      %v5888 = vpop.f32.mrf.mxu0
      %v5889 = vadd.f32 0.0, %v5888
      %v5890 = vpop.f32.mrf.mxu0
      %v5891 = vpop.f32.mrf.mxu0
      %v5892 = vadd.f32 0.0, %v5891
      %v5893 = vpop.f32.mrf.mxu0
      %5894 = vmatprep.mubr.bf16.mxu0 0
      %5895 = vmatmul.mubr.bf16.gmra.mxu0 %v4541
      %v5896 = vpop.f32.mrf.mxu0
      %v5897 = vadd.f32 0.0, %v5896
      %v5898 = vpop.f32.mrf.mxu0
      %v5899 = vpop.f32.mrf.mxu0
      %v5900 = vadd.f32 0.0, %v5899
      %v5901 = vpop.f32.mrf.mxu0
      %5902 = vmatprep.mubr.bf16.mxu0 0
      %5903 = vmatmul.mubr.bf16.gmra.mxu0 %v5159
      %v5904 = vpop.f32.mrf.mxu0
      %v5905 = vadd.f32 0.0, %v5904
      %v5906 = vpop.f32.mrf.mxu0
      %v5907 = vpop.f32.mrf.mxu0
      %v5908 = vadd.f32 0.0, %v5907
      %v5909 = vpop.f32.mrf.mxu0
      %5910 = vmatprep.mubr.bf16.mxu0 0
      %5911 = vmatmul.mubr.bf16.gmra.mxu0 %v517
      %v5912 = vpop.f32.mrf.mxu0
      %v5913 = vadd.f32 0.0, %v5912
      %v5914 = vpop.f32.mrf.mxu0
      %v5915 = vpop.f32.mrf.mxu0
      %v5916 = vadd.f32 0.0, %v5915
      %v5917 = vpop.f32.mrf.mxu0
      %5918 = vdwg.mxu0
      %v5919 = vadd.f32 %v5721, %v5793
      %v5920 = vadd.f32 %v5722, %v5796
      %v5921 = vadd.f32 %v5723, %v5801
      %v5922 = vadd.f32 %v5724, %v5804
      %v5923 = vadd.f32 %v5725, %v5809
      %v5924 = vadd.f32 %v5726, %v5812
      %v5925 = vadd.f32 %v5727, %v5817
      %v5926 = vadd.f32 %v5728, %v5820
      %v5927 = vadd.f32 %v5729, %v5825
      %v5928 = vadd.f32 %v5730, %v5828
      %v5929 = vadd.f32 %v5731, %v5833
      %v5930 = vadd.f32 %v5732, %v5836
      %v5931 = vadd.f32 %v5733, %v5841
      %v5932 = vadd.f32 %v5734, %v5844
      %v5933 = vadd.f32 %v5735, %v5849
      %v5934 = vadd.f32 %v5736, %v5852
      %v5935 = vadd.f32 %v5737, %v5857
      %v5936 = vadd.f32 %v5738, %v5860
      %v5937 = vadd.f32 %v5739, %v5865
      %v5938 = vadd.f32 %v5740, %v5868
      %v5939 = vadd.f32 %v5741, %v5873
      %v5940 = vadd.f32 %v5742, %v5876
      %v5941 = vadd.f32 %v5743, %v5881
      %v5942 = vadd.f32 %v5744, %v5884
      %v5943 = vadd.f32 %v5745, %v5889
      %v5944 = vadd.f32 %v5746, %v5892
      %v5945 = vadd.f32 %v5747, %v5897
      %v5946 = vadd.f32 %v5748, %v5900
      %v5947 = vadd.f32 %v5749, %v5905
      %v5948 = vadd.f32 %v5750, %v5908
      %v5949 = vadd.f32 %v5751, %v5913
      %v5950 = vadd.f32 %v5752, %v5916
      %v5951 = vld [vmem:[%s5] sm:$0x1]
      %v5953 = vlaneseq
      %v5954 = vshrl.u32 %v5953, 7
      %v5955 = vsub.s32 0, %v5954
      %v5956 = vrot.slane %v5951, %v5955
      %v5958 = vmul.f32 %v5919, %v5956
      %v5959 = vmul.f32 %v5920, %v5956
      %v5960 = vmul.f32 %v5921, %v5956
      %v5961 = vmul.f32 %v5922, %v5956
      %v5962 = vmul.f32 %v5923, %v5956
      %v5963 = vmul.f32 %v5924, %v5956
      %v5964 = vmul.f32 %v5925, %v5956
      %v5965 = vmul.f32 %v5926, %v5956
      %v5966 = vmul.f32 %v5927, %v5956
      %v5967 = vmul.f32 %v5928, %v5956
      %v5968 = vmul.f32 %v5929, %v5956
      %v5969 = vmul.f32 %v5930, %v5956
      %v5970 = vmul.f32 %v5931, %v5956
      %v5971 = vmul.f32 %v5932, %v5956
      %v5972 = vmul.f32 %v5933, %v5956
      %v5973 = vmul.f32 %v5934, %v5956
      %v5974 = vmul.f32 %v5935, %v5956
      %v5975 = vmul.f32 %v5936, %v5956
      %v5976 = vmul.f32 %v5937, %v5956
      %v5977 = vmul.f32 %v5938, %v5956
      %v5978 = vmul.f32 %v5939, %v5956
      %v5979 = vmul.f32 %v5940, %v5956
      %v5980 = vmul.f32 %v5941, %v5956
      %v5981 = vmul.f32 %v5942, %v5956
      %v5982 = vmul.f32 %v5943, %v5956
      %v5983 = vmul.f32 %v5944, %v5956
      %v5984 = vmul.f32 %v5945, %v5956
      %v5985 = vmul.f32 %v5946, %v5956
      %v5986 = vmul.f32 %v5947, %v5956
      %v5987 = vmul.f32 %v5948, %v5956
      %v5988 = vmul.f32 %v5949, %v5956
      %v5989 = vmul.f32 %v5950, %v5956
      %v5990 = vld [vmem:[%s6] sm:$0x1]
      %v5992 = vlaneseq
      %v5993 = vshrl.u32 %v5992, 7
      %v5994 = vsub.s32 0, %v5993
      %v5995 = vrot.slane %v5990, %v5994
      %v5997 = vadd.f32 %v5958, %v5995
      %v5998 = vadd.f32 %v5959, %v5995
      %v5999 = vadd.f32 %v5960, %v5995
      %v6000 = vadd.f32 %v5961, %v5995
      %v6001 = vadd.f32 %v5962, %v5995
      %v6002 = vadd.f32 %v5963, %v5995
      %v6003 = vadd.f32 %v5964, %v5995
      %v6004 = vadd.f32 %v5965, %v5995
      %v6005 = vadd.f32 %v5966, %v5995
      %v6006 = vadd.f32 %v5967, %v5995
      %v6007 = vadd.f32 %v5968, %v5995
      %v6008 = vadd.f32 %v5969, %v5995
      %v6009 = vadd.f32 %v5970, %v5995
      %v6010 = vadd.f32 %v5971, %v5995
      %v6011 = vadd.f32 %v5972, %v5995
      %v6012 = vadd.f32 %v5973, %v5995
      %v6013 = vadd.f32 %v5974, %v5995
      %v6014 = vadd.f32 %v5975, %v5995
      %v6015 = vadd.f32 %v5976, %v5995
      %v6016 = vadd.f32 %v5977, %v5995
      %v6017 = vadd.f32 %v5978, %v5995
      %v6018 = vadd.f32 %v5979, %v5995
      %v6019 = vadd.f32 %v5980, %v5995
      %v6020 = vadd.f32 %v5981, %v5995
      %v6021 = vadd.f32 %v5982, %v5995
      %v6022 = vadd.f32 %v5983, %v5995
      %v6023 = vadd.f32 %v5984, %v5995
      %v6024 = vadd.f32 %v5985, %v5995
      %v6025 = vadd.f32 %v5986, %v5995
      %v6026 = vadd.f32 %v5987, %v5995
      %v6027 = vadd.f32 %v5988, %v5995
      %v6028 = vadd.f32 %v5989, %v5995
      %v6029 = vmax.f32 %v5997, 0.0
      %v6030 = vmax.f32 %v5998, 0.0
      %v6031 = vmax.f32 %v5999, 0.0
      %v6032 = vmax.f32 %v6000, 0.0
      %v6033 = vmax.f32 %v6001, 0.0
      %v6034 = vmax.f32 %v6002, 0.0
      %v6035 = vmax.f32 %v6003, 0.0
      %v6036 = vmax.f32 %v6004, 0.0
      %v6037 = vmax.f32 %v6005, 0.0
      %v6038 = vmax.f32 %v6006, 0.0
      %v6039 = vmax.f32 %v6007, 0.0
      %v6040 = vmax.f32 %v6008, 0.0
      %v6041 = vmax.f32 %v6009, 0.0
      %v6042 = vmax.f32 %v6010, 0.0
      %v6043 = vmax.f32 %v6011, 0.0
      %v6044 = vmax.f32 %v6012, 0.0
      %v6045 = vmax.f32 %v6013, 0.0
      %v6046 = vmax.f32 %v6014, 0.0
      %v6047 = vmax.f32 %v6015, 0.0
      %v6048 = vmax.f32 %v6016, 0.0
      %v6049 = vmax.f32 %v6017, 0.0
      %v6050 = vmax.f32 %v6018, 0.0
      %v6051 = vmax.f32 %v6019, 0.0
      %v6052 = vmax.f32 %v6020, 0.0
      %v6053 = vmax.f32 %v6021, 0.0
      %v6054 = vmax.f32 %v6022, 0.0
      %v6055 = vmax.f32 %v6023, 0.0
      %v6056 = vmax.f32 %v6024, 0.0
      %v6057 = vmax.f32 %v6025, 0.0
      %v6058 = vmax.f32 %v6026, 0.0
      %v6059 = vmax.f32 %v6027, 0.0
      %v6060 = vmax.f32 %v6028, 0.0
      %6061 = vst.msk [vmem:[%s278] sm:$0xff] %vm515, %v6029
      %6062 = vst.msk [vmem:[%s278 + $0x8] sm:$0xff] %vm515, %v6030
      %6063 = vst.msk [vmem:[%s278 + $0x10] sm:$0xff] %vm515, %v6031
      %6064 = vst.msk [vmem:[%s278 + $0x18] sm:$0xff] %vm515, %v6032
      %6065 = vst.msk [vmem:[%s278 + $0x20] sm:$0xff] %vm515, %v6033
      %6066 = vst.msk [vmem:[%s278 + $0x28] sm:$0xff] %vm515, %v6034
      %6067 = vst.msk [vmem:[%s278 + $0x30] sm:$0xff] %vm515, %v6035
      %6068 = vst.msk [vmem:[%s278 + $0x38] sm:$0xff] %vm515, %v6036
      %6069 = vst.msk [vmem:[%s278 + $0x40] sm:$0xff] %vm515, %v6037
      %6070 = vst.msk [vmem:[%s278 + $0x48] sm:$0xff] %vm515, %v6038
      %6071 = vst.msk [vmem:[%s278 + $0x50] sm:$0xff] %vm515, %v6039
      %6072 = vst.msk [vmem:[%s278 + $0x58] sm:$0xff] %vm515, %v6040
      %6073 = vst.msk [vmem:[%s278 + $0x60] sm:$0xff] %vm515, %v6041
      %6074 = vst.msk [vmem:[%s278 + $0x68] sm:$0xff] %vm515, %v6042
      %6075 = vst.msk [vmem:[%s278 + $0x70] sm:$0xff] %vm515, %v6043
      %6076 = vst.msk [vmem:[%s278 + $0x78] sm:$0xff] %vm515, %v6044
      %6077 = vst.msk [vmem:[%s278 + $0x80] sm:$0xff] %vm515, %v6045
      %6078 = vst.msk [vmem:[%s278 + $0x88] sm:$0xff] %vm515, %v6046
      %6079 = vst.msk [vmem:[%s278 + $0x90] sm:$0xff] %vm515, %v6047
      %6080 = vst.msk [vmem:[%s278 + $0x98] sm:$0xff] %vm515, %v6048
      %6081 = vst.msk [vmem:[%s278 + $0xa0] sm:$0xff] %vm515, %v6049
      %6082 = vst.msk [vmem:[%s278 + $0xa8] sm:$0xff] %vm515, %v6050
      %6083 = vst.msk [vmem:[%s278 + $0xb0] sm:$0xff] %vm515, %v6051
      %6084 = vst.msk [vmem:[%s278 + $0xb8] sm:$0xff] %vm515, %v6052
      %6085 = vst.msk [vmem:[%s278 + $0xc0] sm:$0xff] %vm515, %v6053
      %6086 = vst.msk [vmem:[%s278 + $0xc8] sm:$0xff] %vm515, %v6054
      %6087 = vst.msk [vmem:[%s278 + $0xd0] sm:$0xff] %vm515, %v6055
      %6088 = vst.msk [vmem:[%s278 + $0xd8] sm:$0xff] %vm515, %v6056
      %6089 = vst.msk [vmem:[%s278 + $0xe0] sm:$0xff] %vm515, %v6057
      %6090 = vst.msk [vmem:[%s278 + $0xe8] sm:$0xff] %vm515, %v6058
      %6091 = vst.msk [vmem:[%s278 + $0xf0] sm:$0xff] %vm515, %v6059
      %6092 = vst.msk [vmem:[%s278 + $0xf8] sm:$0xff] %vm515, %v6060
      %p6093 = scmp.lt.s32.totalorder %s18, 1
      %s6094 = scalar_select %p6093, %s18, 1
      %s6095 = smul.addr %s6094, 32
      %s6096 = smul.addr %s6095, 8
      %s6097 = scalar_lea.vmem %s7, %s6096
      // Predicated region
      $region49: #{nl_block_apply.1} parent=47 // pred_check
        %p6098 = pneg %p188
      $region50: #{nl_block_apply.1} parent=47 // pred_check_branch
        %6100 = sbr.rel (%p6098) target = $region52
      $region51: #{nl_block_apply.1} parent=47 // pred_region
        _
      $region52: #{nl_block_apply.1} parent=47 // pred_fallthru
        _
    $region48: #{nl_block_apply.1} parent=5 // pred_fallthru
      _
    %p6101 = scmp.le.s32.totalorder 2, %s13
    // Predicated region
    $region53: #{nl_block_apply.1} parent=5 // pred_check
      %p6102 = pneg %p6101
    $region54: #{nl_block_apply.1} parent=5 // pred_check_branch
      %6104 = sbr.rel (%p6102) target = $region56
    $region55: #{nl_block_apply.1} parent=5 // pred_region
      %s6105 = ssub.s32 %s13, 2
      // Predicated region
      $region57: #{nl_block_apply.1} parent=55 // pred_check
        %p6106 = pneg %p194
      $region58: #{nl_block_apply.1} parent=55 // pred_check_branch
        %6108 = sbr.rel (%p6106) target = $region60
      $region59: #{nl_block_apply.1} parent=55 // pred_region
        %p6109 = scmp.lt.s32.totalorder %s19, 1
        %s6110 = scalar_select %p6109, %s19, 1
        %s6111 = smul.addr %s6110, 32
        %s6112 = smul.addr %s6111, 8
        %s6113 = scalar_lea.vmem %s7, %s6112
      $region60: #{nl_block_apply.1} parent=55 // pred_fallthru
        _
    $region56: #{nl_block_apply.1} parent=5 // pred_fallthru
      _
  $region6: #{nl_block_apply.1} parent=0 // loop_footer
    %s17 = sadd.s32 1, %s13
  $region7: #{nl_block_apply.1} parent=0 // loop_footer_branch
    %12 = sbr.rel target = $region3
  $region8: #{nl_block_apply.1} parent=0 // loop_exit
    _

</llo_original>
